<compile_context>
chip_gen: v6e
topology: v6e:2x2x1
jax: 0.10.0
libtpu: 0.0.40
codegen_flags: <defaults>
</compile_context>

<pallas_src>
import jax
import jax.numpy as jnp
from jax import lax
from jax.experimental import pallas as pl
from jax.experimental.pallas import tpu as pltpu

NUM_CLASS = 21
DIM = NUM_CLASS
PATCH = 15
SPECTRAL = 30                    # conv2d expects 8*28 in-channels -> 30 spectral bands
SEQ = (PATCH - 4) ** 2 + 1       # 122 tokens (cls + 121 spiral positions)
LPAD = 128                       # sequence length padded to a full lane tile
MLP_HIDDEN = 8
SLOT = 128                       # aligned slot width for the fused S6 projections
EPS_BN = 1e-5
EPS_LN = 1e-5
VMEM_LIMIT = 32 * 1024 * 1024    # explicit scoped-VMEM limit, uniform across v5e/v6e/v7x


def _cdiv(a, b):
    return -(-a // b)


# --------------------------------------------------------------------------
# Pallas kernel 1: lane-dense conv GEMM  (Cout, K) @ (K, M_tile)   [bf16 MXU]
#                  with fused (eval) BatchNorm scale/shift + ReLU epilogue (f32).
# --------------------------------------------------------------------------
def gemm_bn_relu_kernel(w_ref, p_ref, scale_ref, shift_ref, o_ref):
    acc = jnp.dot(w_ref[...], p_ref[...], preferred_element_type=jnp.float32)
    o_ref[...] = jnp.maximum(acc * scale_ref[...] + shift_ref[...], 0.0)


def _plan_col_tiles(K, M, elem_bytes=2, budget_bytes=8 << 20):
    """Column-tile plan: tm is a multiple of 128, the step count is even (>=2 when
    M spans more than one lane tile, for v7x's two TensorCores) and the
    double-buffered patch block stays inside the VMEM budget."""
    n128 = _cdiv(M, 128)
    per_tile = K * 128 * elem_bytes * 2            # double-buffered patch bytes / 128 cols
    max_tiles = max(1, budget_bytes // per_tile)
    steps = _cdiv(n128, max_tiles)
    if n128 >= 2:
        steps = max(steps, 2)
    if steps > 1 and steps % 2:
        steps += 1                                  # even step count balances 2 TCs
    tiles = _cdiv(n128, steps)
    tm = tiles * 128
    steps = _cdiv(n128, tiles)
    return tm, steps


def conv_gemm_T(wT, patchesT, scale, shift):
    """(N, K) @ (K, M) -> (N, M) with per-row BN scale/shift (conv bias folded) + ReLU."""
    N, K = wT.shape
    M = patchesT.shape[1]
    tm, steps = _plan_col_tiles(K, M)
    Mp = tm * steps
    w_bf = wT.astype(jnp.bfloat16)
    p_bf = patchesT.astype(jnp.bfloat16)
    if Mp != M:
        p_bf = jnp.pad(p_bf, ((0, 0), (0, Mp - M)))
    out = pl.pallas_call(
        gemm_bn_relu_kernel,
        out_shape=jax.ShapeDtypeStruct((N, Mp), jnp.float32),
        grid=(steps,),
        in_specs=[
            pl.BlockSpec((N, K), lambda i: (0, 0)),
            pl.BlockSpec((K, tm), lambda i: (0, i)),
            pl.BlockSpec((N, 1), lambda i: (0, 0)),
            pl.BlockSpec((N, 1), lambda i: (0, 0)),
        ],
        out_specs=pl.BlockSpec((N, tm), lambda i: (0, i)),
        compiler_params=pltpu.CompilerParams(
            dimension_semantics=("parallel",),
            vmem_limit_bytes=VMEM_LIMIT),
    )(w_bf, p_bf, scale.reshape(N, 1), shift.reshape(N, 1))
    return out[:, :M]


# --------------------------------------------------------------------------
# Pallas kernel 2: STMambaBlock (depth=1):
#   Residual(LN + S6_noC) -> AvgPool(L) -> Residual(LN + MLP)
# Feature-major layout: D=21 on sublanes, L (padded to 128) on lanes.
# One batch element per grid step (grid = B = 2 -> both v7x TCs busy).
# --------------------------------------------------------------------------
def stmamba_block_kernel(x_ref, wcatT_ref, bcatT_ref, lp_ref, vec_ref,
                         w1t_ref, w2t_ref, out_ref):
    D, LP = x_ref.shape                       # (21, 128)
    H = w1t_ref.shape[0]

    delta_p = lp_ref[0]                       # (D, LP)
    A_p = lp_ref[1]
    lmask = lp_ref[2]                         # 1.0 for t < SEQ else 0.0
    pos = lp_ref[3]                           # positional embedding (folded in here)

    vec = vec_ref[...]                        # (D, 8) packed per-feature vectors
    ln1_w, ln1_b = vec[:, 0:1], vec[:, 1:2]
    st_bias = vec[:, 2:3]
    ln2_w, ln2_b = vec[:, 3:4], vec[:, 4:5]
    mlp_b1 = vec[:H, 5:6]                     # (H, 1)
    mlp_b2 = vec[:, 6:7]

    # token sequence (cls + spiral tokens); padded steps stay exactly zero.
    x3 = x_ref[...] + pos                     # (D, LP)

    # --- LayerNormalize over the feature axis; padded steps forced to zero ---
    mu = jnp.mean(x3, axis=0, keepdims=True)
    var = jnp.mean((x3 - mu) ** 2, axis=0, keepdims=True)
    u = ((x3 - mu) * lax.rsqrt(var + EPS_LN) * ln1_w + ln1_b) * lmask

    # --- fused S6 projections (wB | wC | wdelta | wSToken), 128-row slots ---
    proj = jnp.dot(wcatT_ref[...], u, preferred_element_type=jnp.float32) + bcatT_ref[...]
    B0 = proj[0 * SLOT:0 * SLOT + D, :]       # slot starts are vreg-row aligned -> free
    C_ = proj[1 * SLOT:1 * SLOT + D, :]
    dlin = proj[2 * SLOT:2 * SLOT + D, :]
    stp = proj[3 * SLOT:3 * SLOT + D, :]

    z = jax.nn.sigmoid(u)
    delta = jax.nn.sigmoid(dlin + delta_p)
    a_t = delta * A_p                         # multiplicative scan coeff (0 on pad steps)
    b_t = delta * B0 * u                      # additive scan coeff       (0 on pad steps)
    cz = C_ * z * lmask                       # output gating, masked to 122 real steps

    # SToken: Linear commutes with the mean over L; ReLU -> Sigmoid -> + bias
    st = jax.nn.sigmoid(jnp.maximum(
        jnp.sum(stp * lmask, axis=1, keepdims=True) / float(SEQ), 0.0))    # (D, 1)
    t_pre = st + st_bias

    # state-independent terms of y_t, pre-reduced over L: sum_t (T_t*z_t + x_in_t)
    rest = jnp.sum(t_pre * u * z + x3, axis=1, keepdims=True)              # (D, 1)

    # --- associative (Hillis-Steele) inclusive scan of s_t = a_t*s_{t-1} + b_t ---
    # 7 dense passes over 3 vregs each; pltpu.roll follows jnp.roll semantics
    # (result[t] = x[t - shift]).
    col = lax.broadcasted_iota(jnp.int32, (D, LP), 1)
    a, b = a_t, b_t
    shift = 1
    while shift < LP:
        a_sh = pltpu.roll(a, shift=shift, axis=1)
        b_sh = pltpu.roll(b, shift=shift, axis=1)
        valid = col >= shift
        b = a * jnp.where(valid, b_sh, 0.0) + b
        a = a * jnp.where(valid, a_sh, 1.0)
        shift *= 2
    # b[:, t] == s_t; padded steps are masked out through cz.
    acc = jnp.sum(cz * b, axis=1, keepdims=True)                           # (D, 1)

    # residual + AdaptiveAvgPool1d(1) over the 122 real tokens
    pooled = (acc + rest) / float(SEQ)                                     # (D, 1)

    # --- LayerNormalize + MLP_Block + residual (dropout == identity in eval) ---
    mu2 = jnp.mean(pooled, axis=0, keepdims=True)
    var2 = jnp.mean((pooled - mu2) ** 2, axis=0, keepdims=True)
    w = (pooled - mu2) * lax.rsqrt(var2 + EPS_LN) * ln2_w + ln2_b
    h = jnp.dot(w1t_ref[...], w, preferred_element_type=jnp.float32) + mlp_b1
    # TODO(synk): PyTorch nn.GELU() is exact (erf); tanh approximation used in-kernel.
    h = jax.nn.gelu(h)
    m = jnp.dot(w2t_ref[...], h, preferred_element_type=jnp.float32) + mlp_b2
    out_ref[...] = m + pooled


def stmamba_block_call(seq_bdl, p):
    """seq_bdl: (B, D, SEQ) feature-major token sequence (cls + spiral tokens),
    WITHOUT positional embedding (added inside the kernel)."""
    B, D, L = seq_bdl.shape
    H = p["mlp_w1"].shape[1]
    x_pad = jnp.pad(seq_bdl, ((0, 0), (0, 0), (0, LPAD - L)))

    # ---- pack parameters into few dense, aligned operands ----
    def slot_w(w):        # (D, D) used as u @ w  ->  128-row slot of the fused weight^T
        return jnp.pad(w.T, ((0, SLOT - D), (0, 0)))

    def slot_b(b):        # (1, D) -> (SLOT, 1)
        return jnp.pad(b.reshape(D, 1), ((0, SLOT - D), (0, 0)))

    wcatT = jnp.concatenate([slot_w(p["wB"]), slot_w(p["wC"]),
                             slot_w(p["wd"]), slot_w(p["wst"])], axis=0)   # (512, D)
    bcatT = jnp.concatenate([slot_b(p["bB"]), slot_b(p["bC"]),
                             slot_b(p["bd"]), slot_b(p["bst"])], axis=0)   # (512, 1)

    def pad_L(v):         # (SEQ, D) -> (D, LPAD)
        return jnp.pad(v.T, ((0, 0), (0, LPAD - SEQ)))

    lmask = jnp.concatenate([jnp.ones((D, SEQ), jnp.float32),
                             jnp.zeros((D, LPAD - SEQ), jnp.float32)], axis=1)
    lp = jnp.stack([pad_L(p["delta_p"]), pad_L(p["A_p"]), lmask,
                    pad_L(p["pos_emb"][0])])                               # (4, D, LPAD)

    def col(v, n=D):      # (1, n) -> (D, 1) column, zero padded
        return jnp.pad(v.reshape(-1, 1), ((0, D - n), (0, 0)))

    vec = jnp.concatenate([col(p["ln1_w"]), col(p["ln1_b"]), col(p["st_bias"]),
                           col(p["ln2_w"]), col(p["ln2_b"]),
                           col(p["mlp_b1"], H), col(p["mlp_b2"]),
                           jnp.zeros((D, 1), jnp.float32)], axis=1)        # (D, 8)

    out = pl.pallas_call(
        stmamba_block_kernel,
        out_shape=jax.ShapeDtypeStruct((B, D, 1), jnp.float32),
        grid=(B,),
        in_specs=[
            pl.BlockSpec((None, D, LPAD), lambda b: (b, 0, 0)),
            pl.BlockSpec((4 * SLOT, D), lambda b: (0, 0)),
            pl.BlockSpec((4 * SLOT, 1), lambda b: (0, 0)),
            pl.BlockSpec((4, D, LPAD), lambda b: (0, 0, 0)),
            pl.BlockSpec((D, 8), lambda b: (0, 0)),
            pl.BlockSpec((H, D), lambda b: (0, 0)),
            pl.BlockSpec((D, H), lambda b: (0, 0)),
        ],
        out_specs=pl.BlockSpec((None, D, 1), lambda b: (b, 0, 0)),
        compiler_params=pltpu.CompilerParams(
            dimension_semantics=("parallel",),
            vmem_limit_bytes=VMEM_LIMIT),
    )(x_pad, wcatT, bcatT, lp, vec, p["mlp_w1"].T, p["mlp_w2"].T)
    return out.reshape(B, D)


# --------------------------------------------------------------------------
# Plain-JAX glue: spiral Scan index table
# --------------------------------------------------------------------------
def scan_indices(h):
    """Reproduces Scan.forward's spiral ordering for an h x h map (h=11, cen=5)."""
    cen = h // 2
    idx = [(cen, cen)]
    for i in range(cen):
        r = i + 1
        idx += [(cen - r, c) for c in range(cen - r + 1, cen + r + 1)]    # top row
        idx += [(rr, cen + r) for rr in range(cen - r + 1, cen + r + 1)]  # right col
        idx += [(cen + r, c) for c in range(cen - r, cen + r)]            # bottom row
        idx += [(rr, cen - r) for rr in range(cen - r, cen + r)]          # left col
    return [r * h + c for (r, c) in idx]


# --------------------------------------------------------------------------
# Full forward
# --------------------------------------------------------------------------
def stmamba_forward(x, p):
    # x: (B, 1, 30, 15, 15) -- PyTorch NCDHW layout for Conv3d (in_channels == 1).
    B = x.shape[0]
    DO, HO, WO = SPECTRAL - 2, PATCH - 2, PATCH - 2            # 28, 13, 13

    # ---- conv3d(1->8,k=3)+BN+ReLU as a GEMM with (depth, batch, h, w) column
    #      order so the output reshapes WITHOUT any transpose into the
    #      (c*depth, B, H, W) layout the conv2d im2col needs.
    x0 = x[:, 0]                                               # (B, 30, 15, 15)
    xT = x0.transpose(1, 0, 2, 3)                              # (30, B, 15, 15) tiny
    cols = []
    for a in range(3):
        for i in range(3):
            for j in range(3):
                cols.append(xT[a:a + DO, :, i:i + HO, j:j + WO])
    p3T = jnp.stack(cols, axis=0).reshape(27, DO * B * HO * WO)
    w3T = p["conv3_w"].reshape(8, 27)
    sc3 = p["bn3_scale"]
    sh3 = p["bn3_shift"] + p["conv3_b"] * sc3                  # fold conv bias into BN shift
    y1 = conv_gemm_T(w3T, p3T, sc3, sh3)                       # (8, 28*B*13*13)

    # rearrange 'b c h w y -> b (c h) w y' is a free reshape in this column order
    y4 = y1.reshape(8 * DO, B, HO, WO)                         # (224, B, 13, 13)

    # ---- conv2d(224->21,k=3)+BN+ReLU: im2col is one stack (no transposes) ----
    HO2, WO2 = HO - 2, WO - 2                                  # 11, 11
    cols2 = []
    for i in range(3):
        for j in range(3):
            cols2.append(y4[:, :, i:i + HO2, j:j + WO2])
    p2T = jnp.stack(cols2, axis=1).reshape(8 * DO * 9, B * HO2 * WO2)
    # TODO(synk): folding this 3x3 im2col into the conv2 pallas_call (K-chunk grid
    # axis) needs unaligned spatial blocks; kept as streamlined XLA glue instead.
    w2T = p["conv2_w"].reshape(DIM, 8 * DO * 9)
    sc2 = p["bn2_scale"]
    sh2 = p["bn2_shift"] + p["conv2_b"] * sc2
    y2 = conv_gemm_T(w2T, p2T, sc2, sh2)                       # (21, B*121)

    # ---- spiral Scan + cls token, built directly in feature-major (B, D, L) ----
    idx = jnp.asarray(scan_indices(HO2), dtype=jnp.int32)      # (121,)
    feat = y2.reshape(DIM, B, HO2 * WO2)                       # (21, B, 121)
    seq = jnp.take(feat, idx, axis=2).transpose(1, 0, 2)       # (B, 21, 121)
    cls = jnp.broadcast_to(p["cls_token"].reshape(1, DIM, 1), (B, DIM, 1))
    seq = jnp.concatenate([cls, seq], axis=2)                  # (B, 21, 122)

    # STMambaBlock (depth=1); positional embedding + dropout(eval) folded in kernel
    return stmamba_block_call(seq, p)                          # (B, 21)


# --------------------------------------------------------------------------
# Deterministic parameter initialization (shapes match the PyTorch module)
# --------------------------------------------------------------------------
def init_params(key):
    ks = jax.random.split(key, 24)

    def rnd(k, shape, s=0.1):
        return (s * jax.random.normal(k, shape)).astype(jnp.float32)

    p = {}
    p["conv3_w"] = rnd(ks[0], (8, 1, 3, 3, 3))
    p["conv3_b"] = rnd(ks[1], (8,))
    p["bn3_scale"] = jnp.ones((8,), jnp.float32) / jnp.sqrt(1.0 + EPS_BN)
    p["bn3_shift"] = jnp.zeros((8,), jnp.float32)

    p["conv2_w"] = rnd(ks[2], (DIM, 8 * 28, 3, 3))
    p["conv2_b"] = rnd(ks[3], (DIM,))
    p["bn2_scale"] = jnp.ones((DIM,), jnp.float32) / jnp.sqrt(1.0 + EPS_BN)
    p["bn2_shift"] = jnp.zeros((DIM,), jnp.float32)

    p["pos_emb"] = jax.random.uniform(ks[4], (1, SEQ, DIM), jnp.float32)
    p["cls_token"] = jnp.zeros((1, 1, DIM), jnp.float32)

    # LayerNorm defaults (weight=1, bias=0)
    p["ln1_w"] = jnp.ones((1, DIM), jnp.float32)
    p["ln1_b"] = jnp.zeros((1, DIM), jnp.float32)
    p["ln2_w"] = jnp.ones((1, DIM), jnp.float32)
    p["ln2_b"] = jnp.zeros((1, DIM), jnp.float32)

    # S6_noC
    p["wB"] = rnd(ks[5], (DIM, DIM));  p["bB"] = rnd(ks[6], (1, DIM))
    p["wC"] = rnd(ks[7], (DIM, DIM));  p["bC"] = rnd(ks[8], (1, DIM))
    p["wd"] = rnd(ks[9], (DIM, DIM));  p["bd"] = rnd(ks[10], (1, DIM))
    p["delta_p"] = rnd(ks[11], (SEQ, DIM))    # nn.Parameter(1, seq, dim) xavier-normal
    p["A_p"] = rnd(ks[12], (SEQ, DIM))        # nn.Parameter(seq, dim) xavier-normal
    p["wst"] = rnd(ks[13], (DIM, DIM)); p["bst"] = rnd(ks[14], (1, DIM))
    p["st_bias"] = rnd(ks[15], (1, DIM))      # SToken bias (1,1,dim)

    # MLP_Block(dim=21, hidden=8)
    p["mlp_w1"] = rnd(ks[16], (DIM, MLP_HIDDEN)); p["mlp_b1"] = rnd(ks[17], (1, MLP_HIDDEN))
    p["mlp_w2"] = rnd(ks[18], (MLP_HIDDEN, DIM)); p["mlp_b2"] = rnd(ks[19], (1, DIM))
    return p


if __name__ == "__main__":
    key = jax.random.PRNGKey(0)
    kx, kp = jax.random.split(key)
    # (batch=2, in_channels=1, spectral=30, H=15, W=15) — shapes the module implies.
    x = jax.random.normal(kx, (2, 1, SPECTRAL, PATCH, PATCH), jnp.float32)
    params = init_params(kp)

    out = jax.jit(stmamba_forward)(x, params)
    out = jax.block_until_ready(out)
    assert out.shape == (2, NUM_CLASS), out.shape
    assert bool(jnp.all(jnp.isfinite(out)))
    print("KERNEL_OK")
</pallas_src>

<mosaic_0001>
module attributes {stable_mosaic.version = 11 : i64} {
  func.func @gemm_bn_relu_kernel(%arg0: i32, %arg1: memref<8x27xbf16, #tpu.memory_space<vmem>>, %arg2: memref<27x4736xbf16, #tpu.memory_space<vmem>>, %arg3: memref<8x1xf32, #tpu.memory_space<vmem>>, %arg4: memref<8x1xf32, #tpu.memory_space<vmem>>, %arg5: memref<8x4736xf32, #tpu.memory_space<vmem>>) attributes {dimension_semantics = [#tpu.dimension_semantics<parallel>], iteration_bounds = array<i64: 2>, scalar_prefetch = 0 : i64, scratch_operands = 0 : i64, tpu.core_type = #tpu.core_type<tc>, window_params = [{pipeline_mode = #tpu.pipeline_mode<synchronous>, transform_indices = @transform_0, window_bounds = array<i64: 8, 27>}, {transform_indices = @transform_1, window_bounds = array<i64: 27, 4736>}, {pipeline_mode = #tpu.pipeline_mode<synchronous>, transform_indices = @transform_2, window_bounds = array<i64: 8, 1>}, {pipeline_mode = #tpu.pipeline_mode<synchronous>, transform_indices = @transform_3, window_bounds = array<i64: 8, 1>}, {transform_indices = @transform_4, window_bounds = array<i64: 8, 4736>}]} {
    %c0 = arith.constant 0 : index
    %c0_0 = arith.constant 0 : index
    %0 = vector.load %arg1[%c0, %c0_0] : memref<8x27xbf16, #tpu.memory_space<vmem>>, vector<8x27xbf16>
    %c0_1 = arith.constant 0 : index
    %c0_2 = arith.constant 0 : index
    %1 = vector.load %arg2[%c0_1, %c0_2] : memref<27x4736xbf16, #tpu.memory_space<vmem>>, vector<27x4736xbf16>
    %cst = arith.constant dense<0.000000e+00> : vector<8x4736xf32>
    %2 = tpu.matmul %0, %1, %cst {dimension_numbers = #tpu.dot_dimension_numbers<[1], [0], [0], [1], [0, 0, 1, 1], [], []>} : vector<8x27xbf16>, vector<27x4736xbf16>, vector<8x4736xf32> -> vector<8x4736xf32>
    %c0_3 = arith.constant 0 : index
    %c0_4 = arith.constant 0 : index
    %3 = vector.load %arg3[%c0_3, %c0_4] : memref<8x1xf32, #tpu.memory_space<vmem>>, vector<8x1xf32>
    %4 = vector.broadcast %3 : vector<8x1xf32> to vector<8x4736xf32>
    %5 = arith.mulf %2, %4 : vector<8x4736xf32>
    %c0_5 = arith.constant 0 : index
    %c0_6 = arith.constant 0 : index
    %6 = vector.load %arg4[%c0_5, %c0_6] : memref<8x1xf32, #tpu.memory_space<vmem>>, vector<8x1xf32>
    %7 = vector.broadcast %6 : vector<8x1xf32> to vector<8x4736xf32>
    %8 = arith.addf %5, %7 : vector<8x4736xf32>
    %cst_7 = arith.constant 0.000000e+00 : f32
    %9 = vector.broadcast %cst_7 : f32 to vector<8x4736xf32>
    %10 = arith.maximumf %8, %9 : vector<8x4736xf32>
    %c0_8 = arith.constant 0 : index
    %c0_9 = arith.constant 0 : index
    %11 = vector.load %arg5[%c0_8, %c0_9] : memref<8x4736xf32, #tpu.memory_space<vmem>>, vector<8x4736xf32>
    tpu.vector_store %arg5[%c0_8, %c0_9], %10 {strides = array<i32>} : memref<8x4736xf32, #tpu.memory_space<vmem>>, vector<8x4736xf32>,
    return
  }
  func.func @transform_0(%arg0: i32) -> (i32, i32) {
    %c0_i32 = arith.constant 0 : i32
    %c0_i32_0 = arith.constant 0 : i32
    %c0_i32_1 = arith.constant 0 : i32
    return %c0_i32, %c0_i32_0 : i32, i32
  }
  func.func @transform_1(%arg0: i32) -> (i32, i32) {
    %c0_i32 = arith.constant 0 : i32
    %c0_i32_0 = arith.constant 0 : i32
    return %c0_i32, %arg0 : i32, i32
  }
  func.func @transform_2(%arg0: i32) -> (i32, i32) {
    %c0_i32 = arith.constant 0 : i32
    %c0_i32_0 = arith.constant 0 : i32
    %c0_i32_1 = arith.constant 0 : i32
    return %c0_i32, %c0_i32_0 : i32, i32
  }
  func.func @transform_3(%arg0: i32) -> (i32, i32) {
    %c0_i32 = arith.constant 0 : i32
    %c0_i32_0 = arith.constant 0 : i32
    %c0_i32_1 = arith.constant 0 : i32
    return %c0_i32, %c0_i32_0 : i32, i32
  }
  func.func @transform_4(%arg0: i32) -> (i32, i32) {
    %c0_i32 = arith.constant 0 : i32
    %c0_i32_0 = arith.constant 0 : i32
    return %c0_i32, %arg0 : i32, i32
  }
}

module attributes {stable_mosaic.version = 11 : i64} {
  func.func @gemm_bn_relu_kernel(%arg0: i32, %arg1: memref<21x2016xbf16, #tpu.memory_space<vmem>>, %arg2: memref<2016x128xbf16, #tpu.memory_space<vmem>>, %arg3: memref<21x1xf32, #tpu.memory_space<vmem>>, %arg4: memref<21x1xf32, #tpu.memory_space<vmem>>, %arg5: memref<21x128xf32, #tpu.memory_space<vmem>>) attributes {dimension_semantics = [#tpu.dimension_semantics<parallel>], iteration_bounds = array<i64: 2>, scalar_prefetch = 0 : i64, scratch_operands = 0 : i64, tpu.core_type = #tpu.core_type<tc>, window_params = [{pipeline_mode = #tpu.pipeline_mode<synchronous>, transform_indices = @transform_0, window_bounds = array<i64: 21, 2016>}, {transform_indices = @transform_1, window_bounds = array<i64: 2016, 128>}, {pipeline_mode = #tpu.pipeline_mode<synchronous>, transform_indices = @transform_2, window_bounds = array<i64: 21, 1>}, {pipeline_mode = #tpu.pipeline_mode<synchronous>, transform_indices = @transform_3, window_bounds = array<i64: 21, 1>}, {transform_indices = @transform_4, window_bounds = array<i64: 21, 128>}]} {
    %c0 = arith.constant 0 : index
    %c0_0 = arith.constant 0 : index
    %0 = vector.load %arg1[%c0, %c0_0] : memref<21x2016xbf16, #tpu.memory_space<vmem>>, vector<21x2016xbf16>
    %c0_1 = arith.constant 0 : index
    %c0_2 = arith.constant 0 : index
    %1 = vector.load %arg2[%c0_1, %c0_2] : memref<2016x128xbf16, #tpu.memory_space<vmem>>, vector<2016x128xbf16>
    %cst = arith.constant dense<0.000000e+00> : vector<21x128xf32>
    %2 = tpu.matmul %0, %1, %cst {dimension_numbers = #tpu.dot_dimension_numbers<[1], [0], [0], [1], [0, 0, 1, 1], [], []>} : vector<21x2016xbf16>, vector<2016x128xbf16>, vector<21x128xf32> -> vector<21x128xf32>
    %c0_3 = arith.constant 0 : index
    %c0_4 = arith.constant 0 : index
    %3 = vector.load %arg3[%c0_3, %c0_4] : memref<21x1xf32, #tpu.memory_space<vmem>>, vector<21x1xf32>
    %4 = vector.broadcast %3 : vector<21x1xf32> to vector<21x128xf32>
    %5 = arith.mulf %2, %4 : vector<21x128xf32>
    %c0_5 = arith.constant 0 : index
    %c0_6 = arith.constant 0 : index
    %6 = vector.load %arg4[%c0_5, %c0_6] : memref<21x1xf32, #tpu.memory_space<vmem>>, vector<21x1xf32>
    %7 = vector.broadcast %6 : vector<21x1xf32> to vector<21x128xf32>
    %8 = arith.addf %5, %7 : vector<21x128xf32>
    %cst_7 = arith.constant 0.000000e+00 : f32
    %9 = vector.broadcast %cst_7 : f32 to vector<21x128xf32>
    %10 = arith.maximumf %8, %9 : vector<21x128xf32>
    %c0_8 = arith.constant 0 : index
    %c0_9 = arith.constant 0 : index
    %11 = vector.load %arg5[%c0_8, %c0_9] : memref<21x128xf32, #tpu.memory_space<vmem>>, vector<21x128xf32>
    tpu.vector_store %arg5[%c0_8, %c0_9], %10 {strides = array<i32>} : memref<21x128xf32, #tpu.memory_space<vmem>>, vector<21x128xf32>,
    return
  }
  func.func @transform_0(%arg0: i32) -> (i32, i32) {
    %c0_i32 = arith.constant 0 : i32
    %c0_i32_0 = arith.constant 0 : i32
    %c0_i32_1 = arith.constant 0 : i32
    return %c0_i32, %c0_i32_0 : i32, i32
  }
  func.func @transform_1(%arg0: i32) -> (i32, i32) {
    %c0_i32 = arith.constant 0 : i32
    %c0_i32_0 = arith.constant 0 : i32
    return %c0_i32, %arg0 : i32, i32
  }
  func.func @transform_2(%arg0: i32) -> (i32, i32) {
    %c0_i32 = arith.constant 0 : i32
    %c0_i32_0 = arith.constant 0 : i32
    %c0_i32_1 = arith.constant 0 : i32
    return %c0_i32, %c0_i32_0 : i32, i32
  }
  func.func @transform_3(%arg0: i32) -> (i32, i32) {
    %c0_i32 = arith.constant 0 : i32
    %c0_i32_0 = arith.constant 0 : i32
    %c0_i32_1 = arith.constant 0 : i32
    return %c0_i32, %c0_i32_0 : i32, i32
  }
  func.func @transform_4(%arg0: i32) -> (i32, i32) {
    %c0_i32 = arith.constant 0 : i32
    %c0_i32_0 = arith.constant 0 : i32
    return %c0_i32, %arg0 : i32, i32
  }
}

module attributes {stable_mosaic.version = 11 : i64} {
  func.func @stmamba_block_kernel(%arg0: i32, %arg1: memref<1x21x128xf32, #tpu.memory_space<vmem>>, %arg2: memref<512x21xf32, #tpu.memory_space<vmem>>, %arg3: memref<512x1xf32, #tpu.memory_space<vmem>>, %arg4: memref<4x21x128xf32, #tpu.memory_space<vmem>>, %arg5: memref<21x8xf32, #tpu.memory_space<vmem>>, %arg6: memref<8x21xf32, #tpu.memory_space<vmem>>, %arg7: memref<21x8xf32, #tpu.memory_space<vmem>>, %arg8: memref<1x21x1xf32, #tpu.memory_space<vmem>>) attributes {dimension_semantics = [#tpu.dimension_semantics<parallel>], iteration_bounds = array<i64: 2>, scalar_prefetch = 0 : i64, scratch_operands = 0 : i64, tpu.core_type = #tpu.core_type<tc>, window_params = [{transform_indices = @transform_0, window_bounds = array<i64: 1, 21, 128>}, {pipeline_mode = #tpu.pipeline_mode<synchronous>, transform_indices = @transform_1, window_bounds = array<i64: 512, 21>}, {pipeline_mode = #tpu.pipeline_mode<synchronous>, transform_indices = @transform_2, window_bounds = array<i64: 512, 1>}, {pipeline_mode = #tpu.pipeline_mode<synchronous>, transform_indices = @transform_3, window_bounds = array<i64: 4, 21, 128>}, {pipeline_mode = #tpu.pipeline_mode<synchronous>, transform_indices = @transform_4, window_bounds = array<i64: 21, 8>}, {pipeline_mode = #tpu.pipeline_mode<synchronous>, transform_indices = @transform_5, window_bounds = array<i64: 8, 21>}, {pipeline_mode = #tpu.pipeline_mode<synchronous>, transform_indices = @transform_6, window_bounds = array<i64: 21, 8>}, {transform_indices = @transform_7, window_bounds = array<i64: 1, 21, 1>}]} {
    %c0 = arith.constant 0 : index
    %c0_0 = arith.constant 0 : index
    %c0_1 = arith.constant 0 : index
    %0 = vector.load %arg4[%c0, %c0_0, %c0_1] : memref<4x21x128xf32, #tpu.memory_space<vmem>>, vector<1x21x128xf32>
    %1 = vector.shape_cast %0 : vector<1x21x128xf32> to vector<21x128xf32>
    %c1 = arith.constant 1 : index
    %c0_2 = arith.constant 0 : index
    %c0_3 = arith.constant 0 : index
    %2 = vector.load %arg4[%c1, %c0_2, %c0_3] : memref<4x21x128xf32, #tpu.memory_space<vmem>>, vector<1x21x128xf32>
    %3 = vector.shape_cast %2 : vector<1x21x128xf32> to vector<21x128xf32>
    %c2 = arith.constant 2 : index
    %c0_4 = arith.constant 0 : index
    %c0_5 = arith.constant 0 : index
    %4 = vector.load %arg4[%c2, %c0_4, %c0_5] : memref<4x21x128xf32, #tpu.memory_space<vmem>>, vector<1x21x128xf32>
    %5 = vector.shape_cast %4 : vector<1x21x128xf32> to vector<21x128xf32>
    %c3 = arith.constant 3 : index
    %c0_6 = arith.constant 0 : index
    %c0_7 = arith.constant 0 : index
    %6 = vector.load %arg4[%c3, %c0_6, %c0_7] : memref<4x21x128xf32, #tpu.memory_space<vmem>>, vector<1x21x128xf32>
    %7 = vector.shape_cast %6 : vector<1x21x128xf32> to vector<21x128xf32>
    %c0_8 = arith.constant 0 : index
    %c0_9 = arith.constant 0 : index
    %8 = vector.load %arg5[%c0_8, %c0_9] : memref<21x8xf32, #tpu.memory_space<vmem>>, vector<21x8xf32>
    %9 = vector.extract_strided_slice %8 {offsets = [0, 0], sizes = [21, 1], strides = [1, 1]} : vector<21x8xf32> to vector<21x1xf32>
    %10 = vector.extract_strided_slice %8 {offsets = [0, 1], sizes = [21, 1], strides = [1, 1]} : vector<21x8xf32> to vector<21x1xf32>
    %11 = vector.extract_strided_slice %8 {offsets = [0, 2], sizes = [21, 1], strides = [1, 1]} : vector<21x8xf32> to vector<21x1xf32>
    %12 = vector.extract_strided_slice %8 {offsets = [0, 3], sizes = [21, 1], strides = [1, 1]} : vector<21x8xf32> to vector<21x1xf32>
    %13 = vector.extract_strided_slice %8 {offsets = [0, 4], sizes = [21, 1], strides = [1, 1]} : vector<21x8xf32> to vector<21x1xf32>
    %14 = vector.extract_strided_slice %8 {offsets = [0, 5], sizes = [8, 1], strides = [1, 1]} : vector<21x8xf32> to vector<8x1xf32>
    %15 = vector.extract_strided_slice %8 {offsets = [0, 6], sizes = [21, 1], strides = [1, 1]} : vector<21x8xf32> to vector<21x1xf32>
    %c0_10 = arith.constant 0 : index
    %c0_11 = arith.constant 0 : index
    %c0_12 = arith.constant 0 : index
    %16 = vector.load %arg1[%c0_10, %c0_11, %c0_12] : memref<1x21x128xf32, #tpu.memory_space<vmem>>, vector<1x21x128xf32>
    %17 = vector.shape_cast %16 : vector<1x21x128xf32> to vector<21x128xf32>
    %18 = arith.addf %17, %7 : vector<21x128xf32>
    %cst = arith.constant dense<0.000000e+00> : vector<128xf32>
    %19 = vector.multi_reduction <add>, %18, %cst [0] : vector<21x128xf32> to vector<128xf32>
    %20 = vector.shape_cast %19 : vector<128xf32> to vector<1x128xf32>
    %cst_13 = arith.constant 2.100000e+01 : f32
    %21 = vector.broadcast %cst_13 : f32 to vector<1x128xf32>
    %22 = arith.divf %20, %21 : vector<1x128xf32>
    %23 = vector.broadcast %22 : vector<1x128xf32> to vector<21x128xf32>
    %24 = arith.subf %18, %23 : vector<21x128xf32>
    %25 = arith.mulf %24, %24 : vector<21x128xf32>
    %cst_14 = arith.constant dense<0.000000e+00> : vector<128xf32>
    %26 = vector.multi_reduction <add>, %25, %cst_14 [0] : vector<21x128xf32> to vector<128xf32>
    %27 = vector.shape_cast %26 : vector<128xf32> to vector<1x128xf32>
    %cst_15 = arith.constant 2.100000e+01 : f32
    %28 = vector.broadcast %cst_15 : f32 to vector<1x128xf32>
    %29 = arith.divf %27, %28 : vector<1x128xf32>
    %30 = vector.broadcast %22 : vector<1x128xf32> to vector<21x128xf32>
    %31 = arith.subf %18, %30 : vector<21x128xf32>
    %cst_16 = arith.constant 9.99999974E-6 : f32
    %32 = vector.broadcast %cst_16 : f32 to vector<1x128xf32>
    %33 = arith.addf %29, %32 : vector<1x128xf32>
    %34 = math.rsqrt %33 : vector<1x128xf32>
    %35 = vector.broadcast %34 : vector<1x128xf32> to vector<21x128xf32>
    %36 = arith.mulf %31, %35 : vector<21x128xf32>
    %37 = vector.broadcast %9 : vector<21x1xf32> to vector<21x128xf32>
    %38 = arith.mulf %36, %37 : vector<21x128xf32>
    %39 = vector.broadcast %10 : vector<21x1xf32> to vector<21x128xf32>
    %40 = arith.addf %38, %39 : vector<21x128xf32>
    %41 = arith.mulf %40, %5 : vector<21x128xf32>
    %c0_17 = arith.constant 0 : index
    %c0_18 = arith.constant 0 : index
    %42 = vector.load %arg2[%c0_17, %c0_18] : memref<512x21xf32, #tpu.memory_space<vmem>>, vector<512x21xf32>
    %cst_19 = arith.constant dense<0.000000e+00> : vector<512x128xf32>
    %43 = tpu.matmul %42, %41, %cst_19 {dimension_numbers = #tpu.dot_dimension_numbers<[1], [0], [0], [1], [0, 0, 1, 1], [], []>} : vector<512x21xf32>, vector<21x128xf32>, vector<512x128xf32> -> vector<512x128xf32>
    %c0_20 = arith.constant 0 : index
    %c0_21 = arith.constant 0 : index
    %44 = vector.load %arg3[%c0_20, %c0_21] : memref<512x1xf32, #tpu.memory_space<vmem>>, vector<512x1xf32>
    %45 = vector.broadcast %44 : vector<512x1xf32> to vector<512x128xf32>
    %46 = arith.addf %43, %45 : vector<512x128xf32>
    %47 = vector.extract_strided_slice %46 {offsets = [0, 0], sizes = [21, 128], strides = [1, 1]} : vector<512x128xf32> to vector<21x128xf32>
    %48 = vector.extract_strided_slice %46 {offsets = [128, 0], sizes = [21, 128], strides = [1, 1]} : vector<512x128xf32> to vector<21x128xf32>
    %49 = vector.extract_strided_slice %46 {offsets = [256, 0], sizes = [21, 128], strides = [1, 1]} : vector<512x128xf32> to vector<21x128xf32>
    %50 = vector.extract_strided_slice %46 {offsets = [384, 0], sizes = [21, 128], strides = [1, 1]} : vector<512x128xf32> to vector<21x128xf32>
    %51 = arith.negf %41 : vector<21x128xf32>
    %52 = math.exp %51 : vector<21x128xf32>
    %cst_22 = arith.constant 1.000000e+00 : f32
    %53 = vector.broadcast %cst_22 : f32 to vector<21x128xf32>
    %54 = arith.addf %53, %52 : vector<21x128xf32>
    %55 = arith.divf %53, %54 : vector<21x128xf32>
    %56 = arith.addf %49, %1 : vector<21x128xf32>
    %57 = arith.negf %56 : vector<21x128xf32>
    %58 = math.exp %57 : vector<21x128xf32>
    %cst_23 = arith.constant 1.000000e+00 : f32
    %59 = vector.broadcast %cst_23 : f32 to vector<21x128xf32>
    %60 = arith.addf %59, %58 : vector<21x128xf32>
    %61 = arith.divf %59, %60 : vector<21x128xf32>
    %62 = arith.mulf %61, %3 : vector<21x128xf32>
    %63 = arith.mulf %61, %47 : vector<21x128xf32>
    %64 = arith.mulf %63, %41 : vector<21x128xf32>
    %65 = arith.mulf %48, %55 : vector<21x128xf32>
    %66 = arith.mulf %65, %5 : vector<21x128xf32>
    %67 = arith.mulf %50, %5 : vector<21x128xf32>
    %cst_24 = arith.constant dense<0.000000e+00> : vector<21xf32>
    %68 = vector.multi_reduction <add>, %67, %cst_24 [1] : vector<21x128xf32> to vector<21xf32>
    %69 = vector.shape_cast %68 : vector<21xf32> to vector<21x1xf32>
    %cst_25 = arith.constant 1.220000e+02 : f32
    %70 = vector.broadcast %cst_25 : f32 to vector<21x1xf32>
    %71 = arith.divf %69, %70 : vector<21x1xf32>
    %cst_26 = arith.constant 0.000000e+00 : f32
    %72 = vector.broadcast %cst_26 : f32 to vector<21x1xf32>
    %73 = arith.maximumf %71, %72 : vector<21x1xf32>
    %74 = arith.negf %73 : vector<21x1xf32>
    %75 = math.exp %74 : vector<21x1xf32>
    %cst_27 = arith.constant 1.000000e+00 : f32
    %76 = vector.broadcast %cst_27 : f32 to vector<21x1xf32>
    %77 = arith.addf %76, %75 : vector<21x1xf32>
    %78 = arith.divf %76, %77 : vector<21x1xf32>
    %79 = arith.addf %78, %11 : vector<21x1xf32>
    %80 = vector.broadcast %79 : vector<21x1xf32> to vector<21x128xf32>
    %81 = arith.mulf %80, %41 : vector<21x128xf32>
    %82 = arith.mulf %81, %55 : vector<21x128xf32>
    %83 = arith.addf %82, %18 : vector<21x128xf32>
    %cst_28 = arith.constant dense<0.000000e+00> : vector<21xf32>
    %84 = vector.multi_reduction <add>, %83, %cst_28 [1] : vector<21x128xf32> to vector<21xf32>
    %85 = vector.shape_cast %84 : vector<21xf32> to vector<21x1xf32>
    %86 = tpu.iota {dimensions = array<i32: 1>} : vector<21x128xi32>
    %c1_i32 = arith.constant 1 : i32
    %87 = tpu.dynamic_rotate %62 by %c1_i32 dim 1 : vector<21x128xf32>, i32 -> vector<21x128xf32>
    %c1_i32_29 = arith.constant 1 : i32
    %88 = tpu.dynamic_rotate %64 by %c1_i32_29 dim 1 : vector<21x128xf32>, i32 -> vector<21x128xf32>
    %c1_i32_30 = arith.constant 1 : i32
    %89 = vector.broadcast %c1_i32_30 : i32 to vector<21x128xi32>
    %90 = arith.cmpi sge, %86, %89 : vector<21x128xi32>
    %cst_31 = arith.constant 0.000000e+00 : f32
    %91 = vector.broadcast %cst_31 : f32 to vector<21x128xf32>
    %92 = arith.select %90, %88, %91 : vector<21x128xi1>, vector<21x128xf32>
    %93 = arith.mulf %62, %92 : vector<21x128xf32>
    %94 = arith.addf %93, %64 : vector<21x128xf32>
    %cst_32 = arith.constant 1.000000e+00 : f32
    %95 = vector.broadcast %cst_32 : f32 to vector<21x128xf32>
    %96 = arith.select %90, %87, %95 : vector<21x128xi1>, vector<21x128xf32>
    %97 = arith.mulf %62, %96 : vector<21x128xf32>
    %c2_i32 = arith.constant 2 : i32
    %98 = tpu.dynamic_rotate %97 by %c2_i32 dim 1 : vector<21x128xf32>, i32 -> vector<21x128xf32>
    %c2_i32_33 = arith.constant 2 : i32
    %99 = tpu.dynamic_rotate %94 by %c2_i32_33 dim 1 : vector<21x128xf32>, i32 -> vector<21x128xf32>
    %c2_i32_34 = arith.constant 2 : i32
    %100 = vector.broadcast %c2_i32_34 : i32 to vector<21x128xi32>
    %101 = arith.cmpi sge, %86, %100 : vector<21x128xi32>
    %cst_35 = arith.constant 0.000000e+00 : f32
    %102 = vector.broadcast %cst_35 : f32 to vector<21x128xf32>
    %103 = arith.select %101, %99, %102 : vector<21x128xi1>, vector<21x128xf32>
    %104 = arith.mulf %97, %103 : vector<21x128xf32>
    %105 = arith.addf %104, %94 : vector<21x128xf32>
    %cst_36 = arith.constant 1.000000e+00 : f32
    %106 = vector.broadcast %cst_36 : f32 to vector<21x128xf32>
    %107 = arith.select %101, %98, %106 : vector<21x128xi1>, vector<21x128xf32>
    %108 = arith.mulf %97, %107 : vector<21x128xf32>
    %c4_i32 = arith.constant 4 : i32
    %109 = tpu.dynamic_rotate %108 by %c4_i32 dim 1 : vector<21x128xf32>, i32 -> vector<21x128xf32>
    %c4_i32_37 = arith.constant 4 : i32
    %110 = tpu.dynamic_rotate %105 by %c4_i32_37 dim 1 : vector<21x128xf32>, i32 -> vector<21x128xf32>
    %c4_i32_38 = arith.constant 4 : i32
    %111 = vector.broadcast %c4_i32_38 : i32 to vector<21x128xi32>
    %112 = arith.cmpi sge, %86, %111 : vector<21x128xi32>
    %cst_39 = arith.constant 0.000000e+00 : f32
    %113 = vector.broadcast %cst_39 : f32 to vector<21x128xf32>
    %114 = arith.select %112, %110, %113 : vector<21x128xi1>, vector<21x128xf32>
    %115 = arith.mulf %108, %114 : vector<21x128xf32>
    %116 = arith.addf %115, %105 : vector<21x128xf32>
    %cst_40 = arith.constant 1.000000e+00 : f32
    %117 = vector.broadcast %cst_40 : f32 to vector<21x128xf32>
    %118 = arith.select %112, %109, %117 : vector<21x128xi1>, vector<21x128xf32>
    %119 = arith.mulf %108, %118 : vector<21x128xf32>
    %c8_i32 = arith.constant 8 : i32
    %120 = tpu.dynamic_rotate %119 by %c8_i32 dim 1 : vector<21x128xf32>, i32 -> vector<21x128xf32>
    %c8_i32_41 = arith.constant 8 : i32
    %121 = tpu.dynamic_rotate %116 by %c8_i32_41 dim 1 : vector<21x128xf32>, i32 -> vector<21x128xf32>
    %c8_i32_42 = arith.constant 8 : i32
    %122 = vector.broadcast %c8_i32_42 : i32 to vector<21x128xi32>
    %123 = arith.cmpi sge, %86, %122 : vector<21x128xi32>
    %cst_43 = arith.constant 0.000000e+00 : f32
    %124 = vector.broadcast %cst_43 : f32 to vector<21x128xf32>
    %125 = arith.select %123, %121, %124 : vector<21x128xi1>, vector<21x128xf32>
    %126 = arith.mulf %119, %125 : vector<21x128xf32>
    %127 = arith.addf %126, %116 : vector<21x128xf32>
    %cst_44 = arith.constant 1.000000e+00 : f32
    %128 = vector.broadcast %cst_44 : f32 to vector<21x128xf32>
    %129 = arith.select %123, %120, %128 : vector<21x128xi1>, vector<21x128xf32>
    %130 = arith.mulf %119, %129 : vector<21x128xf32>
    %c16_i32 = arith.constant 16 : i32
    %131 = tpu.dynamic_rotate %130 by %c16_i32 dim 1 : vector<21x128xf32>, i32 -> vector<21x128xf32>
    %c16_i32_45 = arith.constant 16 : i32
    %132 = tpu.dynamic_rotate %127 by %c16_i32_45 dim 1 : vector<21x128xf32>, i32 -> vector<21x128xf32>
    %c16_i32_46 = arith.constant 16 : i32
    %133 = vector.broadcast %c16_i32_46 : i32 to vector<21x128xi32>
    %134 = arith.cmpi sge, %86, %133 : vector<21x128xi32>
    %cst_47 = arith.constant 0.000000e+00 : f32
    %135 = vector.broadcast %cst_47 : f32 to vector<21x128xf32>
    %136 = arith.select %134, %132, %135 : vector<21x128xi1>, vector<21x128xf32>
    %137 = arith.mulf %130, %136 : vector<21x128xf32>
    %138 = arith.addf %137, %127 : vector<21x128xf32>
    %cst_48 = arith.constant 1.000000e+00 : f32
    %139 = vector.broadcast %cst_48 : f32 to vector<21x128xf32>
    %140 = arith.select %134, %131, %139 : vector<21x128xi1>, vector<21x128xf32>
    %141 = arith.mulf %130, %140 : vector<21x128xf32>
    %c32_i32 = arith.constant 32 : i32
    %142 = tpu.dynamic_rotate %141 by %c32_i32 dim 1 : vector<21x128xf32>, i32 -> vector<21x128xf32>
    %c32_i32_49 = arith.constant 32 : i32
    %143 = tpu.dynamic_rotate %138 by %c32_i32_49 dim 1 : vector<21x128xf32>, i32 -> vector<21x128xf32>
    %c32_i32_50 = arith.constant 32 : i32
    %144 = vector.broadcast %c32_i32_50 : i32 to vector<21x128xi32>
    %145 = arith.cmpi sge, %86, %144 : vector<21x128xi32>
    %cst_51 = arith.constant 0.000000e+00 : f32
    %146 = vector.broadcast %cst_51 : f32 to vector<21x128xf32>
    %147 = arith.select %145, %143, %146 : vector<21x128xi1>, vector<21x128xf32>
    %148 = arith.mulf %141, %147 : vector<21x128xf32>
    %149 = arith.addf %148, %138 : vector<21x128xf32>
    %cst_52 = arith.constant 1.000000e+00 : f32
    %150 = vector.broadcast %cst_52 : f32 to vector<21x128xf32>
    %151 = arith.select %145, %142, %150 : vector<21x128xi1>, vector<21x128xf32>
    %152 = arith.mulf %141, %151 : vector<21x128xf32>
    %c64_i32 = arith.constant 64 : i32
    %153 = tpu.dynamic_rotate %149 by %c64_i32 dim 1 : vector<21x128xf32>, i32 -> vector<21x128xf32>
    %c64_i32_53 = arith.constant 64 : i32
    %154 = vector.broadcast %c64_i32_53 : i32 to vector<21x128xi32>
    %155 = arith.cmpi sge, %86, %154 : vector<21x128xi32>
    %cst_54 = arith.constant 0.000000e+00 : f32
    %156 = vector.broadcast %cst_54 : f32 to vector<21x128xf32>
    %157 = arith.select %155, %153, %156 : vector<21x128xi1>, vector<21x128xf32>
    %158 = arith.mulf %152, %157 : vector<21x128xf32>
    %159 = arith.addf %158, %149 : vector<21x128xf32>
    %160 = arith.mulf %66, %159 : vector<21x128xf32>
    %cst_55 = arith.constant dense<0.000000e+00> : vector<21xf32>
    %161 = vector.multi_reduction <add>, %160, %cst_55 [1] : vector<21x128xf32> to vector<21xf32>
    %162 = vector.shape_cast %161 : vector<21xf32> to vector<21x1xf32>
    %163 = arith.addf %162, %85 : vector<21x1xf32>
    %cst_56 = arith.constant 1.220000e+02 : f32
    %164 = vector.broadcast %cst_56 : f32 to vector<21x1xf32>
    %165 = arith.divf %163, %164 : vector<21x1xf32>
    %cst_57 = arith.constant dense<0.000000e+00> : vector<1xf32>
    %166 = vector.multi_reduction <add>, %165, %cst_57 [0] : vector<21x1xf32> to vector<1xf32>
    %167 = vector.shape_cast %166 : vector<1xf32> to vector<1x1xf32>
    %cst_58 = arith.constant 2.100000e+01 : f32
    %168 = vector.broadcast %cst_58 : f32 to vector<1x1xf32>
    %169 = arith.divf %167, %168 : vector<1x1xf32>
    %170 = vector.broadcast %169 : vector<1x1xf32> to vector<21x1xf32>
    %171 = arith.subf %165, %170 : vector<21x1xf32>
    %172 = arith.mulf %171, %171 : vector<21x1xf32>
    %cst_59 = arith.constant dense<0.000000e+00> : vector<1xf32>
    %173 = vector.multi_reduction <add>, %172, %cst_59 [0] : vector<21x1xf32> to vector<1xf32>
    %174 = vector.shape_cast %173 : vector<1xf32> to vector<1x1xf32>
    %cst_60 = arith.constant 2.100000e+01 : f32
    %175 = vector.broadcast %cst_60 : f32 to vector<1x1xf32>
    %176 = arith.divf %174, %175 : vector<1x1xf32>
    %177 = vector.broadcast %169 : vector<1x1xf32> to vector<21x1xf32>
    %178 = arith.subf %165, %177 : vector<21x1xf32>
    %cst_61 = arith.constant 9.99999974E-6 : f32
    %179 = vector.broadcast %cst_61 : f32 to vector<1x1xf32>
    %180 = arith.addf %176, %179 : vector<1x1xf32>
    %181 = math.rsqrt %180 : vector<1x1xf32>
    %182 = vector.broadcast %181 : vector<1x1xf32> to vector<21x1xf32>
    %183 = arith.mulf %178, %182 : vector<21x1xf32>
    %184 = arith.mulf %183, %12 : vector<21x1xf32>
    %185 = arith.addf %184, %13 : vector<21x1xf32>
    %c0_62 = arith.constant 0 : index
    %c0_63 = arith.constant 0 : index
    %186 = vector.load %arg6[%c0_62, %c0_63] : memref<8x21xf32, #tpu.memory_space<vmem>>, vector<8x21xf32>
    %cst_64 = arith.constant dense<0.000000e+00> : vector<8x1xf32>
    %187 = tpu.matmul %186, %185, %cst_64 {dimension_numbers = #tpu.dot_dimension_numbers<[1], [0], [0], [1], [0, 0, 1, 1], [], []>} : vector<8x21xf32>, vector<21x1xf32>, vector<8x1xf32> -> vector<8x1xf32>
    %188 = arith.addf %187, %14 : vector<8x1xf32>
    %189 = arith.mulf %188, %188 : vector<8x1xf32>
    %190 = arith.mulf %188, %189 : vector<8x1xf32>
    %cst_65 = arith.constant 4.471500e-02 : f32
    %191 = vector.broadcast %cst_65 : f32 to vector<8x1xf32>
    %192 = arith.mulf %191, %190 : vector<8x1xf32>
    %193 = arith.addf %188, %192 : vector<8x1xf32>
    %cst_66 = arith.constant 0.797884583 : f32
    %194 = vector.broadcast %cst_66 : f32 to vector<8x1xf32>
    %195 = arith.mulf %194, %193 : vector<8x1xf32>
    %196 = math.tanh %195 : vector<8x1xf32>
    %cst_67 = arith.constant 1.000000e+00 : f32
    %197 = vector.broadcast %cst_67 : f32 to vector<8x1xf32>
    %198 = arith.addf %197, %196 : vector<8x1xf32>
    %cst_68 = arith.constant 5.000000e-01 : f32
    %199 = vector.broadcast %cst_68 : f32 to vector<8x1xf32>
    %200 = arith.mulf %199, %198 : vector<8x1xf32>
    %201 = arith.mulf %188, %200 : vector<8x1xf32>
    %c0_69 = arith.constant 0 : index
    %c0_70 = arith.constant 0 : index
    %202 = vector.load %arg7[%c0_69, %c0_70] : memref<21x8xf32, #tpu.memory_space<vmem>>, vector<21x8xf32>
    %cst_71 = arith.constant dense<0.000000e+00> : vector<21x1xf32>
    %203 = tpu.matmul %202, %201, %cst_71 {dimension_numbers = #tpu.dot_dimension_numbers<[1], [0], [0], [1], [0, 0, 1, 1], [], []>} : vector<21x8xf32>, vector<8x1xf32>, vector<21x1xf32> -> vector<21x1xf32>
    %204 = arith.addf %203, %15 : vector<21x1xf32>
    %205 = arith.addf %204, %165 : vector<21x1xf32>
    %c0_72 = arith.constant 0 : index
    %c0_73 = arith.constant 0 : index
    %c0_74 = arith.constant 0 : index
    %206 = vector.load %arg8[%c0_72, %c0_73, %c0_74] : memref<1x21x1xf32, #tpu.memory_space<vmem>>, vector<1x21x1xf32>
    %207 = vector.shape_cast %206 : vector<1x21x1xf32> to vector<21x1xf32>
    %208 = vector.shape_cast %205 : vector<21x1xf32> to vector<1x21x1xf32>
    tpu.vector_store %arg8[%c0_72, %c0_73, %c0_74], %208 {strides = array<i32>} : memref<1x21x1xf32, #tpu.memory_space<vmem>>, vector<1x21x1xf32>,
    return
  }
  func.func @transform_0(%arg0: i32) -> (i32, i32, i32) {
    %c0_i32 = arith.constant 0 : i32
    %c0_i32_0 = arith.constant 0 : i32
    %c0_i32_1 = arith.constant 0 : i32
    return %arg0, %c0_i32, %c0_i32_0 : i32, i32, i32
  }
  func.func @transform_1(%arg0: i32) -> (i32, i32) {
    %c0_i32 = arith.constant 0 : i32
    %c0_i32_0 = arith.constant 0 : i32
    %c0_i32_1 = arith.constant 0 : i32
    return %c0_i32, %c0_i32_0 : i32, i32
  }
  func.func @transform_2(%arg0: i32) -> (i32, i32) {
    %c0_i32 = arith.constant 0 : i32
    %c0_i32_0 = arith.constant 0 : i32
    %c0_i32_1 = arith.constant 0 : i32
    return %c0_i32, %c0_i32_0 : i32, i32
  }
  func.func @transform_3(%arg0: i32) -> (i32, i32, i32) {
    %c0_i32 = arith.constant 0 : i32
    %c0_i32_0 = arith.constant 0 : i32
    %c0_i32_1 = arith.constant 0 : i32
    %c0_i32_2 = arith.constant 0 : i32
    return %c0_i32, %c0_i32_0, %c0_i32_1 : i32, i32, i32
  }
  func.func @transform_4(%arg0: i32) -> (i32, i32) {
    %c0_i32 = arith.constant 0 : i32
    %c0_i32_0 = arith.constant 0 : i32
    %c0_i32_1 = arith.constant 0 : i32
    return %c0_i32, %c0_i32_0 : i32, i32
  }
  func.func @transform_5(%arg0: i32) -> (i32, i32) {
    %c0_i32 = arith.constant 0 : i32
    %c0_i32_0 = arith.constant 0 : i32
    %c0_i32_1 = arith.constant 0 : i32
    return %c0_i32, %c0_i32_0 : i32, i32
  }
  func.func @transform_6(%arg0: i32) -> (i32, i32) {
    %c0_i32 = arith.constant 0 : i32
    %c0_i32_0 = arith.constant 0 : i32
    %c0_i32_1 = arith.constant 0 : i32
    return %c0_i32, %c0_i32_0 : i32, i32
  }
  func.func @transform_7(%arg0: i32) -> (i32, i32, i32) {
    %c0_i32 = arith.constant 0 : i32
    %c0_i32_0 = arith.constant 0 : i32
    %c0_i32_1 = arith.constant 0 : i32
    return %arg0, %c0_i32, %c0_i32_0 : i32, i32, i32
  }
}

</mosaic_0001>

<llo_original>
// kernel: stmamba_forward.3
$region0: #{stmamba_forward.3}
  #allocation0 [shape = 'u32[]', space=smem, size = 0x4, offset = 0x4, fixed_abs, tag = 'smem constant byte address 0x4 - core index']
  #allocation1 [shape = 'u32[144,128]{1,0:T(1,128)}', space=vmem, size = 0x12000, scoped, tag = 'internal scratch']
  %s0 = inlined_call_operand.vmem [shape: bf16[8,27], index: 0, kind: input, shape index: {}]
  %s1 = inlined_call_operand.vmem [shape: bf16[27,9472], index: 1, kind: input, shape index: {}]
  %s2 = inlined_call_operand.vmem [shape: f32[8,1], index: 2, kind: input, shape index: {}]
  %s3 = inlined_call_operand.vmem [shape: f32[8,1], index: 3, kind: input, shape index: {}]
  %s4 = inlined_call_operand.vmem [shape: f32[8,9472], index: 4, kind: output, shape index: {}]
  %s5 = sld [smem:[#allocation0]]
  $region75: #{stmamba_forward.3} parent=0
    _
  %s7 = ssub.s32 1, %s5
  %s8 = scalar_select 0, %s7, %s5
  $region1: #{stmamba_forward.3} parent=0
    #allocation2 [shape = 'u8[606208]{0}', space=vmem, size = 0x94000, scoped, tag = 'input window, operand 1']
    loop: start=0, step=1, limit=4
    $region2: #{stmamba_forward.3} parent=1 // loop_pre_header
      _
    $region3: #{stmamba_forward.3} parent=1 // loop_header
      %s10 = sphi 0, %s14
      %p11 = scmp.ge.s32.totalorder %s10, 4
      %s18 = sphi 0, %s18
      %s20 = sphi 0, %s18
      %s21 = sphi 0, %s20
      %s35 = sphi 0, %s21
      %s41 = sphi 0, %s43
      %s44 = sphi 0, %s41
      %s45 = sphi 0, %s44
      %s61 = sphi 0, %s45
      %s65 = sphi 0, %s65
      %s67 = sphi 0, %s65
      %s68 = sphi 0, %s67
      %s82 = sphi 0, %s68
      %s86 = sphi 0, %s86
      %s88 = sphi 0, %s86
      %s89 = sphi 0, %s88
      %s103 = sphi 0, %s89
      %s109 = sphi 0, %s111
      %s112 = sphi 0, %s109
      %s113 = sphi 0, %s112
      %s129 = sphi 0, %s113
    $region4: #{stmamba_forward.3} parent=1 // loop_header_branch
      %13 = sbr.rel (%p11) target = $region8
    $region5: #{stmamba_forward.3} parent=1 // loop_body
      %s15 = ssub.s32 %s10, 1
      %s16 = ssub.s32 %s10, 2
      %s17 = sadd.s32 %s10, 1
      %s19 = sadd.s32 %s18, 1
      %p22 = scmp.eq.s32.totalorder %s10, 1
      %p23 = scmp.ne.s32.totalorder %s18, %s20
      %p24 = scmp.eq.s32.totalorder %s10, 0
      %p25 = por %p23, %p24
      %p26 = scmp.ne.s32.totalorder %s18, %s20
      %p27 = scmp.eq.s32.totalorder %s15, 1
      %p28 = por %p26, %p27
      %p29 = scmp.ne.s32.totalorder %s20, %s21
      %p30 = scmp.eq.s32.totalorder %s15, 0
      %p31 = por %p29, %p30
      %p32 = scmp.ne.s32.totalorder %s20, %s21
      %p33 = scmp.eq.s32.totalorder %s16, 1
      %p34 = por %p32, %p33
      %p36 = scmp.ne.s32.totalorder %s21, %s35
      %p37 = scmp.eq.s32.totalorder %s16, 0
      %p38 = por %p36, %p37
      %s39 = ssub.s32 %s10, %s17
      %p40 = scmp.eq.s32.totalorder %s39, 0
      %s42 = sadd.s32 %s41, 1
      %s43 = scalar_select %p40, %s41, %s42
      %p46 = pneg %p40
      %p47 = scmp.eq.s32.totalorder %s10, 1
      %p48 = por %p46, %p47
      %p49 = scmp.ne.s32.totalorder %s41, %s44
      %p50 = scmp.eq.s32.totalorder %s10, 0
      %p51 = por %p49, %p50
      %p52 = scmp.ne.s32.totalorder %s41, %s44
      %p53 = scmp.eq.s32.totalorder %s15, 1
      %p54 = por %p52, %p53
      %p55 = scmp.ne.s32.totalorder %s44, %s45
      %p56 = scmp.eq.s32.totalorder %s15, 0
      %p57 = por %p55, %p56
      %p58 = scmp.ne.s32.totalorder %s44, %s45
      %p59 = scmp.eq.s32.totalorder %s16, 1
      %p60 = por %p58, %p59
      %p62 = scmp.ne.s32.totalorder %s45, %s61
      %p63 = scmp.eq.s32.totalorder %s16, 0
      %p64 = por %p62, %p63
      %s66 = sadd.s32 %s65, 1
      %p69 = scmp.eq.s32.totalorder %s10, 1
      %p70 = scmp.ne.s32.totalorder %s65, %s67
      %p71 = scmp.eq.s32.totalorder %s10, 0
      %p72 = por %p70, %p71
      %p73 = scmp.ne.s32.totalorder %s65, %s67
      %p74 = scmp.eq.s32.totalorder %s15, 1
      %p75 = por %p73, %p74
      %p76 = scmp.ne.s32.totalorder %s67, %s68
      %p77 = scmp.eq.s32.totalorder %s15, 0
      %p78 = por %p76, %p77
      %p79 = scmp.ne.s32.totalorder %s67, %s68
      %p80 = scmp.eq.s32.totalorder %s16, 1
      %p81 = por %p79, %p80
      %p83 = scmp.ne.s32.totalorder %s68, %s82
      %p84 = scmp.eq.s32.totalorder %s16, 0
      %p85 = por %p83, %p84
      %s87 = sadd.s32 %s86, 1
      %p90 = scmp.eq.s32.totalorder %s10, 1
      %p91 = scmp.ne.s32.totalorder %s86, %s88
      %p92 = scmp.eq.s32.totalorder %s10, 0
      %p93 = por %p91, %p92
      %p94 = scmp.ne.s32.totalorder %s86, %s88
      %p95 = scmp.eq.s32.totalorder %s15, 1
      %p96 = por %p94, %p95
      %p97 = scmp.ne.s32.totalorder %s88, %s89
      %p98 = scmp.eq.s32.totalorder %s15, 0
      %p99 = por %p97, %p98
      %p100 = scmp.ne.s32.totalorder %s88, %s89
      %p101 = scmp.eq.s32.totalorder %s16, 1
      %p102 = por %p100, %p101
      %p104 = scmp.ne.s32.totalorder %s89, %s103
      %p105 = scmp.eq.s32.totalorder %s16, 0
      %p106 = por %p104, %p105
      %s107 = ssub.s32 %s10, %s17
      %p108 = scmp.eq.s32.totalorder %s107, 0
      %s110 = sadd.s32 %s109, 1
      %s111 = scalar_select %p108, %s109, %s110
      %p114 = pneg %p108
      %p115 = scmp.eq.s32.totalorder %s10, 1
      %p116 = por %p114, %p115
      %p117 = scmp.ne.s32.totalorder %s109, %s112
      %p118 = scmp.eq.s32.totalorder %s10, 0
      %p119 = por %p117, %p118
      %p120 = scmp.ne.s32.totalorder %s109, %s112
      %p121 = scmp.eq.s32.totalorder %s15, 1
      %p122 = por %p120, %p121
      %p123 = scmp.ne.s32.totalorder %s112, %s113
      %p124 = scmp.eq.s32.totalorder %s15, 0
      %p125 = por %p123, %p124
      %p126 = scmp.ne.s32.totalorder %s112, %s113
      %p127 = scmp.eq.s32.totalorder %s16, 1
      %p128 = por %p126, %p127
      %p130 = scmp.ne.s32.totalorder %s113, %s129
      %p131 = scmp.eq.s32.totalorder %s16, 0
      %p132 = por %p130, %p131
      %p133 = scmp.le.s32.totalorder 1, %s10
      %p134 = scmp.lt.s32.totalorder %s10, 3
      %p135 = pnand %p133, %p134
      %p136 = pneg %p135
      // Predicated region
      $region9: #{stmamba_forward.3} parent=5 // pred_check
        _
      $region10: #{stmamba_forward.3} parent=5 // pred_check_branch
        %138 = sbr.rel (%p135) target = $region12
      $region11: #{stmamba_forward.3} parent=5 // pred_region
        %s139 = ssub.s32 %s10, 1
        // Predicated region
        $region13: #{stmamba_forward.3} parent=11 // pred_check
          %p140 = pneg %p31
        $region14: #{stmamba_forward.3} parent=11 // pred_check_branch
          %142 = sbr.rel (%p140) target = $region16
        $region15: #{stmamba_forward.3} parent=11 // pred_region
          _
        $region16: #{stmamba_forward.3} parent=11 // pred_fallthru
          _
        // Predicated region
        $region17: #{stmamba_forward.3} parent=11 // pred_check
          %p143 = pneg %p78
        $region18: #{stmamba_forward.3} parent=11 // pred_check_branch
          %145 = sbr.rel (%p143) target = $region20
        $region19: #{stmamba_forward.3} parent=11 // pred_region
          _
        $region20: #{stmamba_forward.3} parent=11 // pred_fallthru
          _
        // Predicated region
        $region21: #{stmamba_forward.3} parent=11 // pred_check
          %p146 = pneg %p99
        $region22: #{stmamba_forward.3} parent=11 // pred_check_branch
          %148 = sbr.rel (%p146) target = $region24
        $region23: #{stmamba_forward.3} parent=11 // pred_region
          _
        $region24: #{stmamba_forward.3} parent=11 // pred_fallthru
          _
      $region12: #{stmamba_forward.3} parent=5 // pred_fallthru
        _
      %p149 = scmp.lt.s32.totalorder %s10, 2
      // Predicated region
      $region25: #{stmamba_forward.3} parent=5 // pred_check
        %p150 = pneg %p149
      $region26: #{stmamba_forward.3} parent=5 // pred_check_branch
        %152 = sbr.rel (%p150) target = $region28
      $region27: #{stmamba_forward.3} parent=5 // pred_region
        // Predicated region
        $region29: #{stmamba_forward.3} parent=27 // pred_check
          %p153 = pneg %p51
        $region30: #{stmamba_forward.3} parent=27 // pred_check_branch
          %155 = sbr.rel (%p153) target = $region32
        $region31: #{stmamba_forward.3} parent=27 // pred_region
          %s156 = sand.u32 %s41, 1
          %s157 = sand.u32 %s41, 1
          %s158 = smul.addr %s157, 592
          %s159 = scalar_lea.vmem [#allocation2], %s158
          %s160 = smul.u32 37, %s10
          %s161 = smul.addr %s160, 4
          %s162 = scalar_lea.vmem %s1, %s161
          // Predicated region
          $region33: #{stmamba_forward.3} parent=31 // pred_check
            _
          $region34: #{stmamba_forward.3} parent=31 // pred_check_branch
            %164 = sbr.rel (0) target = $region36
          $region35: #{stmamba_forward.3} parent=31 // pred_region
            // Predicated region
            $region37: #{stmamba_forward.3} parent=35 // pred_check
              _
            $region38: #{stmamba_forward.3} parent=35 // pred_check_branch
              %166 = sbr.rel (0) target = $region40
            $region39: #{stmamba_forward.3} parent=35 // pred_region
              %s167 = scalar_lea.vmem %s162, 144
              %s168 = scalar_lea.vmem %s159, 144 [#allocation2]
              loop: start=0, step=1, limit=1
              $region41: #{stmamba_forward.3} parent=39 // loop_pre_header
                _
              $region42: #{stmamba_forward.3} parent=39 // loop_header
                %s170 = sphi 0, %s174
                %p171 = scmp.ge.s32.totalorder %s170, 1
                %s175 = sphi %s162, %s162
                %s176 = sphi %s159, %s159
              $region43: #{stmamba_forward.3} parent=39 // loop_header_branch
                %173 = sbr.rel (%p171) target = $region47
              $region44: #{stmamba_forward.3} parent=39 // loop_body
                %v177 = vld [vmem:[%s175] sm:$0xff]
                %178 = vst [vmem:[%s176] sm:$0xff] %v177
                %v179 = vld [vmem:[%s175 + $0x8] sm:$0xff]
                %180 = vst [vmem:[%s176 + $0x8] sm:$0xff] %v179
                %v181 = vld [vmem:[%s175 + $0x10] sm:$0xff]
                %182 = vst [vmem:[%s176 + $0x10] sm:$0xff] %v181
                %v183 = vld [vmem:[%s175 + $0x18] sm:$0xff]
                %184 = vst [vmem:[%s176 + $0x18] sm:$0xff] %v183
                %v185 = vld [vmem:[%s175 + $0x20] sm:$0xff]
                %186 = vst [vmem:[%s176 + $0x20] sm:$0xff] %v185
                %v187 = vld [vmem:[%s175 + $0x28] sm:$0xff]
                %188 = vst [vmem:[%s176 + $0x28] sm:$0xff] %v187
                %v189 = vld [vmem:[%s175 + $0x30] sm:$0xff]
                %190 = vst [vmem:[%s176 + $0x30] sm:$0xff] %v189
                %v191 = vld [vmem:[%s175 + $0x38] sm:$0xff]
                %192 = vst [vmem:[%s176 + $0x38] sm:$0xff] %v191
                %v193 = vld [vmem:[%s175 + $0x40] sm:$0xff]
                %194 = vst [vmem:[%s176 + $0x40] sm:$0xff] %v193
                %v195 = vld [vmem:[%s175 + $0x48] sm:$0xff]
                %196 = vst [vmem:[%s176 + $0x48] sm:$0xff] %v195
                %v197 = vld [vmem:[%s175 + $0x50] sm:$0xff]
                %198 = vst [vmem:[%s176 + $0x50] sm:$0xff] %v197
                %v199 = vld [vmem:[%s175 + $0x58] sm:$0xff]
                %200 = vst [vmem:[%s176 + $0x58] sm:$0xff] %v199
                %v201 = vld [vmem:[%s175 + $0x60] sm:$0xff]
                %202 = vst [vmem:[%s176 + $0x60] sm:$0xff] %v201
                %v203 = vld [vmem:[%s175 + $0x68] sm:$0xff]
                %204 = vst [vmem:[%s176 + $0x68] sm:$0xff] %v203
                %v205 = vld [vmem:[%s175 + $0x70] sm:$0xff]
                %206 = vst [vmem:[%s176 + $0x70] sm:$0xff] %v205
                %v207 = vld [vmem:[%s175 + $0x78] sm:$0xff]
                %208 = vst [vmem:[%s176 + $0x78] sm:$0xff] %v207
                %v209 = vld [vmem:[%s175 + $0x80] sm:$0xff]
                %210 = vst [vmem:[%s176 + $0x80] sm:$0xff] %v209
                %v211 = vld [vmem:[%s175 + $0x88] sm:$0xff]
                %212 = vst [vmem:[%s176 + $0x88] sm:$0xff] %v211
                %v213 = vld [vmem:[%s175 + $0x128] sm:$0xff]
                %214 = vst [vmem:[%s176 + $0x94] sm:$0xff] %v213
                %v215 = vld [vmem:[%s175 + $0x130] sm:$0xff]
                %216 = vst [vmem:[%s176 + $0x9c] sm:$0xff] %v215
                %v217 = vld [vmem:[%s175 + $0x138] sm:$0xff]
                %218 = vst [vmem:[%s176 + $0xa4] sm:$0xff] %v217
                %v219 = vld [vmem:[%s175 + $0x140] sm:$0xff]
                %220 = vst [vmem:[%s176 + $0xac] sm:$0xff] %v219
                %v221 = vld [vmem:[%s175 + $0x148] sm:$0xff]
                %222 = vst [vmem:[%s176 + $0xb4] sm:$0xff] %v221
                %v223 = vld [vmem:[%s175 + $0x150] sm:$0xff]
                %224 = vst [vmem:[%s176 + $0xbc] sm:$0xff] %v223
                %v225 = vld [vmem:[%s175 + $0x158] sm:$0xff]
                %226 = vst [vmem:[%s176 + $0xc4] sm:$0xff] %v225
                %v227 = vld [vmem:[%s175 + $0x160] sm:$0xff]
                %228 = vst [vmem:[%s176 + $0xcc] sm:$0xff] %v227
                %v229 = vld [vmem:[%s175 + $0x168] sm:$0xff]
                %230 = vst [vmem:[%s176 + $0xd4] sm:$0xff] %v229
                %v231 = vld [vmem:[%s175 + $0x170] sm:$0xff]
                %232 = vst [vmem:[%s176 + $0xdc] sm:$0xff] %v231
                %v233 = vld [vmem:[%s175 + $0x178] sm:$0xff]
                %234 = vst [vmem:[%s176 + $0xe4] sm:$0xff] %v233
                %v235 = vld [vmem:[%s175 + $0x180] sm:$0xff]
                %236 = vst [vmem:[%s176 + $0xec] sm:$0xff] %v235
                %v237 = vld [vmem:[%s175 + $0x188] sm:$0xff]
                %238 = vst [vmem:[%s176 + $0xf4] sm:$0xff] %v237
                %v239 = vld [vmem:[%s175 + $0x190] sm:$0xff]
                %240 = vst [vmem:[%s176 + $0xfc] sm:$0xff] %v239
                %v241 = vld [vmem:[%s175 + $0x198] sm:$0xff]
                %242 = vst [vmem:[%s176 + $0x104] sm:$0xff] %v241
                %v243 = vld [vmem:[%s175 + $0x1a0] sm:$0xff]
                %244 = vst [vmem:[%s176 + $0x10c] sm:$0xff] %v243
                %v245 = vld [vmem:[%s175 + $0x1a8] sm:$0xff]
                %246 = vst [vmem:[%s176 + $0x114] sm:$0xff] %v245
                %v247 = vld [vmem:[%s175 + $0x1b0] sm:$0xff]
                %248 = vst [vmem:[%s176 + $0x11c] sm:$0xff] %v247
                %v249 = vld [vmem:[%s175 + $0x250] sm:$0xff]
                %250 = vst [vmem:[%s176 + $0x128] sm:$0xff] %v249
                %v251 = vld [vmem:[%s175 + $0x258] sm:$0xff]
                %252 = vst [vmem:[%s176 + $0x130] sm:$0xff] %v251
                %v253 = vld [vmem:[%s175 + $0x260] sm:$0xff]
                %254 = vst [vmem:[%s176 + $0x138] sm:$0xff] %v253
                %v255 = vld [vmem:[%s175 + $0x268] sm:$0xff]
                %256 = vst [vmem:[%s176 + $0x140] sm:$0xff] %v255
                %v257 = vld [vmem:[%s175 + $0x270] sm:$0xff]
                %258 = vst [vmem:[%s176 + $0x148] sm:$0xff] %v257
                %v259 = vld [vmem:[%s175 + $0x278] sm:$0xff]
                %260 = vst [vmem:[%s176 + $0x150] sm:$0xff] %v259
                %v261 = vld [vmem:[%s175 + $0x280] sm:$0xff]
                %262 = vst [vmem:[%s176 + $0x158] sm:$0xff] %v261
                %v263 = vld [vmem:[%s175 + $0x288] sm:$0xff]
                %264 = vst [vmem:[%s176 + $0x160] sm:$0xff] %v263
                %v265 = vld [vmem:[%s175 + $0x290] sm:$0xff]
                %266 = vst [vmem:[%s176 + $0x168] sm:$0xff] %v265
                %v267 = vld [vmem:[%s175 + $0x298] sm:$0xff]
                %268 = vst [vmem:[%s176 + $0x170] sm:$0xff] %v267
                %v269 = vld [vmem:[%s175 + $0x2a0] sm:$0xff]
                %270 = vst [vmem:[%s176 + $0x178] sm:$0xff] %v269
                %v271 = vld [vmem:[%s175 + $0x2a8] sm:$0xff]
                %272 = vst [vmem:[%s176 + $0x180] sm:$0xff] %v271
                %v273 = vld [vmem:[%s175 + $0x2b0] sm:$0xff]
                %274 = vst [vmem:[%s176 + $0x188] sm:$0xff] %v273
                %v275 = vld [vmem:[%s175 + $0x2b8] sm:$0xff]
                %276 = vst [vmem:[%s176 + $0x190] sm:$0xff] %v275
                %v277 = vld [vmem:[%s175 + $0x2c0] sm:$0xff]
                %278 = vst [vmem:[%s176 + $0x198] sm:$0xff] %v277
                %v279 = vld [vmem:[%s175 + $0x2c8] sm:$0xff]
                %280 = vst [vmem:[%s176 + $0x1a0] sm:$0xff] %v279
                %v281 = vld [vmem:[%s175 + $0x2d0] sm:$0xff]
                %282 = vst [vmem:[%s176 + $0x1a8] sm:$0xff] %v281
                %v283 = vld [vmem:[%s175 + $0x2d8] sm:$0xff]
                %284 = vst [vmem:[%s176 + $0x1b0] sm:$0xff] %v283
                %v285 = vld [vmem:[%s175 + $0x378] sm:$0xff]
                %286 = vst [vmem:[%s176 + $0x1bc] sm:$0xff] %v285
                %v287 = vld [vmem:[%s175 + $0x380] sm:$0xff]
                %288 = vst [vmem:[%s176 + $0x1c4] sm:$0xff] %v287
                %v289 = vld [vmem:[%s175 + $0x388] sm:$0xff]
                %290 = vst [vmem:[%s176 + $0x1cc] sm:$0xff] %v289
                %v291 = vld [vmem:[%s175 + $0x390] sm:$0xff]
                %292 = vst [vmem:[%s176 + $0x1d4] sm:$0xff] %v291
                %v293 = vld [vmem:[%s175 + $0x398] sm:$0xff]
                %294 = vst [vmem:[%s176 + $0x1dc] sm:$0xff] %v293
                %v295 = vld [vmem:[%s175 + $0x3a0] sm:$0xff]
                %296 = vst [vmem:[%s176 + $0x1e4] sm:$0xff] %v295
                %v297 = vld [vmem:[%s175 + $0x3a8] sm:$0xff]
                %298 = vst [vmem:[%s176 + $0x1ec] sm:$0xff] %v297
                %v299 = vld [vmem:[%s175 + $0x3b0] sm:$0xff]
                %300 = vst [vmem:[%s176 + $0x1f4] sm:$0xff] %v299
                %v301 = vld [vmem:[%s175 + $0x3b8] sm:$0xff]
                %302 = vst [vmem:[%s176 + $0x1fc] sm:$0xff] %v301
                %v303 = vld [vmem:[%s175 + $0x3c0] sm:$0xff]
                %304 = vst [vmem:[%s176 + $0x204] sm:$0xff] %v303
                %v305 = vld [vmem:[%s175 + $0x3c8] sm:$0xff]
                %306 = vst [vmem:[%s176 + $0x20c] sm:$0xff] %v305
                %v307 = vld [vmem:[%s175 + $0x3d0] sm:$0xff]
                %308 = vst [vmem:[%s176 + $0x214] sm:$0xff] %v307
                %v309 = vld [vmem:[%s175 + $0x3d8] sm:$0xff]
                %310 = vst [vmem:[%s176 + $0x21c] sm:$0xff] %v309
                %v311 = vld [vmem:[%s175 + $0x3e0] sm:$0xff]
                %312 = vst [vmem:[%s176 + $0x224] sm:$0xff] %v311
                %v313 = vld [vmem:[%s175 + $0x3e8] sm:$0xff]
                %314 = vst [vmem:[%s176 + $0x22c] sm:$0xff] %v313
                %v315 = vld [vmem:[%s175 + $0x3f0] sm:$0xff]
                %316 = vst [vmem:[%s176 + $0x234] sm:$0xff] %v315
                %v317 = vld [vmem:[%s175 + $0x3f8] sm:$0xff]
                %318 = vst [vmem:[%s176 + $0x23c] sm:$0xff] %v317
                %v319 = vld [vmem:[%s175 + $0x400] sm:$0xff]
                %320 = vst [vmem:[%s176 + $0x244] sm:$0xff] %v319
              $region45: #{stmamba_forward.3} parent=39 // loop_footer
                %s174 = sadd.s32 1, %s170
              $region46: #{stmamba_forward.3} parent=39 // loop_footer_branch
                %169 = sbr.rel target = $region42
              $region47: #{stmamba_forward.3} parent=39 // loop_exit
                _
              %s322 = ssub.s32 16, 1
              loop: start=0, step=1, limit=1
              $region48: #{stmamba_forward.3} parent=39 // loop_pre_header
                _
              $region49: #{stmamba_forward.3} parent=39 // loop_header
                %s324 = sphi 0, %s328
                %p325 = scmp.ge.s32.totalorder %s324, 1
                %s329 = sphi %s167, %s167
                %s330 = sphi %s168, %s168
              $region50: #{stmamba_forward.3} parent=39 // loop_header_branch
                %327 = sbr.rel (%p325) target = $region54
              $region51: #{stmamba_forward.3} parent=39 // loop_body
                %v331 = vld [vmem:[%s329] sm:%s322]
                %332 = vst [vmem:[%s330] sm:%s322] %v331
                %v333 = vld [vmem:[%s329 + $0x128] sm:%s322]
                %334 = vst [vmem:[%s330 + $0x94] sm:%s322] %v333
                %v335 = vld [vmem:[%s329 + $0x250] sm:%s322]
                %336 = vst [vmem:[%s330 + $0x128] sm:%s322] %v335
                %v337 = vld [vmem:[%s329 + $0x378] sm:%s322]
                %338 = vst [vmem:[%s330 + $0x1bc] sm:%s322] %v337
              $region52: #{stmamba_forward.3} parent=39 // loop_footer
                %s328 = sadd.s32 1, %s324
              $region53: #{stmamba_forward.3} parent=39 // loop_footer_branch
                %323 = sbr.rel target = $region49
              $region54: #{stmamba_forward.3} parent=39 // loop_exit
                _
            $region40: #{stmamba_forward.3} parent=35 // pred_fallthru
              _
          $region36: #{stmamba_forward.3} parent=31 // pred_fallthru
            _
          %339 = vnop
        $region32: #{stmamba_forward.3} parent=27 // pred_fallthru
          _
      $region28: #{stmamba_forward.3} parent=5 // pred_fallthru
        _
      %p340 = scmp.le.s32.totalorder 1, %s10
      %p341 = scmp.lt.s32.totalorder %s10, 3
      %p342 = pnand %p340, %p341
      %p343 = pneg %p342
      // Predicated region
      $region55: #{stmamba_forward.3} parent=5 // pred_check
        _
      $region56: #{stmamba_forward.3} parent=5 // pred_check_branch
        %345 = sbr.rel (%p342) target = $region58
      $region57: #{stmamba_forward.3} parent=5 // pred_region
        %s346 = ssub.s32 %s10, 1
        %s347 = sand.u32 %s44, 1
        %s348 = sand.u32 %s44, 1
        %s349 = smul.addr %s348, 592
        %s350 = scalar_lea.vmem [#allocation2], %s349
        // Predicated region
        $region59: #{stmamba_forward.3} parent=57 // pred_check
          %p351 = pneg %p57
        $region60: #{stmamba_forward.3} parent=57 // pred_check_branch
          %353 = sbr.rel (%p351) target = $region62
        $region61: #{stmamba_forward.3} parent=57 // pred_region
          _
        $region62: #{stmamba_forward.3} parent=57 // pred_fallthru
          _
        %p354 = pneg %p31
        %p355 = pneg %p28
        %s356 = sand.u32 %s44, 1
        %s357 = sand.u32 %s44, 1
        %s358 = smul.addr %s357, 592
        %s359 = scalar_lea.vmem [#allocation2], %s358
        %p360 = pneg %p57
        %p361 = pneg %p54
        %p362 = pneg %p78
        %p363 = pneg %p75
        %p364 = pneg %p99
        %p365 = pneg %p96
        %p366 = pneg %p125
        %p367 = pneg %p122
        %s368 = smul.u32 37, %s15
        %p369 = scmp.lt.s32.totalorder %s368, 73
        %s370 = scalar_select %p369, %s368, 73
        %s371 = smul.addr %s370, 8
        %s372 = scalar_lea.vmem %s4, %s371
        %s373 = smul.u32 37, %s15
        %s374 = smul.u32 37, %s15
        %p375 = scmp.lt.s32.totalorder %s374, 73
        %s376 = scalar_select %p375, %s374, 73
        %s377 = smul.addr %s376, 8
        %s378 = scalar_lea.vmem %s4, %s377
        %s379 = smul.u32 37, %s15
        %v381 = vld [vmem:[%s0] sm:$0xf]
        %v382 = vld [vmem:[%s350] sm:$0xff]
        %v383 = vld [vmem:[%s350 + $0x8] sm:$0xff]
        %v384 = vld [vmem:[%s350 + $0x10] sm:$0xff]
        %v385 = vld [vmem:[%s350 + $0x18] sm:$0xff]
        %v386 = vld [vmem:[%s350 + $0x20] sm:$0xff]
        %v387 = vld [vmem:[%s350 + $0x28] sm:$0xff]
        %v388 = vld [vmem:[%s350 + $0x30] sm:$0xff]
        %v389 = vld [vmem:[%s350 + $0x38] sm:$0xff]
        %v390 = vld [vmem:[%s350 + $0x40] sm:$0xff]
        %v391 = vld [vmem:[%s350 + $0x48] sm:$0xff]
        %v392 = vld [vmem:[%s350 + $0x50] sm:$0xff]
        %v393 = vld [vmem:[%s350 + $0x58] sm:$0xff]
        %v394 = vld [vmem:[%s350 + $0x60] sm:$0xff]
        %v395 = vld [vmem:[%s350 + $0x68] sm:$0xff]
        %v396 = vld [vmem:[%s350 + $0x70] sm:$0xff]
        %v397 = vld [vmem:[%s350 + $0x78] sm:$0xff]
        %v398 = vld [vmem:[%s350 + $0x80] sm:$0xff]
        %v399 = vld [vmem:[%s350 + $0x88] sm:$0xff]
        %v400 = vld [vmem:[%s350 + $0x90] sm:$0xf]
        %v401 = vld [vmem:[%s350 + $0x94] sm:$0xff]
        %v402 = vld [vmem:[%s350 + $0x9c] sm:$0xff]
        %v403 = vld [vmem:[%s350 + $0xa4] sm:$0xff]
        %v404 = vld [vmem:[%s350 + $0xac] sm:$0xff]
        %v405 = vld [vmem:[%s350 + $0xb4] sm:$0xff]
        %v406 = vld [vmem:[%s350 + $0xbc] sm:$0xff]
        %v407 = vld [vmem:[%s350 + $0xc4] sm:$0xff]
        %v408 = vld [vmem:[%s350 + $0xcc] sm:$0xff]
        %v409 = vld [vmem:[%s350 + $0xd4] sm:$0xff]
        %v410 = vld [vmem:[%s350 + $0xdc] sm:$0xff]
        %v411 = vld [vmem:[%s350 + $0xe4] sm:$0xff]
        %v412 = vld [vmem:[%s350 + $0xec] sm:$0xff]
        %v413 = vld [vmem:[%s350 + $0xf4] sm:$0xff]
        %v414 = vld [vmem:[%s350 + $0xfc] sm:$0xff]
        %v415 = vld [vmem:[%s350 + $0x104] sm:$0xff]
        %v416 = vld [vmem:[%s350 + $0x10c] sm:$0xff]
        %v417 = vld [vmem:[%s350 + $0x114] sm:$0xff]
        %v418 = vld [vmem:[%s350 + $0x11c] sm:$0xff]
        %v419 = vld [vmem:[%s350 + $0x124] sm:$0xf]
        %v420 = vld [vmem:[%s350 + $0x128] sm:$0xff]
        %v421 = vld [vmem:[%s350 + $0x130] sm:$0xff]
        %v422 = vld [vmem:[%s350 + $0x138] sm:$0xff]
        %v423 = vld [vmem:[%s350 + $0x140] sm:$0xff]
        %v424 = vld [vmem:[%s350 + $0x148] sm:$0xff]
        %v425 = vld [vmem:[%s350 + $0x150] sm:$0xff]
        %v426 = vld [vmem:[%s350 + $0x158] sm:$0xff]
        %v427 = vld [vmem:[%s350 + $0x160] sm:$0xff]
        %v428 = vld [vmem:[%s350 + $0x168] sm:$0xff]
        %v429 = vld [vmem:[%s350 + $0x170] sm:$0xff]
        %v430 = vld [vmem:[%s350 + $0x178] sm:$0xff]
        %v431 = vld [vmem:[%s350 + $0x180] sm:$0xff]
        %v432 = vld [vmem:[%s350 + $0x188] sm:$0xff]
        %v433 = vld [vmem:[%s350 + $0x190] sm:$0xff]
        %v434 = vld [vmem:[%s350 + $0x198] sm:$0xff]
        %v435 = vld [vmem:[%s350 + $0x1a0] sm:$0xff]
        %v436 = vld [vmem:[%s350 + $0x1a8] sm:$0xff]
        %v437 = vld [vmem:[%s350 + $0x1b0] sm:$0xff]
        %v438 = vld [vmem:[%s350 + $0x1b8] sm:$0xf]
        %v439 = vld [vmem:[%s350 + $0x1bc] sm:$0x33]
        %v440 = vld [vmem:[%s350 + $0x1c4] sm:$0x33]
        %v441 = vld [vmem:[%s350 + $0x1cc] sm:$0x33]
        %v442 = vld [vmem:[%s350 + $0x1d4] sm:$0x33]
        %v443 = vld [vmem:[%s350 + $0x1dc] sm:$0x33]
        %v444 = vld [vmem:[%s350 + $0x1e4] sm:$0x33]
        %v445 = vld [vmem:[%s350 + $0x1ec] sm:$0x33]
        %v446 = vld [vmem:[%s350 + $0x1f4] sm:$0x33]
        %v447 = vld [vmem:[%s350 + $0x1fc] sm:$0x33]
        %v448 = vld [vmem:[%s350 + $0x204] sm:$0x33]
        %v449 = vld [vmem:[%s350 + $0x20c] sm:$0x33]
        %v450 = vld [vmem:[%s350 + $0x214] sm:$0x33]
        %v451 = vld [vmem:[%s350 + $0x21c] sm:$0x33]
        %v452 = vld [vmem:[%s350 + $0x224] sm:$0x33]
        %v453 = vld [vmem:[%s350 + $0x22c] sm:$0x33]
        %v454 = vld [vmem:[%s350 + $0x234] sm:$0x33]
        %v455 = vld [vmem:[%s350 + $0x23c] sm:$0x33]
        %v456 = vld [vmem:[%s350 + $0x244] sm:$0x33]
        %v457 = vld [vmem:[%s350 + $0x24c] sm:$0x3]
        %v534 = vunpack.c.l.b16 %v382
        %v535 = vunpack.c.h.b16 %v382
        %v536 = vunpack.c.l.b16 %v383
        %v537 = vunpack.c.h.b16 %v383
        %v538 = vunpack.c.l.b16 %v384
        %v539 = vunpack.c.h.b16 %v384
        %v540 = vunpack.c.l.b16 %v385
        %v541 = vunpack.c.h.b16 %v385
        %v542 = vunpack.c.l.b16 %v386
        %v543 = vunpack.c.h.b16 %v386
        %v544 = vunpack.c.l.b16 %v387
        %v545 = vunpack.c.h.b16 %v387
        %v546 = vunpack.c.l.b16 %v388
        %v547 = vunpack.c.h.b16 %v388
        %v548 = vunpack.c.l.b16 %v389
        %v549 = vunpack.c.h.b16 %v389
        %v550 = vunpack.c.l.b16 %v390
        %v551 = vunpack.c.h.b16 %v390
        %v552 = vunpack.c.l.b16 %v391
        %v553 = vunpack.c.h.b16 %v391
        %v554 = vunpack.c.l.b16 %v392
        %v555 = vunpack.c.h.b16 %v392
        %v556 = vunpack.c.l.b16 %v393
        %v557 = vunpack.c.h.b16 %v393
        %v558 = vunpack.c.l.b16 %v394
        %v559 = vunpack.c.h.b16 %v394
        %v560 = vunpack.c.l.b16 %v395
        %v561 = vunpack.c.h.b16 %v395
        %v562 = vunpack.c.l.b16 %v396
        %v563 = vunpack.c.h.b16 %v396
        %v564 = vunpack.c.l.b16 %v397
        %v565 = vunpack.c.h.b16 %v397
        %v566 = vunpack.c.l.b16 %v398
        %v567 = vunpack.c.h.b16 %v398
        %v568 = vunpack.c.l.b16 %v399
        %v569 = vunpack.c.h.b16 %v399
        %v570 = vunpack.c.l.b16 %v400
        %v571 = vunpack.c.l.b16 %v401
        %v572 = vunpack.c.h.b16 %v401
        %v573 = vunpack.c.l.b16 %v402
        %v574 = vunpack.c.h.b16 %v402
        %v575 = vunpack.c.l.b16 %v403
        %v576 = vunpack.c.h.b16 %v403
        %v577 = vunpack.c.l.b16 %v404
        %v578 = vunpack.c.h.b16 %v404
        %v579 = vunpack.c.l.b16 %v405
        %v580 = vunpack.c.h.b16 %v405
        %v581 = vunpack.c.l.b16 %v406
        %v582 = vunpack.c.h.b16 %v406
        %v583 = vunpack.c.l.b16 %v407
        %v584 = vunpack.c.h.b16 %v407
        %v585 = vunpack.c.l.b16 %v408
        %v586 = vunpack.c.h.b16 %v408
        %v587 = vunpack.c.l.b16 %v409
        %v588 = vunpack.c.h.b16 %v409
        %v589 = vunpack.c.l.b16 %v410
        %v590 = vunpack.c.h.b16 %v410
        %v591 = vunpack.c.l.b16 %v411
        %v592 = vunpack.c.h.b16 %v411
        %v593 = vunpack.c.l.b16 %v412
        %v594 = vunpack.c.h.b16 %v412
        %v595 = vunpack.c.l.b16 %v413
        %v596 = vunpack.c.h.b16 %v413
        %v597 = vunpack.c.l.b16 %v414
        %v598 = vunpack.c.h.b16 %v414
        %v599 = vunpack.c.l.b16 %v415
        %v600 = vunpack.c.h.b16 %v415
        %v601 = vunpack.c.l.b16 %v416
        %v602 = vunpack.c.h.b16 %v416
        %v603 = vunpack.c.l.b16 %v417
        %v604 = vunpack.c.h.b16 %v417
        %v605 = vunpack.c.l.b16 %v418
        %v606 = vunpack.c.h.b16 %v418
        %v607 = vunpack.c.l.b16 %v419
        %v608 = vunpack.c.l.b16 %v420
        %v609 = vunpack.c.h.b16 %v420
        %v610 = vunpack.c.l.b16 %v421
        %v611 = vunpack.c.h.b16 %v421
        %v612 = vunpack.c.l.b16 %v422
        %v613 = vunpack.c.h.b16 %v422
        %v614 = vunpack.c.l.b16 %v423
        %v615 = vunpack.c.h.b16 %v423
        %v616 = vunpack.c.l.b16 %v424
        %v617 = vunpack.c.h.b16 %v424
        %v618 = vunpack.c.l.b16 %v425
        %v619 = vunpack.c.h.b16 %v425
        %v620 = vunpack.c.l.b16 %v426
        %v621 = vunpack.c.h.b16 %v426
        %v622 = vunpack.c.l.b16 %v427
        %v623 = vunpack.c.h.b16 %v427
        %v624 = vunpack.c.l.b16 %v428
        %v625 = vunpack.c.h.b16 %v428
        %v626 = vunpack.c.l.b16 %v429
        %v627 = vunpack.c.h.b16 %v429
        %v628 = vunpack.c.l.b16 %v430
        %v629 = vunpack.c.h.b16 %v430
        %v630 = vunpack.c.l.b16 %v431
        %v631 = vunpack.c.h.b16 %v431
        %v632 = vunpack.c.l.b16 %v432
        %v633 = vunpack.c.h.b16 %v432
        %v634 = vunpack.c.l.b16 %v433
        %v635 = vunpack.c.h.b16 %v433
        %v636 = vunpack.c.l.b16 %v434
        %v637 = vunpack.c.h.b16 %v434
        %v638 = vunpack.c.l.b16 %v435
        %v639 = vunpack.c.h.b16 %v435
        %v640 = vunpack.c.l.b16 %v436
        %v641 = vunpack.c.h.b16 %v436
        %v642 = vunpack.c.l.b16 %v437
        %v643 = vunpack.c.h.b16 %v437
        %v644 = vunpack.c.l.b16 %v438
        %v645 = vunpack.c.l.b16 %v439
        %v646 = vunpack.c.h.b16 %v439
        %v647 = vunpack.c.l.b16 %v440
        %v648 = vunpack.c.h.b16 %v440
        %v649 = vunpack.c.l.b16 %v441
        %v650 = vunpack.c.h.b16 %v441
        %v651 = vunpack.c.l.b16 %v442
        %v652 = vunpack.c.h.b16 %v442
        %v653 = vunpack.c.l.b16 %v443
        %v654 = vunpack.c.h.b16 %v443
        %v655 = vunpack.c.l.b16 %v444
        %v656 = vunpack.c.h.b16 %v444
        %v657 = vunpack.c.l.b16 %v445
        %v658 = vunpack.c.h.b16 %v445
        %v659 = vunpack.c.l.b16 %v446
        %v660 = vunpack.c.h.b16 %v446
        %v661 = vunpack.c.l.b16 %v447
        %v662 = vunpack.c.h.b16 %v447
        %v663 = vunpack.c.l.b16 %v448
        %v664 = vunpack.c.h.b16 %v448
        %v665 = vunpack.c.l.b16 %v449
        %v666 = vunpack.c.h.b16 %v449
        %v667 = vunpack.c.l.b16 %v450
        %v668 = vunpack.c.h.b16 %v450
        %v669 = vunpack.c.l.b16 %v451
        %v670 = vunpack.c.h.b16 %v451
        %v671 = vunpack.c.l.b16 %v452
        %v672 = vunpack.c.h.b16 %v452
        %v673 = vunpack.c.l.b16 %v453
        %v674 = vunpack.c.h.b16 %v453
        %v675 = vunpack.c.l.b16 %v454
        %v676 = vunpack.c.h.b16 %v454
        %v677 = vunpack.c.l.b16 %v455
        %v678 = vunpack.c.h.b16 %v455
        %v679 = vunpack.c.l.b16 %v456
        %v680 = vunpack.c.h.b16 %v456
        %v681 = vunpack.c.l.b16 %v457
        %v682 = vpack.c.b16 %v571, %v534
        %v683 = vpack.c.b16 %v572, %v535
        %v684 = vpack.c.b16 %v573, %v536
        %v685 = vpack.c.b16 %v574, %v537
        %v686 = vpack.c.b16 %v575, %v538
        %v687 = vpack.c.b16 %v576, %v539
        %v688 = vpack.c.b16 %v577, %v540
        %v689 = vpack.c.b16 %v578, %v541
        %v690 = vpack.c.b16 %v579, %v542
        %v691 = vpack.c.b16 %v580, %v543
        %v692 = vpack.c.b16 %v581, %v544
        %v693 = vpack.c.b16 %v582, %v545
        %v694 = vpack.c.b16 %v583, %v546
        %v695 = vpack.c.b16 %v584, %v547
        %v696 = vpack.c.b16 %v585, %v548
        %v697 = vpack.c.b16 %v586, %v549
        %v698 = vpack.c.b16 %v587, %v550
        %v699 = vpack.c.b16 %v588, %v551
        %v700 = vpack.c.b16 %v589, %v552
        %v701 = vpack.c.b16 %v590, %v553
        %v702 = vpack.c.b16 %v591, %v554
        %v703 = vpack.c.b16 %v592, %v555
        %v704 = vpack.c.b16 %v593, %v556
        %v705 = vpack.c.b16 %v594, %v557
        %v706 = vpack.c.b16 %v595, %v558
        %v707 = vpack.c.b16 %v596, %v559
        %v708 = vpack.c.b16 %v597, %v560
        %v709 = vpack.c.b16 %v598, %v561
        %v710 = vpack.c.b16 %v599, %v562
        %v711 = vpack.c.b16 %v600, %v563
        %v712 = vpack.c.b16 %v601, %v564
        %v713 = vpack.c.b16 %v602, %v565
        %v714 = vpack.c.b16 %v603, %v566
        %v715 = vpack.c.b16 %v604, %v567
        %v716 = vpack.c.b16 %v605, %v568
        %v717 = vpack.c.b16 %v606, %v569
        %v718 = vpack.c.b16 %v607, %v570
        %v719 = vpack.c.b16 %v645, %v608
        %v720 = vpack.c.b16 %v646, %v609
        %v721 = vpack.c.b16 %v647, %v610
        %v722 = vpack.c.b16 %v648, %v611
        %v723 = vpack.c.b16 %v649, %v612
        %v724 = vpack.c.b16 %v650, %v613
        %v725 = vpack.c.b16 %v651, %v614
        %v726 = vpack.c.b16 %v652, %v615
        %v727 = vpack.c.b16 %v653, %v616
        %v728 = vpack.c.b16 %v654, %v617
        %v729 = vpack.c.b16 %v655, %v618
        %v730 = vpack.c.b16 %v656, %v619
        %v731 = vpack.c.b16 %v657, %v620
        %v732 = vpack.c.b16 %v658, %v621
        %v733 = vpack.c.b16 %v659, %v622
        %v734 = vpack.c.b16 %v660, %v623
        %v735 = vpack.c.b16 %v661, %v624
        %v736 = vpack.c.b16 %v662, %v625
        %v737 = vpack.c.b16 %v663, %v626
        %v738 = vpack.c.b16 %v664, %v627
        %v739 = vpack.c.b16 %v665, %v628
        %v740 = vpack.c.b16 %v666, %v629
        %v741 = vpack.c.b16 %v667, %v630
        %v742 = vpack.c.b16 %v668, %v631
        %v743 = vpack.c.b16 %v669, %v632
        %v744 = vpack.c.b16 %v670, %v633
        %v745 = vpack.c.b16 %v671, %v634
        %v746 = vpack.c.b16 %v672, %v635
        %v747 = vpack.c.b16 %v673, %v636
        %v748 = vpack.c.b16 %v674, %v637
        %v749 = vpack.c.b16 %v675, %v638
        %v750 = vpack.c.b16 %v676, %v639
        %v751 = vpack.c.b16 %v677, %v640
        %v752 = vpack.c.b16 %v678, %v641
        %v753 = vpack.c.b16 %v679, %v642
        %v754 = vpack.c.b16 %v680, %v643
        %v755 = vpack.c.b16 %v681, %v644
        %vm793 = vcmask 220160
        %v795 = vsel %vm793, %v381, 0
        %vm797 = vcmask 1044480
        %vm798 = vcmask 1045504
        %v799 = vsel %vm797, 4294967295, 65535
        %v800 = vsel %vm798, %v799, 0
        %v802 = vand.u32 %v719, %v800
        %v805 = vand.u32 %v720, %v800
        %v808 = vand.u32 %v721, %v800
        %v811 = vand.u32 %v722, %v800
        %v814 = vand.u32 %v723, %v800
        %v817 = vand.u32 %v724, %v800
        %v820 = vand.u32 %v725, %v800
        %v823 = vand.u32 %v726, %v800
        %v826 = vand.u32 %v727, %v800
        %v829 = vand.u32 %v728, %v800
        %v832 = vand.u32 %v729, %v800
        %v835 = vand.u32 %v730, %v800
        %v838 = vand.u32 %v731, %v800
        %v841 = vand.u32 %v732, %v800
        %v844 = vand.u32 %v733, %v800
        %v847 = vand.u32 %v734, %v800
        %v850 = vand.u32 %v735, %v800
        %v853 = vand.u32 %v736, %v800
        %v856 = vand.u32 %v737, %v800
        %v859 = vand.u32 %v738, %v800
        %v862 = vand.u32 %v739, %v800
        %v865 = vand.u32 %v740, %v800
        %v868 = vand.u32 %v741, %v800
        %v871 = vand.u32 %v742, %v800
        %v874 = vand.u32 %v743, %v800
        %v877 = vand.u32 %v744, %v800
        %v880 = vand.u32 %v745, %v800
        %v883 = vand.u32 %v746, %v800
        %v886 = vand.u32 %v747, %v800
        %v889 = vand.u32 %v748, %v800
        %v892 = vand.u32 %v749, %v800
        %v895 = vand.u32 %v750, %v800
        %v898 = vand.u32 %v751, %v800
        %v901 = vand.u32 %v752, %v800
        %v904 = vand.u32 %v753, %v800
        %v907 = vand.u32 %v754, %v800
        %v910 = vand.u32 %v755, %v800
        %912 = vmatprep.subr.bf16.mxu0 0
        %913 = vmatpush1.bf16.msra.mxu0 0
        %914 = vmatprep.subr.bf16.mxu0 0
        %915 = vmatpush1.bf16.msra.mxu0 0
        %916 = vmatprep.subr.bf16.mxu0 0
        %917 = vmatpush1.bf16.msra.mxu0 0
        %918 = vmatprep.subr.bf16.mxu0 0
        %919 = vmatpush1.bf16.msra.mxu0 0
        %920 = vmatprep.subr.bf16.mxu0 0
        %921 = vmatpush1.bf16.msra.mxu0 0
        %922 = vmatprep.subr.bf16.mxu0 0
        %923 = vmatpush1.bf16.msra.mxu0 0
        %924 = vmatprep.subr.bf16.mxu0 %v805
        %925 = vmatpush1.bf16.msra.mxu0 %v802
        %926 = vmatprep.subr.bf16.mxu0 %v683
        %927 = vmatpush1.bf16.msra.mxu0 %v682
        %928 = vmatprep.subr.bf16.mxu0 0
        %929 = vmatpush2.bf16.msra.mxu0 0
        %930 = vmatprep.subr.bf16.mxu0 0
        %931 = vmatpush2.bf16.msra.mxu0 0
        %932 = vmatprep.subr.bf16.mxu0 0
        %933 = vmatpush2.bf16.msra.mxu0 0
        %934 = vmatprep.subr.bf16.mxu0 0
        %935 = vmatpush2.bf16.msra.mxu0 0
        %936 = vmatprep.subr.bf16.mxu0 0
        %937 = vmatpush2.bf16.msra.mxu0 0
        %938 = vmatprep.subr.bf16.mxu0 0
        %939 = vmatpush2.bf16.msra.mxu0 0
        %940 = vmatprep.subr.bf16.mxu0 0
        %941 = vmatpush2.bf16.msra.mxu0 0
        %942 = vmatprep.subr.bf16.mxu0 0
        %943 = vmatpush2.bf16.msra.mxu0 0
        %944 = vmatprep.mubr.bf16.mxu0 0
        %945 = vmatmul.mubr.bf16.gmra.mxu0 %v795
        %v946 = vpop.f32.mrf.mxu0
        %v947 = vadd.f32 0.0, %v946
        %v948 = vpop.f32.mrf.mxu0
        %v949 = vadd.f32 0.0, %v948
        %v950 = vpop.f32.mrf.mxu0
        %v951 = vpop.f32.mrf.mxu0
        %952 = vdwg.mxu0
        %953 = vmatprep.subr.bf16.mxu0 0
        %954 = vmatpush1.bf16.msra.mxu0 0
        %955 = vmatprep.subr.bf16.mxu0 0
        %956 = vmatpush1.bf16.msra.mxu0 0
        %957 = vmatprep.subr.bf16.mxu0 0
        %958 = vmatpush1.bf16.msra.mxu0 0
        %959 = vmatprep.subr.bf16.mxu0 0
        %960 = vmatpush1.bf16.msra.mxu0 0
        %961 = vmatprep.subr.bf16.mxu0 0
        %962 = vmatpush1.bf16.msra.mxu0 0
        %963 = vmatprep.subr.bf16.mxu0 0
        %964 = vmatpush1.bf16.msra.mxu0 0
        %965 = vmatprep.subr.bf16.mxu0 %v811
        %966 = vmatpush1.bf16.msra.mxu0 %v808
        %967 = vmatprep.subr.bf16.mxu0 %v685
        %968 = vmatpush1.bf16.msra.mxu0 %v684
        %969 = vmatprep.subr.bf16.mxu0 0
        %970 = vmatpush2.bf16.msra.mxu0 0
        %971 = vmatprep.subr.bf16.mxu0 0
        %972 = vmatpush2.bf16.msra.mxu0 0
        %973 = vmatprep.subr.bf16.mxu0 0
        %974 = vmatpush2.bf16.msra.mxu0 0
        %975 = vmatprep.subr.bf16.mxu0 0
        %976 = vmatpush2.bf16.msra.mxu0 0
        %977 = vmatprep.subr.bf16.mxu0 0
        %978 = vmatpush2.bf16.msra.mxu0 0
        %979 = vmatprep.subr.bf16.mxu0 0
        %980 = vmatpush2.bf16.msra.mxu0 0
        %981 = vmatprep.subr.bf16.mxu0 0
        %982 = vmatpush2.bf16.msra.mxu0 0
        %983 = vmatprep.subr.bf16.mxu0 0
        %984 = vmatpush2.bf16.msra.mxu0 0
        %985 = vmatprep.mubr.bf16.mxu0 0
        %986 = vmatmul.mubr.bf16.gmra.mxu0 %v795
        %v987 = vpop.f32.mrf.mxu0
        %v988 = vadd.f32 0.0, %v987
        %v989 = vpop.f32.mrf.mxu0
        %v990 = vadd.f32 0.0, %v989
        %v991 = vpop.f32.mrf.mxu0
        %v992 = vpop.f32.mrf.mxu0
        %993 = vdwg.mxu0
        %994 = vmatprep.subr.bf16.mxu0 0
        %995 = vmatpush1.bf16.msra.mxu0 0
        %996 = vmatprep.subr.bf16.mxu0 0
        %997 = vmatpush1.bf16.msra.mxu0 0
        %998 = vmatprep.subr.bf16.mxu0 0
        %999 = vmatpush1.bf16.msra.mxu0 0
        %1000 = vmatprep.subr.bf16.mxu0 0
        %1001 = vmatpush1.bf16.msra.mxu0 0
        %1002 = vmatprep.subr.bf16.mxu0 0
        %1003 = vmatpush1.bf16.msra.mxu0 0
        %1004 = vmatprep.subr.bf16.mxu0 0
        %1005 = vmatpush1.bf16.msra.mxu0 0
        %1006 = vmatprep.subr.bf16.mxu0 %v817
        %1007 = vmatpush1.bf16.msra.mxu0 %v814
        %1008 = vmatprep.subr.bf16.mxu0 %v687
        %1009 = vmatpush1.bf16.msra.mxu0 %v686
        %1010 = vmatprep.subr.bf16.mxu0 0
        %1011 = vmatpush2.bf16.msra.mxu0 0
        %1012 = vmatprep.subr.bf16.mxu0 0
        %1013 = vmatpush2.bf16.msra.mxu0 0
        %1014 = vmatprep.subr.bf16.mxu0 0
        %1015 = vmatpush2.bf16.msra.mxu0 0
        %1016 = vmatprep.subr.bf16.mxu0 0
        %1017 = vmatpush2.bf16.msra.mxu0 0
        %1018 = vmatprep.subr.bf16.mxu0 0
        %1019 = vmatpush2.bf16.msra.mxu0 0
        %1020 = vmatprep.subr.bf16.mxu0 0
        %1021 = vmatpush2.bf16.msra.mxu0 0
        %1022 = vmatprep.subr.bf16.mxu0 0
        %1023 = vmatpush2.bf16.msra.mxu0 0
        %1024 = vmatprep.subr.bf16.mxu0 0
        %1025 = vmatpush2.bf16.msra.mxu0 0
        %1026 = vmatprep.mubr.bf16.mxu0 0
        %1027 = vmatmul.mubr.bf16.gmra.mxu0 %v795
        %v1028 = vpop.f32.mrf.mxu0
        %v1029 = vadd.f32 0.0, %v1028
        %v1030 = vpop.f32.mrf.mxu0
        %v1031 = vadd.f32 0.0, %v1030
        %v1032 = vpop.f32.mrf.mxu0
        %v1033 = vpop.f32.mrf.mxu0
        %1034 = vdwg.mxu0
        %1035 = vmatprep.subr.bf16.mxu0 0
        %1036 = vmatpush1.bf16.msra.mxu0 0
        %1037 = vmatprep.subr.bf16.mxu0 0
        %1038 = vmatpush1.bf16.msra.mxu0 0
        %1039 = vmatprep.subr.bf16.mxu0 0
        %1040 = vmatpush1.bf16.msra.mxu0 0
        %1041 = vmatprep.subr.bf16.mxu0 0
        %1042 = vmatpush1.bf16.msra.mxu0 0
        %1043 = vmatprep.subr.bf16.mxu0 0
        %1044 = vmatpush1.bf16.msra.mxu0 0
        %1045 = vmatprep.subr.bf16.mxu0 0
        %1046 = vmatpush1.bf16.msra.mxu0 0
        %1047 = vmatprep.subr.bf16.mxu0 %v823
        %1048 = vmatpush1.bf16.msra.mxu0 %v820
        %1049 = vmatprep.subr.bf16.mxu0 %v689
        %1050 = vmatpush1.bf16.msra.mxu0 %v688
        %1051 = vmatprep.subr.bf16.mxu0 0
        %1052 = vmatpush2.bf16.msra.mxu0 0
        %1053 = vmatprep.subr.bf16.mxu0 0
        %1054 = vmatpush2.bf16.msra.mxu0 0
        %1055 = vmatprep.subr.bf16.mxu0 0
        %1056 = vmatpush2.bf16.msra.mxu0 0
        %1057 = vmatprep.subr.bf16.mxu0 0
        %1058 = vmatpush2.bf16.msra.mxu0 0
        %1059 = vmatprep.subr.bf16.mxu0 0
        %1060 = vmatpush2.bf16.msra.mxu0 0
        %1061 = vmatprep.subr.bf16.mxu0 0
        %1062 = vmatpush2.bf16.msra.mxu0 0
        %1063 = vmatprep.subr.bf16.mxu0 0
        %1064 = vmatpush2.bf16.msra.mxu0 0
        %1065 = vmatprep.subr.bf16.mxu0 0
        %1066 = vmatpush2.bf16.msra.mxu0 0
        %1067 = vmatprep.mubr.bf16.mxu0 0
        %1068 = vmatmul.mubr.bf16.gmra.mxu0 %v795
        %v1069 = vpop.f32.mrf.mxu0
        %v1070 = vadd.f32 0.0, %v1069
        %v1071 = vpop.f32.mrf.mxu0
        %v1072 = vadd.f32 0.0, %v1071
        %v1073 = vpop.f32.mrf.mxu0
        %v1074 = vpop.f32.mrf.mxu0
        %1075 = vdwg.mxu0
        %1076 = vmatprep.subr.bf16.mxu0 0
        %1077 = vmatpush1.bf16.msra.mxu0 0
        %1078 = vmatprep.subr.bf16.mxu0 0
        %1079 = vmatpush1.bf16.msra.mxu0 0
        %1080 = vmatprep.subr.bf16.mxu0 0
        %1081 = vmatpush1.bf16.msra.mxu0 0
        %1082 = vmatprep.subr.bf16.mxu0 0
        %1083 = vmatpush1.bf16.msra.mxu0 0
        %1084 = vmatprep.subr.bf16.mxu0 0
        %1085 = vmatpush1.bf16.msra.mxu0 0
        %1086 = vmatprep.subr.bf16.mxu0 0
        %1087 = vmatpush1.bf16.msra.mxu0 0
        %1088 = vmatprep.subr.bf16.mxu0 %v829
        %1089 = vmatpush1.bf16.msra.mxu0 %v826
        %1090 = vmatprep.subr.bf16.mxu0 %v691
        %1091 = vmatpush1.bf16.msra.mxu0 %v690
        %1092 = vmatprep.subr.bf16.mxu0 0
        %1093 = vmatpush2.bf16.msra.mxu0 0
        %1094 = vmatprep.subr.bf16.mxu0 0
        %1095 = vmatpush2.bf16.msra.mxu0 0
        %1096 = vmatprep.subr.bf16.mxu0 0
        %1097 = vmatpush2.bf16.msra.mxu0 0
        %1098 = vmatprep.subr.bf16.mxu0 0
        %1099 = vmatpush2.bf16.msra.mxu0 0
        %1100 = vmatprep.subr.bf16.mxu0 0
        %1101 = vmatpush2.bf16.msra.mxu0 0
        %1102 = vmatprep.subr.bf16.mxu0 0
        %1103 = vmatpush2.bf16.msra.mxu0 0
        %1104 = vmatprep.subr.bf16.mxu0 0
        %1105 = vmatpush2.bf16.msra.mxu0 0
        %1106 = vmatprep.subr.bf16.mxu0 0
        %1107 = vmatpush2.bf16.msra.mxu0 0
        %1108 = vmatprep.mubr.bf16.mxu0 0
        %1109 = vmatmul.mubr.bf16.gmra.mxu0 %v795
        %v1110 = vpop.f32.mrf.mxu0
        %v1111 = vadd.f32 0.0, %v1110
        %v1112 = vpop.f32.mrf.mxu0
        %v1113 = vadd.f32 0.0, %v1112
        %v1114 = vpop.f32.mrf.mxu0
        %v1115 = vpop.f32.mrf.mxu0
        %1116 = vdwg.mxu0
        %1117 = vmatprep.subr.bf16.mxu0 0
        %1118 = vmatpush1.bf16.msra.mxu0 0
        %1119 = vmatprep.subr.bf16.mxu0 0
        %1120 = vmatpush1.bf16.msra.mxu0 0
        %1121 = vmatprep.subr.bf16.mxu0 0
        %1122 = vmatpush1.bf16.msra.mxu0 0
        %1123 = vmatprep.subr.bf16.mxu0 0
        %1124 = vmatpush1.bf16.msra.mxu0 0
        %1125 = vmatprep.subr.bf16.mxu0 0
        %1126 = vmatpush1.bf16.msra.mxu0 0
        %1127 = vmatprep.subr.bf16.mxu0 0
        %1128 = vmatpush1.bf16.msra.mxu0 0
        %1129 = vmatprep.subr.bf16.mxu0 %v835
        %1130 = vmatpush1.bf16.msra.mxu0 %v832
        %1131 = vmatprep.subr.bf16.mxu0 %v693
        %1132 = vmatpush1.bf16.msra.mxu0 %v692
        %1133 = vmatprep.subr.bf16.mxu0 0
        %1134 = vmatpush2.bf16.msra.mxu0 0
        %1135 = vmatprep.subr.bf16.mxu0 0
        %1136 = vmatpush2.bf16.msra.mxu0 0
        %1137 = vmatprep.subr.bf16.mxu0 0
        %1138 = vmatpush2.bf16.msra.mxu0 0
        %1139 = vmatprep.subr.bf16.mxu0 0
        %1140 = vmatpush2.bf16.msra.mxu0 0
        %1141 = vmatprep.subr.bf16.mxu0 0
        %1142 = vmatpush2.bf16.msra.mxu0 0
        %1143 = vmatprep.subr.bf16.mxu0 0
        %1144 = vmatpush2.bf16.msra.mxu0 0
        %1145 = vmatprep.subr.bf16.mxu0 0
        %1146 = vmatpush2.bf16.msra.mxu0 0
        %1147 = vmatprep.subr.bf16.mxu0 0
        %1148 = vmatpush2.bf16.msra.mxu0 0
        %1149 = vmatprep.mubr.bf16.mxu0 0
        %1150 = vmatmul.mubr.bf16.gmra.mxu0 %v795
        %v1151 = vpop.f32.mrf.mxu0
        %v1152 = vadd.f32 0.0, %v1151
        %v1153 = vpop.f32.mrf.mxu0
        %v1154 = vadd.f32 0.0, %v1153
        %v1155 = vpop.f32.mrf.mxu0
        %v1156 = vpop.f32.mrf.mxu0
        %1157 = vdwg.mxu0
        %1158 = vmatprep.subr.bf16.mxu0 0
        %1159 = vmatpush1.bf16.msra.mxu0 0
        %1160 = vmatprep.subr.bf16.mxu0 0
        %1161 = vmatpush1.bf16.msra.mxu0 0
        %1162 = vmatprep.subr.bf16.mxu0 0
        %1163 = vmatpush1.bf16.msra.mxu0 0
        %1164 = vmatprep.subr.bf16.mxu0 0
        %1165 = vmatpush1.bf16.msra.mxu0 0
        %1166 = vmatprep.subr.bf16.mxu0 0
        %1167 = vmatpush1.bf16.msra.mxu0 0
        %1168 = vmatprep.subr.bf16.mxu0 0
        %1169 = vmatpush1.bf16.msra.mxu0 0
        %1170 = vmatprep.subr.bf16.mxu0 %v841
        %1171 = vmatpush1.bf16.msra.mxu0 %v838
        %1172 = vmatprep.subr.bf16.mxu0 %v695
        %1173 = vmatpush1.bf16.msra.mxu0 %v694
        %1174 = vmatprep.subr.bf16.mxu0 0
        %1175 = vmatpush2.bf16.msra.mxu0 0
        %1176 = vmatprep.subr.bf16.mxu0 0
        %1177 = vmatpush2.bf16.msra.mxu0 0
        %1178 = vmatprep.subr.bf16.mxu0 0
        %1179 = vmatpush2.bf16.msra.mxu0 0
        %1180 = vmatprep.subr.bf16.mxu0 0
        %1181 = vmatpush2.bf16.msra.mxu0 0
        %1182 = vmatprep.subr.bf16.mxu0 0
        %1183 = vmatpush2.bf16.msra.mxu0 0
        %1184 = vmatprep.subr.bf16.mxu0 0
        %1185 = vmatpush2.bf16.msra.mxu0 0
        %1186 = vmatprep.subr.bf16.mxu0 0
        %1187 = vmatpush2.bf16.msra.mxu0 0
        %1188 = vmatprep.subr.bf16.mxu0 0
        %1189 = vmatpush2.bf16.msra.mxu0 0
        %1190 = vmatprep.mubr.bf16.mxu0 0
        %1191 = vmatmul.mubr.bf16.gmra.mxu0 %v795
        %v1192 = vpop.f32.mrf.mxu0
        %v1193 = vadd.f32 0.0, %v1192
        %v1194 = vpop.f32.mrf.mxu0
        %v1195 = vadd.f32 0.0, %v1194
        %v1196 = vpop.f32.mrf.mxu0
        %v1197 = vpop.f32.mrf.mxu0
        %1198 = vdwg.mxu0
        %1199 = vmatprep.subr.bf16.mxu0 0
        %1200 = vmatpush1.bf16.msra.mxu0 0
        %1201 = vmatprep.subr.bf16.mxu0 0
        %1202 = vmatpush1.bf16.msra.mxu0 0
        %1203 = vmatprep.subr.bf16.mxu0 0
        %1204 = vmatpush1.bf16.msra.mxu0 0
        %1205 = vmatprep.subr.bf16.mxu0 0
        %1206 = vmatpush1.bf16.msra.mxu0 0
        %1207 = vmatprep.subr.bf16.mxu0 0
        %1208 = vmatpush1.bf16.msra.mxu0 0
        %1209 = vmatprep.subr.bf16.mxu0 0
        %1210 = vmatpush1.bf16.msra.mxu0 0
        %1211 = vmatprep.subr.bf16.mxu0 %v847
        %1212 = vmatpush1.bf16.msra.mxu0 %v844
        %1213 = vmatprep.subr.bf16.mxu0 %v697
        %1214 = vmatpush1.bf16.msra.mxu0 %v696
        %1215 = vmatprep.subr.bf16.mxu0 0
        %1216 = vmatpush2.bf16.msra.mxu0 0
        %1217 = vmatprep.subr.bf16.mxu0 0
        %1218 = vmatpush2.bf16.msra.mxu0 0
        %1219 = vmatprep.subr.bf16.mxu0 0
        %1220 = vmatpush2.bf16.msra.mxu0 0
        %1221 = vmatprep.subr.bf16.mxu0 0
        %1222 = vmatpush2.bf16.msra.mxu0 0
        %1223 = vmatprep.subr.bf16.mxu0 0
        %1224 = vmatpush2.bf16.msra.mxu0 0
        %1225 = vmatprep.subr.bf16.mxu0 0
        %1226 = vmatpush2.bf16.msra.mxu0 0
        %1227 = vmatprep.subr.bf16.mxu0 0
        %1228 = vmatpush2.bf16.msra.mxu0 0
        %1229 = vmatprep.subr.bf16.mxu0 0
        %1230 = vmatpush2.bf16.msra.mxu0 0
        %1231 = vmatprep.mubr.bf16.mxu0 0
        %1232 = vmatmul.mubr.bf16.gmra.mxu0 %v795
        %v1233 = vpop.f32.mrf.mxu0
        %v1234 = vadd.f32 0.0, %v1233
        %v1235 = vpop.f32.mrf.mxu0
        %v1236 = vadd.f32 0.0, %v1235
        %v1237 = vpop.f32.mrf.mxu0
        %v1238 = vpop.f32.mrf.mxu0
        %1239 = vdwg.mxu0
        %1240 = vmatprep.subr.bf16.mxu0 0
        %1241 = vmatpush1.bf16.msra.mxu0 0
        %1242 = vmatprep.subr.bf16.mxu0 0
        %1243 = vmatpush1.bf16.msra.mxu0 0
        %1244 = vmatprep.subr.bf16.mxu0 0
        %1245 = vmatpush1.bf16.msra.mxu0 0
        %1246 = vmatprep.subr.bf16.mxu0 0
        %1247 = vmatpush1.bf16.msra.mxu0 0
        %1248 = vmatprep.subr.bf16.mxu0 0
        %1249 = vmatpush1.bf16.msra.mxu0 0
        %1250 = vmatprep.subr.bf16.mxu0 0
        %1251 = vmatpush1.bf16.msra.mxu0 0
        %1252 = vmatprep.subr.bf16.mxu0 %v853
        %1253 = vmatpush1.bf16.msra.mxu0 %v850
        %1254 = vmatprep.subr.bf16.mxu0 %v699
        %1255 = vmatpush1.bf16.msra.mxu0 %v698
        %1256 = vmatprep.subr.bf16.mxu0 0
        %1257 = vmatpush2.bf16.msra.mxu0 0
        %1258 = vmatprep.subr.bf16.mxu0 0
        %1259 = vmatpush2.bf16.msra.mxu0 0
        %1260 = vmatprep.subr.bf16.mxu0 0
        %1261 = vmatpush2.bf16.msra.mxu0 0
        %1262 = vmatprep.subr.bf16.mxu0 0
        %1263 = vmatpush2.bf16.msra.mxu0 0
        %1264 = vmatprep.subr.bf16.mxu0 0
        %1265 = vmatpush2.bf16.msra.mxu0 0
        %1266 = vmatprep.subr.bf16.mxu0 0
        %1267 = vmatpush2.bf16.msra.mxu0 0
        %1268 = vmatprep.subr.bf16.mxu0 0
        %1269 = vmatpush2.bf16.msra.mxu0 0
        %1270 = vmatprep.subr.bf16.mxu0 0
        %1271 = vmatpush2.bf16.msra.mxu0 0
        %1272 = vmatprep.mubr.bf16.mxu0 0
        %1273 = vmatmul.mubr.bf16.gmra.mxu0 %v795
        %v1274 = vpop.f32.mrf.mxu0
        %v1275 = vadd.f32 0.0, %v1274
        %v1276 = vpop.f32.mrf.mxu0
        %v1277 = vadd.f32 0.0, %v1276
        %v1278 = vpop.f32.mrf.mxu0
        %v1279 = vpop.f32.mrf.mxu0
        %1280 = vdwg.mxu0
        %1281 = vmatprep.subr.bf16.mxu0 0
        %1282 = vmatpush1.bf16.msra.mxu0 0
        %1283 = vmatprep.subr.bf16.mxu0 0
        %1284 = vmatpush1.bf16.msra.mxu0 0
        %1285 = vmatprep.subr.bf16.mxu0 0
        %1286 = vmatpush1.bf16.msra.mxu0 0
        %1287 = vmatprep.subr.bf16.mxu0 0
        %1288 = vmatpush1.bf16.msra.mxu0 0
        %1289 = vmatprep.subr.bf16.mxu0 0
        %1290 = vmatpush1.bf16.msra.mxu0 0
        %1291 = vmatprep.subr.bf16.mxu0 0
        %1292 = vmatpush1.bf16.msra.mxu0 0
        %1293 = vmatprep.subr.bf16.mxu0 %v859
        %1294 = vmatpush1.bf16.msra.mxu0 %v856
        %1295 = vmatprep.subr.bf16.mxu0 %v701
        %1296 = vmatpush1.bf16.msra.mxu0 %v700
        %1297 = vmatprep.subr.bf16.mxu0 0
        %1298 = vmatpush2.bf16.msra.mxu0 0
        %1299 = vmatprep.subr.bf16.mxu0 0
        %1300 = vmatpush2.bf16.msra.mxu0 0
        %1301 = vmatprep.subr.bf16.mxu0 0
        %1302 = vmatpush2.bf16.msra.mxu0 0
        %1303 = vmatprep.subr.bf16.mxu0 0
        %1304 = vmatpush2.bf16.msra.mxu0 0
        %1305 = vmatprep.subr.bf16.mxu0 0
        %1306 = vmatpush2.bf16.msra.mxu0 0
        %1307 = vmatprep.subr.bf16.mxu0 0
        %1308 = vmatpush2.bf16.msra.mxu0 0
        %1309 = vmatprep.subr.bf16.mxu0 0
        %1310 = vmatpush2.bf16.msra.mxu0 0
        %1311 = vmatprep.subr.bf16.mxu0 0
        %1312 = vmatpush2.bf16.msra.mxu0 0
        %1313 = vmatprep.mubr.bf16.mxu0 0
        %1314 = vmatmul.mubr.bf16.gmra.mxu0 %v795
        %v1315 = vpop.f32.mrf.mxu0
        %v1316 = vadd.f32 0.0, %v1315
        %v1317 = vpop.f32.mrf.mxu0
        %v1318 = vadd.f32 0.0, %v1317
        %v1319 = vpop.f32.mrf.mxu0
        %v1320 = vpop.f32.mrf.mxu0
        %1321 = vdwg.mxu0
        %1322 = vmatprep.subr.bf16.mxu0 0
        %1323 = vmatpush1.bf16.msra.mxu0 0
        %1324 = vmatprep.subr.bf16.mxu0 0
        %1325 = vmatpush1.bf16.msra.mxu0 0
        %1326 = vmatprep.subr.bf16.mxu0 0
        %1327 = vmatpush1.bf16.msra.mxu0 0
        %1328 = vmatprep.subr.bf16.mxu0 0
        %1329 = vmatpush1.bf16.msra.mxu0 0
        %1330 = vmatprep.subr.bf16.mxu0 0
        %1331 = vmatpush1.bf16.msra.mxu0 0
        %1332 = vmatprep.subr.bf16.mxu0 0
        %1333 = vmatpush1.bf16.msra.mxu0 0
        %1334 = vmatprep.subr.bf16.mxu0 %v865
        %1335 = vmatpush1.bf16.msra.mxu0 %v862
        %1336 = vmatprep.subr.bf16.mxu0 %v703
        %1337 = vmatpush1.bf16.msra.mxu0 %v702
        %1338 = vmatprep.subr.bf16.mxu0 0
        %1339 = vmatpush2.bf16.msra.mxu0 0
        %1340 = vmatprep.subr.bf16.mxu0 0
        %1341 = vmatpush2.bf16.msra.mxu0 0
        %1342 = vmatprep.subr.bf16.mxu0 0
        %1343 = vmatpush2.bf16.msra.mxu0 0
        %1344 = vmatprep.subr.bf16.mxu0 0
        %1345 = vmatpush2.bf16.msra.mxu0 0
        %1346 = vmatprep.subr.bf16.mxu0 0
        %1347 = vmatpush2.bf16.msra.mxu0 0
        %1348 = vmatprep.subr.bf16.mxu0 0
        %1349 = vmatpush2.bf16.msra.mxu0 0
        %1350 = vmatprep.subr.bf16.mxu0 0
        %1351 = vmatpush2.bf16.msra.mxu0 0
        %1352 = vmatprep.subr.bf16.mxu0 0
        %1353 = vmatpush2.bf16.msra.mxu0 0
        %1354 = vmatprep.mubr.bf16.mxu0 0
        %1355 = vmatmul.mubr.bf16.gmra.mxu0 %v795
        %v1356 = vpop.f32.mrf.mxu0
        %v1357 = vadd.f32 0.0, %v1356
        %v1358 = vpop.f32.mrf.mxu0
        %v1359 = vadd.f32 0.0, %v1358
        %v1360 = vpop.f32.mrf.mxu0
        %v1361 = vpop.f32.mrf.mxu0
        %1362 = vdwg.mxu0
        %1363 = vmatprep.subr.bf16.mxu0 0
        %1364 = vmatpush1.bf16.msra.mxu0 0
        %1365 = vmatprep.subr.bf16.mxu0 0
        %1366 = vmatpush1.bf16.msra.mxu0 0
        %1367 = vmatprep.subr.bf16.mxu0 0
        %1368 = vmatpush1.bf16.msra.mxu0 0
        %1369 = vmatprep.subr.bf16.mxu0 0
        %1370 = vmatpush1.bf16.msra.mxu0 0
        %1371 = vmatprep.subr.bf16.mxu0 0
        %1372 = vmatpush1.bf16.msra.mxu0 0
        %1373 = vmatprep.subr.bf16.mxu0 0
        %1374 = vmatpush1.bf16.msra.mxu0 0
        %1375 = vmatprep.subr.bf16.mxu0 %v871
        %1376 = vmatpush1.bf16.msra.mxu0 %v868
        %1377 = vmatprep.subr.bf16.mxu0 %v705
        %1378 = vmatpush1.bf16.msra.mxu0 %v704
        %1379 = vmatprep.subr.bf16.mxu0 0
        %1380 = vmatpush2.bf16.msra.mxu0 0
        %1381 = vmatprep.subr.bf16.mxu0 0
        %1382 = vmatpush2.bf16.msra.mxu0 0
        %1383 = vmatprep.subr.bf16.mxu0 0
        %1384 = vmatpush2.bf16.msra.mxu0 0
        %1385 = vmatprep.subr.bf16.mxu0 0
        %1386 = vmatpush2.bf16.msra.mxu0 0
        %1387 = vmatprep.subr.bf16.mxu0 0
        %1388 = vmatpush2.bf16.msra.mxu0 0
        %1389 = vmatprep.subr.bf16.mxu0 0
        %1390 = vmatpush2.bf16.msra.mxu0 0
        %1391 = vmatprep.subr.bf16.mxu0 0
        %1392 = vmatpush2.bf16.msra.mxu0 0
        %1393 = vmatprep.subr.bf16.mxu0 0
        %1394 = vmatpush2.bf16.msra.mxu0 0
        %1395 = vmatprep.mubr.bf16.mxu0 0
        %1396 = vmatmul.mubr.bf16.gmra.mxu0 %v795
        %v1397 = vpop.f32.mrf.mxu0
        %v1398 = vadd.f32 0.0, %v1397
        %v1399 = vpop.f32.mrf.mxu0
        %v1400 = vadd.f32 0.0, %v1399
        %v1401 = vpop.f32.mrf.mxu0
        %v1402 = vpop.f32.mrf.mxu0
        %1403 = vdwg.mxu0
        %1404 = vmatprep.subr.bf16.mxu0 0
        %1405 = vmatpush1.bf16.msra.mxu0 0
        %1406 = vmatprep.subr.bf16.mxu0 0
        %1407 = vmatpush1.bf16.msra.mxu0 0
        %1408 = vmatprep.subr.bf16.mxu0 0
        %1409 = vmatpush1.bf16.msra.mxu0 0
        %1410 = vmatprep.subr.bf16.mxu0 0
        %1411 = vmatpush1.bf16.msra.mxu0 0
        %1412 = vmatprep.subr.bf16.mxu0 0
        %1413 = vmatpush1.bf16.msra.mxu0 0
        %1414 = vmatprep.subr.bf16.mxu0 0
        %1415 = vmatpush1.bf16.msra.mxu0 0
        %1416 = vmatprep.subr.bf16.mxu0 %v877
        %1417 = vmatpush1.bf16.msra.mxu0 %v874
        %1418 = vmatprep.subr.bf16.mxu0 %v707
        %1419 = vmatpush1.bf16.msra.mxu0 %v706
        %1420 = vmatprep.subr.bf16.mxu0 0
        %1421 = vmatpush2.bf16.msra.mxu0 0
        %1422 = vmatprep.subr.bf16.mxu0 0
        %1423 = vmatpush2.bf16.msra.mxu0 0
        %1424 = vmatprep.subr.bf16.mxu0 0
        %1425 = vmatpush2.bf16.msra.mxu0 0
        %1426 = vmatprep.subr.bf16.mxu0 0
        %1427 = vmatpush2.bf16.msra.mxu0 0
        %1428 = vmatprep.subr.bf16.mxu0 0
        %1429 = vmatpush2.bf16.msra.mxu0 0
        %1430 = vmatprep.subr.bf16.mxu0 0
        %1431 = vmatpush2.bf16.msra.mxu0 0
        %1432 = vmatprep.subr.bf16.mxu0 0
        %1433 = vmatpush2.bf16.msra.mxu0 0
        %1434 = vmatprep.subr.bf16.mxu0 0
        %1435 = vmatpush2.bf16.msra.mxu0 0
        %1436 = vmatprep.mubr.bf16.mxu0 0
        %1437 = vmatmul.mubr.bf16.gmra.mxu0 %v795
        %v1438 = vpop.f32.mrf.mxu0
        %v1439 = vadd.f32 0.0, %v1438
        %v1440 = vpop.f32.mrf.mxu0
        %v1441 = vadd.f32 0.0, %v1440
        %v1442 = vpop.f32.mrf.mxu0
        %v1443 = vpop.f32.mrf.mxu0
        %1444 = vdwg.mxu0
        %1445 = vmatprep.subr.bf16.mxu0 0
        %1446 = vmatpush1.bf16.msra.mxu0 0
        %1447 = vmatprep.subr.bf16.mxu0 0
        %1448 = vmatpush1.bf16.msra.mxu0 0
        %1449 = vmatprep.subr.bf16.mxu0 0
        %1450 = vmatpush1.bf16.msra.mxu0 0
        %1451 = vmatprep.subr.bf16.mxu0 0
        %1452 = vmatpush1.bf16.msra.mxu0 0
        %1453 = vmatprep.subr.bf16.mxu0 0
        %1454 = vmatpush1.bf16.msra.mxu0 0
        %1455 = vmatprep.subr.bf16.mxu0 0
        %1456 = vmatpush1.bf16.msra.mxu0 0
        %1457 = vmatprep.subr.bf16.mxu0 %v883
        %1458 = vmatpush1.bf16.msra.mxu0 %v880
        %1459 = vmatprep.subr.bf16.mxu0 %v709
        %1460 = vmatpush1.bf16.msra.mxu0 %v708
        %1461 = vmatprep.subr.bf16.mxu0 0
        %1462 = vmatpush2.bf16.msra.mxu0 0
        %1463 = vmatprep.subr.bf16.mxu0 0
        %1464 = vmatpush2.bf16.msra.mxu0 0
        %1465 = vmatprep.subr.bf16.mxu0 0
        %1466 = vmatpush2.bf16.msra.mxu0 0
        %1467 = vmatprep.subr.bf16.mxu0 0
        %1468 = vmatpush2.bf16.msra.mxu0 0
        %1469 = vmatprep.subr.bf16.mxu0 0
        %1470 = vmatpush2.bf16.msra.mxu0 0
        %1471 = vmatprep.subr.bf16.mxu0 0
        %1472 = vmatpush2.bf16.msra.mxu0 0
        %1473 = vmatprep.subr.bf16.mxu0 0
        %1474 = vmatpush2.bf16.msra.mxu0 0
        %1475 = vmatprep.subr.bf16.mxu0 0
        %1476 = vmatpush2.bf16.msra.mxu0 0
        %1477 = vmatprep.mubr.bf16.mxu0 0
        %1478 = vmatmul.mubr.bf16.gmra.mxu0 %v795
        %v1479 = vpop.f32.mrf.mxu0
        %v1480 = vadd.f32 0.0, %v1479
        %v1481 = vpop.f32.mrf.mxu0
        %v1482 = vadd.f32 0.0, %v1481
        %v1483 = vpop.f32.mrf.mxu0
        %v1484 = vpop.f32.mrf.mxu0
        %1485 = vdwg.mxu0
        %1486 = vmatprep.subr.bf16.mxu0 0
        %1487 = vmatpush1.bf16.msra.mxu0 0
        %1488 = vmatprep.subr.bf16.mxu0 0
        %1489 = vmatpush1.bf16.msra.mxu0 0
        %1490 = vmatprep.subr.bf16.mxu0 0
        %1491 = vmatpush1.bf16.msra.mxu0 0
        %1492 = vmatprep.subr.bf16.mxu0 0
        %1493 = vmatpush1.bf16.msra.mxu0 0
        %1494 = vmatprep.subr.bf16.mxu0 0
        %1495 = vmatpush1.bf16.msra.mxu0 0
        %1496 = vmatprep.subr.bf16.mxu0 0
        %1497 = vmatpush1.bf16.msra.mxu0 0
        %1498 = vmatprep.subr.bf16.mxu0 %v889
        %1499 = vmatpush1.bf16.msra.mxu0 %v886
        %1500 = vmatprep.subr.bf16.mxu0 %v711
        %1501 = vmatpush1.bf16.msra.mxu0 %v710
        %1502 = vmatprep.subr.bf16.mxu0 0
        %1503 = vmatpush2.bf16.msra.mxu0 0
        %1504 = vmatprep.subr.bf16.mxu0 0
        %1505 = vmatpush2.bf16.msra.mxu0 0
        %1506 = vmatprep.subr.bf16.mxu0 0
        %1507 = vmatpush2.bf16.msra.mxu0 0
        %1508 = vmatprep.subr.bf16.mxu0 0
        %1509 = vmatpush2.bf16.msra.mxu0 0
        %1510 = vmatprep.subr.bf16.mxu0 0
        %1511 = vmatpush2.bf16.msra.mxu0 0
        %1512 = vmatprep.subr.bf16.mxu0 0
        %1513 = vmatpush2.bf16.msra.mxu0 0
        %1514 = vmatprep.subr.bf16.mxu0 0
        %1515 = vmatpush2.bf16.msra.mxu0 0
        %1516 = vmatprep.subr.bf16.mxu0 0
        %1517 = vmatpush2.bf16.msra.mxu0 0
        %1518 = vmatprep.mubr.bf16.mxu0 0
        %1519 = vmatmul.mubr.bf16.gmra.mxu0 %v795
        %v1520 = vpop.f32.mrf.mxu0
        %v1521 = vadd.f32 0.0, %v1520
        %v1522 = vpop.f32.mrf.mxu0
        %v1523 = vadd.f32 0.0, %v1522
        %v1524 = vpop.f32.mrf.mxu0
        %v1525 = vpop.f32.mrf.mxu0
        %1526 = vdwg.mxu0
        %1527 = vmatprep.subr.bf16.mxu0 0
        %1528 = vmatpush1.bf16.msra.mxu0 0
        %1529 = vmatprep.subr.bf16.mxu0 0
        %1530 = vmatpush1.bf16.msra.mxu0 0
        %1531 = vmatprep.subr.bf16.mxu0 0
        %1532 = vmatpush1.bf16.msra.mxu0 0
        %1533 = vmatprep.subr.bf16.mxu0 0
        %1534 = vmatpush1.bf16.msra.mxu0 0
        %1535 = vmatprep.subr.bf16.mxu0 0
        %1536 = vmatpush1.bf16.msra.mxu0 0
        %1537 = vmatprep.subr.bf16.mxu0 0
        %1538 = vmatpush1.bf16.msra.mxu0 0
        %1539 = vmatprep.subr.bf16.mxu0 %v895
        %1540 = vmatpush1.bf16.msra.mxu0 %v892
        %1541 = vmatprep.subr.bf16.mxu0 %v713
        %1542 = vmatpush1.bf16.msra.mxu0 %v712
        %1543 = vmatprep.subr.bf16.mxu0 0
        %1544 = vmatpush2.bf16.msra.mxu0 0
        %1545 = vmatprep.subr.bf16.mxu0 0
        %1546 = vmatpush2.bf16.msra.mxu0 0
        %1547 = vmatprep.subr.bf16.mxu0 0
        %1548 = vmatpush2.bf16.msra.mxu0 0
        %1549 = vmatprep.subr.bf16.mxu0 0
        %1550 = vmatpush2.bf16.msra.mxu0 0
        %1551 = vmatprep.subr.bf16.mxu0 0
        %1552 = vmatpush2.bf16.msra.mxu0 0
        %1553 = vmatprep.subr.bf16.mxu0 0
        %1554 = vmatpush2.bf16.msra.mxu0 0
        %1555 = vmatprep.subr.bf16.mxu0 0
        %1556 = vmatpush2.bf16.msra.mxu0 0
        %1557 = vmatprep.subr.bf16.mxu0 0
        %1558 = vmatpush2.bf16.msra.mxu0 0
        %1559 = vmatprep.mubr.bf16.mxu0 0
        %1560 = vmatmul.mubr.bf16.gmra.mxu0 %v795
        %v1561 = vpop.f32.mrf.mxu0
        %v1562 = vadd.f32 0.0, %v1561
        %v1563 = vpop.f32.mrf.mxu0
        %v1564 = vadd.f32 0.0, %v1563
        %v1565 = vpop.f32.mrf.mxu0
        %v1566 = vpop.f32.mrf.mxu0
        %1567 = vdwg.mxu0
        %1568 = vmatprep.subr.bf16.mxu0 0
        %1569 = vmatpush1.bf16.msra.mxu0 0
        %1570 = vmatprep.subr.bf16.mxu0 0
        %1571 = vmatpush1.bf16.msra.mxu0 0
        %1572 = vmatprep.subr.bf16.mxu0 0
        %1573 = vmatpush1.bf16.msra.mxu0 0
        %1574 = vmatprep.subr.bf16.mxu0 0
        %1575 = vmatpush1.bf16.msra.mxu0 0
        %1576 = vmatprep.subr.bf16.mxu0 0
        %1577 = vmatpush1.bf16.msra.mxu0 0
        %1578 = vmatprep.subr.bf16.mxu0 0
        %1579 = vmatpush1.bf16.msra.mxu0 0
        %1580 = vmatprep.subr.bf16.mxu0 %v901
        %1581 = vmatpush1.bf16.msra.mxu0 %v898
        %1582 = vmatprep.subr.bf16.mxu0 %v715
        %1583 = vmatpush1.bf16.msra.mxu0 %v714
        %1584 = vmatprep.subr.bf16.mxu0 0
        %1585 = vmatpush2.bf16.msra.mxu0 0
        %1586 = vmatprep.subr.bf16.mxu0 0
        %1587 = vmatpush2.bf16.msra.mxu0 0
        %1588 = vmatprep.subr.bf16.mxu0 0
        %1589 = vmatpush2.bf16.msra.mxu0 0
        %1590 = vmatprep.subr.bf16.mxu0 0
        %1591 = vmatpush2.bf16.msra.mxu0 0
        %1592 = vmatprep.subr.bf16.mxu0 0
        %1593 = vmatpush2.bf16.msra.mxu0 0
        %1594 = vmatprep.subr.bf16.mxu0 0
        %1595 = vmatpush2.bf16.msra.mxu0 0
        %1596 = vmatprep.subr.bf16.mxu0 0
        %1597 = vmatpush2.bf16.msra.mxu0 0
        %1598 = vmatprep.subr.bf16.mxu0 0
        %1599 = vmatpush2.bf16.msra.mxu0 0
        %1600 = vmatprep.mubr.bf16.mxu0 0
        %1601 = vmatmul.mubr.bf16.gmra.mxu0 %v795
        %v1602 = vpop.f32.mrf.mxu0
        %v1603 = vadd.f32 0.0, %v1602
        %v1604 = vpop.f32.mrf.mxu0
        %v1605 = vadd.f32 0.0, %v1604
        %v1606 = vpop.f32.mrf.mxu0
        %v1607 = vpop.f32.mrf.mxu0
        %1608 = vdwg.mxu0
        %1609 = vmatprep.subr.bf16.mxu0 0
        %1610 = vmatpush1.bf16.msra.mxu0 0
        %1611 = vmatprep.subr.bf16.mxu0 0
        %1612 = vmatpush1.bf16.msra.mxu0 0
        %1613 = vmatprep.subr.bf16.mxu0 0
        %1614 = vmatpush1.bf16.msra.mxu0 0
        %1615 = vmatprep.subr.bf16.mxu0 0
        %1616 = vmatpush1.bf16.msra.mxu0 0
        %1617 = vmatprep.subr.bf16.mxu0 0
        %1618 = vmatpush1.bf16.msra.mxu0 0
        %1619 = vmatprep.subr.bf16.mxu0 0
        %1620 = vmatpush1.bf16.msra.mxu0 0
        %1621 = vmatprep.subr.bf16.mxu0 %v907
        %1622 = vmatpush1.bf16.msra.mxu0 %v904
        %1623 = vmatprep.subr.bf16.mxu0 %v717
        %1624 = vmatpush1.bf16.msra.mxu0 %v716
        %1625 = vmatprep.subr.bf16.mxu0 0
        %1626 = vmatpush2.bf16.msra.mxu0 0
        %1627 = vmatprep.subr.bf16.mxu0 0
        %1628 = vmatpush2.bf16.msra.mxu0 0
        %1629 = vmatprep.subr.bf16.mxu0 0
        %1630 = vmatpush2.bf16.msra.mxu0 0
        %1631 = vmatprep.subr.bf16.mxu0 0
        %1632 = vmatpush2.bf16.msra.mxu0 0
        %1633 = vmatprep.subr.bf16.mxu0 0
        %1634 = vmatpush2.bf16.msra.mxu0 0
        %1635 = vmatprep.subr.bf16.mxu0 0
        %1636 = vmatpush2.bf16.msra.mxu0 0
        %1637 = vmatprep.subr.bf16.mxu0 0
        %1638 = vmatpush2.bf16.msra.mxu0 0
        %1639 = vmatprep.subr.bf16.mxu0 0
        %1640 = vmatpush2.bf16.msra.mxu0 0
        %1641 = vmatprep.mubr.bf16.mxu0 0
        %1642 = vmatmul.mubr.bf16.gmra.mxu0 %v795
        %v1643 = vpop.f32.mrf.mxu0
        %v1644 = vadd.f32 0.0, %v1643
        %v1645 = vpop.f32.mrf.mxu0
        %v1646 = vadd.f32 0.0, %v1645
        %v1647 = vpop.f32.mrf.mxu0
        %v1648 = vpop.f32.mrf.mxu0
        %1649 = vdwg.mxu0
        %1650 = vmatprep.subr.bf16.mxu0 0
        %1651 = vmatpush1.bf16.msra.mxu0 0
        %1652 = vmatprep.subr.bf16.mxu0 0
        %1653 = vmatpush1.bf16.msra.mxu0 0
        %1654 = vmatprep.subr.bf16.mxu0 0
        %1655 = vmatpush1.bf16.msra.mxu0 0
        %1656 = vmatprep.subr.bf16.mxu0 0
        %1657 = vmatpush1.bf16.msra.mxu0 0
        %1658 = vmatprep.subr.bf16.mxu0 0
        %1659 = vmatpush1.bf16.msra.mxu0 0
        %1660 = vmatprep.subr.bf16.mxu0 0
        %1661 = vmatpush1.bf16.msra.mxu0 0
        %1662 = vmatprep.subr.bf16.mxu0 0
        %1663 = vmatpush1.bf16.msra.mxu0 %v910
        %1664 = vmatprep.subr.bf16.mxu0 0
        %1665 = vmatpush1.bf16.msra.mxu0 %v718
        %1666 = vmatprep.subr.bf16.mxu0 0
        %1667 = vmatpush2.bf16.msra.mxu0 0
        %1668 = vmatprep.subr.bf16.mxu0 0
        %1669 = vmatpush2.bf16.msra.mxu0 0
        %1670 = vmatprep.subr.bf16.mxu0 0
        %1671 = vmatpush2.bf16.msra.mxu0 0
        %1672 = vmatprep.subr.bf16.mxu0 0
        %1673 = vmatpush2.bf16.msra.mxu0 0
        %1674 = vmatprep.subr.bf16.mxu0 0
        %1675 = vmatpush2.bf16.msra.mxu0 0
        %1676 = vmatprep.subr.bf16.mxu0 0
        %1677 = vmatpush2.bf16.msra.mxu0 0
        %1678 = vmatprep.subr.bf16.mxu0 0
        %1679 = vmatpush2.bf16.msra.mxu0 0
        %1680 = vmatprep.subr.bf16.mxu0 0
        %1681 = vmatpush2.bf16.msra.mxu0 0
        %1682 = vmatprep.mubr.bf16.mxu0 0
        %1683 = vmatmul.mubr.bf16.gmra.mxu0 %v795
        %v1684 = vpop.f32.mrf.mxu0
        %v1685 = vadd.f32 0.0, %v1684
        %v1686 = vpop.f32.mrf.mxu0
        %v1687 = vpop.f32.mrf.mxu0
        %v1688 = vpop.f32.mrf.mxu0
        %1689 = vdwg.mxu0
        %v1690 = vld [vmem:[%s2] sm:$0xff]
        %1692 = vset.pattern.permute.xlu0 0
        %1693 = vperm.xlu0 %1692, %v1690
        %v1694 = vpop.permute.xlu0 %1693
        %v1696 = vmul.f32 %v947, %v1694
        %v1697 = vmul.f32 %v949, %v1694
        %v1698 = vmul.f32 %v988, %v1694
        %v1699 = vmul.f32 %v990, %v1694
        %v1700 = vmul.f32 %v1029, %v1694
        %v1701 = vmul.f32 %v1031, %v1694
        %v1702 = vmul.f32 %v1070, %v1694
        %v1703 = vmul.f32 %v1072, %v1694
        %v1704 = vmul.f32 %v1111, %v1694
        %v1705 = vmul.f32 %v1113, %v1694
        %v1706 = vmul.f32 %v1152, %v1694
        %v1707 = vmul.f32 %v1154, %v1694
        %v1708 = vmul.f32 %v1193, %v1694
        %v1709 = vmul.f32 %v1195, %v1694
        %v1710 = vmul.f32 %v1234, %v1694
        %v1711 = vmul.f32 %v1236, %v1694
        %v1712 = vmul.f32 %v1275, %v1694
        %v1713 = vmul.f32 %v1277, %v1694
        %v1714 = vmul.f32 %v1316, %v1694
        %v1715 = vmul.f32 %v1318, %v1694
        %v1716 = vmul.f32 %v1357, %v1694
        %v1717 = vmul.f32 %v1359, %v1694
        %v1718 = vmul.f32 %v1398, %v1694
        %v1719 = vmul.f32 %v1400, %v1694
        %v1720 = vmul.f32 %v1439, %v1694
        %v1721 = vmul.f32 %v1441, %v1694
        %v1722 = vmul.f32 %v1480, %v1694
        %v1723 = vmul.f32 %v1482, %v1694
        %v1724 = vmul.f32 %v1521, %v1694
        %v1725 = vmul.f32 %v1523, %v1694
        %v1726 = vmul.f32 %v1562, %v1694
        %v1727 = vmul.f32 %v1564, %v1694
        %v1728 = vmul.f32 %v1603, %v1694
        %v1729 = vmul.f32 %v1605, %v1694
        %v1730 = vmul.f32 %v1644, %v1694
        %v1731 = vmul.f32 %v1646, %v1694
        %v1732 = vmul.f32 %v1685, %v1694
        %v1733 = vld [vmem:[%s3] sm:$0xff]
        %1735 = vset.pattern.permute.xlu0 0
        %1736 = vperm.xlu0 %1735, %v1733
        %v1737 = vpop.permute.xlu0 %1736
        %v1739 = vadd.f32 %v1696, %v1737
        %v1740 = vadd.f32 %v1697, %v1737
        %v1741 = vadd.f32 %v1698, %v1737
        %v1742 = vadd.f32 %v1699, %v1737
        %v1743 = vadd.f32 %v1700, %v1737
        %v1744 = vadd.f32 %v1701, %v1737
        %v1745 = vadd.f32 %v1702, %v1737
        %v1746 = vadd.f32 %v1703, %v1737
        %v1747 = vadd.f32 %v1704, %v1737
        %v1748 = vadd.f32 %v1705, %v1737
        %v1749 = vadd.f32 %v1706, %v1737
        %v1750 = vadd.f32 %v1707, %v1737
        %v1751 = vadd.f32 %v1708, %v1737
        %v1752 = vadd.f32 %v1709, %v1737
        %v1753 = vadd.f32 %v1710, %v1737
        %v1754 = vadd.f32 %v1711, %v1737
        %v1755 = vadd.f32 %v1712, %v1737
        %v1756 = vadd.f32 %v1713, %v1737
        %v1757 = vadd.f32 %v1714, %v1737
        %v1758 = vadd.f32 %v1715, %v1737
        %v1759 = vadd.f32 %v1716, %v1737
        %v1760 = vadd.f32 %v1717, %v1737
        %v1761 = vadd.f32 %v1718, %v1737
        %v1762 = vadd.f32 %v1719, %v1737
        %v1763 = vadd.f32 %v1720, %v1737
        %v1764 = vadd.f32 %v1721, %v1737
        %v1765 = vadd.f32 %v1722, %v1737
        %v1766 = vadd.f32 %v1723, %v1737
        %v1767 = vadd.f32 %v1724, %v1737
        %v1768 = vadd.f32 %v1725, %v1737
        %v1769 = vadd.f32 %v1726, %v1737
        %v1770 = vadd.f32 %v1727, %v1737
        %v1771 = vadd.f32 %v1728, %v1737
        %v1772 = vadd.f32 %v1729, %v1737
        %v1773 = vadd.f32 %v1730, %v1737
        %v1774 = vadd.f32 %v1731, %v1737
        %v1775 = vadd.f32 %v1732, %v1737
        %v1776 = vmax.f32 %v1739, 0.0
        %v1777 = vmax.f32 %v1740, 0.0
        %v1778 = vmax.f32 %v1741, 0.0
        %v1779 = vmax.f32 %v1742, 0.0
        %v1780 = vmax.f32 %v1743, 0.0
        %v1781 = vmax.f32 %v1744, 0.0
        %v1782 = vmax.f32 %v1745, 0.0
        %v1783 = vmax.f32 %v1746, 0.0
        %v1784 = vmax.f32 %v1747, 0.0
        %v1785 = vmax.f32 %v1748, 0.0
        %v1786 = vmax.f32 %v1749, 0.0
        %v1787 = vmax.f32 %v1750, 0.0
        %v1788 = vmax.f32 %v1751, 0.0
        %v1789 = vmax.f32 %v1752, 0.0
        %v1790 = vmax.f32 %v1753, 0.0
        %v1791 = vmax.f32 %v1754, 0.0
        %v1792 = vmax.f32 %v1755, 0.0
        %v1793 = vmax.f32 %v1756, 0.0
        %v1794 = vmax.f32 %v1757, 0.0
        %v1795 = vmax.f32 %v1758, 0.0
        %v1796 = vmax.f32 %v1759, 0.0
        %v1797 = vmax.f32 %v1760, 0.0
        %v1798 = vmax.f32 %v1761, 0.0
        %v1799 = vmax.f32 %v1762, 0.0
        %v1800 = vmax.f32 %v1763, 0.0
        %v1801 = vmax.f32 %v1764, 0.0
        %v1802 = vmax.f32 %v1765, 0.0
        %v1803 = vmax.f32 %v1766, 0.0
        %v1804 = vmax.f32 %v1767, 0.0
        %v1805 = vmax.f32 %v1768, 0.0
        %v1806 = vmax.f32 %v1769, 0.0
        %v1807 = vmax.f32 %v1770, 0.0
        %v1808 = vmax.f32 %v1771, 0.0
        %v1809 = vmax.f32 %v1772, 0.0
        %v1810 = vmax.f32 %v1773, 0.0
        %v1811 = vmax.f32 %v1774, 0.0
        %v1812 = vmax.f32 %v1775, 0.0
        %1813 = vst [vmem:[%s378] sm:$0xff] %v1776
        %1814 = vst [vmem:[%s378 + $0x8] sm:$0xff] %v1777
        %1815 = vst [vmem:[%s378 + $0x10] sm:$0xff] %v1778
        %1816 = vst [vmem:[%s378 + $0x18] sm:$0xff] %v1779
        %1817 = vst [vmem:[%s378 + $0x20] sm:$0xff] %v1780
        %1818 = vst [vmem:[%s378 + $0x28] sm:$0xff] %v1781
        %1819 = vst [vmem:[%s378 + $0x30] sm:$0xff] %v1782
        %1820 = vst [vmem:[%s378 + $0x38] sm:$0xff] %v1783
        %1821 = vst [vmem:[%s378 + $0x40] sm:$0xff] %v1784
        %1822 = vst [vmem:[%s378 + $0x48] sm:$0xff] %v1785
        %1823 = vst [vmem:[%s378 + $0x50] sm:$0xff] %v1786
        %1824 = vst [vmem:[%s378 + $0x58] sm:$0xff] %v1787
        %1825 = vst [vmem:[%s378 + $0x60] sm:$0xff] %v1788
        %1826 = vst [vmem:[%s378 + $0x68] sm:$0xff] %v1789
        %1827 = vst [vmem:[%s378 + $0x70] sm:$0xff] %v1790
        %1828 = vst [vmem:[%s378 + $0x78] sm:$0xff] %v1791
        %1829 = vst [vmem:[%s378 + $0x80] sm:$0xff] %v1792
        %1830 = vst [vmem:[%s378 + $0x88] sm:$0xff] %v1793
        %1831 = vst [vmem:[%s378 + $0x90] sm:$0xff] %v1794
        %1832 = vst [vmem:[%s378 + $0x98] sm:$0xff] %v1795
        %1833 = vst [vmem:[%s378 + $0xa0] sm:$0xff] %v1796
        %1834 = vst [vmem:[%s378 + $0xa8] sm:$0xff] %v1797
        %1835 = vst [vmem:[%s378 + $0xb0] sm:$0xff] %v1798
        %1836 = vst [vmem:[%s378 + $0xb8] sm:$0xff] %v1799
        %1837 = vst [vmem:[%s378 + $0xc0] sm:$0xff] %v1800
        %1838 = vst [vmem:[%s378 + $0xc8] sm:$0xff] %v1801
        %1839 = vst [vmem:[%s378 + $0xd0] sm:$0xff] %v1802
        %1840 = vst [vmem:[%s378 + $0xd8] sm:$0xff] %v1803
        %1841 = vst [vmem:[%s378 + $0xe0] sm:$0xff] %v1804
        %1842 = vst [vmem:[%s378 + $0xe8] sm:$0xff] %v1805
        %1843 = vst [vmem:[%s378 + $0xf0] sm:$0xff] %v1806
        %1844 = vst [vmem:[%s378 + $0xf8] sm:$0xff] %v1807
        %1845 = vst [vmem:[%s378 + $0x100] sm:$0xff] %v1808
        %1846 = vst [vmem:[%s378 + $0x108] sm:$0xff] %v1809
        %1847 = vst [vmem:[%s378 + $0x110] sm:$0xff] %v1810
        %1848 = vst [vmem:[%s378 + $0x118] sm:$0xff] %v1811
        %1849 = vst [vmem:[%s378 + $0x120] sm:$0xff] %v1812
        %s1850 = smul.u32 37, %s15
        %p1851 = scmp.lt.s32.totalorder %s1850, 73
        %s1852 = scalar_select %p1851, %s1850, 73
        %s1853 = smul.addr %s1852, 8
        %s1854 = scalar_lea.vmem %s4, %s1853
        // Predicated region
        $region63: #{stmamba_forward.3} parent=57 // pred_check
          %p1855 = pneg %p122
        $region64: #{stmamba_forward.3} parent=57 // pred_check_branch
          %1857 = sbr.rel (%p1855) target = $region66
        $region65: #{stmamba_forward.3} parent=57 // pred_region
          %s1858 = smul.u32 37, %s15
        $region66: #{stmamba_forward.3} parent=57 // pred_fallthru
          _
      $region58: #{stmamba_forward.3} parent=5 // pred_fallthru
        _
      %p1859 = scmp.le.s32.totalorder 2, %s10
      // Predicated region
      $region67: #{stmamba_forward.3} parent=5 // pred_check
        %p1860 = pneg %p1859
      $region68: #{stmamba_forward.3} parent=5 // pred_check_branch
        %1862 = sbr.rel (%p1860) target = $region70
      $region69: #{stmamba_forward.3} parent=5 // pred_region
        %s1863 = ssub.s32 %s10, 2
        // Predicated region
        $region71: #{stmamba_forward.3} parent=69 // pred_check
          %p1864 = pneg %p128
        $region72: #{stmamba_forward.3} parent=69 // pred_check_branch
          %1866 = sbr.rel (%p1864) target = $region74
        $region73: #{stmamba_forward.3} parent=69 // pred_region
          %s1867 = smul.u32 37, %s16
          %p1868 = scmp.lt.s32.totalorder %s1867, 73
          %s1869 = scalar_select %p1868, %s1867, 73
          %s1870 = smul.addr %s1869, 8
          %s1871 = scalar_lea.vmem %s4, %s1870
        $region74: #{stmamba_forward.3} parent=69 // pred_fallthru
          _
      $region70: #{stmamba_forward.3} parent=5 // pred_fallthru
        _
    $region6: #{stmamba_forward.3} parent=1 // loop_footer
      %s14 = sadd.s32 1, %s10
    $region7: #{stmamba_forward.3} parent=1 // loop_footer_branch
      %9 = sbr.rel target = $region3
    $region8: #{stmamba_forward.3} parent=1 // loop_exit
      _

// kernel: stmamba_forward.4
$region0: #{stmamba_forward.4}
  #allocation0 [shape = 'u32[]', space=smem, size = 0x4, offset = 0x4, fixed_abs, tag = 'smem constant byte address 0x4 - core index']
  #allocation1 [shape = 'u32[144,128]{1,0:T(1,128)}', space=vmem, size = 0x12000, scoped, tag = 'internal scratch']
  %s0 = inlined_call_operand.vmem [shape: bf16[21,2016], index: 0, kind: input, shape index: {}]
  %s1 = inlined_call_operand.vmem [shape: bf16[2016,256], index: 1, kind: input, shape index: {}]
  %s2 = inlined_call_operand.vmem [shape: f32[21,1], index: 2, kind: input, shape index: {}]
  %s3 = inlined_call_operand.vmem [shape: f32[21,1], index: 3, kind: input, shape index: {}]
  %s4 = inlined_call_operand.vmem [shape: f32[21,256], index: 4, kind: output, shape index: {}]
  %s5 = sld [smem:[#allocation0]]
  $region124: #{stmamba_forward.4} parent=0
    _
  %s7 = ssub.s32 1, %s5
  %s8 = scalar_select 0, %s7, %s5
  $region1: #{stmamba_forward.4} parent=0
    #allocation2 [shape = 'u8[1032192]{0}', space=vmem, size = 0xfc000, scoped, tag = 'input window, operand 1']
    #allocation3 [shape = 'u8[24576]{0}', space=vmem, size = 0x6000, scoped, tag = 'output window, operand 0']
    loop: start=0, step=1, limit=4
    $region2: #{stmamba_forward.4} parent=1 // loop_pre_header
      _
    $region3: #{stmamba_forward.4} parent=1 // loop_header
      %s10 = sphi 0, %s14
      %p11 = scmp.ge.s32.totalorder %s10, 4
      %s18 = sphi 0, %s18
      %s20 = sphi 0, %s18
      %s21 = sphi 0, %s20
      %s35 = sphi 0, %s21
      %s41 = sphi 0, %s43
      %s44 = sphi 0, %s41
      %s45 = sphi 0, %s44
      %s61 = sphi 0, %s45
      %s65 = sphi 0, %s65
      %s67 = sphi 0, %s65
      %s68 = sphi 0, %s67
      %s82 = sphi 0, %s68
      %s86 = sphi 0, %s86
      %s88 = sphi 0, %s86
      %s89 = sphi 0, %s88
      %s103 = sphi 0, %s89
      %s109 = sphi 0, %s111
      %s112 = sphi 0, %s109
      %s113 = sphi 0, %s112
      %s129 = sphi 0, %s113
    $region4: #{stmamba_forward.4} parent=1 // loop_header_branch
      %13 = sbr.rel (%p11) target = $region8
    $region5: #{stmamba_forward.4} parent=1 // loop_body
      %s15 = ssub.s32 %s10, 1
      %s16 = ssub.s32 %s10, 2
      %s17 = sadd.s32 %s10, 1
      %s19 = sadd.s32 %s18, 1
      %p22 = scmp.eq.s32.totalorder %s10, 1
      %p23 = scmp.ne.s32.totalorder %s18, %s20
      %p24 = scmp.eq.s32.totalorder %s10, 0
      %p25 = por %p23, %p24
      %p26 = scmp.ne.s32.totalorder %s18, %s20
      %p27 = scmp.eq.s32.totalorder %s15, 1
      %p28 = por %p26, %p27
      %p29 = scmp.ne.s32.totalorder %s20, %s21
      %p30 = scmp.eq.s32.totalorder %s15, 0
      %p31 = por %p29, %p30
      %p32 = scmp.ne.s32.totalorder %s20, %s21
      %p33 = scmp.eq.s32.totalorder %s16, 1
      %p34 = por %p32, %p33
      %p36 = scmp.ne.s32.totalorder %s21, %s35
      %p37 = scmp.eq.s32.totalorder %s16, 0
      %p38 = por %p36, %p37
      %s39 = ssub.s32 %s10, %s17
      %p40 = scmp.eq.s32.totalorder %s39, 0
      %s42 = sadd.s32 %s41, 1
      %s43 = scalar_select %p40, %s41, %s42
      %p46 = pneg %p40
      %p47 = scmp.eq.s32.totalorder %s10, 1
      %p48 = por %p46, %p47
      %p49 = scmp.ne.s32.totalorder %s41, %s44
      %p50 = scmp.eq.s32.totalorder %s10, 0
      %p51 = por %p49, %p50
      %p52 = scmp.ne.s32.totalorder %s41, %s44
      %p53 = scmp.eq.s32.totalorder %s15, 1
      %p54 = por %p52, %p53
      %p55 = scmp.ne.s32.totalorder %s44, %s45
      %p56 = scmp.eq.s32.totalorder %s15, 0
      %p57 = por %p55, %p56
      %p58 = scmp.ne.s32.totalorder %s44, %s45
      %p59 = scmp.eq.s32.totalorder %s16, 1
      %p60 = por %p58, %p59
      %p62 = scmp.ne.s32.totalorder %s45, %s61
      %p63 = scmp.eq.s32.totalorder %s16, 0
      %p64 = por %p62, %p63
      %s66 = sadd.s32 %s65, 1
      %p69 = scmp.eq.s32.totalorder %s10, 1
      %p70 = scmp.ne.s32.totalorder %s65, %s67
      %p71 = scmp.eq.s32.totalorder %s10, 0
      %p72 = por %p70, %p71
      %p73 = scmp.ne.s32.totalorder %s65, %s67
      %p74 = scmp.eq.s32.totalorder %s15, 1
      %p75 = por %p73, %p74
      %p76 = scmp.ne.s32.totalorder %s67, %s68
      %p77 = scmp.eq.s32.totalorder %s15, 0
      %p78 = por %p76, %p77
      %p79 = scmp.ne.s32.totalorder %s67, %s68
      %p80 = scmp.eq.s32.totalorder %s16, 1
      %p81 = por %p79, %p80
      %p83 = scmp.ne.s32.totalorder %s68, %s82
      %p84 = scmp.eq.s32.totalorder %s16, 0
      %p85 = por %p83, %p84
      %s87 = sadd.s32 %s86, 1
      %p90 = scmp.eq.s32.totalorder %s10, 1
      %p91 = scmp.ne.s32.totalorder %s86, %s88
      %p92 = scmp.eq.s32.totalorder %s10, 0
      %p93 = por %p91, %p92
      %p94 = scmp.ne.s32.totalorder %s86, %s88
      %p95 = scmp.eq.s32.totalorder %s15, 1
      %p96 = por %p94, %p95
      %p97 = scmp.ne.s32.totalorder %s88, %s89
      %p98 = scmp.eq.s32.totalorder %s15, 0
      %p99 = por %p97, %p98
      %p100 = scmp.ne.s32.totalorder %s88, %s89
      %p101 = scmp.eq.s32.totalorder %s16, 1
      %p102 = por %p100, %p101
      %p104 = scmp.ne.s32.totalorder %s89, %s103
      %p105 = scmp.eq.s32.totalorder %s16, 0
      %p106 = por %p104, %p105
      %s107 = ssub.s32 %s10, %s17
      %p108 = scmp.eq.s32.totalorder %s107, 0
      %s110 = sadd.s32 %s109, 1
      %s111 = scalar_select %p108, %s109, %s110
      %p114 = pneg %p108
      %p115 = scmp.eq.s32.totalorder %s10, 1
      %p116 = por %p114, %p115
      %p117 = scmp.ne.s32.totalorder %s109, %s112
      %p118 = scmp.eq.s32.totalorder %s10, 0
      %p119 = por %p117, %p118
      %p120 = scmp.ne.s32.totalorder %s109, %s112
      %p121 = scmp.eq.s32.totalorder %s15, 1
      %p122 = por %p120, %p121
      %p123 = scmp.ne.s32.totalorder %s112, %s113
      %p124 = scmp.eq.s32.totalorder %s15, 0
      %p125 = por %p123, %p124
      %p126 = scmp.ne.s32.totalorder %s112, %s113
      %p127 = scmp.eq.s32.totalorder %s16, 1
      %p128 = por %p126, %p127
      %p130 = scmp.ne.s32.totalorder %s113, %s129
      %p131 = scmp.eq.s32.totalorder %s16, 0
      %p132 = por %p130, %p131
      %p133 = scmp.le.s32.totalorder 1, %s10
      %p134 = scmp.lt.s32.totalorder %s10, 3
      %p135 = pnand %p133, %p134
      %p136 = pneg %p135
      // Predicated region
      $region9: #{stmamba_forward.4} parent=5 // pred_check
        _
      $region10: #{stmamba_forward.4} parent=5 // pred_check_branch
        %138 = sbr.rel (%p135) target = $region12
      $region11: #{stmamba_forward.4} parent=5 // pred_region
        %s139 = ssub.s32 %s10, 1
        // Predicated region
        $region13: #{stmamba_forward.4} parent=11 // pred_check
          %p140 = pneg %p31
        $region14: #{stmamba_forward.4} parent=11 // pred_check_branch
          %142 = sbr.rel (%p140) target = $region16
        $region15: #{stmamba_forward.4} parent=11 // pred_region
          _
        $region16: #{stmamba_forward.4} parent=11 // pred_fallthru
          _
        // Predicated region
        $region17: #{stmamba_forward.4} parent=11 // pred_check
          %p143 = pneg %p78
        $region18: #{stmamba_forward.4} parent=11 // pred_check_branch
          %145 = sbr.rel (%p143) target = $region20
        $region19: #{stmamba_forward.4} parent=11 // pred_region
          _
        $region20: #{stmamba_forward.4} parent=11 // pred_fallthru
          _
        // Predicated region
        $region21: #{stmamba_forward.4} parent=11 // pred_check
          %p146 = pneg %p99
        $region22: #{stmamba_forward.4} parent=11 // pred_check_branch
          %148 = sbr.rel (%p146) target = $region24
        $region23: #{stmamba_forward.4} parent=11 // pred_region
          _
        $region24: #{stmamba_forward.4} parent=11 // pred_fallthru
          _
      $region12: #{stmamba_forward.4} parent=5 // pred_fallthru
        _
      %p149 = scmp.lt.s32.totalorder %s10, 2
      // Predicated region
      $region25: #{stmamba_forward.4} parent=5 // pred_check
        %p150 = pneg %p149
      $region26: #{stmamba_forward.4} parent=5 // pred_check_branch
        %152 = sbr.rel (%p150) target = $region28
      $region27: #{stmamba_forward.4} parent=5 // pred_region
        // Predicated region
        $region29: #{stmamba_forward.4} parent=27 // pred_check
          %p153 = pneg %p51
        $region30: #{stmamba_forward.4} parent=27 // pred_check_branch
          %155 = sbr.rel (%p153) target = $region32
        $region31: #{stmamba_forward.4} parent=27 // pred_region
          %s156 = sand.u32 %s41, 1
          %s157 = sand.u32 %s41, 1
          %s158 = smul.addr %s157, 1008
          %s159 = scalar_lea.vmem [#allocation2], %s158
          %s160 = smul.addr %s10, 4
          %s161 = scalar_lea.vmem %s1, %s160
          // Predicated region
          $region33: #{stmamba_forward.4} parent=31 // pred_check
            _
          $region34: #{stmamba_forward.4} parent=31 // pred_check_branch
            %163 = sbr.rel (0) target = $region36
          $region35: #{stmamba_forward.4} parent=31 // pred_region
            // Predicated region
            $region37: #{stmamba_forward.4} parent=35 // pred_check
              _
            $region38: #{stmamba_forward.4} parent=35 // pred_check_branch
              %165 = sbr.rel target = $region40
            $region39: #{stmamba_forward.4} parent=35 // pred_region
              // Predicated region
              $region52: #{stmamba_forward.4} parent=39 // pred_check
                _
              $region53: #{stmamba_forward.4} parent=39 // pred_check_branch
                %683 = sbr.rel (0) target = $region55
              $region54: #{stmamba_forward.4} parent=39 // pred_region
                loop: start=0, step=1, limit=1
                $region56: #{stmamba_forward.4} parent=54 // loop_pre_header
                  _
                $region57: #{stmamba_forward.4} parent=54 // loop_header
                  %s685 = sphi 0, %s689
                  %p686 = scmp.ge.s32.totalorder %s685, 1
                  %s690 = sphi %s161, %s161
                  %s691 = sphi %s159, %s159
                $region58: #{stmamba_forward.4} parent=54 // loop_header_branch
                  %688 = sbr.rel (%p686) target = $region62
                $region59: #{stmamba_forward.4} parent=54 // loop_body
                  _
                $region60: #{stmamba_forward.4} parent=54 // loop_footer
                  %s689 = sadd.s32 1, %s685
                $region61: #{stmamba_forward.4} parent=54 // loop_footer_branch
                  %684 = sbr.rel target = $region57
                $region62: #{stmamba_forward.4} parent=54 // loop_exit
                  _
                %s693 = ssub.s32 16, 1
                loop: start=0, step=1, limit=1
                $region63: #{stmamba_forward.4} parent=54 // loop_pre_header
                  _
                $region64: #{stmamba_forward.4} parent=54 // loop_header
                  %s695 = sphi 0, %s699
                  %p696 = scmp.ge.s32.totalorder %s695, 1
                  %s700 = sphi %s161, %s161
                  %s701 = sphi %s159, %s159
                $region65: #{stmamba_forward.4} parent=54 // loop_header_branch
                  %698 = sbr.rel (%p696) target = $region69
                $region66: #{stmamba_forward.4} parent=54 // loop_body
                  %v702 = vld [vmem:[%s700] sm:%s693]
                  %703 = vst [vmem:[%s701] sm:%s693] %v702
                  %v704 = vld [vmem:[%s700 + $0x8] sm:%s693]
                  %705 = vst [vmem:[%s701 + $0x4] sm:%s693] %v704
                  %v706 = vld [vmem:[%s700 + $0x10] sm:%s693]
                  %707 = vst [vmem:[%s701 + $0x8] sm:%s693] %v706
                  %v708 = vld [vmem:[%s700 + $0x18] sm:%s693]
                  %709 = vst [vmem:[%s701 + $0xc] sm:%s693] %v708
                  %v710 = vld [vmem:[%s700 + $0x20] sm:%s693]
                  %711 = vst [vmem:[%s701 + $0x10] sm:%s693] %v710
                  %v712 = vld [vmem:[%s700 + $0x28] sm:%s693]
                  %713 = vst [vmem:[%s701 + $0x14] sm:%s693] %v712
                  %v714 = vld [vmem:[%s700 + $0x30] sm:%s693]
                  %715 = vst [vmem:[%s701 + $0x18] sm:%s693] %v714
                  %v716 = vld [vmem:[%s700 + $0x38] sm:%s693]
                  %717 = vst [vmem:[%s701 + $0x1c] sm:%s693] %v716
                  %v718 = vld [vmem:[%s700 + $0x40] sm:%s693]
                  %719 = vst [vmem:[%s701 + $0x20] sm:%s693] %v718
                  %v720 = vld [vmem:[%s700 + $0x48] sm:%s693]
                  %721 = vst [vmem:[%s701 + $0x24] sm:%s693] %v720
                  %v722 = vld [vmem:[%s700 + $0x50] sm:%s693]
                  %723 = vst [vmem:[%s701 + $0x28] sm:%s693] %v722
                  %v724 = vld [vmem:[%s700 + $0x58] sm:%s693]
                  %725 = vst [vmem:[%s701 + $0x2c] sm:%s693] %v724
                  %v726 = vld [vmem:[%s700 + $0x60] sm:%s693]
                  %727 = vst [vmem:[%s701 + $0x30] sm:%s693] %v726
                  %v728 = vld [vmem:[%s700 + $0x68] sm:%s693]
                  %729 = vst [vmem:[%s701 + $0x34] sm:%s693] %v728
                  %v730 = vld [vmem:[%s700 + $0x70] sm:%s693]
                  %731 = vst [vmem:[%s701 + $0x38] sm:%s693] %v730
                  %v732 = vld [vmem:[%s700 + $0x78] sm:%s693]
                  %733 = vst [vmem:[%s701 + $0x3c] sm:%s693] %v732
                  %v734 = vld [vmem:[%s700 + $0x80] sm:%s693]
                  %735 = vst [vmem:[%s701 + $0x40] sm:%s693] %v734
                  %v736 = vld [vmem:[%s700 + $0x88] sm:%s693]
                  %737 = vst [vmem:[%s701 + $0x44] sm:%s693] %v736
                  %v738 = vld [vmem:[%s700 + $0x90] sm:%s693]
                  %739 = vst [vmem:[%s701 + $0x48] sm:%s693] %v738
                  %v740 = vld [vmem:[%s700 + $0x98] sm:%s693]
                  %741 = vst [vmem:[%s701 + $0x4c] sm:%s693] %v740
                  %v742 = vld [vmem:[%s700 + $0xa0] sm:%s693]
                  %743 = vst [vmem:[%s701 + $0x50] sm:%s693] %v742
                  %v744 = vld [vmem:[%s700 + $0xa8] sm:%s693]
                  %745 = vst [vmem:[%s701 + $0x54] sm:%s693] %v744
                  %v746 = vld [vmem:[%s700 + $0xb0] sm:%s693]
                  %747 = vst [vmem:[%s701 + $0x58] sm:%s693] %v746
                  %v748 = vld [vmem:[%s700 + $0xb8] sm:%s693]
                  %749 = vst [vmem:[%s701 + $0x5c] sm:%s693] %v748
                  %v750 = vld [vmem:[%s700 + $0xc0] sm:%s693]
                  %751 = vst [vmem:[%s701 + $0x60] sm:%s693] %v750
                  %v752 = vld [vmem:[%s700 + $0xc8] sm:%s693]
                  %753 = vst [vmem:[%s701 + $0x64] sm:%s693] %v752
                  %v754 = vld [vmem:[%s700 + $0xd0] sm:%s693]
                  %755 = vst [vmem:[%s701 + $0x68] sm:%s693] %v754
                  %v756 = vld [vmem:[%s700 + $0xd8] sm:%s693]
                  %757 = vst [vmem:[%s701 + $0x6c] sm:%s693] %v756
                  %v758 = vld [vmem:[%s700 + $0xe0] sm:%s693]
                  %759 = vst [vmem:[%s701 + $0x70] sm:%s693] %v758
                  %v760 = vld [vmem:[%s700 + $0xe8] sm:%s693]
                  %761 = vst [vmem:[%s701 + $0x74] sm:%s693] %v760
                  %v762 = vld [vmem:[%s700 + $0xf0] sm:%s693]
                  %763 = vst [vmem:[%s701 + $0x78] sm:%s693] %v762
                  %v764 = vld [vmem:[%s700 + $0xf8] sm:%s693]
                  %765 = vst [vmem:[%s701 + $0x7c] sm:%s693] %v764
                  %v766 = vld [vmem:[%s700 + $0x100] sm:%s693]
                  %767 = vst [vmem:[%s701 + $0x80] sm:%s693] %v766
                  %v768 = vld [vmem:[%s700 + $0x108] sm:%s693]
                  %769 = vst [vmem:[%s701 + $0x84] sm:%s693] %v768
                  %v770 = vld [vmem:[%s700 + $0x110] sm:%s693]
                  %771 = vst [vmem:[%s701 + $0x88] sm:%s693] %v770
                  %v772 = vld [vmem:[%s700 + $0x118] sm:%s693]
                  %773 = vst [vmem:[%s701 + $0x8c] sm:%s693] %v772
                  %v774 = vld [vmem:[%s700 + $0x120] sm:%s693]
                  %775 = vst [vmem:[%s701 + $0x90] sm:%s693] %v774
                  %v776 = vld [vmem:[%s700 + $0x128] sm:%s693]
                  %777 = vst [vmem:[%s701 + $0x94] sm:%s693] %v776
                  %v778 = vld [vmem:[%s700 + $0x130] sm:%s693]
                  %779 = vst [vmem:[%s701 + $0x98] sm:%s693] %v778
                  %v780 = vld [vmem:[%s700 + $0x138] sm:%s693]
                  %781 = vst [vmem:[%s701 + $0x9c] sm:%s693] %v780
                  %v782 = vld [vmem:[%s700 + $0x140] sm:%s693]
                  %783 = vst [vmem:[%s701 + $0xa0] sm:%s693] %v782
                  %v784 = vld [vmem:[%s700 + $0x148] sm:%s693]
                  %785 = vst [vmem:[%s701 + $0xa4] sm:%s693] %v784
                  %v786 = vld [vmem:[%s700 + $0x150] sm:%s693]
                  %787 = vst [vmem:[%s701 + $0xa8] sm:%s693] %v786
                  %v788 = vld [vmem:[%s700 + $0x158] sm:%s693]
                  %789 = vst [vmem:[%s701 + $0xac] sm:%s693] %v788
                  %v790 = vld [vmem:[%s700 + $0x160] sm:%s693]
                  %791 = vst [vmem:[%s701 + $0xb0] sm:%s693] %v790
                  %v792 = vld [vmem:[%s700 + $0x168] sm:%s693]
                  %793 = vst [vmem:[%s701 + $0xb4] sm:%s693] %v792
                  %v794 = vld [vmem:[%s700 + $0x170] sm:%s693]
                  %795 = vst [vmem:[%s701 + $0xb8] sm:%s693] %v794
                  %v796 = vld [vmem:[%s700 + $0x178] sm:%s693]
                  %797 = vst [vmem:[%s701 + $0xbc] sm:%s693] %v796
                  %v798 = vld [vmem:[%s700 + $0x180] sm:%s693]
                  %799 = vst [vmem:[%s701 + $0xc0] sm:%s693] %v798
                  %v800 = vld [vmem:[%s700 + $0x188] sm:%s693]
                  %801 = vst [vmem:[%s701 + $0xc4] sm:%s693] %v800
                  %v802 = vld [vmem:[%s700 + $0x190] sm:%s693]
                  %803 = vst [vmem:[%s701 + $0xc8] sm:%s693] %v802
                  %v804 = vld [vmem:[%s700 + $0x198] sm:%s693]
                  %805 = vst [vmem:[%s701 + $0xcc] sm:%s693] %v804
                  %v806 = vld [vmem:[%s700 + $0x1a0] sm:%s693]
                  %807 = vst [vmem:[%s701 + $0xd0] sm:%s693] %v806
                  %v808 = vld [vmem:[%s700 + $0x1a8] sm:%s693]
                  %809 = vst [vmem:[%s701 + $0xd4] sm:%s693] %v808
                  %v810 = vld [vmem:[%s700 + $0x1b0] sm:%s693]
                  %811 = vst [vmem:[%s701 + $0xd8] sm:%s693] %v810
                  %v812 = vld [vmem:[%s700 + $0x1b8] sm:%s693]
                  %813 = vst [vmem:[%s701 + $0xdc] sm:%s693] %v812
                  %v814 = vld [vmem:[%s700 + $0x1c0] sm:%s693]
                  %815 = vst [vmem:[%s701 + $0xe0] sm:%s693] %v814
                  %v816 = vld [vmem:[%s700 + $0x1c8] sm:%s693]
                  %817 = vst [vmem:[%s701 + $0xe4] sm:%s693] %v816
                  %v818 = vld [vmem:[%s700 + $0x1d0] sm:%s693]
                  %819 = vst [vmem:[%s701 + $0xe8] sm:%s693] %v818
                  %v820 = vld [vmem:[%s700 + $0x1d8] sm:%s693]
                  %821 = vst [vmem:[%s701 + $0xec] sm:%s693] %v820
                  %v822 = vld [vmem:[%s700 + $0x1e0] sm:%s693]
                  %823 = vst [vmem:[%s701 + $0xf0] sm:%s693] %v822
                  %v824 = vld [vmem:[%s700 + $0x1e8] sm:%s693]
                  %825 = vst [vmem:[%s701 + $0xf4] sm:%s693] %v824
                  %v826 = vld [vmem:[%s700 + $0x1f0] sm:%s693]
                  %827 = vst [vmem:[%s701 + $0xf8] sm:%s693] %v826
                  %v828 = vld [vmem:[%s700 + $0x1f8] sm:%s693]
                  %829 = vst [vmem:[%s701 + $0xfc] sm:%s693] %v828
                  %v830 = vld [vmem:[%s700 + $0x200] sm:%s693]
                  %831 = vst [vmem:[%s701 + $0x100] sm:%s693] %v830
                  %v832 = vld [vmem:[%s700 + $0x208] sm:%s693]
                  %833 = vst [vmem:[%s701 + $0x104] sm:%s693] %v832
                  %v834 = vld [vmem:[%s700 + $0x210] sm:%s693]
                  %835 = vst [vmem:[%s701 + $0x108] sm:%s693] %v834
                  %v836 = vld [vmem:[%s700 + $0x218] sm:%s693]
                  %837 = vst [vmem:[%s701 + $0x10c] sm:%s693] %v836
                  %v838 = vld [vmem:[%s700 + $0x220] sm:%s693]
                  %839 = vst [vmem:[%s701 + $0x110] sm:%s693] %v838
                  %v840 = vld [vmem:[%s700 + $0x228] sm:%s693]
                  %841 = vst [vmem:[%s701 + $0x114] sm:%s693] %v840
                  %v842 = vld [vmem:[%s700 + $0x230] sm:%s693]
                  %843 = vst [vmem:[%s701 + $0x118] sm:%s693] %v842
                  %v844 = vld [vmem:[%s700 + $0x238] sm:%s693]
                  %845 = vst [vmem:[%s701 + $0x11c] sm:%s693] %v844
                  %v846 = vld [vmem:[%s700 + $0x240] sm:%s693]
                  %847 = vst [vmem:[%s701 + $0x120] sm:%s693] %v846
                  %v848 = vld [vmem:[%s700 + $0x248] sm:%s693]
                  %849 = vst [vmem:[%s701 + $0x124] sm:%s693] %v848
                  %v850 = vld [vmem:[%s700 + $0x250] sm:%s693]
                  %851 = vst [vmem:[%s701 + $0x128] sm:%s693] %v850
                  %v852 = vld [vmem:[%s700 + $0x258] sm:%s693]
                  %853 = vst [vmem:[%s701 + $0x12c] sm:%s693] %v852
                  %v854 = vld [vmem:[%s700 + $0x260] sm:%s693]
                  %855 = vst [vmem:[%s701 + $0x130] sm:%s693] %v854
                  %v856 = vld [vmem:[%s700 + $0x268] sm:%s693]
                  %857 = vst [vmem:[%s701 + $0x134] sm:%s693] %v856
                  %v858 = vld [vmem:[%s700 + $0x270] sm:%s693]
                  %859 = vst [vmem:[%s701 + $0x138] sm:%s693] %v858
                  %v860 = vld [vmem:[%s700 + $0x278] sm:%s693]
                  %861 = vst [vmem:[%s701 + $0x13c] sm:%s693] %v860
                  %v862 = vld [vmem:[%s700 + $0x280] sm:%s693]
                  %863 = vst [vmem:[%s701 + $0x140] sm:%s693] %v862
                  %v864 = vld [vmem:[%s700 + $0x288] sm:%s693]
                  %865 = vst [vmem:[%s701 + $0x144] sm:%s693] %v864
                  %v866 = vld [vmem:[%s700 + $0x290] sm:%s693]
                  %867 = vst [vmem:[%s701 + $0x148] sm:%s693] %v866
                  %v868 = vld [vmem:[%s700 + $0x298] sm:%s693]
                  %869 = vst [vmem:[%s701 + $0x14c] sm:%s693] %v868
                  %v870 = vld [vmem:[%s700 + $0x2a0] sm:%s693]
                  %871 = vst [vmem:[%s701 + $0x150] sm:%s693] %v870
                  %v872 = vld [vmem:[%s700 + $0x2a8] sm:%s693]
                  %873 = vst [vmem:[%s701 + $0x154] sm:%s693] %v872
                  %v874 = vld [vmem:[%s700 + $0x2b0] sm:%s693]
                  %875 = vst [vmem:[%s701 + $0x158] sm:%s693] %v874
                  %v876 = vld [vmem:[%s700 + $0x2b8] sm:%s693]
                  %877 = vst [vmem:[%s701 + $0x15c] sm:%s693] %v876
                  %v878 = vld [vmem:[%s700 + $0x2c0] sm:%s693]
                  %879 = vst [vmem:[%s701 + $0x160] sm:%s693] %v878
                  %v880 = vld [vmem:[%s700 + $0x2c8] sm:%s693]
                  %881 = vst [vmem:[%s701 + $0x164] sm:%s693] %v880
                  %v882 = vld [vmem:[%s700 + $0x2d0] sm:%s693]
                  %883 = vst [vmem:[%s701 + $0x168] sm:%s693] %v882
                  %v884 = vld [vmem:[%s700 + $0x2d8] sm:%s693]
                  %885 = vst [vmem:[%s701 + $0x16c] sm:%s693] %v884
                  %v886 = vld [vmem:[%s700 + $0x2e0] sm:%s693]
                  %887 = vst [vmem:[%s701 + $0x170] sm:%s693] %v886
                  %v888 = vld [vmem:[%s700 + $0x2e8] sm:%s693]
                  %889 = vst [vmem:[%s701 + $0x174] sm:%s693] %v888
                  %v890 = vld [vmem:[%s700 + $0x2f0] sm:%s693]
                  %891 = vst [vmem:[%s701 + $0x178] sm:%s693] %v890
                  %v892 = vld [vmem:[%s700 + $0x2f8] sm:%s693]
                  %893 = vst [vmem:[%s701 + $0x17c] sm:%s693] %v892
                  %v894 = vld [vmem:[%s700 + $0x300] sm:%s693]
                  %895 = vst [vmem:[%s701 + $0x180] sm:%s693] %v894
                  %v896 = vld [vmem:[%s700 + $0x308] sm:%s693]
                  %897 = vst [vmem:[%s701 + $0x184] sm:%s693] %v896
                  %v898 = vld [vmem:[%s700 + $0x310] sm:%s693]
                  %899 = vst [vmem:[%s701 + $0x188] sm:%s693] %v898
                  %v900 = vld [vmem:[%s700 + $0x318] sm:%s693]
                  %901 = vst [vmem:[%s701 + $0x18c] sm:%s693] %v900
                  %v902 = vld [vmem:[%s700 + $0x320] sm:%s693]
                  %903 = vst [vmem:[%s701 + $0x190] sm:%s693] %v902
                  %v904 = vld [vmem:[%s700 + $0x328] sm:%s693]
                  %905 = vst [vmem:[%s701 + $0x194] sm:%s693] %v904
                  %v906 = vld [vmem:[%s700 + $0x330] sm:%s693]
                  %907 = vst [vmem:[%s701 + $0x198] sm:%s693] %v906
                  %v908 = vld [vmem:[%s700 + $0x338] sm:%s693]
                  %909 = vst [vmem:[%s701 + $0x19c] sm:%s693] %v908
                  %v910 = vld [vmem:[%s700 + $0x340] sm:%s693]
                  %911 = vst [vmem:[%s701 + $0x1a0] sm:%s693] %v910
                  %v912 = vld [vmem:[%s700 + $0x348] sm:%s693]
                  %913 = vst [vmem:[%s701 + $0x1a4] sm:%s693] %v912
                  %v914 = vld [vmem:[%s700 + $0x350] sm:%s693]
                  %915 = vst [vmem:[%s701 + $0x1a8] sm:%s693] %v914
                  %v916 = vld [vmem:[%s700 + $0x358] sm:%s693]
                  %917 = vst [vmem:[%s701 + $0x1ac] sm:%s693] %v916
                  %v918 = vld [vmem:[%s700 + $0x360] sm:%s693]
                  %919 = vst [vmem:[%s701 + $0x1b0] sm:%s693] %v918
                  %v920 = vld [vmem:[%s700 + $0x368] sm:%s693]
                  %921 = vst [vmem:[%s701 + $0x1b4] sm:%s693] %v920
                  %v922 = vld [vmem:[%s700 + $0x370] sm:%s693]
                  %923 = vst [vmem:[%s701 + $0x1b8] sm:%s693] %v922
                  %v924 = vld [vmem:[%s700 + $0x378] sm:%s693]
                  %925 = vst [vmem:[%s701 + $0x1bc] sm:%s693] %v924
                  %v926 = vld [vmem:[%s700 + $0x380] sm:%s693]
                  %927 = vst [vmem:[%s701 + $0x1c0] sm:%s693] %v926
                  %v928 = vld [vmem:[%s700 + $0x388] sm:%s693]
                  %929 = vst [vmem:[%s701 + $0x1c4] sm:%s693] %v928
                  %v930 = vld [vmem:[%s700 + $0x390] sm:%s693]
                  %931 = vst [vmem:[%s701 + $0x1c8] sm:%s693] %v930
                  %v932 = vld [vmem:[%s700 + $0x398] sm:%s693]
                  %933 = vst [vmem:[%s701 + $0x1cc] sm:%s693] %v932
                  %v934 = vld [vmem:[%s700 + $0x3a0] sm:%s693]
                  %935 = vst [vmem:[%s701 + $0x1d0] sm:%s693] %v934
                  %v936 = vld [vmem:[%s700 + $0x3a8] sm:%s693]
                  %937 = vst [vmem:[%s701 + $0x1d4] sm:%s693] %v936
                  %v938 = vld [vmem:[%s700 + $0x3b0] sm:%s693]
                  %939 = vst [vmem:[%s701 + $0x1d8] sm:%s693] %v938
                  %v940 = vld [vmem:[%s700 + $0x3b8] sm:%s693]
                  %941 = vst [vmem:[%s701 + $0x1dc] sm:%s693] %v940
                  %v942 = vld [vmem:[%s700 + $0x3c0] sm:%s693]
                  %943 = vst [vmem:[%s701 + $0x1e0] sm:%s693] %v942
                  %v944 = vld [vmem:[%s700 + $0x3c8] sm:%s693]
                  %945 = vst [vmem:[%s701 + $0x1e4] sm:%s693] %v944
                  %v946 = vld [vmem:[%s700 + $0x3d0] sm:%s693]
                  %947 = vst [vmem:[%s701 + $0x1e8] sm:%s693] %v946
                  %v948 = vld [vmem:[%s700 + $0x3d8] sm:%s693]
                  %949 = vst [vmem:[%s701 + $0x1ec] sm:%s693] %v948
                  %v950 = vld [vmem:[%s700 + $0x3e0] sm:%s693]
                  %951 = vst [vmem:[%s701 + $0x1f0] sm:%s693] %v950
                  %v952 = vld [vmem:[%s700 + $0x3e8] sm:%s693]
                  %953 = vst [vmem:[%s701 + $0x1f4] sm:%s693] %v952
                  %v954 = vld [vmem:[%s700 + $0x3f0] sm:%s693]
                  %955 = vst [vmem:[%s701 + $0x1f8] sm:%s693] %v954
                  %v956 = vld [vmem:[%s700 + $0x3f8] sm:%s693]
                  %957 = vst [vmem:[%s701 + $0x1fc] sm:%s693] %v956
                  %v958 = vld [vmem:[%s700 + $0x400] sm:%s693]
                  %959 = vst [vmem:[%s701 + $0x200] sm:%s693] %v958
                  %v960 = vld [vmem:[%s700 + $0x408] sm:%s693]
                  %961 = vst [vmem:[%s701 + $0x204] sm:%s693] %v960
                  %v962 = vld [vmem:[%s700 + $0x410] sm:%s693]
                  %963 = vst [vmem:[%s701 + $0x208] sm:%s693] %v962
                  %v964 = vld [vmem:[%s700 + $0x418] sm:%s693]
                  %965 = vst [vmem:[%s701 + $0x20c] sm:%s693] %v964
                  %v966 = vld [vmem:[%s700 + $0x420] sm:%s693]
                  %967 = vst [vmem:[%s701 + $0x210] sm:%s693] %v966
                  %v968 = vld [vmem:[%s700 + $0x428] sm:%s693]
                  %969 = vst [vmem:[%s701 + $0x214] sm:%s693] %v968
                  %v970 = vld [vmem:[%s700 + $0x430] sm:%s693]
                  %971 = vst [vmem:[%s701 + $0x218] sm:%s693] %v970
                  %v972 = vld [vmem:[%s700 + $0x438] sm:%s693]
                  %973 = vst [vmem:[%s701 + $0x21c] sm:%s693] %v972
                  %v974 = vld [vmem:[%s700 + $0x440] sm:%s693]
                  %975 = vst [vmem:[%s701 + $0x220] sm:%s693] %v974
                  %v976 = vld [vmem:[%s700 + $0x448] sm:%s693]
                  %977 = vst [vmem:[%s701 + $0x224] sm:%s693] %v976
                  %v978 = vld [vmem:[%s700 + $0x450] sm:%s693]
                  %979 = vst [vmem:[%s701 + $0x228] sm:%s693] %v978
                  %v980 = vld [vmem:[%s700 + $0x458] sm:%s693]
                  %981 = vst [vmem:[%s701 + $0x22c] sm:%s693] %v980
                  %v982 = vld [vmem:[%s700 + $0x460] sm:%s693]
                  %983 = vst [vmem:[%s701 + $0x230] sm:%s693] %v982
                  %v984 = vld [vmem:[%s700 + $0x468] sm:%s693]
                  %985 = vst [vmem:[%s701 + $0x234] sm:%s693] %v984
                  %v986 = vld [vmem:[%s700 + $0x470] sm:%s693]
                  %987 = vst [vmem:[%s701 + $0x238] sm:%s693] %v986
                  %v988 = vld [vmem:[%s700 + $0x478] sm:%s693]
                  %989 = vst [vmem:[%s701 + $0x23c] sm:%s693] %v988
                  %v990 = vld [vmem:[%s700 + $0x480] sm:%s693]
                  %991 = vst [vmem:[%s701 + $0x240] sm:%s693] %v990
                  %v992 = vld [vmem:[%s700 + $0x488] sm:%s693]
                  %993 = vst [vmem:[%s701 + $0x244] sm:%s693] %v992
                  %v994 = vld [vmem:[%s700 + $0x490] sm:%s693]
                  %995 = vst [vmem:[%s701 + $0x248] sm:%s693] %v994
                  %v996 = vld [vmem:[%s700 + $0x498] sm:%s693]
                  %997 = vst [vmem:[%s701 + $0x24c] sm:%s693] %v996
                  %v998 = vld [vmem:[%s700 + $0x4a0] sm:%s693]
                  %999 = vst [vmem:[%s701 + $0x250] sm:%s693] %v998
                  %v1000 = vld [vmem:[%s700 + $0x4a8] sm:%s693]
                  %1001 = vst [vmem:[%s701 + $0x254] sm:%s693] %v1000
                  %v1002 = vld [vmem:[%s700 + $0x4b0] sm:%s693]
                  %1003 = vst [vmem:[%s701 + $0x258] sm:%s693] %v1002
                  %v1004 = vld [vmem:[%s700 + $0x4b8] sm:%s693]
                  %1005 = vst [vmem:[%s701 + $0x25c] sm:%s693] %v1004
                  %v1006 = vld [vmem:[%s700 + $0x4c0] sm:%s693]
                  %1007 = vst [vmem:[%s701 + $0x260] sm:%s693] %v1006
                  %v1008 = vld [vmem:[%s700 + $0x4c8] sm:%s693]
                  %1009 = vst [vmem:[%s701 + $0x264] sm:%s693] %v1008
                  %v1010 = vld [vmem:[%s700 + $0x4d0] sm:%s693]
                  %1011 = vst [vmem:[%s701 + $0x268] sm:%s693] %v1010
                  %v1012 = vld [vmem:[%s700 + $0x4d8] sm:%s693]
                  %1013 = vst [vmem:[%s701 + $0x26c] sm:%s693] %v1012
                  %v1014 = vld [vmem:[%s700 + $0x4e0] sm:%s693]
                  %1015 = vst [vmem:[%s701 + $0x270] sm:%s693] %v1014
                  %v1016 = vld [vmem:[%s700 + $0x4e8] sm:%s693]
                  %1017 = vst [vmem:[%s701 + $0x274] sm:%s693] %v1016
                  %v1018 = vld [vmem:[%s700 + $0x4f0] sm:%s693]
                  %1019 = vst [vmem:[%s701 + $0x278] sm:%s693] %v1018
                  %v1020 = vld [vmem:[%s700 + $0x4f8] sm:%s693]
                  %1021 = vst [vmem:[%s701 + $0x27c] sm:%s693] %v1020
                  %v1022 = vld [vmem:[%s700 + $0x500] sm:%s693]
                  %1023 = vst [vmem:[%s701 + $0x280] sm:%s693] %v1022
                  %v1024 = vld [vmem:[%s700 + $0x508] sm:%s693]
                  %1025 = vst [vmem:[%s701 + $0x284] sm:%s693] %v1024
                  %v1026 = vld [vmem:[%s700 + $0x510] sm:%s693]
                  %1027 = vst [vmem:[%s701 + $0x288] sm:%s693] %v1026
                  %v1028 = vld [vmem:[%s700 + $0x518] sm:%s693]
                  %1029 = vst [vmem:[%s701 + $0x28c] sm:%s693] %v1028
                  %v1030 = vld [vmem:[%s700 + $0x520] sm:%s693]
                  %1031 = vst [vmem:[%s701 + $0x290] sm:%s693] %v1030
                  %v1032 = vld [vmem:[%s700 + $0x528] sm:%s693]
                  %1033 = vst [vmem:[%s701 + $0x294] sm:%s693] %v1032
                  %v1034 = vld [vmem:[%s700 + $0x530] sm:%s693]
                  %1035 = vst [vmem:[%s701 + $0x298] sm:%s693] %v1034
                  %v1036 = vld [vmem:[%s700 + $0x538] sm:%s693]
                  %1037 = vst [vmem:[%s701 + $0x29c] sm:%s693] %v1036
                  %v1038 = vld [vmem:[%s700 + $0x540] sm:%s693]
                  %1039 = vst [vmem:[%s701 + $0x2a0] sm:%s693] %v1038
                  %v1040 = vld [vmem:[%s700 + $0x548] sm:%s693]
                  %1041 = vst [vmem:[%s701 + $0x2a4] sm:%s693] %v1040
                  %v1042 = vld [vmem:[%s700 + $0x550] sm:%s693]
                  %1043 = vst [vmem:[%s701 + $0x2a8] sm:%s693] %v1042
                  %v1044 = vld [vmem:[%s700 + $0x558] sm:%s693]
                  %1045 = vst [vmem:[%s701 + $0x2ac] sm:%s693] %v1044
                  %v1046 = vld [vmem:[%s700 + $0x560] sm:%s693]
                  %1047 = vst [vmem:[%s701 + $0x2b0] sm:%s693] %v1046
                  %v1048 = vld [vmem:[%s700 + $0x568] sm:%s693]
                  %1049 = vst [vmem:[%s701 + $0x2b4] sm:%s693] %v1048
                  %v1050 = vld [vmem:[%s700 + $0x570] sm:%s693]
                  %1051 = vst [vmem:[%s701 + $0x2b8] sm:%s693] %v1050
                  %v1052 = vld [vmem:[%s700 + $0x578] sm:%s693]
                  %1053 = vst [vmem:[%s701 + $0x2bc] sm:%s693] %v1052
                  %v1054 = vld [vmem:[%s700 + $0x580] sm:%s693]
                  %1055 = vst [vmem:[%s701 + $0x2c0] sm:%s693] %v1054
                  %v1056 = vld [vmem:[%s700 + $0x588] sm:%s693]
                  %1057 = vst [vmem:[%s701 + $0x2c4] sm:%s693] %v1056
                  %v1058 = vld [vmem:[%s700 + $0x590] sm:%s693]
                  %1059 = vst [vmem:[%s701 + $0x2c8] sm:%s693] %v1058
                  %v1060 = vld [vmem:[%s700 + $0x598] sm:%s693]
                  %1061 = vst [vmem:[%s701 + $0x2cc] sm:%s693] %v1060
                  %v1062 = vld [vmem:[%s700 + $0x5a0] sm:%s693]
                  %1063 = vst [vmem:[%s701 + $0x2d0] sm:%s693] %v1062
                  %v1064 = vld [vmem:[%s700 + $0x5a8] sm:%s693]
                  %1065 = vst [vmem:[%s701 + $0x2d4] sm:%s693] %v1064
                  %v1066 = vld [vmem:[%s700 + $0x5b0] sm:%s693]
                  %1067 = vst [vmem:[%s701 + $0x2d8] sm:%s693] %v1066
                  %v1068 = vld [vmem:[%s700 + $0x5b8] sm:%s693]
                  %1069 = vst [vmem:[%s701 + $0x2dc] sm:%s693] %v1068
                  %v1070 = vld [vmem:[%s700 + $0x5c0] sm:%s693]
                  %1071 = vst [vmem:[%s701 + $0x2e0] sm:%s693] %v1070
                  %v1072 = vld [vmem:[%s700 + $0x5c8] sm:%s693]
                  %1073 = vst [vmem:[%s701 + $0x2e4] sm:%s693] %v1072
                  %v1074 = vld [vmem:[%s700 + $0x5d0] sm:%s693]
                  %1075 = vst [vmem:[%s701 + $0x2e8] sm:%s693] %v1074
                  %v1076 = vld [vmem:[%s700 + $0x5d8] sm:%s693]
                  %1077 = vst [vmem:[%s701 + $0x2ec] sm:%s693] %v1076
                  %v1078 = vld [vmem:[%s700 + $0x5e0] sm:%s693]
                  %1079 = vst [vmem:[%s701 + $0x2f0] sm:%s693] %v1078
                  %v1080 = vld [vmem:[%s700 + $0x5e8] sm:%s693]
                  %1081 = vst [vmem:[%s701 + $0x2f4] sm:%s693] %v1080
                  %v1082 = vld [vmem:[%s700 + $0x5f0] sm:%s693]
                  %1083 = vst [vmem:[%s701 + $0x2f8] sm:%s693] %v1082
                  %v1084 = vld [vmem:[%s700 + $0x5f8] sm:%s693]
                  %1085 = vst [vmem:[%s701 + $0x2fc] sm:%s693] %v1084
                  %v1086 = vld [vmem:[%s700 + $0x600] sm:%s693]
                  %1087 = vst [vmem:[%s701 + $0x300] sm:%s693] %v1086
                  %v1088 = vld [vmem:[%s700 + $0x608] sm:%s693]
                  %1089 = vst [vmem:[%s701 + $0x304] sm:%s693] %v1088
                  %v1090 = vld [vmem:[%s700 + $0x610] sm:%s693]
                  %1091 = vst [vmem:[%s701 + $0x308] sm:%s693] %v1090
                  %v1092 = vld [vmem:[%s700 + $0x618] sm:%s693]
                  %1093 = vst [vmem:[%s701 + $0x30c] sm:%s693] %v1092
                  %v1094 = vld [vmem:[%s700 + $0x620] sm:%s693]
                  %1095 = vst [vmem:[%s701 + $0x310] sm:%s693] %v1094
                  %v1096 = vld [vmem:[%s700 + $0x628] sm:%s693]
                  %1097 = vst [vmem:[%s701 + $0x314] sm:%s693] %v1096
                  %v1098 = vld [vmem:[%s700 + $0x630] sm:%s693]
                  %1099 = vst [vmem:[%s701 + $0x318] sm:%s693] %v1098
                  %v1100 = vld [vmem:[%s700 + $0x638] sm:%s693]
                  %1101 = vst [vmem:[%s701 + $0x31c] sm:%s693] %v1100
                  %v1102 = vld [vmem:[%s700 + $0x640] sm:%s693]
                  %1103 = vst [vmem:[%s701 + $0x320] sm:%s693] %v1102
                  %v1104 = vld [vmem:[%s700 + $0x648] sm:%s693]
                  %1105 = vst [vmem:[%s701 + $0x324] sm:%s693] %v1104
                  %v1106 = vld [vmem:[%s700 + $0x650] sm:%s693]
                  %1107 = vst [vmem:[%s701 + $0x328] sm:%s693] %v1106
                  %v1108 = vld [vmem:[%s700 + $0x658] sm:%s693]
                  %1109 = vst [vmem:[%s701 + $0x32c] sm:%s693] %v1108
                  %v1110 = vld [vmem:[%s700 + $0x660] sm:%s693]
                  %1111 = vst [vmem:[%s701 + $0x330] sm:%s693] %v1110
                  %v1112 = vld [vmem:[%s700 + $0x668] sm:%s693]
                  %1113 = vst [vmem:[%s701 + $0x334] sm:%s693] %v1112
                  %v1114 = vld [vmem:[%s700 + $0x670] sm:%s693]
                  %1115 = vst [vmem:[%s701 + $0x338] sm:%s693] %v1114
                  %v1116 = vld [vmem:[%s700 + $0x678] sm:%s693]
                  %1117 = vst [vmem:[%s701 + $0x33c] sm:%s693] %v1116
                  %v1118 = vld [vmem:[%s700 + $0x680] sm:%s693]
                  %1119 = vst [vmem:[%s701 + $0x340] sm:%s693] %v1118
                  %v1120 = vld [vmem:[%s700 + $0x688] sm:%s693]
                  %1121 = vst [vmem:[%s701 + $0x344] sm:%s693] %v1120
                  %v1122 = vld [vmem:[%s700 + $0x690] sm:%s693]
                  %1123 = vst [vmem:[%s701 + $0x348] sm:%s693] %v1122
                  %v1124 = vld [vmem:[%s700 + $0x698] sm:%s693]
                  %1125 = vst [vmem:[%s701 + $0x34c] sm:%s693] %v1124
                  %v1126 = vld [vmem:[%s700 + $0x6a0] sm:%s693]
                  %1127 = vst [vmem:[%s701 + $0x350] sm:%s693] %v1126
                  %v1128 = vld [vmem:[%s700 + $0x6a8] sm:%s693]
                  %1129 = vst [vmem:[%s701 + $0x354] sm:%s693] %v1128
                  %v1130 = vld [vmem:[%s700 + $0x6b0] sm:%s693]
                  %1131 = vst [vmem:[%s701 + $0x358] sm:%s693] %v1130
                  %v1132 = vld [vmem:[%s700 + $0x6b8] sm:%s693]
                  %1133 = vst [vmem:[%s701 + $0x35c] sm:%s693] %v1132
                  %v1134 = vld [vmem:[%s700 + $0x6c0] sm:%s693]
                  %1135 = vst [vmem:[%s701 + $0x360] sm:%s693] %v1134
                  %v1136 = vld [vmem:[%s700 + $0x6c8] sm:%s693]
                  %1137 = vst [vmem:[%s701 + $0x364] sm:%s693] %v1136
                  %v1138 = vld [vmem:[%s700 + $0x6d0] sm:%s693]
                  %1139 = vst [vmem:[%s701 + $0x368] sm:%s693] %v1138
                  %v1140 = vld [vmem:[%s700 + $0x6d8] sm:%s693]
                  %1141 = vst [vmem:[%s701 + $0x36c] sm:%s693] %v1140
                  %v1142 = vld [vmem:[%s700 + $0x6e0] sm:%s693]
                  %1143 = vst [vmem:[%s701 + $0x370] sm:%s693] %v1142
                  %v1144 = vld [vmem:[%s700 + $0x6e8] sm:%s693]
                  %1145 = vst [vmem:[%s701 + $0x374] sm:%s693] %v1144
                  %v1146 = vld [vmem:[%s700 + $0x6f0] sm:%s693]
                  %1147 = vst [vmem:[%s701 + $0x378] sm:%s693] %v1146
                  %v1148 = vld [vmem:[%s700 + $0x6f8] sm:%s693]
                  %1149 = vst [vmem:[%s701 + $0x37c] sm:%s693] %v1148
                  %v1150 = vld [vmem:[%s700 + $0x700] sm:%s693]
                  %1151 = vst [vmem:[%s701 + $0x380] sm:%s693] %v1150
                  %v1152 = vld [vmem:[%s700 + $0x708] sm:%s693]
                  %1153 = vst [vmem:[%s701 + $0x384] sm:%s693] %v1152
                  %v1154 = vld [vmem:[%s700 + $0x710] sm:%s693]
                  %1155 = vst [vmem:[%s701 + $0x388] sm:%s693] %v1154
                  %v1156 = vld [vmem:[%s700 + $0x718] sm:%s693]
                  %1157 = vst [vmem:[%s701 + $0x38c] sm:%s693] %v1156
                  %v1158 = vld [vmem:[%s700 + $0x720] sm:%s693]
                  %1159 = vst [vmem:[%s701 + $0x390] sm:%s693] %v1158
                  %v1160 = vld [vmem:[%s700 + $0x728] sm:%s693]
                  %1161 = vst [vmem:[%s701 + $0x394] sm:%s693] %v1160
                  %v1162 = vld [vmem:[%s700 + $0x730] sm:%s693]
                  %1163 = vst [vmem:[%s701 + $0x398] sm:%s693] %v1162
                  %v1164 = vld [vmem:[%s700 + $0x738] sm:%s693]
                  %1165 = vst [vmem:[%s701 + $0x39c] sm:%s693] %v1164
                  %v1166 = vld [vmem:[%s700 + $0x740] sm:%s693]
                  %1167 = vst [vmem:[%s701 + $0x3a0] sm:%s693] %v1166
                  %v1168 = vld [vmem:[%s700 + $0x748] sm:%s693]
                  %1169 = vst [vmem:[%s701 + $0x3a4] sm:%s693] %v1168
                  %v1170 = vld [vmem:[%s700 + $0x750] sm:%s693]
                  %1171 = vst [vmem:[%s701 + $0x3a8] sm:%s693] %v1170
                  %v1172 = vld [vmem:[%s700 + $0x758] sm:%s693]
                  %1173 = vst [vmem:[%s701 + $0x3ac] sm:%s693] %v1172
                  %v1174 = vld [vmem:[%s700 + $0x760] sm:%s693]
                  %1175 = vst [vmem:[%s701 + $0x3b0] sm:%s693] %v1174
                  %v1176 = vld [vmem:[%s700 + $0x768] sm:%s693]
                  %1177 = vst [vmem:[%s701 + $0x3b4] sm:%s693] %v1176
                  %v1178 = vld [vmem:[%s700 + $0x770] sm:%s693]
                  %1179 = vst [vmem:[%s701 + $0x3b8] sm:%s693] %v1178
                  %v1180 = vld [vmem:[%s700 + $0x778] sm:%s693]
                  %1181 = vst [vmem:[%s701 + $0x3bc] sm:%s693] %v1180
                  %v1182 = vld [vmem:[%s700 + $0x780] sm:%s693]
                  %1183 = vst [vmem:[%s701 + $0x3c0] sm:%s693] %v1182
                  %v1184 = vld [vmem:[%s700 + $0x788] sm:%s693]
                  %1185 = vst [vmem:[%s701 + $0x3c4] sm:%s693] %v1184
                  %v1186 = vld [vmem:[%s700 + $0x790] sm:%s693]
                  %1187 = vst [vmem:[%s701 + $0x3c8] sm:%s693] %v1186
                  %v1188 = vld [vmem:[%s700 + $0x798] sm:%s693]
                  %1189 = vst [vmem:[%s701 + $0x3cc] sm:%s693] %v1188
                  %v1190 = vld [vmem:[%s700 + $0x7a0] sm:%s693]
                  %1191 = vst [vmem:[%s701 + $0x3d0] sm:%s693] %v1190
                  %v1192 = vld [vmem:[%s700 + $0x7a8] sm:%s693]
                  %1193 = vst [vmem:[%s701 + $0x3d4] sm:%s693] %v1192
                  %v1194 = vld [vmem:[%s700 + $0x7b0] sm:%s693]
                  %1195 = vst [vmem:[%s701 + $0x3d8] sm:%s693] %v1194
                  %v1196 = vld [vmem:[%s700 + $0x7b8] sm:%s693]
                  %1197 = vst [vmem:[%s701 + $0x3dc] sm:%s693] %v1196
                  %v1198 = vld [vmem:[%s700 + $0x7c0] sm:%s693]
                  %1199 = vst [vmem:[%s701 + $0x3e0] sm:%s693] %v1198
                  %v1200 = vld [vmem:[%s700 + $0x7c8] sm:%s693]
                  %1201 = vst [vmem:[%s701 + $0x3e4] sm:%s693] %v1200
                  %v1202 = vld [vmem:[%s700 + $0x7d0] sm:%s693]
                  %1203 = vst [vmem:[%s701 + $0x3e8] sm:%s693] %v1202
                  %v1204 = vld [vmem:[%s700 + $0x7d8] sm:%s693]
                  %1205 = vst [vmem:[%s701 + $0x3ec] sm:%s693] %v1204
                $region67: #{stmamba_forward.4} parent=54 // loop_footer
                  %s699 = sadd.s32 1, %s695
                $region68: #{stmamba_forward.4} parent=54 // loop_footer_branch
                  %694 = sbr.rel target = $region64
                $region69: #{stmamba_forward.4} parent=54 // loop_exit
                  _
              $region55: #{stmamba_forward.4} parent=39 // pred_fallthru
                _
            $region40: #{stmamba_forward.4} parent=35 // pred_fallthru
              _
            // Predicated region
            $region41: #{stmamba_forward.4} parent=35 // pred_check
              _
            $region42: #{stmamba_forward.4} parent=35 // pred_check_branch
              %167 = sbr.rel (0) target = $region44
            $region43: #{stmamba_forward.4} parent=35 // pred_region
              %s169 = ssub.s32 16, 1
              loop: start=0, step=1, limit=1
              $region45: #{stmamba_forward.4} parent=43 // loop_pre_header
                _
              $region46: #{stmamba_forward.4} parent=43 // loop_header
                %s171 = sphi 0, %s175
                %p172 = scmp.ge.s32.totalorder %s171, 1
                %s176 = sphi %s161, %s161
                %s177 = sphi %s159, %s159
              $region47: #{stmamba_forward.4} parent=43 // loop_header_branch
                %174 = sbr.rel (%p172) target = $region51
              $region48: #{stmamba_forward.4} parent=43 // loop_body
                %v178 = vld [vmem:[%s176] sm:%s169]
                %179 = vst [vmem:[%s177] sm:%s169] %v178
                %v180 = vld [vmem:[%s176 + $0x8] sm:%s169]
                %181 = vst [vmem:[%s177 + $0x4] sm:%s169] %v180
                %v182 = vld [vmem:[%s176 + $0x10] sm:%s169]
                %183 = vst [vmem:[%s177 + $0x8] sm:%s169] %v182
                %v184 = vld [vmem:[%s176 + $0x18] sm:%s169]
                %185 = vst [vmem:[%s177 + $0xc] sm:%s169] %v184
                %v186 = vld [vmem:[%s176 + $0x20] sm:%s169]
                %187 = vst [vmem:[%s177 + $0x10] sm:%s169] %v186
                %v188 = vld [vmem:[%s176 + $0x28] sm:%s169]
                %189 = vst [vmem:[%s177 + $0x14] sm:%s169] %v188
                %v190 = vld [vmem:[%s176 + $0x30] sm:%s169]
                %191 = vst [vmem:[%s177 + $0x18] sm:%s169] %v190
                %v192 = vld [vmem:[%s176 + $0x38] sm:%s169]
                %193 = vst [vmem:[%s177 + $0x1c] sm:%s169] %v192
                %v194 = vld [vmem:[%s176 + $0x40] sm:%s169]
                %195 = vst [vmem:[%s177 + $0x20] sm:%s169] %v194
                %v196 = vld [vmem:[%s176 + $0x48] sm:%s169]
                %197 = vst [vmem:[%s177 + $0x24] sm:%s169] %v196
                %v198 = vld [vmem:[%s176 + $0x50] sm:%s169]
                %199 = vst [vmem:[%s177 + $0x28] sm:%s169] %v198
                %v200 = vld [vmem:[%s176 + $0x58] sm:%s169]
                %201 = vst [vmem:[%s177 + $0x2c] sm:%s169] %v200
                %v202 = vld [vmem:[%s176 + $0x60] sm:%s169]
                %203 = vst [vmem:[%s177 + $0x30] sm:%s169] %v202
                %v204 = vld [vmem:[%s176 + $0x68] sm:%s169]
                %205 = vst [vmem:[%s177 + $0x34] sm:%s169] %v204
                %v206 = vld [vmem:[%s176 + $0x70] sm:%s169]
                %207 = vst [vmem:[%s177 + $0x38] sm:%s169] %v206
                %v208 = vld [vmem:[%s176 + $0x78] sm:%s169]
                %209 = vst [vmem:[%s177 + $0x3c] sm:%s169] %v208
                %v210 = vld [vmem:[%s176 + $0x80] sm:%s169]
                %211 = vst [vmem:[%s177 + $0x40] sm:%s169] %v210
                %v212 = vld [vmem:[%s176 + $0x88] sm:%s169]
                %213 = vst [vmem:[%s177 + $0x44] sm:%s169] %v212
                %v214 = vld [vmem:[%s176 + $0x90] sm:%s169]
                %215 = vst [vmem:[%s177 + $0x48] sm:%s169] %v214
                %v216 = vld [vmem:[%s176 + $0x98] sm:%s169]
                %217 = vst [vmem:[%s177 + $0x4c] sm:%s169] %v216
                %v218 = vld [vmem:[%s176 + $0xa0] sm:%s169]
                %219 = vst [vmem:[%s177 + $0x50] sm:%s169] %v218
                %v220 = vld [vmem:[%s176 + $0xa8] sm:%s169]
                %221 = vst [vmem:[%s177 + $0x54] sm:%s169] %v220
                %v222 = vld [vmem:[%s176 + $0xb0] sm:%s169]
                %223 = vst [vmem:[%s177 + $0x58] sm:%s169] %v222
                %v224 = vld [vmem:[%s176 + $0xb8] sm:%s169]
                %225 = vst [vmem:[%s177 + $0x5c] sm:%s169] %v224
                %v226 = vld [vmem:[%s176 + $0xc0] sm:%s169]
                %227 = vst [vmem:[%s177 + $0x60] sm:%s169] %v226
                %v228 = vld [vmem:[%s176 + $0xc8] sm:%s169]
                %229 = vst [vmem:[%s177 + $0x64] sm:%s169] %v228
                %v230 = vld [vmem:[%s176 + $0xd0] sm:%s169]
                %231 = vst [vmem:[%s177 + $0x68] sm:%s169] %v230
                %v232 = vld [vmem:[%s176 + $0xd8] sm:%s169]
                %233 = vst [vmem:[%s177 + $0x6c] sm:%s169] %v232
                %v234 = vld [vmem:[%s176 + $0xe0] sm:%s169]
                %235 = vst [vmem:[%s177 + $0x70] sm:%s169] %v234
                %v236 = vld [vmem:[%s176 + $0xe8] sm:%s169]
                %237 = vst [vmem:[%s177 + $0x74] sm:%s169] %v236
                %v238 = vld [vmem:[%s176 + $0xf0] sm:%s169]
                %239 = vst [vmem:[%s177 + $0x78] sm:%s169] %v238
                %v240 = vld [vmem:[%s176 + $0xf8] sm:%s169]
                %241 = vst [vmem:[%s177 + $0x7c] sm:%s169] %v240
                %v242 = vld [vmem:[%s176 + $0x100] sm:%s169]
                %243 = vst [vmem:[%s177 + $0x80] sm:%s169] %v242
                %v244 = vld [vmem:[%s176 + $0x108] sm:%s169]
                %245 = vst [vmem:[%s177 + $0x84] sm:%s169] %v244
                %v246 = vld [vmem:[%s176 + $0x110] sm:%s169]
                %247 = vst [vmem:[%s177 + $0x88] sm:%s169] %v246
                %v248 = vld [vmem:[%s176 + $0x118] sm:%s169]
                %249 = vst [vmem:[%s177 + $0x8c] sm:%s169] %v248
                %v250 = vld [vmem:[%s176 + $0x120] sm:%s169]
                %251 = vst [vmem:[%s177 + $0x90] sm:%s169] %v250
                %v252 = vld [vmem:[%s176 + $0x128] sm:%s169]
                %253 = vst [vmem:[%s177 + $0x94] sm:%s169] %v252
                %v254 = vld [vmem:[%s176 + $0x130] sm:%s169]
                %255 = vst [vmem:[%s177 + $0x98] sm:%s169] %v254
                %v256 = vld [vmem:[%s176 + $0x138] sm:%s169]
                %257 = vst [vmem:[%s177 + $0x9c] sm:%s169] %v256
                %v258 = vld [vmem:[%s176 + $0x140] sm:%s169]
                %259 = vst [vmem:[%s177 + $0xa0] sm:%s169] %v258
                %v260 = vld [vmem:[%s176 + $0x148] sm:%s169]
                %261 = vst [vmem:[%s177 + $0xa4] sm:%s169] %v260
                %v262 = vld [vmem:[%s176 + $0x150] sm:%s169]
                %263 = vst [vmem:[%s177 + $0xa8] sm:%s169] %v262
                %v264 = vld [vmem:[%s176 + $0x158] sm:%s169]
                %265 = vst [vmem:[%s177 + $0xac] sm:%s169] %v264
                %v266 = vld [vmem:[%s176 + $0x160] sm:%s169]
                %267 = vst [vmem:[%s177 + $0xb0] sm:%s169] %v266
                %v268 = vld [vmem:[%s176 + $0x168] sm:%s169]
                %269 = vst [vmem:[%s177 + $0xb4] sm:%s169] %v268
                %v270 = vld [vmem:[%s176 + $0x170] sm:%s169]
                %271 = vst [vmem:[%s177 + $0xb8] sm:%s169] %v270
                %v272 = vld [vmem:[%s176 + $0x178] sm:%s169]
                %273 = vst [vmem:[%s177 + $0xbc] sm:%s169] %v272
                %v274 = vld [vmem:[%s176 + $0x180] sm:%s169]
                %275 = vst [vmem:[%s177 + $0xc0] sm:%s169] %v274
                %v276 = vld [vmem:[%s176 + $0x188] sm:%s169]
                %277 = vst [vmem:[%s177 + $0xc4] sm:%s169] %v276
                %v278 = vld [vmem:[%s176 + $0x190] sm:%s169]
                %279 = vst [vmem:[%s177 + $0xc8] sm:%s169] %v278
                %v280 = vld [vmem:[%s176 + $0x198] sm:%s169]
                %281 = vst [vmem:[%s177 + $0xcc] sm:%s169] %v280
                %v282 = vld [vmem:[%s176 + $0x1a0] sm:%s169]
                %283 = vst [vmem:[%s177 + $0xd0] sm:%s169] %v282
                %v284 = vld [vmem:[%s176 + $0x1a8] sm:%s169]
                %285 = vst [vmem:[%s177 + $0xd4] sm:%s169] %v284
                %v286 = vld [vmem:[%s176 + $0x1b0] sm:%s169]
                %287 = vst [vmem:[%s177 + $0xd8] sm:%s169] %v286
                %v288 = vld [vmem:[%s176 + $0x1b8] sm:%s169]
                %289 = vst [vmem:[%s177 + $0xdc] sm:%s169] %v288
                %v290 = vld [vmem:[%s176 + $0x1c0] sm:%s169]
                %291 = vst [vmem:[%s177 + $0xe0] sm:%s169] %v290
                %v292 = vld [vmem:[%s176 + $0x1c8] sm:%s169]
                %293 = vst [vmem:[%s177 + $0xe4] sm:%s169] %v292
                %v294 = vld [vmem:[%s176 + $0x1d0] sm:%s169]
                %295 = vst [vmem:[%s177 + $0xe8] sm:%s169] %v294
                %v296 = vld [vmem:[%s176 + $0x1d8] sm:%s169]
                %297 = vst [vmem:[%s177 + $0xec] sm:%s169] %v296
                %v298 = vld [vmem:[%s176 + $0x1e0] sm:%s169]
                %299 = vst [vmem:[%s177 + $0xf0] sm:%s169] %v298
                %v300 = vld [vmem:[%s176 + $0x1e8] sm:%s169]
                %301 = vst [vmem:[%s177 + $0xf4] sm:%s169] %v300
                %v302 = vld [vmem:[%s176 + $0x1f0] sm:%s169]
                %303 = vst [vmem:[%s177 + $0xf8] sm:%s169] %v302
                %v304 = vld [vmem:[%s176 + $0x1f8] sm:%s169]
                %305 = vst [vmem:[%s177 + $0xfc] sm:%s169] %v304
                %v306 = vld [vmem:[%s176 + $0x200] sm:%s169]
                %307 = vst [vmem:[%s177 + $0x100] sm:%s169] %v306
                %v308 = vld [vmem:[%s176 + $0x208] sm:%s169]
                %309 = vst [vmem:[%s177 + $0x104] sm:%s169] %v308
                %v310 = vld [vmem:[%s176 + $0x210] sm:%s169]
                %311 = vst [vmem:[%s177 + $0x108] sm:%s169] %v310
                %v312 = vld [vmem:[%s176 + $0x218] sm:%s169]
                %313 = vst [vmem:[%s177 + $0x10c] sm:%s169] %v312
                %v314 = vld [vmem:[%s176 + $0x220] sm:%s169]
                %315 = vst [vmem:[%s177 + $0x110] sm:%s169] %v314
                %v316 = vld [vmem:[%s176 + $0x228] sm:%s169]
                %317 = vst [vmem:[%s177 + $0x114] sm:%s169] %v316
                %v318 = vld [vmem:[%s176 + $0x230] sm:%s169]
                %319 = vst [vmem:[%s177 + $0x118] sm:%s169] %v318
                %v320 = vld [vmem:[%s176 + $0x238] sm:%s169]
                %321 = vst [vmem:[%s177 + $0x11c] sm:%s169] %v320
                %v322 = vld [vmem:[%s176 + $0x240] sm:%s169]
                %323 = vst [vmem:[%s177 + $0x120] sm:%s169] %v322
                %v324 = vld [vmem:[%s176 + $0x248] sm:%s169]
                %325 = vst [vmem:[%s177 + $0x124] sm:%s169] %v324
                %v326 = vld [vmem:[%s176 + $0x250] sm:%s169]
                %327 = vst [vmem:[%s177 + $0x128] sm:%s169] %v326
                %v328 = vld [vmem:[%s176 + $0x258] sm:%s169]
                %329 = vst [vmem:[%s177 + $0x12c] sm:%s169] %v328
                %v330 = vld [vmem:[%s176 + $0x260] sm:%s169]
                %331 = vst [vmem:[%s177 + $0x130] sm:%s169] %v330
                %v332 = vld [vmem:[%s176 + $0x268] sm:%s169]
                %333 = vst [vmem:[%s177 + $0x134] sm:%s169] %v332
                %v334 = vld [vmem:[%s176 + $0x270] sm:%s169]
                %335 = vst [vmem:[%s177 + $0x138] sm:%s169] %v334
                %v336 = vld [vmem:[%s176 + $0x278] sm:%s169]
                %337 = vst [vmem:[%s177 + $0x13c] sm:%s169] %v336
                %v338 = vld [vmem:[%s176 + $0x280] sm:%s169]
                %339 = vst [vmem:[%s177 + $0x140] sm:%s169] %v338
                %v340 = vld [vmem:[%s176 + $0x288] sm:%s169]
                %341 = vst [vmem:[%s177 + $0x144] sm:%s169] %v340
                %v342 = vld [vmem:[%s176 + $0x290] sm:%s169]
                %343 = vst [vmem:[%s177 + $0x148] sm:%s169] %v342
                %v344 = vld [vmem:[%s176 + $0x298] sm:%s169]
                %345 = vst [vmem:[%s177 + $0x14c] sm:%s169] %v344
                %v346 = vld [vmem:[%s176 + $0x2a0] sm:%s169]
                %347 = vst [vmem:[%s177 + $0x150] sm:%s169] %v346
                %v348 = vld [vmem:[%s176 + $0x2a8] sm:%s169]
                %349 = vst [vmem:[%s177 + $0x154] sm:%s169] %v348
                %v350 = vld [vmem:[%s176 + $0x2b0] sm:%s169]
                %351 = vst [vmem:[%s177 + $0x158] sm:%s169] %v350
                %v352 = vld [vmem:[%s176 + $0x2b8] sm:%s169]
                %353 = vst [vmem:[%s177 + $0x15c] sm:%s169] %v352
                %v354 = vld [vmem:[%s176 + $0x2c0] sm:%s169]
                %355 = vst [vmem:[%s177 + $0x160] sm:%s169] %v354
                %v356 = vld [vmem:[%s176 + $0x2c8] sm:%s169]
                %357 = vst [vmem:[%s177 + $0x164] sm:%s169] %v356
                %v358 = vld [vmem:[%s176 + $0x2d0] sm:%s169]
                %359 = vst [vmem:[%s177 + $0x168] sm:%s169] %v358
                %v360 = vld [vmem:[%s176 + $0x2d8] sm:%s169]
                %361 = vst [vmem:[%s177 + $0x16c] sm:%s169] %v360
                %v362 = vld [vmem:[%s176 + $0x2e0] sm:%s169]
                %363 = vst [vmem:[%s177 + $0x170] sm:%s169] %v362
                %v364 = vld [vmem:[%s176 + $0x2e8] sm:%s169]
                %365 = vst [vmem:[%s177 + $0x174] sm:%s169] %v364
                %v366 = vld [vmem:[%s176 + $0x2f0] sm:%s169]
                %367 = vst [vmem:[%s177 + $0x178] sm:%s169] %v366
                %v368 = vld [vmem:[%s176 + $0x2f8] sm:%s169]
                %369 = vst [vmem:[%s177 + $0x17c] sm:%s169] %v368
                %v370 = vld [vmem:[%s176 + $0x300] sm:%s169]
                %371 = vst [vmem:[%s177 + $0x180] sm:%s169] %v370
                %v372 = vld [vmem:[%s176 + $0x308] sm:%s169]
                %373 = vst [vmem:[%s177 + $0x184] sm:%s169] %v372
                %v374 = vld [vmem:[%s176 + $0x310] sm:%s169]
                %375 = vst [vmem:[%s177 + $0x188] sm:%s169] %v374
                %v376 = vld [vmem:[%s176 + $0x318] sm:%s169]
                %377 = vst [vmem:[%s177 + $0x18c] sm:%s169] %v376
                %v378 = vld [vmem:[%s176 + $0x320] sm:%s169]
                %379 = vst [vmem:[%s177 + $0x190] sm:%s169] %v378
                %v380 = vld [vmem:[%s176 + $0x328] sm:%s169]
                %381 = vst [vmem:[%s177 + $0x194] sm:%s169] %v380
                %v382 = vld [vmem:[%s176 + $0x330] sm:%s169]
                %383 = vst [vmem:[%s177 + $0x198] sm:%s169] %v382
                %v384 = vld [vmem:[%s176 + $0x338] sm:%s169]
                %385 = vst [vmem:[%s177 + $0x19c] sm:%s169] %v384
                %v386 = vld [vmem:[%s176 + $0x340] sm:%s169]
                %387 = vst [vmem:[%s177 + $0x1a0] sm:%s169] %v386
                %v388 = vld [vmem:[%s176 + $0x348] sm:%s169]
                %389 = vst [vmem:[%s177 + $0x1a4] sm:%s169] %v388
                %v390 = vld [vmem:[%s176 + $0x350] sm:%s169]
                %391 = vst [vmem:[%s177 + $0x1a8] sm:%s169] %v390
                %v392 = vld [vmem:[%s176 + $0x358] sm:%s169]
                %393 = vst [vmem:[%s177 + $0x1ac] sm:%s169] %v392
                %v394 = vld [vmem:[%s176 + $0x360] sm:%s169]
                %395 = vst [vmem:[%s177 + $0x1b0] sm:%s169] %v394
                %v396 = vld [vmem:[%s176 + $0x368] sm:%s169]
                %397 = vst [vmem:[%s177 + $0x1b4] sm:%s169] %v396
                %v398 = vld [vmem:[%s176 + $0x370] sm:%s169]
                %399 = vst [vmem:[%s177 + $0x1b8] sm:%s169] %v398
                %v400 = vld [vmem:[%s176 + $0x378] sm:%s169]
                %401 = vst [vmem:[%s177 + $0x1bc] sm:%s169] %v400
                %v402 = vld [vmem:[%s176 + $0x380] sm:%s169]
                %403 = vst [vmem:[%s177 + $0x1c0] sm:%s169] %v402
                %v404 = vld [vmem:[%s176 + $0x388] sm:%s169]
                %405 = vst [vmem:[%s177 + $0x1c4] sm:%s169] %v404
                %v406 = vld [vmem:[%s176 + $0x390] sm:%s169]
                %407 = vst [vmem:[%s177 + $0x1c8] sm:%s169] %v406
                %v408 = vld [vmem:[%s176 + $0x398] sm:%s169]
                %409 = vst [vmem:[%s177 + $0x1cc] sm:%s169] %v408
                %v410 = vld [vmem:[%s176 + $0x3a0] sm:%s169]
                %411 = vst [vmem:[%s177 + $0x1d0] sm:%s169] %v410
                %v412 = vld [vmem:[%s176 + $0x3a8] sm:%s169]
                %413 = vst [vmem:[%s177 + $0x1d4] sm:%s169] %v412
                %v414 = vld [vmem:[%s176 + $0x3b0] sm:%s169]
                %415 = vst [vmem:[%s177 + $0x1d8] sm:%s169] %v414
                %v416 = vld [vmem:[%s176 + $0x3b8] sm:%s169]
                %417 = vst [vmem:[%s177 + $0x1dc] sm:%s169] %v416
                %v418 = vld [vmem:[%s176 + $0x3c0] sm:%s169]
                %419 = vst [vmem:[%s177 + $0x1e0] sm:%s169] %v418
                %v420 = vld [vmem:[%s176 + $0x3c8] sm:%s169]
                %421 = vst [vmem:[%s177 + $0x1e4] sm:%s169] %v420
                %v422 = vld [vmem:[%s176 + $0x3d0] sm:%s169]
                %423 = vst [vmem:[%s177 + $0x1e8] sm:%s169] %v422
                %v424 = vld [vmem:[%s176 + $0x3d8] sm:%s169]
                %425 = vst [vmem:[%s177 + $0x1ec] sm:%s169] %v424
                %v426 = vld [vmem:[%s176 + $0x3e0] sm:%s169]
                %427 = vst [vmem:[%s177 + $0x1f0] sm:%s169] %v426
                %v428 = vld [vmem:[%s176 + $0x3e8] sm:%s169]
                %429 = vst [vmem:[%s177 + $0x1f4] sm:%s169] %v428
                %v430 = vld [vmem:[%s176 + $0x3f0] sm:%s169]
                %431 = vst [vmem:[%s177 + $0x1f8] sm:%s169] %v430
                %v432 = vld [vmem:[%s176 + $0x3f8] sm:%s169]
                %433 = vst [vmem:[%s177 + $0x1fc] sm:%s169] %v432
                %v434 = vld [vmem:[%s176 + $0x400] sm:%s169]
                %435 = vst [vmem:[%s177 + $0x200] sm:%s169] %v434
                %v436 = vld [vmem:[%s176 + $0x408] sm:%s169]
                %437 = vst [vmem:[%s177 + $0x204] sm:%s169] %v436
                %v438 = vld [vmem:[%s176 + $0x410] sm:%s169]
                %439 = vst [vmem:[%s177 + $0x208] sm:%s169] %v438
                %v440 = vld [vmem:[%s176 + $0x418] sm:%s169]
                %441 = vst [vmem:[%s177 + $0x20c] sm:%s169] %v440
                %v442 = vld [vmem:[%s176 + $0x420] sm:%s169]
                %443 = vst [vmem:[%s177 + $0x210] sm:%s169] %v442
                %v444 = vld [vmem:[%s176 + $0x428] sm:%s169]
                %445 = vst [vmem:[%s177 + $0x214] sm:%s169] %v444
                %v446 = vld [vmem:[%s176 + $0x430] sm:%s169]
                %447 = vst [vmem:[%s177 + $0x218] sm:%s169] %v446
                %v448 = vld [vmem:[%s176 + $0x438] sm:%s169]
                %449 = vst [vmem:[%s177 + $0x21c] sm:%s169] %v448
                %v450 = vld [vmem:[%s176 + $0x440] sm:%s169]
                %451 = vst [vmem:[%s177 + $0x220] sm:%s169] %v450
                %v452 = vld [vmem:[%s176 + $0x448] sm:%s169]
                %453 = vst [vmem:[%s177 + $0x224] sm:%s169] %v452
                %v454 = vld [vmem:[%s176 + $0x450] sm:%s169]
                %455 = vst [vmem:[%s177 + $0x228] sm:%s169] %v454
                %v456 = vld [vmem:[%s176 + $0x458] sm:%s169]
                %457 = vst [vmem:[%s177 + $0x22c] sm:%s169] %v456
                %v458 = vld [vmem:[%s176 + $0x460] sm:%s169]
                %459 = vst [vmem:[%s177 + $0x230] sm:%s169] %v458
                %v460 = vld [vmem:[%s176 + $0x468] sm:%s169]
                %461 = vst [vmem:[%s177 + $0x234] sm:%s169] %v460
                %v462 = vld [vmem:[%s176 + $0x470] sm:%s169]
                %463 = vst [vmem:[%s177 + $0x238] sm:%s169] %v462
                %v464 = vld [vmem:[%s176 + $0x478] sm:%s169]
                %465 = vst [vmem:[%s177 + $0x23c] sm:%s169] %v464
                %v466 = vld [vmem:[%s176 + $0x480] sm:%s169]
                %467 = vst [vmem:[%s177 + $0x240] sm:%s169] %v466
                %v468 = vld [vmem:[%s176 + $0x488] sm:%s169]
                %469 = vst [vmem:[%s177 + $0x244] sm:%s169] %v468
                %v470 = vld [vmem:[%s176 + $0x490] sm:%s169]
                %471 = vst [vmem:[%s177 + $0x248] sm:%s169] %v470
                %v472 = vld [vmem:[%s176 + $0x498] sm:%s169]
                %473 = vst [vmem:[%s177 + $0x24c] sm:%s169] %v472
                %v474 = vld [vmem:[%s176 + $0x4a0] sm:%s169]
                %475 = vst [vmem:[%s177 + $0x250] sm:%s169] %v474
                %v476 = vld [vmem:[%s176 + $0x4a8] sm:%s169]
                %477 = vst [vmem:[%s177 + $0x254] sm:%s169] %v476
                %v478 = vld [vmem:[%s176 + $0x4b0] sm:%s169]
                %479 = vst [vmem:[%s177 + $0x258] sm:%s169] %v478
                %v480 = vld [vmem:[%s176 + $0x4b8] sm:%s169]
                %481 = vst [vmem:[%s177 + $0x25c] sm:%s169] %v480
                %v482 = vld [vmem:[%s176 + $0x4c0] sm:%s169]
                %483 = vst [vmem:[%s177 + $0x260] sm:%s169] %v482
                %v484 = vld [vmem:[%s176 + $0x4c8] sm:%s169]
                %485 = vst [vmem:[%s177 + $0x264] sm:%s169] %v484
                %v486 = vld [vmem:[%s176 + $0x4d0] sm:%s169]
                %487 = vst [vmem:[%s177 + $0x268] sm:%s169] %v486
                %v488 = vld [vmem:[%s176 + $0x4d8] sm:%s169]
                %489 = vst [vmem:[%s177 + $0x26c] sm:%s169] %v488
                %v490 = vld [vmem:[%s176 + $0x4e0] sm:%s169]
                %491 = vst [vmem:[%s177 + $0x270] sm:%s169] %v490
                %v492 = vld [vmem:[%s176 + $0x4e8] sm:%s169]
                %493 = vst [vmem:[%s177 + $0x274] sm:%s169] %v492
                %v494 = vld [vmem:[%s176 + $0x4f0] sm:%s169]
                %495 = vst [vmem:[%s177 + $0x278] sm:%s169] %v494
                %v496 = vld [vmem:[%s176 + $0x4f8] sm:%s169]
                %497 = vst [vmem:[%s177 + $0x27c] sm:%s169] %v496
                %v498 = vld [vmem:[%s176 + $0x500] sm:%s169]
                %499 = vst [vmem:[%s177 + $0x280] sm:%s169] %v498
                %v500 = vld [vmem:[%s176 + $0x508] sm:%s169]
                %501 = vst [vmem:[%s177 + $0x284] sm:%s169] %v500
                %v502 = vld [vmem:[%s176 + $0x510] sm:%s169]
                %503 = vst [vmem:[%s177 + $0x288] sm:%s169] %v502
                %v504 = vld [vmem:[%s176 + $0x518] sm:%s169]
                %505 = vst [vmem:[%s177 + $0x28c] sm:%s169] %v504
                %v506 = vld [vmem:[%s176 + $0x520] sm:%s169]
                %507 = vst [vmem:[%s177 + $0x290] sm:%s169] %v506
                %v508 = vld [vmem:[%s176 + $0x528] sm:%s169]
                %509 = vst [vmem:[%s177 + $0x294] sm:%s169] %v508
                %v510 = vld [vmem:[%s176 + $0x530] sm:%s169]
                %511 = vst [vmem:[%s177 + $0x298] sm:%s169] %v510
                %v512 = vld [vmem:[%s176 + $0x538] sm:%s169]
                %513 = vst [vmem:[%s177 + $0x29c] sm:%s169] %v512
                %v514 = vld [vmem:[%s176 + $0x540] sm:%s169]
                %515 = vst [vmem:[%s177 + $0x2a0] sm:%s169] %v514
                %v516 = vld [vmem:[%s176 + $0x548] sm:%s169]
                %517 = vst [vmem:[%s177 + $0x2a4] sm:%s169] %v516
                %v518 = vld [vmem:[%s176 + $0x550] sm:%s169]
                %519 = vst [vmem:[%s177 + $0x2a8] sm:%s169] %v518
                %v520 = vld [vmem:[%s176 + $0x558] sm:%s169]
                %521 = vst [vmem:[%s177 + $0x2ac] sm:%s169] %v520
                %v522 = vld [vmem:[%s176 + $0x560] sm:%s169]
                %523 = vst [vmem:[%s177 + $0x2b0] sm:%s169] %v522
                %v524 = vld [vmem:[%s176 + $0x568] sm:%s169]
                %525 = vst [vmem:[%s177 + $0x2b4] sm:%s169] %v524
                %v526 = vld [vmem:[%s176 + $0x570] sm:%s169]
                %527 = vst [vmem:[%s177 + $0x2b8] sm:%s169] %v526
                %v528 = vld [vmem:[%s176 + $0x578] sm:%s169]
                %529 = vst [vmem:[%s177 + $0x2bc] sm:%s169] %v528
                %v530 = vld [vmem:[%s176 + $0x580] sm:%s169]
                %531 = vst [vmem:[%s177 + $0x2c0] sm:%s169] %v530
                %v532 = vld [vmem:[%s176 + $0x588] sm:%s169]
                %533 = vst [vmem:[%s177 + $0x2c4] sm:%s169] %v532
                %v534 = vld [vmem:[%s176 + $0x590] sm:%s169]
                %535 = vst [vmem:[%s177 + $0x2c8] sm:%s169] %v534
                %v536 = vld [vmem:[%s176 + $0x598] sm:%s169]
                %537 = vst [vmem:[%s177 + $0x2cc] sm:%s169] %v536
                %v538 = vld [vmem:[%s176 + $0x5a0] sm:%s169]
                %539 = vst [vmem:[%s177 + $0x2d0] sm:%s169] %v538
                %v540 = vld [vmem:[%s176 + $0x5a8] sm:%s169]
                %541 = vst [vmem:[%s177 + $0x2d4] sm:%s169] %v540
                %v542 = vld [vmem:[%s176 + $0x5b0] sm:%s169]
                %543 = vst [vmem:[%s177 + $0x2d8] sm:%s169] %v542
                %v544 = vld [vmem:[%s176 + $0x5b8] sm:%s169]
                %545 = vst [vmem:[%s177 + $0x2dc] sm:%s169] %v544
                %v546 = vld [vmem:[%s176 + $0x5c0] sm:%s169]
                %547 = vst [vmem:[%s177 + $0x2e0] sm:%s169] %v546
                %v548 = vld [vmem:[%s176 + $0x5c8] sm:%s169]
                %549 = vst [vmem:[%s177 + $0x2e4] sm:%s169] %v548
                %v550 = vld [vmem:[%s176 + $0x5d0] sm:%s169]
                %551 = vst [vmem:[%s177 + $0x2e8] sm:%s169] %v550
                %v552 = vld [vmem:[%s176 + $0x5d8] sm:%s169]
                %553 = vst [vmem:[%s177 + $0x2ec] sm:%s169] %v552
                %v554 = vld [vmem:[%s176 + $0x5e0] sm:%s169]
                %555 = vst [vmem:[%s177 + $0x2f0] sm:%s169] %v554
                %v556 = vld [vmem:[%s176 + $0x5e8] sm:%s169]
                %557 = vst [vmem:[%s177 + $0x2f4] sm:%s169] %v556
                %v558 = vld [vmem:[%s176 + $0x5f0] sm:%s169]
                %559 = vst [vmem:[%s177 + $0x2f8] sm:%s169] %v558
                %v560 = vld [vmem:[%s176 + $0x5f8] sm:%s169]
                %561 = vst [vmem:[%s177 + $0x2fc] sm:%s169] %v560
                %v562 = vld [vmem:[%s176 + $0x600] sm:%s169]
                %563 = vst [vmem:[%s177 + $0x300] sm:%s169] %v562
                %v564 = vld [vmem:[%s176 + $0x608] sm:%s169]
                %565 = vst [vmem:[%s177 + $0x304] sm:%s169] %v564
                %v566 = vld [vmem:[%s176 + $0x610] sm:%s169]
                %567 = vst [vmem:[%s177 + $0x308] sm:%s169] %v566
                %v568 = vld [vmem:[%s176 + $0x618] sm:%s169]
                %569 = vst [vmem:[%s177 + $0x30c] sm:%s169] %v568
                %v570 = vld [vmem:[%s176 + $0x620] sm:%s169]
                %571 = vst [vmem:[%s177 + $0x310] sm:%s169] %v570
                %v572 = vld [vmem:[%s176 + $0x628] sm:%s169]
                %573 = vst [vmem:[%s177 + $0x314] sm:%s169] %v572
                %v574 = vld [vmem:[%s176 + $0x630] sm:%s169]
                %575 = vst [vmem:[%s177 + $0x318] sm:%s169] %v574
                %v576 = vld [vmem:[%s176 + $0x638] sm:%s169]
                %577 = vst [vmem:[%s177 + $0x31c] sm:%s169] %v576
                %v578 = vld [vmem:[%s176 + $0x640] sm:%s169]
                %579 = vst [vmem:[%s177 + $0x320] sm:%s169] %v578
                %v580 = vld [vmem:[%s176 + $0x648] sm:%s169]
                %581 = vst [vmem:[%s177 + $0x324] sm:%s169] %v580
                %v582 = vld [vmem:[%s176 + $0x650] sm:%s169]
                %583 = vst [vmem:[%s177 + $0x328] sm:%s169] %v582
                %v584 = vld [vmem:[%s176 + $0x658] sm:%s169]
                %585 = vst [vmem:[%s177 + $0x32c] sm:%s169] %v584
                %v586 = vld [vmem:[%s176 + $0x660] sm:%s169]
                %587 = vst [vmem:[%s177 + $0x330] sm:%s169] %v586
                %v588 = vld [vmem:[%s176 + $0x668] sm:%s169]
                %589 = vst [vmem:[%s177 + $0x334] sm:%s169] %v588
                %v590 = vld [vmem:[%s176 + $0x670] sm:%s169]
                %591 = vst [vmem:[%s177 + $0x338] sm:%s169] %v590
                %v592 = vld [vmem:[%s176 + $0x678] sm:%s169]
                %593 = vst [vmem:[%s177 + $0x33c] sm:%s169] %v592
                %v594 = vld [vmem:[%s176 + $0x680] sm:%s169]
                %595 = vst [vmem:[%s177 + $0x340] sm:%s169] %v594
                %v596 = vld [vmem:[%s176 + $0x688] sm:%s169]
                %597 = vst [vmem:[%s177 + $0x344] sm:%s169] %v596
                %v598 = vld [vmem:[%s176 + $0x690] sm:%s169]
                %599 = vst [vmem:[%s177 + $0x348] sm:%s169] %v598
                %v600 = vld [vmem:[%s176 + $0x698] sm:%s169]
                %601 = vst [vmem:[%s177 + $0x34c] sm:%s169] %v600
                %v602 = vld [vmem:[%s176 + $0x6a0] sm:%s169]
                %603 = vst [vmem:[%s177 + $0x350] sm:%s169] %v602
                %v604 = vld [vmem:[%s176 + $0x6a8] sm:%s169]
                %605 = vst [vmem:[%s177 + $0x354] sm:%s169] %v604
                %v606 = vld [vmem:[%s176 + $0x6b0] sm:%s169]
                %607 = vst [vmem:[%s177 + $0x358] sm:%s169] %v606
                %v608 = vld [vmem:[%s176 + $0x6b8] sm:%s169]
                %609 = vst [vmem:[%s177 + $0x35c] sm:%s169] %v608
                %v610 = vld [vmem:[%s176 + $0x6c0] sm:%s169]
                %611 = vst [vmem:[%s177 + $0x360] sm:%s169] %v610
                %v612 = vld [vmem:[%s176 + $0x6c8] sm:%s169]
                %613 = vst [vmem:[%s177 + $0x364] sm:%s169] %v612
                %v614 = vld [vmem:[%s176 + $0x6d0] sm:%s169]
                %615 = vst [vmem:[%s177 + $0x368] sm:%s169] %v614
                %v616 = vld [vmem:[%s176 + $0x6d8] sm:%s169]
                %617 = vst [vmem:[%s177 + $0x36c] sm:%s169] %v616
                %v618 = vld [vmem:[%s176 + $0x6e0] sm:%s169]
                %619 = vst [vmem:[%s177 + $0x370] sm:%s169] %v618
                %v620 = vld [vmem:[%s176 + $0x6e8] sm:%s169]
                %621 = vst [vmem:[%s177 + $0x374] sm:%s169] %v620
                %v622 = vld [vmem:[%s176 + $0x6f0] sm:%s169]
                %623 = vst [vmem:[%s177 + $0x378] sm:%s169] %v622
                %v624 = vld [vmem:[%s176 + $0x6f8] sm:%s169]
                %625 = vst [vmem:[%s177 + $0x37c] sm:%s169] %v624
                %v626 = vld [vmem:[%s176 + $0x700] sm:%s169]
                %627 = vst [vmem:[%s177 + $0x380] sm:%s169] %v626
                %v628 = vld [vmem:[%s176 + $0x708] sm:%s169]
                %629 = vst [vmem:[%s177 + $0x384] sm:%s169] %v628
                %v630 = vld [vmem:[%s176 + $0x710] sm:%s169]
                %631 = vst [vmem:[%s177 + $0x388] sm:%s169] %v630
                %v632 = vld [vmem:[%s176 + $0x718] sm:%s169]
                %633 = vst [vmem:[%s177 + $0x38c] sm:%s169] %v632
                %v634 = vld [vmem:[%s176 + $0x720] sm:%s169]
                %635 = vst [vmem:[%s177 + $0x390] sm:%s169] %v634
                %v636 = vld [vmem:[%s176 + $0x728] sm:%s169]
                %637 = vst [vmem:[%s177 + $0x394] sm:%s169] %v636
                %v638 = vld [vmem:[%s176 + $0x730] sm:%s169]
                %639 = vst [vmem:[%s177 + $0x398] sm:%s169] %v638
                %v640 = vld [vmem:[%s176 + $0x738] sm:%s169]
                %641 = vst [vmem:[%s177 + $0x39c] sm:%s169] %v640
                %v642 = vld [vmem:[%s176 + $0x740] sm:%s169]
                %643 = vst [vmem:[%s177 + $0x3a0] sm:%s169] %v642
                %v644 = vld [vmem:[%s176 + $0x748] sm:%s169]
                %645 = vst [vmem:[%s177 + $0x3a4] sm:%s169] %v644
                %v646 = vld [vmem:[%s176 + $0x750] sm:%s169]
                %647 = vst [vmem:[%s177 + $0x3a8] sm:%s169] %v646
                %v648 = vld [vmem:[%s176 + $0x758] sm:%s169]
                %649 = vst [vmem:[%s177 + $0x3ac] sm:%s169] %v648
                %v650 = vld [vmem:[%s176 + $0x760] sm:%s169]
                %651 = vst [vmem:[%s177 + $0x3b0] sm:%s169] %v650
                %v652 = vld [vmem:[%s176 + $0x768] sm:%s169]
                %653 = vst [vmem:[%s177 + $0x3b4] sm:%s169] %v652
                %v654 = vld [vmem:[%s176 + $0x770] sm:%s169]
                %655 = vst [vmem:[%s177 + $0x3b8] sm:%s169] %v654
                %v656 = vld [vmem:[%s176 + $0x778] sm:%s169]
                %657 = vst [vmem:[%s177 + $0x3bc] sm:%s169] %v656
                %v658 = vld [vmem:[%s176 + $0x780] sm:%s169]
                %659 = vst [vmem:[%s177 + $0x3c0] sm:%s169] %v658
                %v660 = vld [vmem:[%s176 + $0x788] sm:%s169]
                %661 = vst [vmem:[%s177 + $0x3c4] sm:%s169] %v660
                %v662 = vld [vmem:[%s176 + $0x790] sm:%s169]
                %663 = vst [vmem:[%s177 + $0x3c8] sm:%s169] %v662
                %v664 = vld [vmem:[%s176 + $0x798] sm:%s169]
                %665 = vst [vmem:[%s177 + $0x3cc] sm:%s169] %v664
                %v666 = vld [vmem:[%s176 + $0x7a0] sm:%s169]
                %667 = vst [vmem:[%s177 + $0x3d0] sm:%s169] %v666
                %v668 = vld [vmem:[%s176 + $0x7a8] sm:%s169]
                %669 = vst [vmem:[%s177 + $0x3d4] sm:%s169] %v668
                %v670 = vld [vmem:[%s176 + $0x7b0] sm:%s169]
                %671 = vst [vmem:[%s177 + $0x3d8] sm:%s169] %v670
                %v672 = vld [vmem:[%s176 + $0x7b8] sm:%s169]
                %673 = vst [vmem:[%s177 + $0x3dc] sm:%s169] %v672
                %v674 = vld [vmem:[%s176 + $0x7c0] sm:%s169]
                %675 = vst [vmem:[%s177 + $0x3e0] sm:%s169] %v674
                %v676 = vld [vmem:[%s176 + $0x7c8] sm:%s169]
                %677 = vst [vmem:[%s177 + $0x3e4] sm:%s169] %v676
                %v678 = vld [vmem:[%s176 + $0x7d0] sm:%s169]
                %679 = vst [vmem:[%s177 + $0x3e8] sm:%s169] %v678
                %v680 = vld [vmem:[%s176 + $0x7d8] sm:%s169]
                %681 = vst [vmem:[%s177 + $0x3ec] sm:%s169] %v680
              $region49: #{stmamba_forward.4} parent=43 // loop_footer
                %s175 = sadd.s32 1, %s171
              $region50: #{stmamba_forward.4} parent=43 // loop_footer_branch
                %170 = sbr.rel target = $region46
              $region51: #{stmamba_forward.4} parent=43 // loop_exit
                _
            $region44: #{stmamba_forward.4} parent=35 // pred_fallthru
              _
          $region36: #{stmamba_forward.4} parent=31 // pred_fallthru
            _
          %1206 = vnop
        $region32: #{stmamba_forward.4} parent=27 // pred_fallthru
          _
      $region28: #{stmamba_forward.4} parent=5 // pred_fallthru
        _
      %p1207 = scmp.le.s32.totalorder 1, %s10
      %p1208 = scmp.lt.s32.totalorder %s10, 3
      %p1209 = pnand %p1207, %p1208
      %p1210 = pneg %p1209
      // Predicated region
      $region70: #{stmamba_forward.4} parent=5 // pred_check
        _
      $region71: #{stmamba_forward.4} parent=5 // pred_check_branch
        %1212 = sbr.rel (%p1209) target = $region73
      $region72: #{stmamba_forward.4} parent=5 // pred_region
        %s1213 = ssub.s32 %s10, 1
        %s1214 = sand.u32 %s44, 1
        %s1215 = sand.u32 %s44, 1
        %s1216 = smul.addr %s1215, 1008
        %s1217 = scalar_lea.vmem [#allocation2], %s1216
        // Predicated region
        $region74: #{stmamba_forward.4} parent=72 // pred_check
          %p1218 = pneg %p57
        $region75: #{stmamba_forward.4} parent=72 // pred_check_branch
          %1220 = sbr.rel (%p1218) target = $region77
        $region76: #{stmamba_forward.4} parent=72 // pred_region
          _
        $region77: #{stmamba_forward.4} parent=72 // pred_fallthru
          _
        %p1221 = pneg %p31
        %p1222 = pneg %p28
        %s1223 = sand.u32 %s44, 1
        %s1224 = sand.u32 %s44, 1
        %s1225 = smul.addr %s1224, 1008
        %s1226 = scalar_lea.vmem [#allocation2], %s1225
        %p1227 = pneg %p57
        %p1228 = pneg %p54
        %p1229 = pneg %p78
        %p1230 = pneg %p75
        %p1231 = pneg %p99
        %p1232 = pneg %p96
        %p1233 = pneg %p125
        %p1234 = pneg %p122
        %s1235 = sand.u32 %s112, 1
        %s1236 = sand.u32 %s112, 1
        %s1237 = smul.addr %s1236, 24
        %s1238 = scalar_lea.vmem [#allocation3], %s1237
        %v1240 = vld [vmem:[%s0] sm:$0xff]
        %v1241 = vld [vmem:[%s0 + $0x8] sm:$0xff]
        %v1242 = vld [vmem:[%s0 + $0x10] sm:$0xff]
        %v1243 = vld [vmem:[%s0 + $0x18] sm:$0xff]
        %v1244 = vld [vmem:[%s0 + $0x20] sm:$0xff]
        %v1245 = vld [vmem:[%s0 + $0x28] sm:$0xff]
        %v1246 = vld [vmem:[%s0 + $0x30] sm:$0xff]
        %v1247 = vld [vmem:[%s0 + $0x38] sm:$0xff]
        %v1248 = vld [vmem:[%s0 + $0x40] sm:$0xff]
        %v1249 = vld [vmem:[%s0 + $0x48] sm:$0xff]
        %v1250 = vld [vmem:[%s0 + $0x50] sm:$0xff]
        %v1251 = vld [vmem:[%s0 + $0x58] sm:$0xff]
        %v1252 = vld [vmem:[%s0 + $0x60] sm:$0xff]
        %v1253 = vld [vmem:[%s0 + $0x68] sm:$0xff]
        %v1254 = vld [vmem:[%s0 + $0x70] sm:$0xff]
        %v1255 = vld [vmem:[%s0 + $0x78] sm:$0xff]
        %v1256 = vld [vmem:[%s0 + $0x80] sm:$0x77]
        %v1257 = vld [vmem:[%s0 + $0x88] sm:$0x77]
        %v1258 = vld [vmem:[%s0 + $0x90] sm:$0x77]
        %v1259 = vld [vmem:[%s0 + $0x98] sm:$0x77]
        %v1260 = vld [vmem:[%s0 + $0xa0] sm:$0x77]
        %v1261 = vld [vmem:[%s0 + $0xa8] sm:$0x77]
        %v1262 = vld [vmem:[%s0 + $0xb0] sm:$0x77]
        %v1263 = vld [vmem:[%s0 + $0xb8] sm:$0x77]
        %v1264 = vld [vmem:[%s1217] sm:$0xf]
        %v1265 = vld [vmem:[%s1217 + $0x4] sm:$0xf]
        %v1266 = vld [vmem:[%s1217 + $0x8] sm:$0xf]
        %v1267 = vld [vmem:[%s1217 + $0xc] sm:$0xf]
        %v1268 = vld [vmem:[%s1217 + $0x10] sm:$0xf]
        %v1269 = vld [vmem:[%s1217 + $0x14] sm:$0xf]
        %v1270 = vld [vmem:[%s1217 + $0x18] sm:$0xf]
        %v1271 = vld [vmem:[%s1217 + $0x1c] sm:$0xf]
        %v1272 = vld [vmem:[%s1217 + $0x20] sm:$0xf]
        %v1273 = vld [vmem:[%s1217 + $0x24] sm:$0xf]
        %v1274 = vld [vmem:[%s1217 + $0x28] sm:$0xf]
        %v1275 = vld [vmem:[%s1217 + $0x2c] sm:$0xf]
        %v1276 = vld [vmem:[%s1217 + $0x30] sm:$0xf]
        %v1277 = vld [vmem:[%s1217 + $0x34] sm:$0xf]
        %v1278 = vld [vmem:[%s1217 + $0x38] sm:$0xf]
        %v1279 = vld [vmem:[%s1217 + $0x3c] sm:$0xf]
        %v1280 = vld [vmem:[%s1217 + $0x40] sm:$0xf]
        %v1281 = vld [vmem:[%s1217 + $0x44] sm:$0xf]
        %v1282 = vld [vmem:[%s1217 + $0x48] sm:$0xf]
        %v1283 = vld [vmem:[%s1217 + $0x4c] sm:$0xf]
        %v1284 = vld [vmem:[%s1217 + $0x50] sm:$0xf]
        %v1285 = vld [vmem:[%s1217 + $0x54] sm:$0xf]
        %v1286 = vld [vmem:[%s1217 + $0x58] sm:$0xf]
        %v1287 = vld [vmem:[%s1217 + $0x5c] sm:$0xf]
        %v1288 = vld [vmem:[%s1217 + $0x60] sm:$0xf]
        %v1289 = vld [vmem:[%s1217 + $0x64] sm:$0xf]
        %v1290 = vld [vmem:[%s1217 + $0x68] sm:$0xf]
        %v1291 = vld [vmem:[%s1217 + $0x6c] sm:$0xf]
        %v1292 = vld [vmem:[%s1217 + $0x70] sm:$0xf]
        %v1293 = vld [vmem:[%s1217 + $0x74] sm:$0xf]
        %v1294 = vld [vmem:[%s1217 + $0x78] sm:$0xf]
        %v1295 = vld [vmem:[%s1217 + $0x7c] sm:$0xf]
        %v1296 = vld [vmem:[%s1217 + $0x80] sm:$0xf]
        %v1297 = vld [vmem:[%s1217 + $0x84] sm:$0xf]
        %v1298 = vld [vmem:[%s1217 + $0x88] sm:$0xf]
        %v1299 = vld [vmem:[%s1217 + $0x8c] sm:$0xf]
        %v1300 = vld [vmem:[%s1217 + $0x90] sm:$0xf]
        %v1301 = vld [vmem:[%s1217 + $0x94] sm:$0xf]
        %v1302 = vld [vmem:[%s1217 + $0x98] sm:$0xf]
        %v1303 = vld [vmem:[%s1217 + $0x9c] sm:$0xf]
        %v1304 = vld [vmem:[%s1217 + $0xa0] sm:$0xf]
        %v1305 = vld [vmem:[%s1217 + $0xa4] sm:$0xf]
        %v1306 = vld [vmem:[%s1217 + $0xa8] sm:$0xf]
        %v1307 = vld [vmem:[%s1217 + $0xac] sm:$0xf]
        %v1308 = vld [vmem:[%s1217 + $0xb0] sm:$0xf]
        %v1309 = vld [vmem:[%s1217 + $0xb4] sm:$0xf]
        %v1310 = vld [vmem:[%s1217 + $0xb8] sm:$0xf]
        %v1311 = vld [vmem:[%s1217 + $0xbc] sm:$0xf]
        %v1312 = vld [vmem:[%s1217 + $0xc0] sm:$0xf]
        %v1313 = vld [vmem:[%s1217 + $0xc4] sm:$0xf]
        %v1314 = vld [vmem:[%s1217 + $0xc8] sm:$0xf]
        %v1315 = vld [vmem:[%s1217 + $0xcc] sm:$0xf]
        %v1316 = vld [vmem:[%s1217 + $0xd0] sm:$0xf]
        %v1317 = vld [vmem:[%s1217 + $0xd4] sm:$0xf]
        %v1318 = vld [vmem:[%s1217 + $0xd8] sm:$0xf]
        %v1319 = vld [vmem:[%s1217 + $0xdc] sm:$0xf]
        %v1320 = vld [vmem:[%s1217 + $0xe0] sm:$0xf]
        %v1321 = vld [vmem:[%s1217 + $0xe4] sm:$0xf]
        %v1322 = vld [vmem:[%s1217 + $0xe8] sm:$0xf]
        %v1323 = vld [vmem:[%s1217 + $0xec] sm:$0xf]
        %v1324 = vld [vmem:[%s1217 + $0xf0] sm:$0xf]
        %v1325 = vld [vmem:[%s1217 + $0xf4] sm:$0xf]
        %v1326 = vld [vmem:[%s1217 + $0xf8] sm:$0xf]
        %v1327 = vld [vmem:[%s1217 + $0xfc] sm:$0xf]
        %v1328 = vld [vmem:[%s1217 + $0x100] sm:$0xf]
        %v1329 = vld [vmem:[%s1217 + $0x104] sm:$0xf]
        %v1330 = vld [vmem:[%s1217 + $0x108] sm:$0xf]
        %v1331 = vld [vmem:[%s1217 + $0x10c] sm:$0xf]
        %v1332 = vld [vmem:[%s1217 + $0x110] sm:$0xf]
        %v1333 = vld [vmem:[%s1217 + $0x114] sm:$0xf]
        %v1334 = vld [vmem:[%s1217 + $0x118] sm:$0xf]
        %v1335 = vld [vmem:[%s1217 + $0x11c] sm:$0xf]
        %v1336 = vld [vmem:[%s1217 + $0x120] sm:$0xf]
        %v1337 = vld [vmem:[%s1217 + $0x124] sm:$0xf]
        %v1338 = vld [vmem:[%s1217 + $0x128] sm:$0xf]
        %v1339 = vld [vmem:[%s1217 + $0x12c] sm:$0xf]
        %v1340 = vld [vmem:[%s1217 + $0x130] sm:$0xf]
        %v1341 = vld [vmem:[%s1217 + $0x134] sm:$0xf]
        %v1342 = vld [vmem:[%s1217 + $0x138] sm:$0xf]
        %v1343 = vld [vmem:[%s1217 + $0x13c] sm:$0xf]
        %v1344 = vld [vmem:[%s1217 + $0x140] sm:$0xf]
        %v1345 = vld [vmem:[%s1217 + $0x144] sm:$0xf]
        %v1346 = vld [vmem:[%s1217 + $0x148] sm:$0xf]
        %v1347 = vld [vmem:[%s1217 + $0x14c] sm:$0xf]
        %v1348 = vld [vmem:[%s1217 + $0x150] sm:$0xf]
        %v1349 = vld [vmem:[%s1217 + $0x154] sm:$0xf]
        %v1350 = vld [vmem:[%s1217 + $0x158] sm:$0xf]
        %v1351 = vld [vmem:[%s1217 + $0x15c] sm:$0xf]
        %v1352 = vld [vmem:[%s1217 + $0x160] sm:$0xf]
        %v1353 = vld [vmem:[%s1217 + $0x164] sm:$0xf]
        %v1354 = vld [vmem:[%s1217 + $0x168] sm:$0xf]
        %v1355 = vld [vmem:[%s1217 + $0x16c] sm:$0xf]
        %v1356 = vld [vmem:[%s1217 + $0x170] sm:$0xf]
        %v1357 = vld [vmem:[%s1217 + $0x174] sm:$0xf]
        %v1358 = vld [vmem:[%s1217 + $0x178] sm:$0xf]
        %v1359 = vld [vmem:[%s1217 + $0x17c] sm:$0xf]
        %v1360 = vld [vmem:[%s1217 + $0x180] sm:$0xf]
        %v1361 = vld [vmem:[%s1217 + $0x184] sm:$0xf]
        %v1362 = vld [vmem:[%s1217 + $0x188] sm:$0xf]
        %v1363 = vld [vmem:[%s1217 + $0x18c] sm:$0xf]
        %v1364 = vld [vmem:[%s1217 + $0x190] sm:$0xf]
        %v1365 = vld [vmem:[%s1217 + $0x194] sm:$0xf]
        %v1366 = vld [vmem:[%s1217 + $0x198] sm:$0xf]
        %v1367 = vld [vmem:[%s1217 + $0x19c] sm:$0xf]
        %v1368 = vld [vmem:[%s1217 + $0x1a0] sm:$0xf]
        %v1369 = vld [vmem:[%s1217 + $0x1a4] sm:$0xf]
        %v1370 = vld [vmem:[%s1217 + $0x1a8] sm:$0xf]
        %v1371 = vld [vmem:[%s1217 + $0x1ac] sm:$0xf]
        %v1372 = vld [vmem:[%s1217 + $0x1b0] sm:$0xf]
        %v1373 = vld [vmem:[%s1217 + $0x1b4] sm:$0xf]
        %v1374 = vld [vmem:[%s1217 + $0x1b8] sm:$0xf]
        %v1375 = vld [vmem:[%s1217 + $0x1bc] sm:$0xf]
        %v1376 = vld [vmem:[%s1217 + $0x1c0] sm:$0xf]
        %v1377 = vld [vmem:[%s1217 + $0x1c4] sm:$0xf]
        %v1378 = vld [vmem:[%s1217 + $0x1c8] sm:$0xf]
        %v1379 = vld [vmem:[%s1217 + $0x1cc] sm:$0xf]
        %v1380 = vld [vmem:[%s1217 + $0x1d0] sm:$0xf]
        %v1381 = vld [vmem:[%s1217 + $0x1d4] sm:$0xf]
        %v1382 = vld [vmem:[%s1217 + $0x1d8] sm:$0xf]
        %v1383 = vld [vmem:[%s1217 + $0x1dc] sm:$0xf]
        %v1384 = vld [vmem:[%s1217 + $0x1e0] sm:$0xf]
        %v1385 = vld [vmem:[%s1217 + $0x1e4] sm:$0xf]
        %v1386 = vld [vmem:[%s1217 + $0x1e8] sm:$0xf]
        %v1387 = vld [vmem:[%s1217 + $0x1ec] sm:$0xf]
        %v1388 = vld [vmem:[%s1217 + $0x1f0] sm:$0xf]
        %v1389 = vld [vmem:[%s1217 + $0x1f4] sm:$0xf]
        %v1390 = vld [vmem:[%s1217 + $0x1f8] sm:$0xf]
        %v1391 = vld [vmem:[%s1217 + $0x1fc] sm:$0xf]
        %v1392 = vld [vmem:[%s1217 + $0x200] sm:$0xf]
        %v1393 = vld [vmem:[%s1217 + $0x204] sm:$0xf]
        %v1394 = vld [vmem:[%s1217 + $0x208] sm:$0xf]
        %v1395 = vld [vmem:[%s1217 + $0x20c] sm:$0xf]
        %v1396 = vld [vmem:[%s1217 + $0x210] sm:$0xf]
        %v1397 = vld [vmem:[%s1217 + $0x214] sm:$0xf]
        %v1398 = vld [vmem:[%s1217 + $0x218] sm:$0xf]
        %v1399 = vld [vmem:[%s1217 + $0x21c] sm:$0xf]
        %v1400 = vld [vmem:[%s1217 + $0x220] sm:$0xf]
        %v1401 = vld [vmem:[%s1217 + $0x224] sm:$0xf]
        %v1402 = vld [vmem:[%s1217 + $0x228] sm:$0xf]
        %v1403 = vld [vmem:[%s1217 + $0x22c] sm:$0xf]
        %v1404 = vld [vmem:[%s1217 + $0x230] sm:$0xf]
        %v1405 = vld [vmem:[%s1217 + $0x234] sm:$0xf]
        %v1406 = vld [vmem:[%s1217 + $0x238] sm:$0xf]
        %v1407 = vld [vmem:[%s1217 + $0x23c] sm:$0xf]
        %v1408 = vld [vmem:[%s1217 + $0x240] sm:$0xf]
        %v1409 = vld [vmem:[%s1217 + $0x244] sm:$0xf]
        %v1410 = vld [vmem:[%s1217 + $0x248] sm:$0xf]
        %v1411 = vld [vmem:[%s1217 + $0x24c] sm:$0xf]
        %v1412 = vld [vmem:[%s1217 + $0x250] sm:$0xf]
        %v1413 = vld [vmem:[%s1217 + $0x254] sm:$0xf]
        %v1414 = vld [vmem:[%s1217 + $0x258] sm:$0xf]
        %v1415 = vld [vmem:[%s1217 + $0x25c] sm:$0xf]
        %v1416 = vld [vmem:[%s1217 + $0x260] sm:$0xf]
        %v1417 = vld [vmem:[%s1217 + $0x264] sm:$0xf]
        %v1418 = vld [vmem:[%s1217 + $0x268] sm:$0xf]
        %v1419 = vld [vmem:[%s1217 + $0x26c] sm:$0xf]
        %v1420 = vld [vmem:[%s1217 + $0x270] sm:$0xf]
        %v1421 = vld [vmem:[%s1217 + $0x274] sm:$0xf]
        %v1422 = vld [vmem:[%s1217 + $0x278] sm:$0xf]
        %v1423 = vld [vmem:[%s1217 + $0x27c] sm:$0xf]
        %v1424 = vld [vmem:[%s1217 + $0x280] sm:$0xf]
        %v1425 = vld [vmem:[%s1217 + $0x284] sm:$0xf]
        %v1426 = vld [vmem:[%s1217 + $0x288] sm:$0xf]
        %v1427 = vld [vmem:[%s1217 + $0x28c] sm:$0xf]
        %v1428 = vld [vmem:[%s1217 + $0x290] sm:$0xf]
        %v1429 = vld [vmem:[%s1217 + $0x294] sm:$0xf]
        %v1430 = vld [vmem:[%s1217 + $0x298] sm:$0xf]
        %v1431 = vld [vmem:[%s1217 + $0x29c] sm:$0xf]
        %v1432 = vld [vmem:[%s1217 + $0x2a0] sm:$0xf]
        %v1433 = vld [vmem:[%s1217 + $0x2a4] sm:$0xf]
        %v1434 = vld [vmem:[%s1217 + $0x2a8] sm:$0xf]
        %v1435 = vld [vmem:[%s1217 + $0x2ac] sm:$0xf]
        %v1436 = vld [vmem:[%s1217 + $0x2b0] sm:$0xf]
        %v1437 = vld [vmem:[%s1217 + $0x2b4] sm:$0xf]
        %v1438 = vld [vmem:[%s1217 + $0x2b8] sm:$0xf]
        %v1439 = vld [vmem:[%s1217 + $0x2bc] sm:$0xf]
        %v1440 = vld [vmem:[%s1217 + $0x2c0] sm:$0xf]
        %v1441 = vld [vmem:[%s1217 + $0x2c4] sm:$0xf]
        %v1442 = vld [vmem:[%s1217 + $0x2c8] sm:$0xf]
        %v1443 = vld [vmem:[%s1217 + $0x2cc] sm:$0xf]
        %v1444 = vld [vmem:[%s1217 + $0x2d0] sm:$0xf]
        %v1445 = vld [vmem:[%s1217 + $0x2d4] sm:$0xf]
        %v1446 = vld [vmem:[%s1217 + $0x2d8] sm:$0xf]
        %v1447 = vld [vmem:[%s1217 + $0x2dc] sm:$0xf]
        %v1448 = vld [vmem:[%s1217 + $0x2e0] sm:$0xf]
        %v1449 = vld [vmem:[%s1217 + $0x2e4] sm:$0xf]
        %v1450 = vld [vmem:[%s1217 + $0x2e8] sm:$0xf]
        %v1451 = vld [vmem:[%s1217 + $0x2ec] sm:$0xf]
        %v1452 = vld [vmem:[%s1217 + $0x2f0] sm:$0xf]
        %v1453 = vld [vmem:[%s1217 + $0x2f4] sm:$0xf]
        %v1454 = vld [vmem:[%s1217 + $0x2f8] sm:$0xf]
        %v1455 = vld [vmem:[%s1217 + $0x2fc] sm:$0xf]
        %v1456 = vld [vmem:[%s1217 + $0x300] sm:$0xf]
        %v1457 = vld [vmem:[%s1217 + $0x304] sm:$0xf]
        %v1458 = vld [vmem:[%s1217 + $0x308] sm:$0xf]
        %v1459 = vld [vmem:[%s1217 + $0x30c] sm:$0xf]
        %v1460 = vld [vmem:[%s1217 + $0x310] sm:$0xf]
        %v1461 = vld [vmem:[%s1217 + $0x314] sm:$0xf]
        %v1462 = vld [vmem:[%s1217 + $0x318] sm:$0xf]
        %v1463 = vld [vmem:[%s1217 + $0x31c] sm:$0xf]
        %v1464 = vld [vmem:[%s1217 + $0x320] sm:$0xf]
        %v1465 = vld [vmem:[%s1217 + $0x324] sm:$0xf]
        %v1466 = vld [vmem:[%s1217 + $0x328] sm:$0xf]
        %v1467 = vld [vmem:[%s1217 + $0x32c] sm:$0xf]
        %v1468 = vld [vmem:[%s1217 + $0x330] sm:$0xf]
        %v1469 = vld [vmem:[%s1217 + $0x334] sm:$0xf]
        %v1470 = vld [vmem:[%s1217 + $0x338] sm:$0xf]
        %v1471 = vld [vmem:[%s1217 + $0x33c] sm:$0xf]
        %v1472 = vld [vmem:[%s1217 + $0x340] sm:$0xf]
        %v1473 = vld [vmem:[%s1217 + $0x344] sm:$0xf]
        %v1474 = vld [vmem:[%s1217 + $0x348] sm:$0xf]
        %v1475 = vld [vmem:[%s1217 + $0x34c] sm:$0xf]
        %v1476 = vld [vmem:[%s1217 + $0x350] sm:$0xf]
        %v1477 = vld [vmem:[%s1217 + $0x354] sm:$0xf]
        %v1478 = vld [vmem:[%s1217 + $0x358] sm:$0xf]
        %v1479 = vld [vmem:[%s1217 + $0x35c] sm:$0xf]
        %v1480 = vld [vmem:[%s1217 + $0x360] sm:$0xf]
        %v1481 = vld [vmem:[%s1217 + $0x364] sm:$0xf]
        %v1482 = vld [vmem:[%s1217 + $0x368] sm:$0xf]
        %v1483 = vld [vmem:[%s1217 + $0x36c] sm:$0xf]
        %v1484 = vld [vmem:[%s1217 + $0x370] sm:$0xf]
        %v1485 = vld [vmem:[%s1217 + $0x374] sm:$0xf]
        %v1486 = vld [vmem:[%s1217 + $0x378] sm:$0xf]
        %v1487 = vld [vmem:[%s1217 + $0x37c] sm:$0xf]
        %v1488 = vld [vmem:[%s1217 + $0x380] sm:$0xf]
        %v1489 = vld [vmem:[%s1217 + $0x384] sm:$0xf]
        %v1490 = vld [vmem:[%s1217 + $0x388] sm:$0xf]
        %v1491 = vld [vmem:[%s1217 + $0x38c] sm:$0xf]
        %v1492 = vld [vmem:[%s1217 + $0x390] sm:$0xf]
        %v1493 = vld [vmem:[%s1217 + $0x394] sm:$0xf]
        %v1494 = vld [vmem:[%s1217 + $0x398] sm:$0xf]
        %v1495 = vld [vmem:[%s1217 + $0x39c] sm:$0xf]
        %v1496 = vld [vmem:[%s1217 + $0x3a0] sm:$0xf]
        %v1497 = vld [vmem:[%s1217 + $0x3a4] sm:$0xf]
        %v1498 = vld [vmem:[%s1217 + $0x3a8] sm:$0xf]
        %v1499 = vld [vmem:[%s1217 + $0x3ac] sm:$0xf]
        %v1500 = vld [vmem:[%s1217 + $0x3b0] sm:$0xf]
        %v1501 = vld [vmem:[%s1217 + $0x3b4] sm:$0xf]
        %v1502 = vld [vmem:[%s1217 + $0x3b8] sm:$0xf]
        %v1503 = vld [vmem:[%s1217 + $0x3bc] sm:$0xf]
        %v1504 = vld [vmem:[%s1217 + $0x3c0] sm:$0xf]
        %v1505 = vld [vmem:[%s1217 + $0x3c4] sm:$0xf]
        %v1506 = vld [vmem:[%s1217 + $0x3c8] sm:$0xf]
        %v1507 = vld [vmem:[%s1217 + $0x3cc] sm:$0xf]
        %v1508 = vld [vmem:[%s1217 + $0x3d0] sm:$0xf]
        %v1509 = vld [vmem:[%s1217 + $0x3d4] sm:$0xf]
        %v1510 = vld [vmem:[%s1217 + $0x3d8] sm:$0xf]
        %v1511 = vld [vmem:[%s1217 + $0x3dc] sm:$0xf]
        %v1512 = vld [vmem:[%s1217 + $0x3e0] sm:$0xf]
        %v1513 = vld [vmem:[%s1217 + $0x3e4] sm:$0xf]
        %v1514 = vld [vmem:[%s1217 + $0x3e8] sm:$0xf]
        %v1515 = vld [vmem:[%s1217 + $0x3ec] sm:$0xf]
        %v1540 = vunpack.c.l.b16 %v1240
        %v1541 = vunpack.c.h.b16 %v1240
        %v1542 = vunpack.c.l.b16 %v1241
        %v1543 = vunpack.c.h.b16 %v1241
        %v1544 = vunpack.c.l.b16 %v1242
        %v1545 = vunpack.c.h.b16 %v1242
        %v1546 = vunpack.c.l.b16 %v1243
        %v1547 = vunpack.c.h.b16 %v1243
        %v1548 = vunpack.c.l.b16 %v1244
        %v1549 = vunpack.c.h.b16 %v1244
        %v1550 = vunpack.c.l.b16 %v1245
        %v1551 = vunpack.c.h.b16 %v1245
        %v1552 = vunpack.c.l.b16 %v1246
        %v1553 = vunpack.c.h.b16 %v1246
        %v1554 = vunpack.c.l.b16 %v1247
        %v1555 = vunpack.c.h.b16 %v1247
        %v1556 = vunpack.c.l.b16 %v1248
        %v1557 = vunpack.c.h.b16 %v1248
        %v1558 = vunpack.c.l.b16 %v1249
        %v1559 = vunpack.c.h.b16 %v1249
        %v1560 = vunpack.c.l.b16 %v1250
        %v1561 = vunpack.c.h.b16 %v1250
        %v1562 = vunpack.c.l.b16 %v1251
        %v1563 = vunpack.c.h.b16 %v1251
        %v1564 = vunpack.c.l.b16 %v1252
        %v1565 = vunpack.c.h.b16 %v1252
        %v1566 = vunpack.c.l.b16 %v1253
        %v1567 = vunpack.c.h.b16 %v1253
        %v1568 = vunpack.c.l.b16 %v1254
        %v1569 = vunpack.c.h.b16 %v1254
        %v1570 = vunpack.c.l.b16 %v1255
        %v1571 = vunpack.c.h.b16 %v1255
        %v1572 = vunpack.c.l.b16 %v1256
        %v1573 = vunpack.c.h.b16 %v1256
        %v1574 = vunpack.c.l.b16 %v1257
        %v1575 = vunpack.c.h.b16 %v1257
        %v1576 = vunpack.c.l.b16 %v1258
        %v1577 = vunpack.c.h.b16 %v1258
        %v1578 = vunpack.c.l.b16 %v1259
        %v1579 = vunpack.c.h.b16 %v1259
        %v1580 = vunpack.c.l.b16 %v1260
        %v1581 = vunpack.c.h.b16 %v1260
        %v1582 = vunpack.c.l.b16 %v1261
        %v1583 = vunpack.c.h.b16 %v1261
        %v1584 = vunpack.c.l.b16 %v1262
        %v1585 = vunpack.c.h.b16 %v1262
        %v1586 = vunpack.c.l.b16 %v1263
        %v1587 = vunpack.c.h.b16 %v1263
        %v1588 = vpack.c.b16 %v1556, %v1540
        %v1589 = vpack.c.b16 %v1557, %v1541
        %v1590 = vpack.c.b16 %v1558, %v1542
        %v1591 = vpack.c.b16 %v1559, %v1543
        %v1592 = vpack.c.b16 %v1560, %v1544
        %v1593 = vpack.c.b16 %v1561, %v1545
        %v1594 = vpack.c.b16 %v1562, %v1546
        %v1595 = vpack.c.b16 %v1563, %v1547
        %v1596 = vpack.c.b16 %v1564, %v1548
        %v1597 = vpack.c.b16 %v1565, %v1549
        %v1598 = vpack.c.b16 %v1566, %v1550
        %v1599 = vpack.c.b16 %v1567, %v1551
        %v1600 = vpack.c.b16 %v1568, %v1552
        %v1601 = vpack.c.b16 %v1569, %v1553
        %v1602 = vpack.c.b16 %v1570, %v1554
        %v1603 = vpack.c.b16 %v1571, %v1555
        %v1604 = vpack.c.b16 %v1572, %v1572
        %v1605 = vpack.c.b16 %v1573, %v1573
        %v1606 = vpack.c.b16 %v1574, %v1574
        %v1607 = vpack.c.b16 %v1575, %v1575
        %v1608 = vpack.c.b16 %v1576, %v1576
        %v1609 = vpack.c.b16 %v1577, %v1577
        %v1610 = vpack.c.b16 %v1578, %v1578
        %v1611 = vpack.c.b16 %v1579, %v1579
        %v1612 = vpack.c.b16 %v1580, %v1580
        %v1613 = vpack.c.b16 %v1581, %v1581
        %v1614 = vpack.c.b16 %v1582, %v1582
        %v1615 = vpack.c.b16 %v1583, %v1583
        %v1616 = vpack.c.b16 %v1584, %v1584
        %v1617 = vpack.c.b16 %v1585, %v1585
        %v1618 = vpack.c.b16 %v1586, %v1586
        %v1619 = vpack.c.b16 %v1587, %v1587
        %v1902 = vunpack.c.l.b16 %v1264
        %v1903 = vunpack.c.l.b16 %v1265
        %v1904 = vunpack.c.l.b16 %v1266
        %v1905 = vunpack.c.l.b16 %v1267
        %v1906 = vunpack.c.l.b16 %v1268
        %v1907 = vunpack.c.l.b16 %v1269
        %v1908 = vunpack.c.l.b16 %v1270
        %v1909 = vunpack.c.l.b16 %v1271
        %v1910 = vunpack.c.l.b16 %v1272
        %v1911 = vunpack.c.l.b16 %v1273
        %v1912 = vunpack.c.l.b16 %v1274
        %v1913 = vunpack.c.l.b16 %v1275
        %v1914 = vunpack.c.l.b16 %v1276
        %v1915 = vunpack.c.l.b16 %v1277
        %v1916 = vunpack.c.l.b16 %v1278
        %v1917 = vunpack.c.l.b16 %v1279
        %v1918 = vunpack.c.l.b16 %v1280
        %v1919 = vunpack.c.l.b16 %v1281
        %v1920 = vunpack.c.l.b16 %v1282
        %v1921 = vunpack.c.l.b16 %v1283
        %v1922 = vunpack.c.l.b16 %v1284
        %v1923 = vunpack.c.l.b16 %v1285
        %v1924 = vunpack.c.l.b16 %v1286
        %v1925 = vunpack.c.l.b16 %v1287
        %v1926 = vunpack.c.l.b16 %v1288
        %v1927 = vunpack.c.l.b16 %v1289
        %v1928 = vunpack.c.l.b16 %v1290
        %v1929 = vunpack.c.l.b16 %v1291
        %v1930 = vunpack.c.l.b16 %v1292
        %v1931 = vunpack.c.l.b16 %v1293
        %v1932 = vunpack.c.l.b16 %v1294
        %v1933 = vunpack.c.l.b16 %v1295
        %v1934 = vunpack.c.l.b16 %v1296
        %v1935 = vunpack.c.l.b16 %v1297
        %v1936 = vunpack.c.l.b16 %v1298
        %v1937 = vunpack.c.l.b16 %v1299
        %v1938 = vunpack.c.l.b16 %v1300
        %v1939 = vunpack.c.l.b16 %v1301
        %v1940 = vunpack.c.l.b16 %v1302
        %v1941 = vunpack.c.l.b16 %v1303
        %v1942 = vunpack.c.l.b16 %v1304
        %v1943 = vunpack.c.l.b16 %v1305
        %v1944 = vunpack.c.l.b16 %v1306
        %v1945 = vunpack.c.l.b16 %v1307
        %v1946 = vunpack.c.l.b16 %v1308
        %v1947 = vunpack.c.l.b16 %v1309
        %v1948 = vunpack.c.l.b16 %v1310
        %v1949 = vunpack.c.l.b16 %v1311
        %v1950 = vunpack.c.l.b16 %v1312
        %v1951 = vunpack.c.l.b16 %v1313
        %v1952 = vunpack.c.l.b16 %v1314
        %v1953 = vunpack.c.l.b16 %v1315
        %v1954 = vunpack.c.l.b16 %v1316
        %v1955 = vunpack.c.l.b16 %v1317
        %v1956 = vunpack.c.l.b16 %v1318
        %v1957 = vunpack.c.l.b16 %v1319
        %v1958 = vunpack.c.l.b16 %v1320
        %v1959 = vunpack.c.l.b16 %v1321
        %v1960 = vunpack.c.l.b16 %v1322
        %v1961 = vunpack.c.l.b16 %v1323
        %v1962 = vunpack.c.l.b16 %v1324
        %v1963 = vunpack.c.l.b16 %v1325
        %v1964 = vunpack.c.l.b16 %v1326
        %v1965 = vunpack.c.l.b16 %v1327
        %v1966 = vunpack.c.l.b16 %v1328
        %v1967 = vunpack.c.l.b16 %v1329
        %v1968 = vunpack.c.l.b16 %v1330
        %v1969 = vunpack.c.l.b16 %v1331
        %v1970 = vunpack.c.l.b16 %v1332
        %v1971 = vunpack.c.l.b16 %v1333
        %v1972 = vunpack.c.l.b16 %v1334
        %v1973 = vunpack.c.l.b16 %v1335
        %v1974 = vunpack.c.l.b16 %v1336
        %v1975 = vunpack.c.l.b16 %v1337
        %v1976 = vunpack.c.l.b16 %v1338
        %v1977 = vunpack.c.l.b16 %v1339
        %v1978 = vunpack.c.l.b16 %v1340
        %v1979 = vunpack.c.l.b16 %v1341
        %v1980 = vunpack.c.l.b16 %v1342
        %v1981 = vunpack.c.l.b16 %v1343
        %v1982 = vunpack.c.l.b16 %v1344
        %v1983 = vunpack.c.l.b16 %v1345
        %v1984 = vunpack.c.l.b16 %v1346
        %v1985 = vunpack.c.l.b16 %v1347
        %v1986 = vunpack.c.l.b16 %v1348
        %v1987 = vunpack.c.l.b16 %v1349
        %v1988 = vunpack.c.l.b16 %v1350
        %v1989 = vunpack.c.l.b16 %v1351
        %v1990 = vunpack.c.l.b16 %v1352
        %v1991 = vunpack.c.l.b16 %v1353
        %v1992 = vunpack.c.l.b16 %v1354
        %v1993 = vunpack.c.l.b16 %v1355
        %v1994 = vunpack.c.l.b16 %v1356
        %v1995 = vunpack.c.l.b16 %v1357
        %v1996 = vunpack.c.l.b16 %v1358
        %v1997 = vunpack.c.l.b16 %v1359
        %v1998 = vunpack.c.l.b16 %v1360
        %v1999 = vunpack.c.l.b16 %v1361
        %v2000 = vunpack.c.l.b16 %v1362
        %v2001 = vunpack.c.l.b16 %v1363
        %v2002 = vunpack.c.l.b16 %v1364
        %v2003 = vunpack.c.l.b16 %v1365
        %v2004 = vunpack.c.l.b16 %v1366
        %v2005 = vunpack.c.l.b16 %v1367
        %v2006 = vunpack.c.l.b16 %v1368
        %v2007 = vunpack.c.l.b16 %v1369
        %v2008 = vunpack.c.l.b16 %v1370
        %v2009 = vunpack.c.l.b16 %v1371
        %v2010 = vunpack.c.l.b16 %v1372
        %v2011 = vunpack.c.l.b16 %v1373
        %v2012 = vunpack.c.l.b16 %v1374
        %v2013 = vunpack.c.l.b16 %v1375
        %v2014 = vunpack.c.l.b16 %v1376
        %v2015 = vunpack.c.l.b16 %v1377
        %v2016 = vunpack.c.l.b16 %v1378
        %v2017 = vunpack.c.l.b16 %v1379
        %v2018 = vunpack.c.l.b16 %v1380
        %v2019 = vunpack.c.l.b16 %v1381
        %v2020 = vunpack.c.l.b16 %v1382
        %v2021 = vunpack.c.l.b16 %v1383
        %v2022 = vunpack.c.l.b16 %v1384
        %v2023 = vunpack.c.l.b16 %v1385
        %v2024 = vunpack.c.l.b16 %v1386
        %v2025 = vunpack.c.l.b16 %v1387
        %v2026 = vunpack.c.l.b16 %v1388
        %v2027 = vunpack.c.l.b16 %v1389
        %v2028 = vunpack.c.l.b16 %v1390
        %v2029 = vunpack.c.l.b16 %v1391
        %v2030 = vunpack.c.l.b16 %v1392
        %v2031 = vunpack.c.l.b16 %v1393
        %v2032 = vunpack.c.l.b16 %v1394
        %v2033 = vunpack.c.l.b16 %v1395
        %v2034 = vunpack.c.l.b16 %v1396
        %v2035 = vunpack.c.l.b16 %v1397
        %v2036 = vunpack.c.l.b16 %v1398
        %v2037 = vunpack.c.l.b16 %v1399
        %v2038 = vunpack.c.l.b16 %v1400
        %v2039 = vunpack.c.l.b16 %v1401
        %v2040 = vunpack.c.l.b16 %v1402
        %v2041 = vunpack.c.l.b16 %v1403
        %v2042 = vunpack.c.l.b16 %v1404
        %v2043 = vunpack.c.l.b16 %v1405
        %v2044 = vunpack.c.l.b16 %v1406
        %v2045 = vunpack.c.l.b16 %v1407
        %v2046 = vunpack.c.l.b16 %v1408
        %v2047 = vunpack.c.l.b16 %v1409
        %v2048 = vunpack.c.l.b16 %v1410
        %v2049 = vunpack.c.l.b16 %v1411
        %v2050 = vunpack.c.l.b16 %v1412
        %v2051 = vunpack.c.l.b16 %v1413
        %v2052 = vunpack.c.l.b16 %v1414
        %v2053 = vunpack.c.l.b16 %v1415
        %v2054 = vunpack.c.l.b16 %v1416
        %v2055 = vunpack.c.l.b16 %v1417
        %v2056 = vunpack.c.l.b16 %v1418
        %v2057 = vunpack.c.l.b16 %v1419
        %v2058 = vunpack.c.l.b16 %v1420
        %v2059 = vunpack.c.l.b16 %v1421
        %v2060 = vunpack.c.l.b16 %v1422
        %v2061 = vunpack.c.l.b16 %v1423
        %v2062 = vunpack.c.l.b16 %v1424
        %v2063 = vunpack.c.l.b16 %v1425
        %v2064 = vunpack.c.l.b16 %v1426
        %v2065 = vunpack.c.l.b16 %v1427
        %v2066 = vunpack.c.l.b16 %v1428
        %v2067 = vunpack.c.l.b16 %v1429
        %v2068 = vunpack.c.l.b16 %v1430
        %v2069 = vunpack.c.l.b16 %v1431
        %v2070 = vunpack.c.l.b16 %v1432
        %v2071 = vunpack.c.l.b16 %v1433
        %v2072 = vunpack.c.l.b16 %v1434
        %v2073 = vunpack.c.l.b16 %v1435
        %v2074 = vunpack.c.l.b16 %v1436
        %v2075 = vunpack.c.l.b16 %v1437
        %v2076 = vunpack.c.l.b16 %v1438
        %v2077 = vunpack.c.l.b16 %v1439
        %v2078 = vunpack.c.l.b16 %v1440
        %v2079 = vunpack.c.l.b16 %v1441
        %v2080 = vunpack.c.l.b16 %v1442
        %v2081 = vunpack.c.l.b16 %v1443
        %v2082 = vunpack.c.l.b16 %v1444
        %v2083 = vunpack.c.l.b16 %v1445
        %v2084 = vunpack.c.l.b16 %v1446
        %v2085 = vunpack.c.l.b16 %v1447
        %v2086 = vunpack.c.l.b16 %v1448
        %v2087 = vunpack.c.l.b16 %v1449
        %v2088 = vunpack.c.l.b16 %v1450
        %v2089 = vunpack.c.l.b16 %v1451
        %v2090 = vunpack.c.l.b16 %v1452
        %v2091 = vunpack.c.l.b16 %v1453
        %v2092 = vunpack.c.l.b16 %v1454
        %v2093 = vunpack.c.l.b16 %v1455
        %v2094 = vunpack.c.l.b16 %v1456
        %v2095 = vunpack.c.l.b16 %v1457
        %v2096 = vunpack.c.l.b16 %v1458
        %v2097 = vunpack.c.l.b16 %v1459
        %v2098 = vunpack.c.l.b16 %v1460
        %v2099 = vunpack.c.l.b16 %v1461
        %v2100 = vunpack.c.l.b16 %v1462
        %v2101 = vunpack.c.l.b16 %v1463
        %v2102 = vunpack.c.l.b16 %v1464
        %v2103 = vunpack.c.l.b16 %v1465
        %v2104 = vunpack.c.l.b16 %v1466
        %v2105 = vunpack.c.l.b16 %v1467
        %v2106 = vunpack.c.l.b16 %v1468
        %v2107 = vunpack.c.l.b16 %v1469
        %v2108 = vunpack.c.l.b16 %v1470
        %v2109 = vunpack.c.l.b16 %v1471
        %v2110 = vunpack.c.l.b16 %v1472
        %v2111 = vunpack.c.l.b16 %v1473
        %v2112 = vunpack.c.l.b16 %v1474
        %v2113 = vunpack.c.l.b16 %v1475
        %v2114 = vunpack.c.l.b16 %v1476
        %v2115 = vunpack.c.l.b16 %v1477
        %v2116 = vunpack.c.l.b16 %v1478
        %v2117 = vunpack.c.l.b16 %v1479
        %v2118 = vunpack.c.l.b16 %v1480
        %v2119 = vunpack.c.l.b16 %v1481
        %v2120 = vunpack.c.l.b16 %v1482
        %v2121 = vunpack.c.l.b16 %v1483
        %v2122 = vunpack.c.l.b16 %v1484
        %v2123 = vunpack.c.l.b16 %v1485
        %v2124 = vunpack.c.l.b16 %v1486
        %v2125 = vunpack.c.l.b16 %v1487
        %v2126 = vunpack.c.l.b16 %v1488
        %v2127 = vunpack.c.l.b16 %v1489
        %v2128 = vunpack.c.l.b16 %v1490
        %v2129 = vunpack.c.l.b16 %v1491
        %v2130 = vunpack.c.l.b16 %v1492
        %v2131 = vunpack.c.l.b16 %v1493
        %v2132 = vunpack.c.l.b16 %v1494
        %v2133 = vunpack.c.l.b16 %v1495
        %v2134 = vunpack.c.l.b16 %v1496
        %v2135 = vunpack.c.l.b16 %v1497
        %v2136 = vunpack.c.l.b16 %v1498
        %v2137 = vunpack.c.l.b16 %v1499
        %v2138 = vunpack.c.l.b16 %v1500
        %v2139 = vunpack.c.l.b16 %v1501
        %v2140 = vunpack.c.l.b16 %v1502
        %v2141 = vunpack.c.l.b16 %v1503
        %v2142 = vunpack.c.l.b16 %v1504
        %v2143 = vunpack.c.l.b16 %v1505
        %v2144 = vunpack.c.l.b16 %v1506
        %v2145 = vunpack.c.l.b16 %v1507
        %v2146 = vunpack.c.l.b16 %v1508
        %v2147 = vunpack.c.l.b16 %v1509
        %v2148 = vunpack.c.l.b16 %v1510
        %v2149 = vunpack.c.l.b16 %v1511
        %v2150 = vunpack.c.l.b16 %v1512
        %v2151 = vunpack.c.l.b16 %v1513
        %v2152 = vunpack.c.l.b16 %v1514
        %v2153 = vunpack.c.l.b16 %v1515
        %v2154 = vpack.c.b16 %v1903, %v1902
        %v2155 = vpack.c.b16 %v1905, %v1904
        %v2156 = vpack.c.b16 %v1907, %v1906
        %v2157 = vpack.c.b16 %v1909, %v1908
        %v2158 = vpack.c.b16 %v1911, %v1910
        %v2159 = vpack.c.b16 %v1913, %v1912
        %v2160 = vpack.c.b16 %v1915, %v1914
        %v2161 = vpack.c.b16 %v1917, %v1916
        %v2162 = vpack.c.b16 %v1919, %v1918
        %v2163 = vpack.c.b16 %v1921, %v1920
        %v2164 = vpack.c.b16 %v1923, %v1922
        %v2165 = vpack.c.b16 %v1925, %v1924
        %v2166 = vpack.c.b16 %v1927, %v1926
        %v2167 = vpack.c.b16 %v1929, %v1928
        %v2168 = vpack.c.b16 %v1931, %v1930
        %v2169 = vpack.c.b16 %v1933, %v1932
        %v2170 = vpack.c.b16 %v1935, %v1934
        %v2171 = vpack.c.b16 %v1937, %v1936
        %v2172 = vpack.c.b16 %v1939, %v1938
        %v2173 = vpack.c.b16 %v1941, %v1940
        %v2174 = vpack.c.b16 %v1943, %v1942
        %v2175 = vpack.c.b16 %v1945, %v1944
        %v2176 = vpack.c.b16 %v1947, %v1946
        %v2177 = vpack.c.b16 %v1949, %v1948
        %v2178 = vpack.c.b16 %v1951, %v1950
        %v2179 = vpack.c.b16 %v1953, %v1952
        %v2180 = vpack.c.b16 %v1955, %v1954
        %v2181 = vpack.c.b16 %v1957, %v1956
        %v2182 = vpack.c.b16 %v1959, %v1958
        %v2183 = vpack.c.b16 %v1961, %v1960
        %v2184 = vpack.c.b16 %v1963, %v1962
        %v2185 = vpack.c.b16 %v1965, %v1964
        %v2186 = vpack.c.b16 %v1967, %v1966
        %v2187 = vpack.c.b16 %v1969, %v1968
        %v2188 = vpack.c.b16 %v1971, %v1970
        %v2189 = vpack.c.b16 %v1973, %v1972
        %v2190 = vpack.c.b16 %v1975, %v1974
        %v2191 = vpack.c.b16 %v1977, %v1976
        %v2192 = vpack.c.b16 %v1979, %v1978
        %v2193 = vpack.c.b16 %v1981, %v1980
        %v2194 = vpack.c.b16 %v1983, %v1982
        %v2195 = vpack.c.b16 %v1985, %v1984
        %v2196 = vpack.c.b16 %v1987, %v1986
        %v2197 = vpack.c.b16 %v1989, %v1988
        %v2198 = vpack.c.b16 %v1991, %v1990
        %v2199 = vpack.c.b16 %v1993, %v1992
        %v2200 = vpack.c.b16 %v1995, %v1994
        %v2201 = vpack.c.b16 %v1997, %v1996
        %v2202 = vpack.c.b16 %v1999, %v1998
        %v2203 = vpack.c.b16 %v2001, %v2000
        %v2204 = vpack.c.b16 %v2003, %v2002
        %v2205 = vpack.c.b16 %v2005, %v2004
        %v2206 = vpack.c.b16 %v2007, %v2006
        %v2207 = vpack.c.b16 %v2009, %v2008
        %v2208 = vpack.c.b16 %v2011, %v2010
        %v2209 = vpack.c.b16 %v2013, %v2012
        %v2210 = vpack.c.b16 %v2015, %v2014
        %v2211 = vpack.c.b16 %v2017, %v2016
        %v2212 = vpack.c.b16 %v2019, %v2018
        %v2213 = vpack.c.b16 %v2021, %v2020
        %v2214 = vpack.c.b16 %v2023, %v2022
        %v2215 = vpack.c.b16 %v2025, %v2024
        %v2216 = vpack.c.b16 %v2027, %v2026
        %v2217 = vpack.c.b16 %v2029, %v2028
        %v2218 = vpack.c.b16 %v2031, %v2030
        %v2219 = vpack.c.b16 %v2033, %v2032
        %v2220 = vpack.c.b16 %v2035, %v2034
        %v2221 = vpack.c.b16 %v2037, %v2036
        %v2222 = vpack.c.b16 %v2039, %v2038
        %v2223 = vpack.c.b16 %v2041, %v2040
        %v2224 = vpack.c.b16 %v2043, %v2042
        %v2225 = vpack.c.b16 %v2045, %v2044
        %v2226 = vpack.c.b16 %v2047, %v2046
        %v2227 = vpack.c.b16 %v2049, %v2048
        %v2228 = vpack.c.b16 %v2051, %v2050
        %v2229 = vpack.c.b16 %v2053, %v2052
        %v2230 = vpack.c.b16 %v2055, %v2054
        %v2231 = vpack.c.b16 %v2057, %v2056
        %v2232 = vpack.c.b16 %v2059, %v2058
        %v2233 = vpack.c.b16 %v2061, %v2060
        %v2234 = vpack.c.b16 %v2063, %v2062
        %v2235 = vpack.c.b16 %v2065, %v2064
        %v2236 = vpack.c.b16 %v2067, %v2066
        %v2237 = vpack.c.b16 %v2069, %v2068
        %v2238 = vpack.c.b16 %v2071, %v2070
        %v2239 = vpack.c.b16 %v2073, %v2072
        %v2240 = vpack.c.b16 %v2075, %v2074
        %v2241 = vpack.c.b16 %v2077, %v2076
        %v2242 = vpack.c.b16 %v2079, %v2078
        %v2243 = vpack.c.b16 %v2081, %v2080
        %v2244 = vpack.c.b16 %v2083, %v2082
        %v2245 = vpack.c.b16 %v2085, %v2084
        %v2246 = vpack.c.b16 %v2087, %v2086
        %v2247 = vpack.c.b16 %v2089, %v2088
        %v2248 = vpack.c.b16 %v2091, %v2090
        %v2249 = vpack.c.b16 %v2093, %v2092
        %v2250 = vpack.c.b16 %v2095, %v2094
        %v2251 = vpack.c.b16 %v2097, %v2096
        %v2252 = vpack.c.b16 %v2099, %v2098
        %v2253 = vpack.c.b16 %v2101, %v2100
        %v2254 = vpack.c.b16 %v2103, %v2102
        %v2255 = vpack.c.b16 %v2105, %v2104
        %v2256 = vpack.c.b16 %v2107, %v2106
        %v2257 = vpack.c.b16 %v2109, %v2108
        %v2258 = vpack.c.b16 %v2111, %v2110
        %v2259 = vpack.c.b16 %v2113, %v2112
        %v2260 = vpack.c.b16 %v2115, %v2114
        %v2261 = vpack.c.b16 %v2117, %v2116
        %v2262 = vpack.c.b16 %v2119, %v2118
        %v2263 = vpack.c.b16 %v2121, %v2120
        %v2264 = vpack.c.b16 %v2123, %v2122
        %v2265 = vpack.c.b16 %v2125, %v2124
        %v2266 = vpack.c.b16 %v2127, %v2126
        %v2267 = vpack.c.b16 %v2129, %v2128
        %v2268 = vpack.c.b16 %v2131, %v2130
        %v2269 = vpack.c.b16 %v2133, %v2132
        %v2270 = vpack.c.b16 %v2135, %v2134
        %v2271 = vpack.c.b16 %v2137, %v2136
        %v2272 = vpack.c.b16 %v2139, %v2138
        %v2273 = vpack.c.b16 %v2141, %v2140
        %v2274 = vpack.c.b16 %v2143, %v2142
        %v2275 = vpack.c.b16 %v2145, %v2144
        %v2276 = vpack.c.b16 %v2147, %v2146
        %v2277 = vpack.c.b16 %v2149, %v2148
        %v2278 = vpack.c.b16 %v2151, %v2150
        %v2279 = vpack.c.b16 %v2153, %v2152
        %vm2406 = vcmask 785408
        %v2408 = vsel %vm2406, %v1603, 0
        %v2411 = vsel %vm2406, %v1619, 0
        %2413 = vmatprep.subr.bf16.mxu0 0
        %2414 = vmatpush1.bf16.msra.mxu0 %v2161
        %2415 = vmatprep.subr.bf16.mxu0 0
        %2416 = vmatpush1.bf16.msra.mxu0 %v2160
        %2417 = vmatprep.subr.bf16.mxu0 0
        %2418 = vmatpush1.bf16.msra.mxu0 %v2159
        %2419 = vmatprep.subr.bf16.mxu0 0
        %2420 = vmatpush1.bf16.msra.mxu0 %v2158
        %2421 = vmatprep.subr.bf16.mxu0 0
        %2422 = vmatpush1.bf16.msra.mxu0 %v2157
        %2423 = vmatprep.subr.bf16.mxu0 0
        %2424 = vmatpush1.bf16.msra.mxu0 %v2156
        %2425 = vmatprep.subr.bf16.mxu0 0
        %2426 = vmatpush1.bf16.msra.mxu0 %v2155
        %2427 = vmatprep.subr.bf16.mxu0 0
        %2428 = vmatpush1.bf16.msra.mxu0 %v2154
        %2429 = vmatprep.subr.bf16.mxu0 0
        %2430 = vmatpush2.bf16.msra.mxu0 %v2169
        %2431 = vmatprep.subr.bf16.mxu0 0
        %2432 = vmatpush2.bf16.msra.mxu0 %v2168
        %2433 = vmatprep.subr.bf16.mxu0 0
        %2434 = vmatpush2.bf16.msra.mxu0 %v2167
        %2435 = vmatprep.subr.bf16.mxu0 0
        %2436 = vmatpush2.bf16.msra.mxu0 %v2166
        %2437 = vmatprep.subr.bf16.mxu0 0
        %2438 = vmatpush2.bf16.msra.mxu0 %v2165
        %2439 = vmatprep.subr.bf16.mxu0 0
        %2440 = vmatpush2.bf16.msra.mxu0 %v2164
        %2441 = vmatprep.subr.bf16.mxu0 0
        %2442 = vmatpush2.bf16.msra.mxu0 %v2163
        %2443 = vmatprep.subr.bf16.mxu0 0
        %2444 = vmatpush2.bf16.msra.mxu0 %v2162
        %2445 = vmatprep.mubr.bf16.mxu0 %v1589
        %2446 = vmatmul.mubr.bf16.gmra.mxu0 %v1588
        %v2447 = vpop.f32.mrf.mxu0
        %v2448 = vadd.f32 0.0, %v2447
        %v2449 = vpop.f32.mrf.mxu0
        %v2450 = vpop.f32.mrf.mxu0
        %v2451 = vadd.f32 0.0, %v2450
        %v2452 = vpop.f32.mrf.mxu0
        %2453 = vmatprep.mubr.bf16.mxu0 %v1605
        %2454 = vmatmul.mubr.bf16.gmra.mxu0 %v1604
        %v2455 = vpop.f32.mrf.mxu0
        %v2456 = vadd.f32 0.0, %v2455
        %v2457 = vpop.f32.mrf.mxu0
        %v2458 = vpop.f32.mrf.mxu0
        %v2459 = vpop.f32.mrf.mxu0
        %2460 = vdwg.mxu0
        %2461 = vmatprep.subr.bf16.mxu0 0
        %2462 = vmatpush1.bf16.msra.mxu0 %v2177
        %2463 = vmatprep.subr.bf16.mxu0 0
        %2464 = vmatpush1.bf16.msra.mxu0 %v2176
        %2465 = vmatprep.subr.bf16.mxu0 0
        %2466 = vmatpush1.bf16.msra.mxu0 %v2175
        %2467 = vmatprep.subr.bf16.mxu0 0
        %2468 = vmatpush1.bf16.msra.mxu0 %v2174
        %2469 = vmatprep.subr.bf16.mxu0 0
        %2470 = vmatpush1.bf16.msra.mxu0 %v2173
        %2471 = vmatprep.subr.bf16.mxu0 0
        %2472 = vmatpush1.bf16.msra.mxu0 %v2172
        %2473 = vmatprep.subr.bf16.mxu0 0
        %2474 = vmatpush1.bf16.msra.mxu0 %v2171
        %2475 = vmatprep.subr.bf16.mxu0 0
        %2476 = vmatpush1.bf16.msra.mxu0 %v2170
        %2477 = vmatprep.subr.bf16.mxu0 0
        %2478 = vmatpush2.bf16.msra.mxu0 %v2185
        %2479 = vmatprep.subr.bf16.mxu0 0
        %2480 = vmatpush2.bf16.msra.mxu0 %v2184
        %2481 = vmatprep.subr.bf16.mxu0 0
        %2482 = vmatpush2.bf16.msra.mxu0 %v2183
        %2483 = vmatprep.subr.bf16.mxu0 0
        %2484 = vmatpush2.bf16.msra.mxu0 %v2182
        %2485 = vmatprep.subr.bf16.mxu0 0
        %2486 = vmatpush2.bf16.msra.mxu0 %v2181
        %2487 = vmatprep.subr.bf16.mxu0 0
        %2488 = vmatpush2.bf16.msra.mxu0 %v2180
        %2489 = vmatprep.subr.bf16.mxu0 0
        %2490 = vmatpush2.bf16.msra.mxu0 %v2179
        %2491 = vmatprep.subr.bf16.mxu0 0
        %2492 = vmatpush2.bf16.msra.mxu0 %v2178
        %2493 = vmatprep.mubr.bf16.mxu0 %v1591
        %2494 = vmatmul.mubr.bf16.gmra.mxu0 %v1590
        %v2495 = vpop.f32.mrf.mxu0
        %v2496 = vadd.f32 %v2448, %v2495
        %v2497 = vpop.f32.mrf.mxu0
        %v2498 = vpop.f32.mrf.mxu0
        %v2499 = vadd.f32 %v2451, %v2498
        %v2500 = vpop.f32.mrf.mxu0
        %2501 = vmatprep.mubr.bf16.mxu0 %v1607
        %2502 = vmatmul.mubr.bf16.gmra.mxu0 %v1606
        %v2503 = vpop.f32.mrf.mxu0
        %v2504 = vadd.f32 %v2456, %v2503
        %v2505 = vpop.f32.mrf.mxu0
        %v2506 = vpop.f32.mrf.mxu0
        %v2507 = vpop.f32.mrf.mxu0
        %2508 = vdwg.mxu0
        %2509 = vmatprep.subr.bf16.mxu0 0
        %2510 = vmatpush1.bf16.msra.mxu0 %v2193
        %2511 = vmatprep.subr.bf16.mxu0 0
        %2512 = vmatpush1.bf16.msra.mxu0 %v2192
        %2513 = vmatprep.subr.bf16.mxu0 0
        %2514 = vmatpush1.bf16.msra.mxu0 %v2191
        %2515 = vmatprep.subr.bf16.mxu0 0
        %2516 = vmatpush1.bf16.msra.mxu0 %v2190
        %2517 = vmatprep.subr.bf16.mxu0 0
        %2518 = vmatpush1.bf16.msra.mxu0 %v2189
        %2519 = vmatprep.subr.bf16.mxu0 0
        %2520 = vmatpush1.bf16.msra.mxu0 %v2188
        %2521 = vmatprep.subr.bf16.mxu0 0
        %2522 = vmatpush1.bf16.msra.mxu0 %v2187
        %2523 = vmatprep.subr.bf16.mxu0 0
        %2524 = vmatpush1.bf16.msra.mxu0 %v2186
        %2525 = vmatprep.subr.bf16.mxu0 0
        %2526 = vmatpush2.bf16.msra.mxu0 %v2201
        %2527 = vmatprep.subr.bf16.mxu0 0
        %2528 = vmatpush2.bf16.msra.mxu0 %v2200
        %2529 = vmatprep.subr.bf16.mxu0 0
        %2530 = vmatpush2.bf16.msra.mxu0 %v2199
        %2531 = vmatprep.subr.bf16.mxu0 0
        %2532 = vmatpush2.bf16.msra.mxu0 %v2198
        %2533 = vmatprep.subr.bf16.mxu0 0
        %2534 = vmatpush2.bf16.msra.mxu0 %v2197
        %2535 = vmatprep.subr.bf16.mxu0 0
        %2536 = vmatpush2.bf16.msra.mxu0 %v2196
        %2537 = vmatprep.subr.bf16.mxu0 0
        %2538 = vmatpush2.bf16.msra.mxu0 %v2195
        %2539 = vmatprep.subr.bf16.mxu0 0
        %2540 = vmatpush2.bf16.msra.mxu0 %v2194
        %2541 = vmatprep.mubr.bf16.mxu0 %v1593
        %2542 = vmatmul.mubr.bf16.gmra.mxu0 %v1592
        %v2543 = vpop.f32.mrf.mxu0
        %v2544 = vadd.f32 %v2496, %v2543
        %v2545 = vpop.f32.mrf.mxu0
        %v2546 = vpop.f32.mrf.mxu0
        %v2547 = vadd.f32 %v2499, %v2546
        %v2548 = vpop.f32.mrf.mxu0
        %2549 = vmatprep.mubr.bf16.mxu0 %v1609
        %2550 = vmatmul.mubr.bf16.gmra.mxu0 %v1608
        %v2551 = vpop.f32.mrf.mxu0
        %v2552 = vadd.f32 %v2504, %v2551
        %v2553 = vpop.f32.mrf.mxu0
        %v2554 = vpop.f32.mrf.mxu0
        %v2555 = vpop.f32.mrf.mxu0
        %2556 = vdwg.mxu0
        %2557 = vmatprep.subr.bf16.mxu0 0
        %2558 = vmatpush1.bf16.msra.mxu0 %v2209
        %2559 = vmatprep.subr.bf16.mxu0 0
        %2560 = vmatpush1.bf16.msra.mxu0 %v2208
        %2561 = vmatprep.subr.bf16.mxu0 0
        %2562 = vmatpush1.bf16.msra.mxu0 %v2207
        %2563 = vmatprep.subr.bf16.mxu0 0
        %2564 = vmatpush1.bf16.msra.mxu0 %v2206
        %2565 = vmatprep.subr.bf16.mxu0 0
        %2566 = vmatpush1.bf16.msra.mxu0 %v2205
        %2567 = vmatprep.subr.bf16.mxu0 0
        %2568 = vmatpush1.bf16.msra.mxu0 %v2204
        %2569 = vmatprep.subr.bf16.mxu0 0
        %2570 = vmatpush1.bf16.msra.mxu0 %v2203
        %2571 = vmatprep.subr.bf16.mxu0 0
        %2572 = vmatpush1.bf16.msra.mxu0 %v2202
        %2573 = vmatprep.subr.bf16.mxu0 0
        %2574 = vmatpush2.bf16.msra.mxu0 %v2217
        %2575 = vmatprep.subr.bf16.mxu0 0
        %2576 = vmatpush2.bf16.msra.mxu0 %v2216
        %2577 = vmatprep.subr.bf16.mxu0 0
        %2578 = vmatpush2.bf16.msra.mxu0 %v2215
        %2579 = vmatprep.subr.bf16.mxu0 0
        %2580 = vmatpush2.bf16.msra.mxu0 %v2214
        %2581 = vmatprep.subr.bf16.mxu0 0
        %2582 = vmatpush2.bf16.msra.mxu0 %v2213
        %2583 = vmatprep.subr.bf16.mxu0 0
        %2584 = vmatpush2.bf16.msra.mxu0 %v2212
        %2585 = vmatprep.subr.bf16.mxu0 0
        %2586 = vmatpush2.bf16.msra.mxu0 %v2211
        %2587 = vmatprep.subr.bf16.mxu0 0
        %2588 = vmatpush2.bf16.msra.mxu0 %v2210
        %2589 = vmatprep.mubr.bf16.mxu0 %v1595
        %2590 = vmatmul.mubr.bf16.gmra.mxu0 %v1594
        %v2591 = vpop.f32.mrf.mxu0
        %v2592 = vadd.f32 %v2544, %v2591
        %v2593 = vpop.f32.mrf.mxu0
        %v2594 = vpop.f32.mrf.mxu0
        %v2595 = vadd.f32 %v2547, %v2594
        %v2596 = vpop.f32.mrf.mxu0
        %2597 = vmatprep.mubr.bf16.mxu0 %v1611
        %2598 = vmatmul.mubr.bf16.gmra.mxu0 %v1610
        %v2599 = vpop.f32.mrf.mxu0
        %v2600 = vadd.f32 %v2552, %v2599
        %v2601 = vpop.f32.mrf.mxu0
        %v2602 = vpop.f32.mrf.mxu0
        %v2603 = vpop.f32.mrf.mxu0
        %2604 = vdwg.mxu0
        %2605 = vmatprep.subr.bf16.mxu0 0
        %2606 = vmatpush1.bf16.msra.mxu0 %v2225
        %2607 = vmatprep.subr.bf16.mxu0 0
        %2608 = vmatpush1.bf16.msra.mxu0 %v2224
        %2609 = vmatprep.subr.bf16.mxu0 0
        %2610 = vmatpush1.bf16.msra.mxu0 %v2223
        %2611 = vmatprep.subr.bf16.mxu0 0
        %2612 = vmatpush1.bf16.msra.mxu0 %v2222
        %2613 = vmatprep.subr.bf16.mxu0 0
        %2614 = vmatpush1.bf16.msra.mxu0 %v2221
        %2615 = vmatprep.subr.bf16.mxu0 0
        %2616 = vmatpush1.bf16.msra.mxu0 %v2220
        %2617 = vmatprep.subr.bf16.mxu0 0
        %2618 = vmatpush1.bf16.msra.mxu0 %v2219
        %2619 = vmatprep.subr.bf16.mxu0 0
        %2620 = vmatpush1.bf16.msra.mxu0 %v2218
        %2621 = vmatprep.subr.bf16.mxu0 0
        %2622 = vmatpush2.bf16.msra.mxu0 %v2233
        %2623 = vmatprep.subr.bf16.mxu0 0
        %2624 = vmatpush2.bf16.msra.mxu0 %v2232
        %2625 = vmatprep.subr.bf16.mxu0 0
        %2626 = vmatpush2.bf16.msra.mxu0 %v2231
        %2627 = vmatprep.subr.bf16.mxu0 0
        %2628 = vmatpush2.bf16.msra.mxu0 %v2230
        %2629 = vmatprep.subr.bf16.mxu0 0
        %2630 = vmatpush2.bf16.msra.mxu0 %v2229
        %2631 = vmatprep.subr.bf16.mxu0 0
        %2632 = vmatpush2.bf16.msra.mxu0 %v2228
        %2633 = vmatprep.subr.bf16.mxu0 0
        %2634 = vmatpush2.bf16.msra.mxu0 %v2227
        %2635 = vmatprep.subr.bf16.mxu0 0
        %2636 = vmatpush2.bf16.msra.mxu0 %v2226
        %2637 = vmatprep.mubr.bf16.mxu0 %v1597
        %2638 = vmatmul.mubr.bf16.gmra.mxu0 %v1596
        %v2639 = vpop.f32.mrf.mxu0
        %v2640 = vadd.f32 %v2592, %v2639
        %v2641 = vpop.f32.mrf.mxu0
        %v2642 = vpop.f32.mrf.mxu0
        %v2643 = vadd.f32 %v2595, %v2642
        %v2644 = vpop.f32.mrf.mxu0
        %2645 = vmatprep.mubr.bf16.mxu0 %v1613
        %2646 = vmatmul.mubr.bf16.gmra.mxu0 %v1612
        %v2647 = vpop.f32.mrf.mxu0
        %v2648 = vadd.f32 %v2600, %v2647
        %v2649 = vpop.f32.mrf.mxu0
        %v2650 = vpop.f32.mrf.mxu0
        %v2651 = vpop.f32.mrf.mxu0
        %2652 = vdwg.mxu0
        %2653 = vmatprep.subr.bf16.mxu0 0
        %2654 = vmatpush1.bf16.msra.mxu0 %v2241
        %2655 = vmatprep.subr.bf16.mxu0 0
        %2656 = vmatpush1.bf16.msra.mxu0 %v2240
        %2657 = vmatprep.subr.bf16.mxu0 0
        %2658 = vmatpush1.bf16.msra.mxu0 %v2239
        %2659 = vmatprep.subr.bf16.mxu0 0
        %2660 = vmatpush1.bf16.msra.mxu0 %v2238
        %2661 = vmatprep.subr.bf16.mxu0 0
        %2662 = vmatpush1.bf16.msra.mxu0 %v2237
        %2663 = vmatprep.subr.bf16.mxu0 0
        %2664 = vmatpush1.bf16.msra.mxu0 %v2236
        %2665 = vmatprep.subr.bf16.mxu0 0
        %2666 = vmatpush1.bf16.msra.mxu0 %v2235
        %2667 = vmatprep.subr.bf16.mxu0 0
        %2668 = vmatpush1.bf16.msra.mxu0 %v2234
        %2669 = vmatprep.subr.bf16.mxu0 0
        %2670 = vmatpush2.bf16.msra.mxu0 %v2249
        %2671 = vmatprep.subr.bf16.mxu0 0
        %2672 = vmatpush2.bf16.msra.mxu0 %v2248
        %2673 = vmatprep.subr.bf16.mxu0 0
        %2674 = vmatpush2.bf16.msra.mxu0 %v2247
        %2675 = vmatprep.subr.bf16.mxu0 0
        %2676 = vmatpush2.bf16.msra.mxu0 %v2246
        %2677 = vmatprep.subr.bf16.mxu0 0
        %2678 = vmatpush2.bf16.msra.mxu0 %v2245
        %2679 = vmatprep.subr.bf16.mxu0 0
        %2680 = vmatpush2.bf16.msra.mxu0 %v2244
        %2681 = vmatprep.subr.bf16.mxu0 0
        %2682 = vmatpush2.bf16.msra.mxu0 %v2243
        %2683 = vmatprep.subr.bf16.mxu0 0
        %2684 = vmatpush2.bf16.msra.mxu0 %v2242
        %2685 = vmatprep.mubr.bf16.mxu0 %v1599
        %2686 = vmatmul.mubr.bf16.gmra.mxu0 %v1598
        %v2687 = vpop.f32.mrf.mxu0
        %v2688 = vadd.f32 %v2640, %v2687
        %v2689 = vpop.f32.mrf.mxu0
        %v2690 = vpop.f32.mrf.mxu0
        %v2691 = vadd.f32 %v2643, %v2690
        %v2692 = vpop.f32.mrf.mxu0
        %2693 = vmatprep.mubr.bf16.mxu0 %v1615
        %2694 = vmatmul.mubr.bf16.gmra.mxu0 %v1614
        %v2695 = vpop.f32.mrf.mxu0
        %v2696 = vadd.f32 %v2648, %v2695
        %v2697 = vpop.f32.mrf.mxu0
        %v2698 = vpop.f32.mrf.mxu0
        %v2699 = vpop.f32.mrf.mxu0
        %2700 = vdwg.mxu0
        %2701 = vmatprep.subr.bf16.mxu0 0
        %2702 = vmatpush1.bf16.msra.mxu0 %v2257
        %2703 = vmatprep.subr.bf16.mxu0 0
        %2704 = vmatpush1.bf16.msra.mxu0 %v2256
        %2705 = vmatprep.subr.bf16.mxu0 0
        %2706 = vmatpush1.bf16.msra.mxu0 %v2255
        %2707 = vmatprep.subr.bf16.mxu0 0
        %2708 = vmatpush1.bf16.msra.mxu0 %v2254
        %2709 = vmatprep.subr.bf16.mxu0 0
        %2710 = vmatpush1.bf16.msra.mxu0 %v2253
        %2711 = vmatprep.subr.bf16.mxu0 0
        %2712 = vmatpush1.bf16.msra.mxu0 %v2252
        %2713 = vmatprep.subr.bf16.mxu0 0
        %2714 = vmatpush1.bf16.msra.mxu0 %v2251
        %2715 = vmatprep.subr.bf16.mxu0 0
        %2716 = vmatpush1.bf16.msra.mxu0 %v2250
        %2717 = vmatprep.subr.bf16.mxu0 0
        %2718 = vmatpush2.bf16.msra.mxu0 %v2265
        %2719 = vmatprep.subr.bf16.mxu0 0
        %2720 = vmatpush2.bf16.msra.mxu0 %v2264
        %2721 = vmatprep.subr.bf16.mxu0 0
        %2722 = vmatpush2.bf16.msra.mxu0 %v2263
        %2723 = vmatprep.subr.bf16.mxu0 0
        %2724 = vmatpush2.bf16.msra.mxu0 %v2262
        %2725 = vmatprep.subr.bf16.mxu0 0
        %2726 = vmatpush2.bf16.msra.mxu0 %v2261
        %2727 = vmatprep.subr.bf16.mxu0 0
        %2728 = vmatpush2.bf16.msra.mxu0 %v2260
        %2729 = vmatprep.subr.bf16.mxu0 0
        %2730 = vmatpush2.bf16.msra.mxu0 %v2259
        %2731 = vmatprep.subr.bf16.mxu0 0
        %2732 = vmatpush2.bf16.msra.mxu0 %v2258
        %2733 = vmatprep.mubr.bf16.mxu0 %v1601
        %2734 = vmatmul.mubr.bf16.gmra.mxu0 %v1600
        %v2735 = vpop.f32.mrf.mxu0
        %v2736 = vadd.f32 %v2688, %v2735
        %v2737 = vpop.f32.mrf.mxu0
        %v2738 = vpop.f32.mrf.mxu0
        %v2739 = vadd.f32 %v2691, %v2738
        %v2740 = vpop.f32.mrf.mxu0
        %2741 = vmatprep.mubr.bf16.mxu0 %v1617
        %2742 = vmatmul.mubr.bf16.gmra.mxu0 %v1616
        %v2743 = vpop.f32.mrf.mxu0
        %v2744 = vadd.f32 %v2696, %v2743
        %v2745 = vpop.f32.mrf.mxu0
        %v2746 = vpop.f32.mrf.mxu0
        %v2747 = vpop.f32.mrf.mxu0
        %2748 = vdwg.mxu0
        %2749 = vmatprep.subr.bf16.mxu0 0
        %2750 = vmatpush1.bf16.msra.mxu0 %v2273
        %2751 = vmatprep.subr.bf16.mxu0 0
        %2752 = vmatpush1.bf16.msra.mxu0 %v2272
        %2753 = vmatprep.subr.bf16.mxu0 0
        %2754 = vmatpush1.bf16.msra.mxu0 %v2271
        %2755 = vmatprep.subr.bf16.mxu0 0
        %2756 = vmatpush1.bf16.msra.mxu0 %v2270
        %2757 = vmatprep.subr.bf16.mxu0 0
        %2758 = vmatpush1.bf16.msra.mxu0 %v2269
        %2759 = vmatprep.subr.bf16.mxu0 0
        %2760 = vmatpush1.bf16.msra.mxu0 %v2268
        %2761 = vmatprep.subr.bf16.mxu0 0
        %2762 = vmatpush1.bf16.msra.mxu0 %v2267
        %2763 = vmatprep.subr.bf16.mxu0 0
        %2764 = vmatpush1.bf16.msra.mxu0 %v2266
        %2765 = vmatprep.subr.bf16.mxu0 0
        %2766 = vmatpush2.bf16.msra.mxu0 0
        %2767 = vmatprep.subr.bf16.mxu0 0
        %2768 = vmatpush2.bf16.msra.mxu0 0
        %2769 = vmatprep.subr.bf16.mxu0 0
        %2770 = vmatpush2.bf16.msra.mxu0 %v2279
        %2771 = vmatprep.subr.bf16.mxu0 0
        %2772 = vmatpush2.bf16.msra.mxu0 %v2278
        %2773 = vmatprep.subr.bf16.mxu0 0
        %2774 = vmatpush2.bf16.msra.mxu0 %v2277
        %2775 = vmatprep.subr.bf16.mxu0 0
        %2776 = vmatpush2.bf16.msra.mxu0 %v2276
        %2777 = vmatprep.subr.bf16.mxu0 0
        %2778 = vmatpush2.bf16.msra.mxu0 %v2275
        %2779 = vmatprep.subr.bf16.mxu0 0
        %2780 = vmatpush2.bf16.msra.mxu0 %v2274
        %2781 = vmatprep.mubr.bf16.mxu0 %v2408
        %2782 = vmatmul.mubr.bf16.gmra.mxu0 %v1602
        %v2783 = vpop.f32.mrf.mxu0
        %v2784 = vadd.f32 %v2736, %v2783
        %v2785 = vpop.f32.mrf.mxu0
        %v2786 = vpop.f32.mrf.mxu0
        %v2787 = vadd.f32 %v2739, %v2786
        %v2788 = vpop.f32.mrf.mxu0
        %2789 = vmatprep.mubr.bf16.mxu0 %v2411
        %2790 = vmatmul.mubr.bf16.gmra.mxu0 %v1618
        %v2791 = vpop.f32.mrf.mxu0
        %v2792 = vadd.f32 %v2744, %v2791
        %v2793 = vpop.f32.mrf.mxu0
        %v2794 = vpop.f32.mrf.mxu0
        %v2795 = vpop.f32.mrf.mxu0
        %2796 = vdwg.mxu0
        %v2797 = vld [vmem:[%s2] sm:$0xff]
        %v2798 = vld [vmem:[%s2 + $0x8] sm:$0xff]
        %v2799 = vld [vmem:[%s2 + $0x10] sm:$0x1f]
        %2801 = vset.pattern.permute.xlu0 0
        %2802 = vperm.xlu0 %2801, %v2797
        %v2803 = vpop.permute.xlu0 %2802
        %2806 = vset.pattern.permute.xlu0 0
        %2807 = vperm.xlu0 %2806, %v2798
        %v2808 = vpop.permute.xlu0 %2807
        %2811 = vset.pattern.permute.xlu0 0
        %2812 = vperm.xlu0 %2811, %v2799
        %v2813 = vpop.permute.xlu0 %2812
        %v2815 = vmul.f32 %v2784, %v2803
        %v2816 = vmul.f32 %v2787, %v2808
        %v2817 = vmul.f32 %v2792, %v2813
        %v2818 = vld [vmem:[%s3] sm:$0xff]
        %v2819 = vld [vmem:[%s3 + $0x8] sm:$0xff]
        %v2820 = vld [vmem:[%s3 + $0x10] sm:$0x1f]
        %2822 = vset.pattern.permute.xlu0 0
        %2823 = vperm.xlu0 %2822, %v2818
        %v2824 = vpop.permute.xlu0 %2823
        %2827 = vset.pattern.permute.xlu0 0
        %2828 = vperm.xlu0 %2827, %v2819
        %v2829 = vpop.permute.xlu0 %2828
        %2832 = vset.pattern.permute.xlu0 0
        %2833 = vperm.xlu0 %2832, %v2820
        %v2834 = vpop.permute.xlu0 %2833
        %v2836 = vadd.f32 %v2815, %v2824
        %v2837 = vadd.f32 %v2816, %v2829
        %v2838 = vadd.f32 %v2817, %v2834
        %v2839 = vmax.f32 %v2836, 0.0
        %v2840 = vmax.f32 %v2837, 0.0
        %v2841 = vmax.f32 %v2838, 0.0
        %2842 = vst [vmem:[%s1238] sm:$0xff] %v2839
        %2843 = vst [vmem:[%s1238 + $0x8] sm:$0xff] %v2840
        %2844 = vst [vmem:[%s1238 + $0x10] sm:$0x1f] %v2841
        %s2845 = sand.u32 %s112, 1
        %s2846 = sand.u32 %s112, 1
        %s2847 = smul.addr %s2846, 24
        %s2848 = scalar_lea.vmem [#allocation3], %s2847
        // Predicated region
        $region78: #{stmamba_forward.4} parent=72 // pred_check
          %p2849 = pneg %p122
        $region79: #{stmamba_forward.4} parent=72 // pred_check_branch
          %2851 = sbr.rel (%p2849) target = $region81
        $region80: #{stmamba_forward.4} parent=72 // pred_region
          %s2852 = smul.addr %s15, 8
          %s2853 = scalar_lea.vmem %s4, %s2852
          // Predicated region
          $region82: #{stmamba_forward.4} parent=80 // pred_check
            _
          $region83: #{stmamba_forward.4} parent=80 // pred_check_branch
            %2855 = sbr.rel (0) target = $region85
          $region84: #{stmamba_forward.4} parent=80 // pred_region
            // Predicated region
            $region86: #{stmamba_forward.4} parent=84 // pred_check
              _
            $region87: #{stmamba_forward.4} parent=84 // pred_check_branch
              %2857 = sbr.rel (0) target = $region89
            $region88: #{stmamba_forward.4} parent=84 // pred_region
              // Predicated region
              $region101: #{stmamba_forward.4} parent=88 // pred_check
                _
              $region102: #{stmamba_forward.4} parent=88 // pred_check_branch
                %2877 = sbr.rel (0) target = $region104
              $region103: #{stmamba_forward.4} parent=88 // pred_region
                loop: start=0, step=1, limit=1
                $region105: #{stmamba_forward.4} parent=103 // loop_pre_header
                  _
                $region106: #{stmamba_forward.4} parent=103 // loop_header
                  %s2879 = sphi 0, %s2883
                  %p2880 = scmp.ge.s32.totalorder %s2879, 1
                  %s2884 = sphi %s2848, %s2848
                  %s2885 = sphi %s2853, %s2853
                $region107: #{stmamba_forward.4} parent=103 // loop_header_branch
                  %2882 = sbr.rel (%p2880) target = $region111
                $region108: #{stmamba_forward.4} parent=103 // loop_body
                  %v2886 = vld [vmem:[%s2884] sm:$0xff]
                  %2887 = vst [vmem:[%s2885] sm:$0xff] %v2886
                  %v2888 = vld [vmem:[%s2884 + $0x8] sm:$0xff]
                  %2889 = vst [vmem:[%s2885 + $0x10] sm:$0xff] %v2888
                  %v2890 = vld [vmem:[%s2884 + $0x10] sm:$0xff]
                  %2891 = vst [vmem:[%s2885 + $0x20] sm:$0xff] %v2890
                $region109: #{stmamba_forward.4} parent=103 // loop_footer
                  %s2883 = sadd.s32 1, %s2879
                $region110: #{stmamba_forward.4} parent=103 // loop_footer_branch
                  %2878 = sbr.rel target = $region106
                $region111: #{stmamba_forward.4} parent=103 // loop_exit
                  _
              $region104: #{stmamba_forward.4} parent=88 // pred_fallthru
                _
              // Predicated region
              $region112: #{stmamba_forward.4} parent=88 // pred_check
                _
              $region113: #{stmamba_forward.4} parent=88 // pred_check_branch
                %2893 = sbr.rel target = $region115
              $region114: #{stmamba_forward.4} parent=88 // pred_region
                _
              $region115: #{stmamba_forward.4} parent=88 // pred_fallthru
                _
            $region89: #{stmamba_forward.4} parent=84 // pred_fallthru
              _
            // Predicated region
            $region90: #{stmamba_forward.4} parent=84 // pred_check
              _
            $region91: #{stmamba_forward.4} parent=84 // pred_check_branch
              %2859 = sbr.rel target = $region93
            $region92: #{stmamba_forward.4} parent=84 // pred_region
              %s2861 = ssub.s32 256, 1
              loop: start=0, step=1, limit=1
              $region94: #{stmamba_forward.4} parent=92 // loop_pre_header
                _
              $region95: #{stmamba_forward.4} parent=92 // loop_header
                %s2863 = sphi 0, %s2867
                %p2864 = scmp.ge.s32.totalorder %s2863, 1
                %s2868 = sphi %s2848, %s2848
                %s2869 = sphi %s2853, %s2853
              $region96: #{stmamba_forward.4} parent=92 // loop_header_branch
                %2866 = sbr.rel (%p2864) target = $region100
              $region97: #{stmamba_forward.4} parent=92 // loop_body
                %v2870 = vld [vmem:[%s2868] sm:%s2861]
                %2871 = vst [vmem:[%s2869] sm:%s2861] %v2870
                %v2872 = vld [vmem:[%s2868 + $0x8] sm:%s2861]
                %2873 = vst [vmem:[%s2869 + $0x10] sm:%s2861] %v2872
                %v2874 = vld [vmem:[%s2868 + $0x10] sm:%s2861]
                %2875 = vst [vmem:[%s2869 + $0x20] sm:%s2861] %v2874
              $region98: #{stmamba_forward.4} parent=92 // loop_footer
                %s2867 = sadd.s32 1, %s2863
              $region99: #{stmamba_forward.4} parent=92 // loop_footer_branch
                %2862 = sbr.rel target = $region95
              $region100: #{stmamba_forward.4} parent=92 // loop_exit
                _
            $region93: #{stmamba_forward.4} parent=84 // pred_fallthru
              _
          $region85: #{stmamba_forward.4} parent=80 // pred_fallthru
            _
          %2894 = vnop
        $region81: #{stmamba_forward.4} parent=72 // pred_fallthru
          _
      $region73: #{stmamba_forward.4} parent=5 // pred_fallthru
        _
      %p2895 = scmp.le.s32.totalorder 2, %s10
      // Predicated region
      $region116: #{stmamba_forward.4} parent=5 // pred_check
        %p2896 = pneg %p2895
      $region117: #{stmamba_forward.4} parent=5 // pred_check_branch
        %2898 = sbr.rel (%p2896) target = $region119
      $region118: #{stmamba_forward.4} parent=5 // pred_region
        %s2899 = ssub.s32 %s10, 2
        // Predicated region
        $region120: #{stmamba_forward.4} parent=118 // pred_check
          %p2900 = pneg %p128
        $region121: #{stmamba_forward.4} parent=118 // pred_check_branch
          %2902 = sbr.rel (%p2900) target = $region123
        $region122: #{stmamba_forward.4} parent=118 // pred_region
          %s2903 = sand.u32 %s113, 1
          %s2904 = sand.u32 %s113, 1
          %s2905 = smul.addr %s2904, 24
          %s2906 = scalar_lea.vmem [#allocation3], %s2905
        $region123: #{stmamba_forward.4} parent=118 // pred_fallthru
          _
      $region119: #{stmamba_forward.4} parent=5 // pred_fallthru
        _
    $region6: #{stmamba_forward.4} parent=1 // loop_footer
      %s14 = sadd.s32 1, %s10
    $region7: #{stmamba_forward.4} parent=1 // loop_footer_branch
      %9 = sbr.rel target = $region3
    $region8: #{stmamba_forward.4} parent=1 // loop_exit
      _

// kernel: stmamba_forward.5
$region0: #{stmamba_forward.5}
  #allocation0 [shape = 'u32[]', space=smem, size = 0x4, offset = 0x4, fixed_abs, tag = 'smem constant byte address 0x4 - core index']
  #allocation1 [shape = 'u32[144,128]{1,0:T(1,128)}', space=vmem, size = 0x12000, scoped, tag = 'internal scratch']
  %s0 = inlined_call_operand.vmem [shape: f32[2,21,128], index: 0, kind: input, shape index: {}]
  %s1 = inlined_call_operand.vmem [shape: f32[512,21], index: 1, kind: input, shape index: {}]
  %s2 = inlined_call_operand.vmem [shape: f32[512,1], index: 2, kind: input, shape index: {}]
  %s3 = inlined_call_operand.vmem [shape: f32[4,21,128], index: 3, kind: input, shape index: {}]
  %s4 = inlined_call_operand.vmem [shape: f32[21,8], index: 4, kind: input, shape index: {}]
  %s5 = inlined_call_operand.vmem [shape: f32[8,21], index: 5, kind: input, shape index: {}]
  %s6 = inlined_call_operand.vmem [shape: f32[21,8], index: 6, kind: input, shape index: {}]
  %s7 = inlined_call_operand.vmem [shape: f32[2,21,1], index: 7, kind: output, shape index: {}]
  %s8 = sld [smem:[#allocation0]]
  $region61: #{stmamba_forward.5} parent=0
    _
  %s10 = ssub.s32 1, %s8
  %s11 = scalar_select 0, %s10, %s8
  loop: start=0, step=1, limit=4
  $region2: #{stmamba_forward.5} parent=0 // loop_pre_header
    _
  $region3: #{stmamba_forward.5} parent=0 // loop_header
    %s13 = sphi 0, %s17
    %p14 = scmp.ge.s32.totalorder %s13, 4
    %s23 = sphi 0, %s25
    %s26 = sphi 0, %s23
    %s27 = sphi 0, %s26
    %s43 = sphi 0, %s27
    %s47 = sphi 0, %s47
    %s49 = sphi 0, %s47
    %s50 = sphi 0, %s49
    %s64 = sphi 0, %s50
    %s68 = sphi 0, %s68
    %s70 = sphi 0, %s68
    %s71 = sphi 0, %s70
    %s85 = sphi 0, %s71
    %s89 = sphi 0, %s89
    %s91 = sphi 0, %s89
    %s92 = sphi 0, %s91
    %s106 = sphi 0, %s92
    %s110 = sphi 0, %s110
    %s112 = sphi 0, %s110
    %s113 = sphi 0, %s112
    %s127 = sphi 0, %s113
    %s131 = sphi 0, %s131
    %s133 = sphi 0, %s131
    %s134 = sphi 0, %s133
    %s148 = sphi 0, %s134
    %s152 = sphi 0, %s152
    %s154 = sphi 0, %s152
    %s155 = sphi 0, %s154
    %s169 = sphi 0, %s155
    %s175 = sphi 0, %s177
    %s178 = sphi 0, %s175
    %s179 = sphi 0, %s178
    %s195 = sphi 0, %s179
  $region4: #{stmamba_forward.5} parent=0 // loop_header_branch
    %16 = sbr.rel (%p14) target = $region8
  $region5: #{stmamba_forward.5} parent=0 // loop_body
    %s18 = ssub.s32 %s13, 1
    %s19 = ssub.s32 %s13, 2
    %s20 = sadd.s32 %s13, 1
    %s21 = ssub.s32 %s13, %s20
    %p22 = scmp.eq.s32.totalorder %s21, 0
    %s24 = sadd.s32 %s23, 1
    %s25 = scalar_select %p22, %s23, %s24
    %p28 = pneg %p22
    %p29 = scmp.eq.s32.totalorder %s13, 1
    %p30 = por %p28, %p29
    %p31 = scmp.ne.s32.totalorder %s23, %s26
    %p32 = scmp.eq.s32.totalorder %s13, 0
    %p33 = por %p31, %p32
    %p34 = scmp.ne.s32.totalorder %s23, %s26
    %p35 = scmp.eq.s32.totalorder %s18, 1
    %p36 = por %p34, %p35
    %p37 = scmp.ne.s32.totalorder %s26, %s27
    %p38 = scmp.eq.s32.totalorder %s18, 0
    %p39 = por %p37, %p38
    %p40 = scmp.ne.s32.totalorder %s26, %s27
    %p41 = scmp.eq.s32.totalorder %s19, 1
    %p42 = por %p40, %p41
    %p44 = scmp.ne.s32.totalorder %s27, %s43
    %p45 = scmp.eq.s32.totalorder %s19, 0
    %p46 = por %p44, %p45
    %s48 = sadd.s32 %s47, 1
    %p51 = scmp.eq.s32.totalorder %s13, 1
    %p52 = scmp.ne.s32.totalorder %s47, %s49
    %p53 = scmp.eq.s32.totalorder %s13, 0
    %p54 = por %p52, %p53
    %p55 = scmp.ne.s32.totalorder %s47, %s49
    %p56 = scmp.eq.s32.totalorder %s18, 1
    %p57 = por %p55, %p56
    %p58 = scmp.ne.s32.totalorder %s49, %s50
    %p59 = scmp.eq.s32.totalorder %s18, 0
    %p60 = por %p58, %p59
    %p61 = scmp.ne.s32.totalorder %s49, %s50
    %p62 = scmp.eq.s32.totalorder %s19, 1
    %p63 = por %p61, %p62
    %p65 = scmp.ne.s32.totalorder %s50, %s64
    %p66 = scmp.eq.s32.totalorder %s19, 0
    %p67 = por %p65, %p66
    %s69 = sadd.s32 %s68, 1
    %p72 = scmp.eq.s32.totalorder %s13, 1
    %p73 = scmp.ne.s32.totalorder %s68, %s70
    %p74 = scmp.eq.s32.totalorder %s13, 0
    %p75 = por %p73, %p74
    %p76 = scmp.ne.s32.totalorder %s68, %s70
    %p77 = scmp.eq.s32.totalorder %s18, 1
    %p78 = por %p76, %p77
    %p79 = scmp.ne.s32.totalorder %s70, %s71
    %p80 = scmp.eq.s32.totalorder %s18, 0
    %p81 = por %p79, %p80
    %p82 = scmp.ne.s32.totalorder %s70, %s71
    %p83 = scmp.eq.s32.totalorder %s19, 1
    %p84 = por %p82, %p83
    %p86 = scmp.ne.s32.totalorder %s71, %s85
    %p87 = scmp.eq.s32.totalorder %s19, 0
    %p88 = por %p86, %p87
    %s90 = sadd.s32 %s89, 1
    %p93 = scmp.eq.s32.totalorder %s13, 1
    %p94 = scmp.ne.s32.totalorder %s89, %s91
    %p95 = scmp.eq.s32.totalorder %s13, 0
    %p96 = por %p94, %p95
    %p97 = scmp.ne.s32.totalorder %s89, %s91
    %p98 = scmp.eq.s32.totalorder %s18, 1
    %p99 = por %p97, %p98
    %p100 = scmp.ne.s32.totalorder %s91, %s92
    %p101 = scmp.eq.s32.totalorder %s18, 0
    %p102 = por %p100, %p101
    %p103 = scmp.ne.s32.totalorder %s91, %s92
    %p104 = scmp.eq.s32.totalorder %s19, 1
    %p105 = por %p103, %p104
    %p107 = scmp.ne.s32.totalorder %s92, %s106
    %p108 = scmp.eq.s32.totalorder %s19, 0
    %p109 = por %p107, %p108
    %s111 = sadd.s32 %s110, 1
    %p114 = scmp.eq.s32.totalorder %s13, 1
    %p115 = scmp.ne.s32.totalorder %s110, %s112
    %p116 = scmp.eq.s32.totalorder %s13, 0
    %p117 = por %p115, %p116
    %p118 = scmp.ne.s32.totalorder %s110, %s112
    %p119 = scmp.eq.s32.totalorder %s18, 1
    %p120 = por %p118, %p119
    %p121 = scmp.ne.s32.totalorder %s112, %s113
    %p122 = scmp.eq.s32.totalorder %s18, 0
    %p123 = por %p121, %p122
    %p124 = scmp.ne.s32.totalorder %s112, %s113
    %p125 = scmp.eq.s32.totalorder %s19, 1
    %p126 = por %p124, %p125
    %p128 = scmp.ne.s32.totalorder %s113, %s127
    %p129 = scmp.eq.s32.totalorder %s19, 0
    %p130 = por %p128, %p129
    %s132 = sadd.s32 %s131, 1
    %p135 = scmp.eq.s32.totalorder %s13, 1
    %p136 = scmp.ne.s32.totalorder %s131, %s133
    %p137 = scmp.eq.s32.totalorder %s13, 0
    %p138 = por %p136, %p137
    %p139 = scmp.ne.s32.totalorder %s131, %s133
    %p140 = scmp.eq.s32.totalorder %s18, 1
    %p141 = por %p139, %p140
    %p142 = scmp.ne.s32.totalorder %s133, %s134
    %p143 = scmp.eq.s32.totalorder %s18, 0
    %p144 = por %p142, %p143
    %p145 = scmp.ne.s32.totalorder %s133, %s134
    %p146 = scmp.eq.s32.totalorder %s19, 1
    %p147 = por %p145, %p146
    %p149 = scmp.ne.s32.totalorder %s134, %s148
    %p150 = scmp.eq.s32.totalorder %s19, 0
    %p151 = por %p149, %p150
    %s153 = sadd.s32 %s152, 1
    %p156 = scmp.eq.s32.totalorder %s13, 1
    %p157 = scmp.ne.s32.totalorder %s152, %s154
    %p158 = scmp.eq.s32.totalorder %s13, 0
    %p159 = por %p157, %p158
    %p160 = scmp.ne.s32.totalorder %s152, %s154
    %p161 = scmp.eq.s32.totalorder %s18, 1
    %p162 = por %p160, %p161
    %p163 = scmp.ne.s32.totalorder %s154, %s155
    %p164 = scmp.eq.s32.totalorder %s18, 0
    %p165 = por %p163, %p164
    %p166 = scmp.ne.s32.totalorder %s154, %s155
    %p167 = scmp.eq.s32.totalorder %s19, 1
    %p168 = por %p166, %p167
    %p170 = scmp.ne.s32.totalorder %s155, %s169
    %p171 = scmp.eq.s32.totalorder %s19, 0
    %p172 = por %p170, %p171
    %s173 = ssub.s32 %s13, %s20
    %p174 = scmp.eq.s32.totalorder %s173, 0
    %s176 = sadd.s32 %s175, 1
    %s177 = scalar_select %p174, %s175, %s176
    %p180 = pneg %p174
    %p181 = scmp.eq.s32.totalorder %s13, 1
    %p182 = por %p180, %p181
    %p183 = scmp.ne.s32.totalorder %s175, %s178
    %p184 = scmp.eq.s32.totalorder %s13, 0
    %p185 = por %p183, %p184
    %p186 = scmp.ne.s32.totalorder %s175, %s178
    %p187 = scmp.eq.s32.totalorder %s18, 1
    %p188 = por %p186, %p187
    %p189 = scmp.ne.s32.totalorder %s178, %s179
    %p190 = scmp.eq.s32.totalorder %s18, 0
    %p191 = por %p189, %p190
    %p192 = scmp.ne.s32.totalorder %s178, %s179
    %p193 = scmp.eq.s32.totalorder %s19, 1
    %p194 = por %p192, %p193
    %p196 = scmp.ne.s32.totalorder %s179, %s195
    %p197 = scmp.eq.s32.totalorder %s19, 0
    %p198 = por %p196, %p197
    %p199 = scmp.le.s32.totalorder 1, %s13
    %p200 = scmp.lt.s32.totalorder %s13, 3
    %p201 = pnand %p199, %p200
    %p202 = pneg %p201
    // Predicated region
    $region9: #{stmamba_forward.5} parent=5 // pred_check
      _
    $region10: #{stmamba_forward.5} parent=5 // pred_check_branch
      %204 = sbr.rel (%p201) target = $region12
    $region11: #{stmamba_forward.5} parent=5 // pred_region
      %s205 = ssub.s32 %s13, 1
      // Predicated region
      $region13: #{stmamba_forward.5} parent=11 // pred_check
        %p206 = pneg %p60
      $region14: #{stmamba_forward.5} parent=11 // pred_check_branch
        %208 = sbr.rel (%p206) target = $region16
      $region15: #{stmamba_forward.5} parent=11 // pred_region
        _
      $region16: #{stmamba_forward.5} parent=11 // pred_fallthru
        _
      // Predicated region
      $region17: #{stmamba_forward.5} parent=11 // pred_check
        %p209 = pneg %p81
      $region18: #{stmamba_forward.5} parent=11 // pred_check_branch
        %211 = sbr.rel (%p209) target = $region20
      $region19: #{stmamba_forward.5} parent=11 // pred_region
        _
      $region20: #{stmamba_forward.5} parent=11 // pred_fallthru
        _
      // Predicated region
      $region21: #{stmamba_forward.5} parent=11 // pred_check
        %p212 = pneg %p102
      $region22: #{stmamba_forward.5} parent=11 // pred_check_branch
        %214 = sbr.rel (%p212) target = $region24
      $region23: #{stmamba_forward.5} parent=11 // pred_region
        _
      $region24: #{stmamba_forward.5} parent=11 // pred_fallthru
        _
      // Predicated region
      $region25: #{stmamba_forward.5} parent=11 // pred_check
        %p215 = pneg %p123
      $region26: #{stmamba_forward.5} parent=11 // pred_check_branch
        %217 = sbr.rel (%p215) target = $region28
      $region27: #{stmamba_forward.5} parent=11 // pred_region
        _
      $region28: #{stmamba_forward.5} parent=11 // pred_fallthru
        _
      // Predicated region
      $region29: #{stmamba_forward.5} parent=11 // pred_check
        %p218 = pneg %p144
      $region30: #{stmamba_forward.5} parent=11 // pred_check_branch
        %220 = sbr.rel (%p218) target = $region32
      $region31: #{stmamba_forward.5} parent=11 // pred_region
        _
      $region32: #{stmamba_forward.5} parent=11 // pred_fallthru
        _
      // Predicated region
      $region33: #{stmamba_forward.5} parent=11 // pred_check
        %p221 = pneg %p165
      $region34: #{stmamba_forward.5} parent=11 // pred_check_branch
        %223 = sbr.rel (%p221) target = $region36
      $region35: #{stmamba_forward.5} parent=11 // pred_region
        _
      $region36: #{stmamba_forward.5} parent=11 // pred_fallthru
        _
    $region12: #{stmamba_forward.5} parent=5 // pred_fallthru
      _
    %p224 = scmp.lt.s32.totalorder %s13, 2
    // Predicated region
    $region37: #{stmamba_forward.5} parent=5 // pred_check
      %p225 = pneg %p224
    $region38: #{stmamba_forward.5} parent=5 // pred_check_branch
      %227 = sbr.rel (%p225) target = $region40
    $region39: #{stmamba_forward.5} parent=5 // pred_region
      // Predicated region
      $region41: #{stmamba_forward.5} parent=39 // pred_check
        %p228 = pneg %p33
      $region42: #{stmamba_forward.5} parent=39 // pred_check_branch
        %230 = sbr.rel (%p228) target = $region44
      $region43: #{stmamba_forward.5} parent=39 // pred_region
        %p231 = scmp.lt.s32.totalorder %s13, 1
        %s232 = scalar_select %p231, %s13, 1
        %s233 = smul.addr %s232, 3
        %s234 = smul.addr %s233, 8
        %s235 = scalar_lea.vmem %s0, %s234
      $region44: #{stmamba_forward.5} parent=39 // pred_fallthru
        _
    $region40: #{stmamba_forward.5} parent=5 // pred_fallthru
      _
    %p236 = scmp.le.s32.totalorder 1, %s13
    %p237 = scmp.lt.s32.totalorder %s13, 3
    %p238 = pnand %p236, %p237
    %p239 = pneg %p238
    // Predicated region
    $region45: #{stmamba_forward.5} parent=5 // pred_check
      _
    $region46: #{stmamba_forward.5} parent=5 // pred_check_branch
      %241 = sbr.rel (%p238) target = $region48
    $region47: #{stmamba_forward.5} parent=5 // pred_region
      %s242 = ssub.s32 %s13, 1
      %p243 = scmp.lt.s32.totalorder %s18, 1
      %s244 = scalar_select %p243, %s18, 1
      %s245 = smul.addr %s244, 3
      %s246 = smul.addr %s245, 8
      %s247 = scalar_lea.vmem %s0, %s246
      %p248 = pneg %p39
      %p249 = pneg %p36
      %p250 = pneg %p60
      %p251 = pneg %p57
      %p252 = pneg %p81
      %p253 = pneg %p78
      %p254 = pneg %p102
      %p255 = pneg %p99
      %p256 = pneg %p123
      %p257 = pneg %p120
      %p258 = pneg %p144
      %p259 = pneg %p141
      %p260 = pneg %p165
      %p261 = pneg %p162
      %p262 = pneg %p191
      %p263 = pneg %p188
      %p264 = scmp.lt.s32.totalorder %s18, 1
      %s265 = scalar_select %p264, %s18, 1
      %s266 = smul.addr %s265, 3
      %s267 = smul.addr %s266, 8
      %s268 = scalar_lea.vmem %s7, %s267
      %p269 = scmp.lt.s32.totalorder %s18, 1
      %s270 = scalar_select %p269, %s18, 1
      %s271 = smul.addr %s270, 3
      %s272 = smul.addr %s271, 8
      %s273 = scalar_lea.vmem %s0, %s272
      %p274 = scmp.lt.s32.totalorder %s18, 1
      %s275 = scalar_select %p274, %s18, 1
      %s276 = smul.addr %s275, 3
      %s277 = smul.addr %s276, 8
      %s278 = scalar_lea.vmem %s7, %s277
      %v279 = vld [vmem:[%s3] sm:$0xff]
      %v280 = vld [vmem:[%s3 + $0x8] sm:$0xff]
      %v281 = vld [vmem:[%s3 + $0x10] sm:$0x1f]
      %s282 = scalar_lea.vmem %s3, 24
      %v283 = vld [vmem:[%s282] sm:$0xff]
      %v284 = vld [vmem:[%s282 + $0x8] sm:$0xff]
      %v285 = vld [vmem:[%s282 + $0x10] sm:$0x1f]
      %s286 = scalar_lea.vmem %s3, 48
      %v287 = vld [vmem:[%s286] sm:$0xff]
      %v288 = vld [vmem:[%s286 + $0x8] sm:$0xff]
      %v289 = vld [vmem:[%s286 + $0x10] sm:$0x1f]
      %s290 = scalar_lea.vmem %s3, 72
      %v291 = vld [vmem:[%s290] sm:$0xff]
      %v292 = vld [vmem:[%s290 + $0x8] sm:$0xff]
      %v293 = vld [vmem:[%s290 + $0x10] sm:$0x1f]
      %v294 = vld [vmem:[%s4] sm:$0xff]
      %v295 = vld [vmem:[%s4 + $0x8] sm:$0xff]
      %v296 = vld [vmem:[%s4 + $0x10] sm:$0x1f]
      %v297 = vld [vmem:[%s273] sm:$0xff]
      %v298 = vld [vmem:[%s273 + $0x8] sm:$0xff]
      %v299 = vld [vmem:[%s273 + $0x10] sm:$0x1f]
      %v300 = vadd.f32 %v297, %v291
      %v301 = vadd.f32 %v298, %v292
      %v302 = vadd.f32 %v299, %v293
      %v303 = vadd.f32 %v300, %v301
      %vm304 = vcmask 1044480
      %v305 = vsel %vm304, %v302, 0.0
      %v306 = vadd.f32 %v303, %v305
      %v307 = vrot.slane %v306, 4
      %v308 = vadd.f32 %v306, %v307
      %v309 = vrot.slane %v308, 2
      %v310 = vadd.f32 %v308, %v309
      %v311 = vrot.slane %v310, 1
      %v312 = vadd.f32 %v310, %v311
      %v313 = vrcp.pop 21.0
      %v314 = vmul.f32 %v312, %v313
      %v315 = vsub.f32 %v300, %v314
      %v316 = vsub.f32 %v301, %v314
      %v317 = vsub.f32 %v302, %v314
      %v318 = vmul.f32 %v315, %v315
      %v319 = vmul.f32 %v316, %v316
      %v320 = vmul.f32 %v317, %v317
      %v321 = vadd.f32 %v318, %v319
      %v322 = vsel %vm304, %v320, 0.0
      %v323 = vadd.f32 %v321, %v322
      %v324 = vrot.slane %v323, 4
      %v325 = vadd.f32 %v323, %v324
      %v326 = vrot.slane %v325, 2
      %v327 = vadd.f32 %v325, %v326
      %v328 = vrot.slane %v327, 1
      %v329 = vadd.f32 %v327, %v328
      %v330 = vmul.f32 %v329, %v313
      %v331 = vadd.f32 %v330, 1e-05
      %v332 = vrsqrt.pop %v331
      %v333 = vmul.f32 %v315, %v332
      %v334 = vmul.f32 %v316, %v332
      %v335 = vmul.f32 %v317, %v332
      %337 = vset.pattern.permute.xlu0 0
      %338 = vperm.xlu0 %337, %v294
      %v339 = vpop.permute.xlu0 %338
      %342 = vset.pattern.permute.xlu0 0
      %343 = vperm.xlu0 %342, %v295
      %v344 = vpop.permute.xlu0 %343
      %347 = vset.pattern.permute.xlu0 0
      %348 = vperm.xlu0 %347, %v296
      %v349 = vpop.permute.xlu0 %348
      %v351 = vmul.f32 %v333, %v339
      %v352 = vmul.f32 %v334, %v344
      %v353 = vmul.f32 %v335, %v349
      %354 = vset.pattern.permute.xlu0 1
      %355 = vperm.xlu0 %354, %v294
      %v356 = vpop.permute.xlu0 %355
      %358 = vset.pattern.permute.xlu0 1
      %359 = vperm.xlu0 %358, %v295
      %v360 = vpop.permute.xlu0 %359
      %362 = vset.pattern.permute.xlu0 1
      %363 = vperm.xlu0 %362, %v296
      %v364 = vpop.permute.xlu0 %363
      %v366 = vadd.f32 %v351, %v356
      %v367 = vadd.f32 %v352, %v360
      %v368 = vadd.f32 %v353, %v364
      %v369 = vmul.f32 %v366, %v287
      %v370 = vmul.f32 %v367, %v288
      %v371 = vmul.f32 %v368, %v289
      %v372 = vld [vmem:[%s1] sm:$0xff]
      %v373 = vld [vmem:[%s1 + $0x8] sm:$0xff]
      %v374 = vld [vmem:[%s1 + $0x10] sm:$0xff]
      %v375 = vld [vmem:[%s1 + $0x18] sm:$0xff]
      %v376 = vld [vmem:[%s1 + $0x20] sm:$0xff]
      %v377 = vld [vmem:[%s1 + $0x28] sm:$0xff]
      %v378 = vld [vmem:[%s1 + $0x30] sm:$0xff]
      %v379 = vld [vmem:[%s1 + $0x38] sm:$0xff]
      %v380 = vld [vmem:[%s1 + $0x40] sm:$0xff]
      %v381 = vld [vmem:[%s1 + $0x48] sm:$0xff]
      %v382 = vld [vmem:[%s1 + $0x50] sm:$0xff]
      %v383 = vld [vmem:[%s1 + $0x58] sm:$0xff]
      %v384 = vld [vmem:[%s1 + $0x60] sm:$0xff]
      %v385 = vld [vmem:[%s1 + $0x68] sm:$0xff]
      %v386 = vld [vmem:[%s1 + $0x70] sm:$0xff]
      %v387 = vld [vmem:[%s1 + $0x78] sm:$0xff]
      %v388 = vld [vmem:[%s1 + $0x80] sm:$0xff]
      %v389 = vld [vmem:[%s1 + $0x88] sm:$0xff]
      %v390 = vld [vmem:[%s1 + $0x90] sm:$0xff]
      %v391 = vld [vmem:[%s1 + $0x98] sm:$0xff]
      %v392 = vld [vmem:[%s1 + $0xa0] sm:$0xff]
      %v393 = vld [vmem:[%s1 + $0xa8] sm:$0xff]
      %v394 = vld [vmem:[%s1 + $0xb0] sm:$0xff]
      %v395 = vld [vmem:[%s1 + $0xb8] sm:$0xff]
      %v396 = vld [vmem:[%s1 + $0xc0] sm:$0xff]
      %v397 = vld [vmem:[%s1 + $0xc8] sm:$0xff]
      %v398 = vld [vmem:[%s1 + $0xd0] sm:$0xff]
      %v399 = vld [vmem:[%s1 + $0xd8] sm:$0xff]
      %v400 = vld [vmem:[%s1 + $0xe0] sm:$0xff]
      %v401 = vld [vmem:[%s1 + $0xe8] sm:$0xff]
      %v402 = vld [vmem:[%s1 + $0xf0] sm:$0xff]
      %v403 = vld [vmem:[%s1 + $0xf8] sm:$0xff]
      %v404 = vld [vmem:[%s1 + $0x100] sm:$0xff]
      %v405 = vld [vmem:[%s1 + $0x108] sm:$0xff]
      %v406 = vld [vmem:[%s1 + $0x110] sm:$0xff]
      %v407 = vld [vmem:[%s1 + $0x118] sm:$0xff]
      %v408 = vld [vmem:[%s1 + $0x120] sm:$0xff]
      %v409 = vld [vmem:[%s1 + $0x128] sm:$0xff]
      %v410 = vld [vmem:[%s1 + $0x130] sm:$0xff]
      %v411 = vld [vmem:[%s1 + $0x138] sm:$0xff]
      %v412 = vld [vmem:[%s1 + $0x140] sm:$0xff]
      %v413 = vld [vmem:[%s1 + $0x148] sm:$0xff]
      %v414 = vld [vmem:[%s1 + $0x150] sm:$0xff]
      %v415 = vld [vmem:[%s1 + $0x158] sm:$0xff]
      %v416 = vld [vmem:[%s1 + $0x160] sm:$0xff]
      %v417 = vld [vmem:[%s1 + $0x168] sm:$0xff]
      %v418 = vld [vmem:[%s1 + $0x170] sm:$0xff]
      %v419 = vld [vmem:[%s1 + $0x178] sm:$0xff]
      %v420 = vld [vmem:[%s1 + $0x180] sm:$0xff]
      %v421 = vld [vmem:[%s1 + $0x188] sm:$0xff]
      %v422 = vld [vmem:[%s1 + $0x190] sm:$0xff]
      %v423 = vld [vmem:[%s1 + $0x198] sm:$0xff]
      %v424 = vld [vmem:[%s1 + $0x1a0] sm:$0xff]
      %v425 = vld [vmem:[%s1 + $0x1a8] sm:$0xff]
      %v426 = vld [vmem:[%s1 + $0x1b0] sm:$0xff]
      %v427 = vld [vmem:[%s1 + $0x1b8] sm:$0xff]
      %v428 = vld [vmem:[%s1 + $0x1c0] sm:$0xff]
      %v429 = vld [vmem:[%s1 + $0x1c8] sm:$0xff]
      %v430 = vld [vmem:[%s1 + $0x1d0] sm:$0xff]
      %v431 = vld [vmem:[%s1 + $0x1d8] sm:$0xff]
      %v432 = vld [vmem:[%s1 + $0x1e0] sm:$0xff]
      %v433 = vld [vmem:[%s1 + $0x1e8] sm:$0xff]
      %v434 = vld [vmem:[%s1 + $0x1f0] sm:$0xff]
      %v435 = vld [vmem:[%s1 + $0x1f8] sm:$0xff]
      %v436 = vld [vmem:[%s2] sm:$0xff]
      %v437 = vld [vmem:[%s2 + $0x8] sm:$0xff]
      %v438 = vld [vmem:[%s2 + $0x10] sm:$0xff]
      %v439 = vld [vmem:[%s2 + $0x18] sm:$0xff]
      %v440 = vld [vmem:[%s2 + $0x20] sm:$0xff]
      %v441 = vld [vmem:[%s2 + $0x28] sm:$0xff]
      %v442 = vld [vmem:[%s2 + $0x30] sm:$0xff]
      %v443 = vld [vmem:[%s2 + $0x38] sm:$0xff]
      %v444 = vld [vmem:[%s2 + $0x40] sm:$0xff]
      %v445 = vld [vmem:[%s2 + $0x48] sm:$0xff]
      %v446 = vld [vmem:[%s2 + $0x50] sm:$0xff]
      %v447 = vld [vmem:[%s2 + $0x58] sm:$0xff]
      %v448 = vld [vmem:[%s2 + $0x60] sm:$0xff]
      %v449 = vld [vmem:[%s2 + $0x68] sm:$0xff]
      %v450 = vld [vmem:[%s2 + $0x70] sm:$0xff]
      %v451 = vld [vmem:[%s2 + $0x78] sm:$0xff]
      %v452 = vld [vmem:[%s2 + $0x80] sm:$0xff]
      %v453 = vld [vmem:[%s2 + $0x88] sm:$0xff]
      %v454 = vld [vmem:[%s2 + $0x90] sm:$0xff]
      %v455 = vld [vmem:[%s2 + $0x98] sm:$0xff]
      %v456 = vld [vmem:[%s2 + $0xa0] sm:$0xff]
      %v457 = vld [vmem:[%s2 + $0xa8] sm:$0xff]
      %v458 = vld [vmem:[%s2 + $0xb0] sm:$0xff]
      %v459 = vld [vmem:[%s2 + $0xb8] sm:$0xff]
      %v460 = vld [vmem:[%s2 + $0xc0] sm:$0xff]
      %v461 = vld [vmem:[%s2 + $0xc8] sm:$0xff]
      %v462 = vld [vmem:[%s2 + $0xd0] sm:$0xff]
      %v463 = vld [vmem:[%s2 + $0xd8] sm:$0xff]
      %v464 = vld [vmem:[%s2 + $0xe0] sm:$0xff]
      %v465 = vld [vmem:[%s2 + $0xe8] sm:$0xff]
      %v466 = vld [vmem:[%s2 + $0xf0] sm:$0xff]
      %v467 = vld [vmem:[%s2 + $0xf8] sm:$0xff]
      %v468 = vld [vmem:[%s2 + $0x100] sm:$0xff]
      %v469 = vld [vmem:[%s2 + $0x108] sm:$0xff]
      %v470 = vld [vmem:[%s2 + $0x110] sm:$0xff]
      %v471 = vld [vmem:[%s2 + $0x118] sm:$0xff]
      %v472 = vld [vmem:[%s2 + $0x120] sm:$0xff]
      %v473 = vld [vmem:[%s2 + $0x128] sm:$0xff]
      %v474 = vld [vmem:[%s2 + $0x130] sm:$0xff]
      %v475 = vld [vmem:[%s2 + $0x138] sm:$0xff]
      %v476 = vld [vmem:[%s2 + $0x140] sm:$0xff]
      %v477 = vld [vmem:[%s2 + $0x148] sm:$0xff]
      %v478 = vld [vmem:[%s2 + $0x150] sm:$0xff]
      %v479 = vld [vmem:[%s2 + $0x158] sm:$0xff]
      %v480 = vld [vmem:[%s2 + $0x160] sm:$0xff]
      %v481 = vld [vmem:[%s2 + $0x168] sm:$0xff]
      %v482 = vld [vmem:[%s2 + $0x170] sm:$0xff]
      %v483 = vld [vmem:[%s2 + $0x178] sm:$0xff]
      %v484 = vld [vmem:[%s2 + $0x180] sm:$0xff]
      %v485 = vld [vmem:[%s2 + $0x188] sm:$0xff]
      %v486 = vld [vmem:[%s2 + $0x190] sm:$0xff]
      %v487 = vld [vmem:[%s2 + $0x198] sm:$0xff]
      %v488 = vld [vmem:[%s2 + $0x1a0] sm:$0xff]
      %v489 = vld [vmem:[%s2 + $0x1a8] sm:$0xff]
      %v490 = vld [vmem:[%s2 + $0x1b0] sm:$0xff]
      %v491 = vld [vmem:[%s2 + $0x1b8] sm:$0xff]
      %v492 = vld [vmem:[%s2 + $0x1c0] sm:$0xff]
      %v493 = vld [vmem:[%s2 + $0x1c8] sm:$0xff]
      %v494 = vld [vmem:[%s2 + $0x1d0] sm:$0xff]
      %v495 = vld [vmem:[%s2 + $0x1d8] sm:$0xff]
      %v496 = vld [vmem:[%s2 + $0x1e0] sm:$0xff]
      %v497 = vld [vmem:[%s2 + $0x1e8] sm:$0xff]
      %v498 = vld [vmem:[%s2 + $0x1f0] sm:$0xff]
      %v499 = vld [vmem:[%s2 + $0x1f8] sm:$0xff]
      %501 = vset.pattern.permute.xlu0 0
      %502 = vperm.xlu0 %501, %v436
      %v503 = vpop.permute.xlu0 %502
      %506 = vset.pattern.permute.xlu0 0
      %507 = vperm.xlu0 %506, %v437
      %v508 = vpop.permute.xlu0 %507
      %511 = vset.pattern.permute.xlu0 0
      %512 = vperm.xlu0 %511, %v438
      %v513 = vpop.permute.xlu0 %512
      %516 = vset.pattern.permute.xlu0 0
      %517 = vperm.xlu0 %516, %v439
      %v518 = vpop.permute.xlu0 %517
      %520 = vset.pattern.permute.xlu0 0
      %521 = vperm.xlu0 %520, %v440
      %v522 = vpop.permute.xlu0 %521
      %524 = vset.pattern.permute.xlu0 0
      %525 = vperm.xlu0 %524, %v441
      %v526 = vpop.permute.xlu0 %525
      %528 = vset.pattern.permute.xlu0 0
      %529 = vperm.xlu0 %528, %v442
      %v530 = vpop.permute.xlu0 %529
      %532 = vset.pattern.permute.xlu0 0
      %533 = vperm.xlu0 %532, %v443
      %v534 = vpop.permute.xlu0 %533
      %536 = vset.pattern.permute.xlu0 0
      %537 = vperm.xlu0 %536, %v444
      %v538 = vpop.permute.xlu0 %537
      %540 = vset.pattern.permute.xlu0 0
      %541 = vperm.xlu0 %540, %v445
      %v542 = vpop.permute.xlu0 %541
      %544 = vset.pattern.permute.xlu0 0
      %545 = vperm.xlu0 %544, %v446
      %v546 = vpop.permute.xlu0 %545
      %548 = vset.pattern.permute.xlu0 0
      %549 = vperm.xlu0 %548, %v447
      %v550 = vpop.permute.xlu0 %549
      %552 = vset.pattern.permute.xlu0 0
      %553 = vperm.xlu0 %552, %v448
      %v554 = vpop.permute.xlu0 %553
      %556 = vset.pattern.permute.xlu0 0
      %557 = vperm.xlu0 %556, %v449
      %v558 = vpop.permute.xlu0 %557
      %560 = vset.pattern.permute.xlu0 0
      %561 = vperm.xlu0 %560, %v450
      %v562 = vpop.permute.xlu0 %561
      %564 = vset.pattern.permute.xlu0 0
      %565 = vperm.xlu0 %564, %v451
      %v566 = vpop.permute.xlu0 %565
      %568 = vset.pattern.permute.xlu0 0
      %569 = vperm.xlu0 %568, %v452
      %v570 = vpop.permute.xlu0 %569
      %573 = vset.pattern.permute.xlu0 0
      %574 = vperm.xlu0 %573, %v453
      %v575 = vpop.permute.xlu0 %574
      %578 = vset.pattern.permute.xlu0 0
      %579 = vperm.xlu0 %578, %v454
      %v580 = vpop.permute.xlu0 %579
      %583 = vset.pattern.permute.xlu0 0
      %584 = vperm.xlu0 %583, %v455
      %v585 = vpop.permute.xlu0 %584
      %587 = vset.pattern.permute.xlu0 0
      %588 = vperm.xlu0 %587, %v456
      %v589 = vpop.permute.xlu0 %588
      %591 = vset.pattern.permute.xlu0 0
      %592 = vperm.xlu0 %591, %v457
      %v593 = vpop.permute.xlu0 %592
      %595 = vset.pattern.permute.xlu0 0
      %596 = vperm.xlu0 %595, %v458
      %v597 = vpop.permute.xlu0 %596
      %599 = vset.pattern.permute.xlu0 0
      %600 = vperm.xlu0 %599, %v459
      %v601 = vpop.permute.xlu0 %600
      %603 = vset.pattern.permute.xlu0 0
      %604 = vperm.xlu0 %603, %v460
      %v605 = vpop.permute.xlu0 %604
      %607 = vset.pattern.permute.xlu0 0
      %608 = vperm.xlu0 %607, %v461
      %v609 = vpop.permute.xlu0 %608
      %611 = vset.pattern.permute.xlu0 0
      %612 = vperm.xlu0 %611, %v462
      %v613 = vpop.permute.xlu0 %612
      %615 = vset.pattern.permute.xlu0 0
      %616 = vperm.xlu0 %615, %v463
      %v617 = vpop.permute.xlu0 %616
      %619 = vset.pattern.permute.xlu0 0
      %620 = vperm.xlu0 %619, %v464
      %v621 = vpop.permute.xlu0 %620
      %623 = vset.pattern.permute.xlu0 0
      %624 = vperm.xlu0 %623, %v465
      %v625 = vpop.permute.xlu0 %624
      %627 = vset.pattern.permute.xlu0 0
      %628 = vperm.xlu0 %627, %v466
      %v629 = vpop.permute.xlu0 %628
      %631 = vset.pattern.permute.xlu0 0
      %632 = vperm.xlu0 %631, %v467
      %v633 = vpop.permute.xlu0 %632
      %635 = vset.pattern.permute.xlu0 0
      %636 = vperm.xlu0 %635, %v468
      %v637 = vpop.permute.xlu0 %636
      %640 = vset.pattern.permute.xlu0 0
      %641 = vperm.xlu0 %640, %v469
      %v642 = vpop.permute.xlu0 %641
      %645 = vset.pattern.permute.xlu0 0
      %646 = vperm.xlu0 %645, %v470
      %v647 = vpop.permute.xlu0 %646
      %650 = vset.pattern.permute.xlu0 0
      %651 = vperm.xlu0 %650, %v471
      %v652 = vpop.permute.xlu0 %651
      %654 = vset.pattern.permute.xlu0 0
      %655 = vperm.xlu0 %654, %v472
      %v656 = vpop.permute.xlu0 %655
      %658 = vset.pattern.permute.xlu0 0
      %659 = vperm.xlu0 %658, %v473
      %v660 = vpop.permute.xlu0 %659
      %662 = vset.pattern.permute.xlu0 0
      %663 = vperm.xlu0 %662, %v474
      %v664 = vpop.permute.xlu0 %663
      %666 = vset.pattern.permute.xlu0 0
      %667 = vperm.xlu0 %666, %v475
      %v668 = vpop.permute.xlu0 %667
      %670 = vset.pattern.permute.xlu0 0
      %671 = vperm.xlu0 %670, %v476
      %v672 = vpop.permute.xlu0 %671
      %674 = vset.pattern.permute.xlu0 0
      %675 = vperm.xlu0 %674, %v477
      %v676 = vpop.permute.xlu0 %675
      %678 = vset.pattern.permute.xlu0 0
      %679 = vperm.xlu0 %678, %v478
      %v680 = vpop.permute.xlu0 %679
      %682 = vset.pattern.permute.xlu0 0
      %683 = vperm.xlu0 %682, %v479
      %v684 = vpop.permute.xlu0 %683
      %686 = vset.pattern.permute.xlu0 0
      %687 = vperm.xlu0 %686, %v480
      %v688 = vpop.permute.xlu0 %687
      %690 = vset.pattern.permute.xlu0 0
      %691 = vperm.xlu0 %690, %v481
      %v692 = vpop.permute.xlu0 %691
      %694 = vset.pattern.permute.xlu0 0
      %695 = vperm.xlu0 %694, %v482
      %v696 = vpop.permute.xlu0 %695
      %698 = vset.pattern.permute.xlu0 0
      %699 = vperm.xlu0 %698, %v483
      %v700 = vpop.permute.xlu0 %699
      %702 = vset.pattern.permute.xlu0 0
      %703 = vperm.xlu0 %702, %v484
      %v704 = vpop.permute.xlu0 %703
      %707 = vset.pattern.permute.xlu0 0
      %708 = vperm.xlu0 %707, %v485
      %v709 = vpop.permute.xlu0 %708
      %712 = vset.pattern.permute.xlu0 0
      %713 = vperm.xlu0 %712, %v486
      %v714 = vpop.permute.xlu0 %713
      %717 = vset.pattern.permute.xlu0 0
      %718 = vperm.xlu0 %717, %v487
      %v719 = vpop.permute.xlu0 %718
      %721 = vset.pattern.permute.xlu0 0
      %722 = vperm.xlu0 %721, %v488
      %v723 = vpop.permute.xlu0 %722
      %725 = vset.pattern.permute.xlu0 0
      %726 = vperm.xlu0 %725, %v489
      %v727 = vpop.permute.xlu0 %726
      %729 = vset.pattern.permute.xlu0 0
      %730 = vperm.xlu0 %729, %v490
      %v731 = vpop.permute.xlu0 %730
      %733 = vset.pattern.permute.xlu0 0
      %734 = vperm.xlu0 %733, %v491
      %v735 = vpop.permute.xlu0 %734
      %737 = vset.pattern.permute.xlu0 0
      %738 = vperm.xlu0 %737, %v492
      %v739 = vpop.permute.xlu0 %738
      %741 = vset.pattern.permute.xlu0 0
      %742 = vperm.xlu0 %741, %v493
      %v743 = vpop.permute.xlu0 %742
      %745 = vset.pattern.permute.xlu0 0
      %746 = vperm.xlu0 %745, %v494
      %v747 = vpop.permute.xlu0 %746
      %749 = vset.pattern.permute.xlu0 0
      %750 = vperm.xlu0 %749, %v495
      %v751 = vpop.permute.xlu0 %750
      %753 = vset.pattern.permute.xlu0 0
      %754 = vperm.xlu0 %753, %v496
      %v755 = vpop.permute.xlu0 %754
      %757 = vset.pattern.permute.xlu0 0
      %758 = vperm.xlu0 %757, %v497
      %v759 = vpop.permute.xlu0 %758
      %761 = vset.pattern.permute.xlu0 0
      %762 = vperm.xlu0 %761, %v498
      %v763 = vpop.permute.xlu0 %762
      %765 = vset.pattern.permute.xlu0 0
      %766 = vperm.xlu0 %765, %v499
      %v767 = vpop.permute.xlu0 %766
      %vm768 = vcmask 171008
      %v770 = vsel %vm768, %v372, 0
      %v773 = vsel %vm768, %v373, 0
      %v776 = vsel %vm768, %v374, 0
      %v779 = vsel %vm768, %v375, 0
      %v782 = vsel %vm768, %v376, 0
      %v785 = vsel %vm768, %v377, 0
      %v788 = vsel %vm768, %v378, 0
      %v791 = vsel %vm768, %v379, 0
      %v794 = vsel %vm768, %v380, 0
      %v797 = vsel %vm768, %v381, 0
      %v800 = vsel %vm768, %v382, 0
      %v803 = vsel %vm768, %v383, 0
      %v806 = vsel %vm768, %v384, 0
      %v809 = vsel %vm768, %v385, 0
      %v812 = vsel %vm768, %v386, 0
      %v815 = vsel %vm768, %v387, 0
      %v818 = vsel %vm768, %v388, 0
      %v821 = vsel %vm768, %v389, 0
      %v824 = vsel %vm768, %v390, 0
      %v827 = vsel %vm768, %v391, 0
      %v830 = vsel %vm768, %v392, 0
      %v833 = vsel %vm768, %v393, 0
      %v836 = vsel %vm768, %v394, 0
      %v839 = vsel %vm768, %v395, 0
      %v842 = vsel %vm768, %v396, 0
      %v845 = vsel %vm768, %v397, 0
      %v848 = vsel %vm768, %v398, 0
      %v851 = vsel %vm768, %v399, 0
      %v854 = vsel %vm768, %v400, 0
      %v857 = vsel %vm768, %v401, 0
      %v860 = vsel %vm768, %v402, 0
      %v863 = vsel %vm768, %v403, 0
      %v866 = vsel %vm768, %v404, 0
      %v869 = vsel %vm768, %v405, 0
      %v872 = vsel %vm768, %v406, 0
      %v875 = vsel %vm768, %v407, 0
      %v878 = vsel %vm768, %v408, 0
      %v881 = vsel %vm768, %v409, 0
      %v884 = vsel %vm768, %v410, 0
      %v887 = vsel %vm768, %v411, 0
      %v890 = vsel %vm768, %v412, 0
      %v893 = vsel %vm768, %v413, 0
      %v896 = vsel %vm768, %v414, 0
      %v899 = vsel %vm768, %v415, 0
      %v902 = vsel %vm768, %v416, 0
      %v905 = vsel %vm768, %v417, 0
      %v908 = vsel %vm768, %v418, 0
      %v911 = vsel %vm768, %v419, 0
      %v914 = vsel %vm768, %v420, 0
      %v917 = vsel %vm768, %v421, 0
      %v920 = vsel %vm768, %v422, 0
      %v923 = vsel %vm768, %v423, 0
      %v926 = vsel %vm768, %v424, 0
      %v929 = vsel %vm768, %v425, 0
      %v932 = vsel %vm768, %v426, 0
      %v935 = vsel %vm768, %v427, 0
      %v938 = vsel %vm768, %v428, 0
      %v941 = vsel %vm768, %v429, 0
      %v944 = vsel %vm768, %v430, 0
      %v947 = vsel %vm768, %v431, 0
      %v950 = vsel %vm768, %v432, 0
      %v953 = vsel %vm768, %v433, 0
      %v956 = vsel %vm768, %v434, 0
      %v959 = vsel %vm768, %v435, 0
      %v962 = vsel %vm304, %v371, 0
      %964 = vmatprep.subr.mxu0 0.0
      %965 = vmatpush1.msra.mxu0 0.0
      %966 = vmatprep.subr.mxu0 0.0
      %967 = vmatpush1.msra.mxu0 0.0
      %968 = vmatprep.subr.mxu0 0.0
      %969 = vmatpush1.msra.mxu0 0.0
      %970 = vmatprep.subr.mxu0 0.0
      %971 = vmatpush1.msra.mxu0 0.0
      %972 = vmatprep.subr.mxu0 0.0
      %973 = vmatpush1.msra.mxu0 0.0
      %974 = vmatprep.subr.mxu0 0.0
      %975 = vmatpush1.msra.mxu0 0.0
      %976 = vmatprep.subr.mxu0 0.0
      %977 = vmatpush1.msra.mxu0 0.0
      %978 = vmatprep.subr.mxu0 0.0
      %979 = vmatpush1.msra.mxu0 0.0
      %980 = vmatprep.subr.mxu0 0.0
      %981 = vmatpush1.msra.mxu0 0.0
      %982 = vmatprep.subr.mxu0 0.0
      %983 = vmatpush1.msra.mxu0 0.0
      %984 = vmatprep.subr.mxu0 0.0
      %985 = vmatpush1.msra.mxu0 0.0
      %986 = vmatprep.subr.mxu0 0.0
      %987 = vmatpush1.msra.mxu0 0.0
      %988 = vmatprep.subr.mxu0 0.0
      %989 = vmatpush1.msra.mxu0 0.0
      %990 = vmatprep.subr.mxu0 0.0
      %991 = vmatpush1.msra.mxu0 %v962
      %992 = vmatprep.subr.mxu0 0.0
      %993 = vmatpush1.msra.mxu0 %v370
      %994 = vmatprep.subr.mxu0 0.0
      %995 = vmatpush1.msra.mxu0 %v369
      %996 = vmatprep.subr.mxu0 0.0
      %997 = vmatpush2.msra.mxu0 0.0
      %998 = vmatprep.subr.mxu0 0.0
      %999 = vmatpush2.msra.mxu0 0.0
      %1000 = vmatprep.subr.mxu0 0.0
      %1001 = vmatpush2.msra.mxu0 0.0
      %1002 = vmatprep.subr.mxu0 0.0
      %1003 = vmatpush2.msra.mxu0 0.0
      %1004 = vmatprep.subr.mxu0 0.0
      %1005 = vmatpush2.msra.mxu0 0.0
      %1006 = vmatprep.subr.mxu0 0.0
      %1007 = vmatpush2.msra.mxu0 0.0
      %1008 = vmatprep.subr.mxu0 0.0
      %1009 = vmatpush2.msra.mxu0 0.0
      %1010 = vmatprep.subr.mxu0 0.0
      %1011 = vmatpush2.msra.mxu0 0.0
      %1012 = vmatprep.subr.mxu0 0.0
      %1013 = vmatpush2.msra.mxu0 0.0
      %1014 = vmatprep.subr.mxu0 0.0
      %1015 = vmatpush2.msra.mxu0 0.0
      %1016 = vmatprep.subr.mxu0 0.0
      %1017 = vmatpush2.msra.mxu0 0.0
      %1018 = vmatprep.subr.mxu0 0.0
      %1019 = vmatpush2.msra.mxu0 0.0
      %1020 = vmatprep.subr.mxu0 0.0
      %1021 = vmatpush2.msra.mxu0 0.0
      %1022 = vmatprep.subr.mxu0 0.0
      %1023 = vmatpush2.msra.mxu0 0.0
      %1024 = vmatprep.subr.mxu0 0.0
      %1025 = vmatpush2.msra.mxu0 0.0
      %1026 = vmatprep.subr.mxu0 0.0
      %1027 = vmatpush2.msra.mxu0 0.0
      %1028 = vmatprep.mubr.f32.mxu0 0.0
      %1029 = vmatmul.mubr.f32.gmra.mxu0 %v770
      %v1030 = vpop.f32.mrf.mxu0
      %v1031 = vadd.f32 %v503, %v1030
      %v1032 = vpop.f32.mrf.mxu0
      %1033 = vmatprep.mubr.f32.mxu0 0.0
      %1034 = vmatmul.mubr.f32.gmra.mxu0 %v773
      %v1035 = vpop.f32.mrf.mxu0
      %v1036 = vadd.f32 %v508, %v1035
      %v1037 = vpop.f32.mrf.mxu0
      %1038 = vmatprep.mubr.f32.mxu0 0.0
      %1039 = vmatmul.mubr.f32.gmra.mxu0 %v776
      %v1040 = vpop.f32.mrf.mxu0
      %v1041 = vadd.f32 %v513, %v1040
      %v1042 = vpop.f32.mrf.mxu0
      %1043 = vmatprep.mubr.f32.mxu0 0.0
      %1044 = vmatmul.mubr.f32.gmra.mxu0 %v779
      %v1045 = vpop.f32.mrf.mxu0
      %v1046 = vpop.f32.mrf.mxu0
      %1047 = vmatprep.mubr.f32.mxu0 0.0
      %1048 = vmatmul.mubr.f32.gmra.mxu0 %v782
      %v1049 = vpop.f32.mrf.mxu0
      %v1050 = vpop.f32.mrf.mxu0
      %1051 = vmatprep.mubr.f32.mxu0 0.0
      %1052 = vmatmul.mubr.f32.gmra.mxu0 %v785
      %v1053 = vpop.f32.mrf.mxu0
      %v1054 = vpop.f32.mrf.mxu0
      %1055 = vmatprep.mubr.f32.mxu0 0.0
      %1056 = vmatmul.mubr.f32.gmra.mxu0 %v788
      %v1057 = vpop.f32.mrf.mxu0
      %v1058 = vpop.f32.mrf.mxu0
      %1059 = vmatprep.mubr.f32.mxu0 0.0
      %1060 = vmatmul.mubr.f32.gmra.mxu0 %v791
      %v1061 = vpop.f32.mrf.mxu0
      %v1062 = vpop.f32.mrf.mxu0
      %1063 = vmatprep.mubr.f32.mxu0 0.0
      %1064 = vmatmul.mubr.f32.gmra.mxu0 %v794
      %v1065 = vpop.f32.mrf.mxu0
      %v1066 = vpop.f32.mrf.mxu0
      %1067 = vmatprep.mubr.f32.mxu0 0.0
      %1068 = vmatmul.mubr.f32.gmra.mxu0 %v797
      %v1069 = vpop.f32.mrf.mxu0
      %v1070 = vpop.f32.mrf.mxu0
      %1071 = vmatprep.mubr.f32.mxu0 0.0
      %1072 = vmatmul.mubr.f32.gmra.mxu0 %v800
      %v1073 = vpop.f32.mrf.mxu0
      %v1074 = vpop.f32.mrf.mxu0
      %1075 = vmatprep.mubr.f32.mxu0 0.0
      %1076 = vmatmul.mubr.f32.gmra.mxu0 %v803
      %v1077 = vpop.f32.mrf.mxu0
      %v1078 = vpop.f32.mrf.mxu0
      %1079 = vmatprep.mubr.f32.mxu0 0.0
      %1080 = vmatmul.mubr.f32.gmra.mxu0 %v806
      %v1081 = vpop.f32.mrf.mxu0
      %v1082 = vpop.f32.mrf.mxu0
      %1083 = vmatprep.mubr.f32.mxu0 0.0
      %1084 = vmatmul.mubr.f32.gmra.mxu0 %v809
      %v1085 = vpop.f32.mrf.mxu0
      %v1086 = vpop.f32.mrf.mxu0
      %1087 = vmatprep.mubr.f32.mxu0 0.0
      %1088 = vmatmul.mubr.f32.gmra.mxu0 %v812
      %v1089 = vpop.f32.mrf.mxu0
      %v1090 = vpop.f32.mrf.mxu0
      %1091 = vmatprep.mubr.f32.mxu0 0.0
      %1092 = vmatmul.mubr.f32.gmra.mxu0 %v815
      %v1093 = vpop.f32.mrf.mxu0
      %v1094 = vpop.f32.mrf.mxu0
      %1095 = vmatprep.mubr.f32.mxu0 0.0
      %1096 = vmatmul.mubr.f32.gmra.mxu0 %v818
      %v1097 = vpop.f32.mrf.mxu0
      %v1098 = vadd.f32 %v570, %v1097
      %v1099 = vpop.f32.mrf.mxu0
      %1100 = vmatprep.mubr.f32.mxu0 0.0
      %1101 = vmatmul.mubr.f32.gmra.mxu0 %v821
      %v1102 = vpop.f32.mrf.mxu0
      %v1103 = vadd.f32 %v575, %v1102
      %v1104 = vpop.f32.mrf.mxu0
      %1105 = vmatprep.mubr.f32.mxu0 0.0
      %1106 = vmatmul.mubr.f32.gmra.mxu0 %v824
      %v1107 = vpop.f32.mrf.mxu0
      %v1108 = vadd.f32 %v580, %v1107
      %v1109 = vpop.f32.mrf.mxu0
      %1110 = vmatprep.mubr.f32.mxu0 0.0
      %1111 = vmatmul.mubr.f32.gmra.mxu0 %v827
      %v1112 = vpop.f32.mrf.mxu0
      %v1113 = vpop.f32.mrf.mxu0
      %1114 = vmatprep.mubr.f32.mxu0 0.0
      %1115 = vmatmul.mubr.f32.gmra.mxu0 %v830
      %v1116 = vpop.f32.mrf.mxu0
      %v1117 = vpop.f32.mrf.mxu0
      %1118 = vmatprep.mubr.f32.mxu0 0.0
      %1119 = vmatmul.mubr.f32.gmra.mxu0 %v833
      %v1120 = vpop.f32.mrf.mxu0
      %v1121 = vpop.f32.mrf.mxu0
      %1122 = vmatprep.mubr.f32.mxu0 0.0
      %1123 = vmatmul.mubr.f32.gmra.mxu0 %v836
      %v1124 = vpop.f32.mrf.mxu0
      %v1125 = vpop.f32.mrf.mxu0
      %1126 = vmatprep.mubr.f32.mxu0 0.0
      %1127 = vmatmul.mubr.f32.gmra.mxu0 %v839
      %v1128 = vpop.f32.mrf.mxu0
      %v1129 = vpop.f32.mrf.mxu0
      %1130 = vmatprep.mubr.f32.mxu0 0.0
      %1131 = vmatmul.mubr.f32.gmra.mxu0 %v842
      %v1132 = vpop.f32.mrf.mxu0
      %v1133 = vpop.f32.mrf.mxu0
      %1134 = vmatprep.mubr.f32.mxu0 0.0
      %1135 = vmatmul.mubr.f32.gmra.mxu0 %v845
      %v1136 = vpop.f32.mrf.mxu0
      %v1137 = vpop.f32.mrf.mxu0
      %1138 = vmatprep.mubr.f32.mxu0 0.0
      %1139 = vmatmul.mubr.f32.gmra.mxu0 %v848
      %v1140 = vpop.f32.mrf.mxu0
      %v1141 = vpop.f32.mrf.mxu0
      %1142 = vmatprep.mubr.f32.mxu0 0.0
      %1143 = vmatmul.mubr.f32.gmra.mxu0 %v851
      %v1144 = vpop.f32.mrf.mxu0
      %v1145 = vpop.f32.mrf.mxu0
      %1146 = vmatprep.mubr.f32.mxu0 0.0
      %1147 = vmatmul.mubr.f32.gmra.mxu0 %v854
      %v1148 = vpop.f32.mrf.mxu0
      %v1149 = vpop.f32.mrf.mxu0
      %1150 = vmatprep.mubr.f32.mxu0 0.0
      %1151 = vmatmul.mubr.f32.gmra.mxu0 %v857
      %v1152 = vpop.f32.mrf.mxu0
      %v1153 = vpop.f32.mrf.mxu0
      %1154 = vmatprep.mubr.f32.mxu0 0.0
      %1155 = vmatmul.mubr.f32.gmra.mxu0 %v860
      %v1156 = vpop.f32.mrf.mxu0
      %v1157 = vpop.f32.mrf.mxu0
      %1158 = vmatprep.mubr.f32.mxu0 0.0
      %1159 = vmatmul.mubr.f32.gmra.mxu0 %v863
      %v1160 = vpop.f32.mrf.mxu0
      %v1161 = vpop.f32.mrf.mxu0
      %1162 = vmatprep.mubr.f32.mxu0 0.0
      %1163 = vmatmul.mubr.f32.gmra.mxu0 %v866
      %v1164 = vpop.f32.mrf.mxu0
      %v1165 = vadd.f32 %v637, %v1164
      %v1166 = vpop.f32.mrf.mxu0
      %1167 = vmatprep.mubr.f32.mxu0 0.0
      %1168 = vmatmul.mubr.f32.gmra.mxu0 %v869
      %v1169 = vpop.f32.mrf.mxu0
      %v1170 = vadd.f32 %v642, %v1169
      %v1171 = vpop.f32.mrf.mxu0
      %1172 = vmatprep.mubr.f32.mxu0 0.0
      %1173 = vmatmul.mubr.f32.gmra.mxu0 %v872
      %v1174 = vpop.f32.mrf.mxu0
      %v1175 = vadd.f32 %v647, %v1174
      %v1176 = vpop.f32.mrf.mxu0
      %1177 = vmatprep.mubr.f32.mxu0 0.0
      %1178 = vmatmul.mubr.f32.gmra.mxu0 %v875
      %v1179 = vpop.f32.mrf.mxu0
      %v1180 = vpop.f32.mrf.mxu0
      %1181 = vmatprep.mubr.f32.mxu0 0.0
      %1182 = vmatmul.mubr.f32.gmra.mxu0 %v878
      %v1183 = vpop.f32.mrf.mxu0
      %v1184 = vpop.f32.mrf.mxu0
      %1185 = vmatprep.mubr.f32.mxu0 0.0
      %1186 = vmatmul.mubr.f32.gmra.mxu0 %v881
      %v1187 = vpop.f32.mrf.mxu0
      %v1188 = vpop.f32.mrf.mxu0
      %1189 = vmatprep.mubr.f32.mxu0 0.0
      %1190 = vmatmul.mubr.f32.gmra.mxu0 %v884
      %v1191 = vpop.f32.mrf.mxu0
      %v1192 = vpop.f32.mrf.mxu0
      %1193 = vmatprep.mubr.f32.mxu0 0.0
      %1194 = vmatmul.mubr.f32.gmra.mxu0 %v887
      %v1195 = vpop.f32.mrf.mxu0
      %v1196 = vpop.f32.mrf.mxu0
      %1197 = vmatprep.mubr.f32.mxu0 0.0
      %1198 = vmatmul.mubr.f32.gmra.mxu0 %v890
      %v1199 = vpop.f32.mrf.mxu0
      %v1200 = vpop.f32.mrf.mxu0
      %1201 = vmatprep.mubr.f32.mxu0 0.0
      %1202 = vmatmul.mubr.f32.gmra.mxu0 %v893
      %v1203 = vpop.f32.mrf.mxu0
      %v1204 = vpop.f32.mrf.mxu0
      %1205 = vmatprep.mubr.f32.mxu0 0.0
      %1206 = vmatmul.mubr.f32.gmra.mxu0 %v896
      %v1207 = vpop.f32.mrf.mxu0
      %v1208 = vpop.f32.mrf.mxu0
      %1209 = vmatprep.mubr.f32.mxu0 0.0
      %1210 = vmatmul.mubr.f32.gmra.mxu0 %v899
      %v1211 = vpop.f32.mrf.mxu0
      %v1212 = vpop.f32.mrf.mxu0
      %1213 = vmatprep.mubr.f32.mxu0 0.0
      %1214 = vmatmul.mubr.f32.gmra.mxu0 %v902
      %v1215 = vpop.f32.mrf.mxu0
      %v1216 = vpop.f32.mrf.mxu0
      %1217 = vmatprep.mubr.f32.mxu0 0.0
      %1218 = vmatmul.mubr.f32.gmra.mxu0 %v905
      %v1219 = vpop.f32.mrf.mxu0
      %v1220 = vpop.f32.mrf.mxu0
      %1221 = vmatprep.mubr.f32.mxu0 0.0
      %1222 = vmatmul.mubr.f32.gmra.mxu0 %v908
      %v1223 = vpop.f32.mrf.mxu0
      %v1224 = vpop.f32.mrf.mxu0
      %1225 = vmatprep.mubr.f32.mxu0 0.0
      %1226 = vmatmul.mubr.f32.gmra.mxu0 %v911
      %v1227 = vpop.f32.mrf.mxu0
      %v1228 = vpop.f32.mrf.mxu0
      %1229 = vmatprep.mubr.f32.mxu0 0.0
      %1230 = vmatmul.mubr.f32.gmra.mxu0 %v914
      %v1231 = vpop.f32.mrf.mxu0
      %v1232 = vadd.f32 %v704, %v1231
      %v1233 = vpop.f32.mrf.mxu0
      %1234 = vmatprep.mubr.f32.mxu0 0.0
      %1235 = vmatmul.mubr.f32.gmra.mxu0 %v917
      %v1236 = vpop.f32.mrf.mxu0
      %v1237 = vadd.f32 %v709, %v1236
      %v1238 = vpop.f32.mrf.mxu0
      %1239 = vmatprep.mubr.f32.mxu0 0.0
      %1240 = vmatmul.mubr.f32.gmra.mxu0 %v920
      %v1241 = vpop.f32.mrf.mxu0
      %v1242 = vadd.f32 %v714, %v1241
      %v1243 = vpop.f32.mrf.mxu0
      %1244 = vmatprep.mubr.f32.mxu0 0.0
      %1245 = vmatmul.mubr.f32.gmra.mxu0 %v923
      %v1246 = vpop.f32.mrf.mxu0
      %v1247 = vpop.f32.mrf.mxu0
      %1248 = vmatprep.mubr.f32.mxu0 0.0
      %1249 = vmatmul.mubr.f32.gmra.mxu0 %v926
      %v1250 = vpop.f32.mrf.mxu0
      %v1251 = vpop.f32.mrf.mxu0
      %1252 = vmatprep.mubr.f32.mxu0 0.0
      %1253 = vmatmul.mubr.f32.gmra.mxu0 %v929
      %v1254 = vpop.f32.mrf.mxu0
      %v1255 = vpop.f32.mrf.mxu0
      %1256 = vmatprep.mubr.f32.mxu0 0.0
      %1257 = vmatmul.mubr.f32.gmra.mxu0 %v932
      %v1258 = vpop.f32.mrf.mxu0
      %v1259 = vpop.f32.mrf.mxu0
      %1260 = vmatprep.mubr.f32.mxu0 0.0
      %1261 = vmatmul.mubr.f32.gmra.mxu0 %v935
      %v1262 = vpop.f32.mrf.mxu0
      %v1263 = vpop.f32.mrf.mxu0
      %1264 = vmatprep.mubr.f32.mxu0 0.0
      %1265 = vmatmul.mubr.f32.gmra.mxu0 %v938
      %v1266 = vpop.f32.mrf.mxu0
      %v1267 = vpop.f32.mrf.mxu0
      %1268 = vmatprep.mubr.f32.mxu0 0.0
      %1269 = vmatmul.mubr.f32.gmra.mxu0 %v941
      %v1270 = vpop.f32.mrf.mxu0
      %v1271 = vpop.f32.mrf.mxu0
      %1272 = vmatprep.mubr.f32.mxu0 0.0
      %1273 = vmatmul.mubr.f32.gmra.mxu0 %v944
      %v1274 = vpop.f32.mrf.mxu0
      %v1275 = vpop.f32.mrf.mxu0
      %1276 = vmatprep.mubr.f32.mxu0 0.0
      %1277 = vmatmul.mubr.f32.gmra.mxu0 %v947
      %v1278 = vpop.f32.mrf.mxu0
      %v1279 = vpop.f32.mrf.mxu0
      %1280 = vmatprep.mubr.f32.mxu0 0.0
      %1281 = vmatmul.mubr.f32.gmra.mxu0 %v950
      %v1282 = vpop.f32.mrf.mxu0
      %v1283 = vpop.f32.mrf.mxu0
      %1284 = vmatprep.mubr.f32.mxu0 0.0
      %1285 = vmatmul.mubr.f32.gmra.mxu0 %v953
      %v1286 = vpop.f32.mrf.mxu0
      %v1287 = vpop.f32.mrf.mxu0
      %1288 = vmatprep.mubr.f32.mxu0 0.0
      %1289 = vmatmul.mubr.f32.gmra.mxu0 %v956
      %v1290 = vpop.f32.mrf.mxu0
      %v1291 = vpop.f32.mrf.mxu0
      %1292 = vmatprep.mubr.f32.mxu0 0.0
      %1293 = vmatmul.mubr.f32.gmra.mxu0 %v959
      %v1294 = vpop.f32.mrf.mxu0
      %v1295 = vpop.f32.mrf.mxu0
      %1296 = vdwg.mxu0
      %v1297 = vxor.u32 %v369, 2147483648
      %v1298 = vxor.u32 %v370, 2147483648
      %v1299 = vxor.u32 %v371, 2147483648
      %v1300 = vmul.f32 %v1297, 1.442695
      %v1301 = vpow.pop %v1300
      %v1302 = vmul.f32 %v1298, 1.442695
      %v1303 = vpow.pop %v1302
      %v1304 = vmul.f32 %v1299, 1.442695
      %v1305 = vpow.pop %v1304
      %v1306 = vadd.f32 %v1301, 1.0
      %v1307 = vadd.f32 %v1303, 1.0
      %v1308 = vadd.f32 %v1305, 1.0
      %v1309 = vrcp.pop %v1306
      %v1310 = vmul.f32 1.0, %v1309
      %v1311 = vrcp.pop %v1307
      %v1312 = vmul.f32 1.0, %v1311
      %v1313 = vrcp.pop %v1308
      %v1314 = vmul.f32 1.0, %v1313
      %v1315 = vadd.f32 %v1165, %v279
      %v1316 = vadd.f32 %v1170, %v280
      %v1317 = vadd.f32 %v1175, %v281
      %v1318 = vxor.u32 %v1315, 2147483648
      %v1319 = vxor.u32 %v1316, 2147483648
      %v1320 = vxor.u32 %v1317, 2147483648
      %v1321 = vmul.f32 %v1318, 1.442695
      %v1322 = vpow.pop %v1321
      %v1323 = vmul.f32 %v1319, 1.442695
      %v1324 = vpow.pop %v1323
      %v1325 = vmul.f32 %v1320, 1.442695
      %v1326 = vpow.pop %v1325
      %v1327 = vadd.f32 %v1322, 1.0
      %v1328 = vadd.f32 %v1324, 1.0
      %v1329 = vadd.f32 %v1326, 1.0
      %v1330 = vrcp.pop %v1327
      %v1331 = vmul.f32 1.0, %v1330
      %v1332 = vrcp.pop %v1328
      %v1333 = vmul.f32 1.0, %v1332
      %v1334 = vrcp.pop %v1329
      %v1335 = vmul.f32 1.0, %v1334
      %v1336 = vmul.f32 %v1331, %v283
      %v1337 = vmul.f32 %v1333, %v284
      %v1338 = vmul.f32 %v1335, %v285
      %v1339 = vmul.f32 %v1331, %v1031
      %v1340 = vmul.f32 %v1333, %v1036
      %v1341 = vmul.f32 %v1335, %v1041
      %v1342 = vmul.f32 %v1339, %v369
      %v1343 = vmul.f32 %v1340, %v370
      %v1344 = vmul.f32 %v1341, %v371
      %v1345 = vmul.f32 %v1098, %v1310
      %v1346 = vmul.f32 %v1103, %v1312
      %v1347 = vmul.f32 %v1108, %v1314
      %v1348 = vmul.f32 %v1345, %v287
      %v1349 = vmul.f32 %v1346, %v288
      %v1350 = vmul.f32 %v1347, %v289
      %v1351 = vmul.f32 %v1232, %v287
      %v1352 = vmul.f32 %v1237, %v288
      %v1353 = vmul.f32 %v1242, %v289
      %1354 = vadd.xlane.f32.xlu0 %v1351
      %v1355 = vpop.xlane.xlu0 %1354
      %1356 = vadd.xlane.f32.xlu0 %v1352
      %v1357 = vpop.xlane.xlu0 %1356
      %v1358 = vsel %vm304, %v1353, 0.0
      %1359 = vadd.xlane.f32.xlu0 %v1358
      %v1360 = vpop.xlane.xlu0 %1359
      %v1361 = vrcp.pop 122.0
      %v1362 = vmul.f32 %v1355, %v1361
      %v1363 = vmul.f32 %v1357, %v1361
      %v1364 = vmul.f32 %v1360, %v1361
      %v1365 = vmax.f32 %v1362, 0.0
      %v1366 = vmax.f32 %v1363, 0.0
      %v1367 = vmax.f32 %v1364, 0.0
      %v1368 = vxor.u32 %v1365, 2147483648
      %v1369 = vxor.u32 %v1366, 2147483648
      %v1370 = vxor.u32 %v1367, 2147483648
      %v1371 = vmul.f32 %v1368, 1.442695
      %v1372 = vpow.pop %v1371
      %v1373 = vmul.f32 %v1369, 1.442695
      %v1374 = vpow.pop %v1373
      %v1375 = vmul.f32 %v1370, 1.442695
      %v1376 = vpow.pop %v1375
      %v1377 = vadd.f32 %v1372, 1.0
      %v1378 = vadd.f32 %v1374, 1.0
      %v1379 = vadd.f32 %v1376, 1.0
      %v1380 = vrcp.pop %v1377
      %v1381 = vmul.f32 1.0, %v1380
      %v1382 = vrcp.pop %v1378
      %v1383 = vmul.f32 1.0, %v1382
      %v1384 = vrcp.pop %v1379
      %v1385 = vmul.f32 1.0, %v1384
      %v1386 = vadd.f32 %v1381, %v294
      %v1387 = vadd.f32 %v1383, %v295
      %v1388 = vadd.f32 %v1385, %v296
      %1390 = vset.pattern.permute.xlu0 2
      %1391 = vperm.xlu0 %1390, %v1386
      %v1392 = vpop.permute.xlu0 %1391
      %1395 = vset.pattern.permute.xlu0 2
      %1396 = vperm.xlu0 %1395, %v1387
      %v1397 = vpop.permute.xlu0 %1396
      %1400 = vset.pattern.permute.xlu0 2
      %1401 = vperm.xlu0 %1400, %v1388
      %v1402 = vpop.permute.xlu0 %1401
      %v1404 = vmul.f32 %v1392, %v369
      %v1405 = vmul.f32 %v1397, %v370
      %v1406 = vmul.f32 %v1402, %v371
      %v1407 = vmul.f32 %v1404, %v1310
      %v1408 = vmul.f32 %v1405, %v1312
      %v1409 = vmul.f32 %v1406, %v1314
      %v1410 = vadd.f32 %v1407, %v300
      %v1411 = vadd.f32 %v1408, %v301
      %v1412 = vadd.f32 %v1409, %v302
      %1413 = vadd.xlane.f32.xlu0 %v1410
      %v1414 = vpop.xlane.xlu0 %1413
      %1415 = vadd.xlane.f32.xlu0 %v1411
      %v1416 = vpop.xlane.xlu0 %1415
      %v1417 = vsel %vm304, %v1412, 0.0
      %1418 = vadd.xlane.f32.xlu0 %v1417
      %v1419 = vpop.xlane.xlu0 %1418
      %v1420 = vlaneseq
      %v1421 = vand.u32 %v1420, 127
      %1422 = vrot.lane.b32.xlu0 %v1336, 1
      %v1423 = vpop.permute.xlu0 %1422
      %1424 = vrot.lane.b32.xlu0 %v1337, 1
      %v1425 = vpop.permute.xlu0 %1424
      %1426 = vrot.lane.b32.xlu0 %v1338, 1
      %v1427 = vpop.permute.xlu0 %1426
      %1428 = vrot.lane.b32.xlu0 %v1342, 1
      %v1429 = vpop.permute.xlu0 %1428
      %1430 = vrot.lane.b32.xlu0 %v1343, 1
      %v1431 = vpop.permute.xlu0 %1430
      %1432 = vrot.lane.b32.xlu0 %v1344, 1
      %v1433 = vpop.permute.xlu0 %1432
      %vm1434 = vcmp.ge.s32.totalorder %v1421, 1
      %v1435 = vsel %vm1434, %v1429, 0.0
      %v1436 = vsel %vm1434, %v1431, 0.0
      %v1437 = vsel %vm1434, %v1433, 0.0
      %v1438 = vmul.f32 %v1336, %v1435
      %v1439 = vmul.f32 %v1337, %v1436
      %v1440 = vmul.f32 %v1338, %v1437
      %v1441 = vadd.f32 %v1438, %v1342
      %v1442 = vadd.f32 %v1439, %v1343
      %v1443 = vadd.f32 %v1440, %v1344
      %v1444 = vsel %vm1434, %v1423, 1.0
      %v1445 = vsel %vm1434, %v1425, 1.0
      %v1446 = vsel %vm1434, %v1427, 1.0
      %v1447 = vmul.f32 %v1336, %v1444
      %v1448 = vmul.f32 %v1337, %v1445
      %v1449 = vmul.f32 %v1338, %v1446
      %1450 = vrot.lane.b32.xlu0 %v1447, 2
      %v1451 = vpop.permute.xlu0 %1450
      %1452 = vrot.lane.b32.xlu0 %v1448, 2
      %v1453 = vpop.permute.xlu0 %1452
      %1454 = vrot.lane.b32.xlu0 %v1449, 2
      %v1455 = vpop.permute.xlu0 %1454
      %1456 = vrot.lane.b32.xlu0 %v1441, 2
      %v1457 = vpop.permute.xlu0 %1456
      %1458 = vrot.lane.b32.xlu0 %v1442, 2
      %v1459 = vpop.permute.xlu0 %1458
      %1460 = vrot.lane.b32.xlu0 %v1443, 2
      %v1461 = vpop.permute.xlu0 %1460
      %vm1462 = vcmp.ge.s32.totalorder %v1421, 2
      %v1463 = vsel %vm1462, %v1457, 0.0
      %v1464 = vsel %vm1462, %v1459, 0.0
      %v1465 = vsel %vm1462, %v1461, 0.0
      %v1466 = vmul.f32 %v1447, %v1463
      %v1467 = vmul.f32 %v1448, %v1464
      %v1468 = vmul.f32 %v1449, %v1465
      %v1469 = vadd.f32 %v1466, %v1441
      %v1470 = vadd.f32 %v1467, %v1442
      %v1471 = vadd.f32 %v1468, %v1443
      %v1472 = vsel %vm1462, %v1451, 1.0
      %v1473 = vsel %vm1462, %v1453, 1.0
      %v1474 = vsel %vm1462, %v1455, 1.0
      %v1475 = vmul.f32 %v1447, %v1472
      %v1476 = vmul.f32 %v1448, %v1473
      %v1477 = vmul.f32 %v1449, %v1474
      %1478 = vrot.lane.b32.xlu0 %v1475, 4
      %v1479 = vpop.permute.xlu0 %1478
      %1480 = vrot.lane.b32.xlu0 %v1476, 4
      %v1481 = vpop.permute.xlu0 %1480
      %1482 = vrot.lane.b32.xlu0 %v1477, 4
      %v1483 = vpop.permute.xlu0 %1482
      %1484 = vrot.lane.b32.xlu0 %v1469, 4
      %v1485 = vpop.permute.xlu0 %1484
      %1486 = vrot.lane.b32.xlu0 %v1470, 4
      %v1487 = vpop.permute.xlu0 %1486
      %1488 = vrot.lane.b32.xlu0 %v1471, 4
      %v1489 = vpop.permute.xlu0 %1488
      %vm1490 = vcmp.ge.s32.totalorder %v1421, 4
      %v1491 = vsel %vm1490, %v1485, 0.0
      %v1492 = vsel %vm1490, %v1487, 0.0
      %v1493 = vsel %vm1490, %v1489, 0.0
      %v1494 = vmul.f32 %v1475, %v1491
      %v1495 = vmul.f32 %v1476, %v1492
      %v1496 = vmul.f32 %v1477, %v1493
      %v1497 = vadd.f32 %v1494, %v1469
      %v1498 = vadd.f32 %v1495, %v1470
      %v1499 = vadd.f32 %v1496, %v1471
      %v1500 = vsel %vm1490, %v1479, 1.0
      %v1501 = vsel %vm1490, %v1481, 1.0
      %v1502 = vsel %vm1490, %v1483, 1.0
      %v1503 = vmul.f32 %v1475, %v1500
      %v1504 = vmul.f32 %v1476, %v1501
      %v1505 = vmul.f32 %v1477, %v1502
      %1506 = vrot.lane.b32.xlu0 %v1503, 8
      %v1507 = vpop.permute.xlu0 %1506
      %1508 = vrot.lane.b32.xlu0 %v1504, 8
      %v1509 = vpop.permute.xlu0 %1508
      %1510 = vrot.lane.b32.xlu0 %v1505, 8
      %v1511 = vpop.permute.xlu0 %1510
      %1512 = vrot.lane.b32.xlu0 %v1497, 8
      %v1513 = vpop.permute.xlu0 %1512
      %1514 = vrot.lane.b32.xlu0 %v1498, 8
      %v1515 = vpop.permute.xlu0 %1514
      %1516 = vrot.lane.b32.xlu0 %v1499, 8
      %v1517 = vpop.permute.xlu0 %1516
      %vm1518 = vcmp.ge.s32.totalorder %v1421, 8
      %v1519 = vsel %vm1518, %v1513, 0.0
      %v1520 = vsel %vm1518, %v1515, 0.0
      %v1521 = vsel %vm1518, %v1517, 0.0
      %v1522 = vmul.f32 %v1503, %v1519
      %v1523 = vmul.f32 %v1504, %v1520
      %v1524 = vmul.f32 %v1505, %v1521
      %v1525 = vadd.f32 %v1522, %v1497
      %v1526 = vadd.f32 %v1523, %v1498
      %v1527 = vadd.f32 %v1524, %v1499
      %v1528 = vsel %vm1518, %v1507, 1.0
      %v1529 = vsel %vm1518, %v1509, 1.0
      %v1530 = vsel %vm1518, %v1511, 1.0
      %v1531 = vmul.f32 %v1503, %v1528
      %v1532 = vmul.f32 %v1504, %v1529
      %v1533 = vmul.f32 %v1505, %v1530
      %1534 = vrot.lane.b32.xlu0 %v1531, 16
      %v1535 = vpop.permute.xlu0 %1534
      %1536 = vrot.lane.b32.xlu0 %v1532, 16
      %v1537 = vpop.permute.xlu0 %1536
      %1538 = vrot.lane.b32.xlu0 %v1533, 16
      %v1539 = vpop.permute.xlu0 %1538
      %1540 = vrot.lane.b32.xlu0 %v1525, 16
      %v1541 = vpop.permute.xlu0 %1540
      %1542 = vrot.lane.b32.xlu0 %v1526, 16
      %v1543 = vpop.permute.xlu0 %1542
      %1544 = vrot.lane.b32.xlu0 %v1527, 16
      %v1545 = vpop.permute.xlu0 %1544
      %vm1546 = vcmp.ge.s32.totalorder %v1421, 16
      %v1547 = vsel %vm1546, %v1541, 0.0
      %v1548 = vsel %vm1546, %v1543, 0.0
      %v1549 = vsel %vm1546, %v1545, 0.0
      %v1550 = vmul.f32 %v1531, %v1547
      %v1551 = vmul.f32 %v1532, %v1548
      %v1552 = vmul.f32 %v1533, %v1549
      %v1553 = vadd.f32 %v1550, %v1525
      %v1554 = vadd.f32 %v1551, %v1526
      %v1555 = vadd.f32 %v1552, %v1527
      %v1556 = vsel %vm1546, %v1535, 1.0
      %v1557 = vsel %vm1546, %v1537, 1.0
      %v1558 = vsel %vm1546, %v1539, 1.0
      %v1559 = vmul.f32 %v1531, %v1556
      %v1560 = vmul.f32 %v1532, %v1557
      %v1561 = vmul.f32 %v1533, %v1558
      %1562 = vrot.lane.b32.xlu0 %v1559, 32
      %v1563 = vpop.permute.xlu0 %1562
      %1564 = vrot.lane.b32.xlu0 %v1560, 32
      %v1565 = vpop.permute.xlu0 %1564
      %1566 = vrot.lane.b32.xlu0 %v1561, 32
      %v1567 = vpop.permute.xlu0 %1566
      %1568 = vrot.lane.b32.xlu0 %v1553, 32
      %v1569 = vpop.permute.xlu0 %1568
      %1570 = vrot.lane.b32.xlu0 %v1554, 32
      %v1571 = vpop.permute.xlu0 %1570
      %1572 = vrot.lane.b32.xlu0 %v1555, 32
      %v1573 = vpop.permute.xlu0 %1572
      %vm1574 = vcmp.ge.s32.totalorder %v1421, 32
      %v1575 = vsel %vm1574, %v1569, 0.0
      %v1576 = vsel %vm1574, %v1571, 0.0
      %v1577 = vsel %vm1574, %v1573, 0.0
      %v1578 = vmul.f32 %v1559, %v1575
      %v1579 = vmul.f32 %v1560, %v1576
      %v1580 = vmul.f32 %v1561, %v1577
      %v1581 = vadd.f32 %v1578, %v1553
      %v1582 = vadd.f32 %v1579, %v1554
      %v1583 = vadd.f32 %v1580, %v1555
      %v1584 = vsel %vm1574, %v1563, 1.0
      %v1585 = vsel %vm1574, %v1565, 1.0
      %v1586 = vsel %vm1574, %v1567, 1.0
      %v1587 = vmul.f32 %v1559, %v1584
      %v1588 = vmul.f32 %v1560, %v1585
      %v1589 = vmul.f32 %v1561, %v1586
      %1590 = vrot.lane.b32.xlu0 %v1581, 64
      %v1591 = vpop.permute.xlu0 %1590
      %1592 = vrot.lane.b32.xlu0 %v1582, 64
      %v1593 = vpop.permute.xlu0 %1592
      %1594 = vrot.lane.b32.xlu0 %v1583, 64
      %v1595 = vpop.permute.xlu0 %1594
      %vm1596 = vcmp.ge.s32.totalorder %v1421, 64
      %v1597 = vsel %vm1596, %v1591, 0.0
      %v1598 = vsel %vm1596, %v1593, 0.0
      %v1599 = vsel %vm1596, %v1595, 0.0
      %v1600 = vmul.f32 %v1587, %v1597
      %v1601 = vmul.f32 %v1588, %v1598
      %v1602 = vmul.f32 %v1589, %v1599
      %v1603 = vadd.f32 %v1600, %v1581
      %v1604 = vadd.f32 %v1601, %v1582
      %v1605 = vadd.f32 %v1602, %v1583
      %v1606 = vmul.f32 %v1348, %v1603
      %v1607 = vmul.f32 %v1349, %v1604
      %v1608 = vmul.f32 %v1350, %v1605
      %1609 = vadd.xlane.f32.xlu0 %v1606
      %v1610 = vpop.xlane.xlu0 %1609
      %1611 = vadd.xlane.f32.xlu0 %v1607
      %v1612 = vpop.xlane.xlu0 %1611
      %v1613 = vsel %vm304, %v1608, 0.0
      %1614 = vadd.xlane.f32.xlu0 %v1613
      %v1615 = vpop.xlane.xlu0 %1614
      %v1616 = vadd.f32 %v1610, %v1414
      %v1617 = vadd.f32 %v1612, %v1416
      %v1618 = vadd.f32 %v1615, %v1419
      %v1619 = vmul.f32 %v1616, %v1361
      %v1620 = vmul.f32 %v1617, %v1361
      %v1621 = vmul.f32 %v1618, %v1361
      %v1622 = vadd.f32 %v1619, %v1620
      %v1623 = vsel %vm304, %v1621, 0.0
      %v1624 = vadd.f32 %v1622, %v1623
      %v1625 = vrot.slane %v1624, 4
      %v1626 = vadd.f32 %v1624, %v1625
      %v1627 = vrot.slane %v1626, 2
      %v1628 = vadd.f32 %v1626, %v1627
      %v1629 = vrot.slane %v1628, 1
      %v1630 = vadd.f32 %v1628, %v1629
      %v1631 = vmul.f32 %v1630, %v313
      %v1632 = vsub.f32 %v1619, %v1631
      %v1633 = vsub.f32 %v1620, %v1631
      %v1634 = vsub.f32 %v1621, %v1631
      %v1635 = vmul.f32 %v1632, %v1632
      %v1636 = vmul.f32 %v1633, %v1633
      %v1637 = vmul.f32 %v1634, %v1634
      %v1638 = vadd.f32 %v1635, %v1636
      %v1639 = vsel %vm304, %v1637, 0.0
      %v1640 = vadd.f32 %v1638, %v1639
      %v1641 = vrot.slane %v1640, 4
      %v1642 = vadd.f32 %v1640, %v1641
      %v1643 = vrot.slane %v1642, 2
      %v1644 = vadd.f32 %v1642, %v1643
      %v1645 = vrot.slane %v1644, 1
      %v1646 = vadd.f32 %v1644, %v1645
      %v1647 = vmul.f32 %v1646, %v313
      %v1648 = vadd.f32 %v1647, 1e-05
      %v1649 = vrsqrt.pop %v1648
      %v1650 = vmul.f32 %v1632, %v1649
      %v1651 = vmul.f32 %v1633, %v1649
      %v1652 = vmul.f32 %v1634, %v1649
      %v1653 = vmul.f32 %v1650, %v294
      %v1654 = vmul.f32 %v1651, %v295
      %v1655 = vmul.f32 %v1652, %v296
      %1656 = vrot.lane.b32.xlu0 %v294, 127
      %v1657 = vpop.permute.xlu0 %1656
      %1658 = vrot.lane.b32.xlu0 %v295, 127
      %v1659 = vpop.permute.xlu0 %1658
      %1660 = vrot.lane.b32.xlu0 %v296, 127
      %v1661 = vpop.permute.xlu0 %1660
      %v1665 = vadd.f32 %v1653, %v1657
      %v1666 = vadd.f32 %v1654, %v1659
      %v1667 = vadd.f32 %v1655, %v1661
      %v1668 = vld [vmem:[%s5] sm:$0xff]
      %1672 = vrot.lane.b32.xlu0 %v1665, 125
      %v1673 = vpop.permute.xlu0 %1672
      %1674 = vrot.lane.b32.xlu0 %v1666, 125
      %v1675 = vpop.permute.xlu0 %1674
      %1676 = vrot.lane.b32.xlu0 %v1667, 125
      %v1677 = vpop.permute.xlu0 %1676
      %1680 = vrot.lane.b32.xlu0 %v294, 123
      %v1681 = vpop.permute.xlu0 %1680
      %v1684 = vsel %vm768, %v1668, 0
      %v1686 = vsel %vm304, %v1677, 0
      %1688 = vmatprep.subr.mxu0 0.0
      %1689 = vmatpush1.msra.mxu0 0.0
      %1690 = vmatprep.subr.mxu0 0.0
      %1691 = vmatpush1.msra.mxu0 0.0
      %1692 = vmatprep.subr.mxu0 0.0
      %1693 = vmatpush1.msra.mxu0 0.0
      %1694 = vmatprep.subr.mxu0 0.0
      %1695 = vmatpush1.msra.mxu0 0.0
      %1696 = vmatprep.subr.mxu0 0.0
      %1697 = vmatpush1.msra.mxu0 0.0
      %1698 = vmatprep.subr.mxu0 0.0
      %1699 = vmatpush1.msra.mxu0 0.0
      %1700 = vmatprep.subr.mxu0 0.0
      %1701 = vmatpush1.msra.mxu0 0.0
      %1702 = vmatprep.subr.mxu0 0.0
      %1703 = vmatpush1.msra.mxu0 0.0
      %1704 = vmatprep.subr.mxu0 0.0
      %1705 = vmatpush1.msra.mxu0 0.0
      %1706 = vmatprep.subr.mxu0 0.0
      %1707 = vmatpush1.msra.mxu0 0.0
      %1708 = vmatprep.subr.mxu0 0.0
      %1709 = vmatpush1.msra.mxu0 0.0
      %1710 = vmatprep.subr.mxu0 0.0
      %1711 = vmatpush1.msra.mxu0 0.0
      %1712 = vmatprep.subr.mxu0 0.0
      %1713 = vmatpush1.msra.mxu0 0.0
      %1714 = vmatprep.subr.mxu0 0.0
      %1715 = vmatpush1.msra.mxu0 %v1686
      %1716 = vmatprep.subr.mxu0 0.0
      %1717 = vmatpush1.msra.mxu0 %v1675
      %1718 = vmatprep.subr.mxu0 0.0
      %1719 = vmatpush1.msra.mxu0 %v1673
      %1720 = vmatprep.subr.mxu0 0.0
      %1721 = vmatpush2.msra.mxu0 0.0
      %1722 = vmatprep.subr.mxu0 0.0
      %1723 = vmatpush2.msra.mxu0 0.0
      %1724 = vmatprep.subr.mxu0 0.0
      %1725 = vmatpush2.msra.mxu0 0.0
      %1726 = vmatprep.subr.mxu0 0.0
      %1727 = vmatpush2.msra.mxu0 0.0
      %1728 = vmatprep.subr.mxu0 0.0
      %1729 = vmatpush2.msra.mxu0 0.0
      %1730 = vmatprep.subr.mxu0 0.0
      %1731 = vmatpush2.msra.mxu0 0.0
      %1732 = vmatprep.subr.mxu0 0.0
      %1733 = vmatpush2.msra.mxu0 0.0
      %1734 = vmatprep.subr.mxu0 0.0
      %1735 = vmatpush2.msra.mxu0 0.0
      %1736 = vmatprep.subr.mxu0 0.0
      %1737 = vmatpush2.msra.mxu0 0.0
      %1738 = vmatprep.subr.mxu0 0.0
      %1739 = vmatpush2.msra.mxu0 0.0
      %1740 = vmatprep.subr.mxu0 0.0
      %1741 = vmatpush2.msra.mxu0 0.0
      %1742 = vmatprep.subr.mxu0 0.0
      %1743 = vmatpush2.msra.mxu0 0.0
      %1744 = vmatprep.subr.mxu0 0.0
      %1745 = vmatpush2.msra.mxu0 0.0
      %1746 = vmatprep.subr.mxu0 0.0
      %1747 = vmatpush2.msra.mxu0 0.0
      %1748 = vmatprep.subr.mxu0 0.0
      %1749 = vmatpush2.msra.mxu0 0.0
      %1750 = vmatprep.subr.mxu0 0.0
      %1751 = vmatpush2.msra.mxu0 0.0
      %1752 = vmatprep.mubr.f32.mxu0 0.0
      %1753 = vmatmul.mubr.f32.gmra.mxu0 %v1684
      %v1754 = vpop.f32.mrf.mxu0
      %v1755 = vadd.f32 %v1681, %v1754
      %v1756 = vpop.f32.mrf.mxu0
      %1757 = vdwg.mxu0
      %v1758 = vmul.f32 %v1755, %v1755
      %v1759 = vmul.f32 %v1755, %v1758
      %v1760 = vmul.f32 %v1759, 0.044715
      %v1761 = vadd.f32 %v1755, %v1760
      %v1762 = vmul.f32 %v1761, 0.7978846
      %v1763 = vtanh.pop %v1762
      %v1764 = vadd.f32 %v1763, 1.0
      %v1765 = vmul.f32 %v1764, 0.5
      %v1766 = vmul.f32 %v1755, %v1765
      %v1767 = vld [vmem:[%s6] sm:$0xff]
      %v1768 = vld [vmem:[%s6 + $0x8] sm:$0xff]
      %v1769 = vld [vmem:[%s6 + $0x10] sm:$0x1f]
      %1770 = vrot.lane.b32.xlu0 %v294, 122
      %v1771 = vpop.permute.xlu0 %1770
      %1772 = vrot.lane.b32.xlu0 %v295, 122
      %v1773 = vpop.permute.xlu0 %1772
      %1774 = vrot.lane.b32.xlu0 %v296, 122
      %v1775 = vpop.permute.xlu0 %1774
      %vm1779 = vcmask 64512
      %v1781 = vsel %vm1779, %v1767, 0
      %v1784 = vsel %vm1779, %v1768, 0
      %v1787 = vsel %vm1779, %v1769, 0
      %1789 = vmatprep.subr.mxu0 0.0
      %1790 = vmatpush1.msra.mxu0 0.0
      %1791 = vmatprep.subr.mxu0 0.0
      %1792 = vmatpush1.msra.mxu0 0.0
      %1793 = vmatprep.subr.mxu0 0.0
      %1794 = vmatpush1.msra.mxu0 0.0
      %1795 = vmatprep.subr.mxu0 0.0
      %1796 = vmatpush1.msra.mxu0 0.0
      %1797 = vmatprep.subr.mxu0 0.0
      %1798 = vmatpush1.msra.mxu0 0.0
      %1799 = vmatprep.subr.mxu0 0.0
      %1800 = vmatpush1.msra.mxu0 0.0
      %1801 = vmatprep.subr.mxu0 0.0
      %1802 = vmatpush1.msra.mxu0 0.0
      %1803 = vmatprep.subr.mxu0 0.0
      %1804 = vmatpush1.msra.mxu0 0.0
      %1805 = vmatprep.subr.mxu0 0.0
      %1806 = vmatpush1.msra.mxu0 0.0
      %1807 = vmatprep.subr.mxu0 0.0
      %1808 = vmatpush1.msra.mxu0 0.0
      %1809 = vmatprep.subr.mxu0 0.0
      %1810 = vmatpush1.msra.mxu0 0.0
      %1811 = vmatprep.subr.mxu0 0.0
      %1812 = vmatpush1.msra.mxu0 0.0
      %1813 = vmatprep.subr.mxu0 0.0
      %1814 = vmatpush1.msra.mxu0 0.0
      %1815 = vmatprep.subr.mxu0 0.0
      %1816 = vmatpush1.msra.mxu0 0.0
      %1817 = vmatprep.subr.mxu0 0.0
      %1818 = vmatpush1.msra.mxu0 0.0
      %1819 = vmatprep.subr.mxu0 0.0
      %1820 = vmatpush1.msra.mxu0 %v1766
      %1821 = vmatprep.subr.mxu0 0.0
      %1822 = vmatpush2.msra.mxu0 0.0
      %1823 = vmatprep.subr.mxu0 0.0
      %1824 = vmatpush2.msra.mxu0 0.0
      %1825 = vmatprep.subr.mxu0 0.0
      %1826 = vmatpush2.msra.mxu0 0.0
      %1827 = vmatprep.subr.mxu0 0.0
      %1828 = vmatpush2.msra.mxu0 0.0
      %1829 = vmatprep.subr.mxu0 0.0
      %1830 = vmatpush2.msra.mxu0 0.0
      %1831 = vmatprep.subr.mxu0 0.0
      %1832 = vmatpush2.msra.mxu0 0.0
      %1833 = vmatprep.subr.mxu0 0.0
      %1834 = vmatpush2.msra.mxu0 0.0
      %1835 = vmatprep.subr.mxu0 0.0
      %1836 = vmatpush2.msra.mxu0 0.0
      %1837 = vmatprep.subr.mxu0 0.0
      %1838 = vmatpush2.msra.mxu0 0.0
      %1839 = vmatprep.subr.mxu0 0.0
      %1840 = vmatpush2.msra.mxu0 0.0
      %1841 = vmatprep.subr.mxu0 0.0
      %1842 = vmatpush2.msra.mxu0 0.0
      %1843 = vmatprep.subr.mxu0 0.0
      %1844 = vmatpush2.msra.mxu0 0.0
      %1845 = vmatprep.subr.mxu0 0.0
      %1846 = vmatpush2.msra.mxu0 0.0
      %1847 = vmatprep.subr.mxu0 0.0
      %1848 = vmatpush2.msra.mxu0 0.0
      %1849 = vmatprep.subr.mxu0 0.0
      %1850 = vmatpush2.msra.mxu0 0.0
      %1851 = vmatprep.subr.mxu0 0.0
      %1852 = vmatpush2.msra.mxu0 0.0
      %1853 = vmatprep.mubr.f32.mxu0 0.0
      %1854 = vmatmul.mubr.f32.gmra.mxu0 %v1781
      %v1855 = vpop.f32.mrf.mxu0
      %v1856 = vadd.f32 %v1771, %v1855
      %v1857 = vpop.f32.mrf.mxu0
      %1858 = vmatprep.mubr.f32.mxu0 0.0
      %1859 = vmatmul.mubr.f32.gmra.mxu0 %v1784
      %v1860 = vpop.f32.mrf.mxu0
      %v1861 = vadd.f32 %v1773, %v1860
      %v1862 = vpop.f32.mrf.mxu0
      %1863 = vmatprep.mubr.f32.mxu0 0.0
      %1864 = vmatmul.mubr.f32.gmra.mxu0 %v1787
      %v1865 = vpop.f32.mrf.mxu0
      %v1866 = vadd.f32 %v1775, %v1865
      %v1867 = vpop.f32.mrf.mxu0
      %1868 = vdwg.mxu0
      %v1869 = vadd.f32 %v1856, %v1619
      %v1870 = vadd.f32 %v1861, %v1620
      %v1871 = vadd.f32 %v1866, %v1621
      %vm1872 = vcmask 7168
      %1873 = vst.msk [vmem:[%s278] sm:$0xff] %vm1872, %v1869
      %1874 = vst.msk [vmem:[%s278 + $0x8] sm:$0xff] %vm1872, %v1870
      %vm1875 = vcmask 4096
      %1876 = vst.msk [vmem:[%s278 + $0x10] sm:$0x1f] %vm1875, %v1871
      %p1877 = scmp.lt.s32.totalorder %s18, 1
      %s1878 = scalar_select %p1877, %s18, 1
      %s1879 = smul.addr %s1878, 3
      %s1880 = smul.addr %s1879, 8
      %s1881 = scalar_lea.vmem %s7, %s1880
      // Predicated region
      $region49: #{stmamba_forward.5} parent=47 // pred_check
        %p1882 = pneg %p188
      $region50: #{stmamba_forward.5} parent=47 // pred_check_branch
        %1884 = sbr.rel (%p1882) target = $region52
      $region51: #{stmamba_forward.5} parent=47 // pred_region
        _
      $region52: #{stmamba_forward.5} parent=47 // pred_fallthru
        _
    $region48: #{stmamba_forward.5} parent=5 // pred_fallthru
      _
    %p1885 = scmp.le.s32.totalorder 2, %s13
    // Predicated region
    $region53: #{stmamba_forward.5} parent=5 // pred_check
      %p1886 = pneg %p1885
    $region54: #{stmamba_forward.5} parent=5 // pred_check_branch
      %1888 = sbr.rel (%p1886) target = $region56
    $region55: #{stmamba_forward.5} parent=5 // pred_region
      %s1889 = ssub.s32 %s13, 2
      // Predicated region
      $region57: #{stmamba_forward.5} parent=55 // pred_check
        %p1890 = pneg %p194
      $region58: #{stmamba_forward.5} parent=55 // pred_check_branch
        %1892 = sbr.rel (%p1890) target = $region60
      $region59: #{stmamba_forward.5} parent=55 // pred_region
        %p1893 = scmp.lt.s32.totalorder %s19, 1
        %s1894 = scalar_select %p1893, %s19, 1
        %s1895 = smul.addr %s1894, 3
        %s1896 = smul.addr %s1895, 8
        %s1897 = scalar_lea.vmem %s7, %s1896
      $region60: #{stmamba_forward.5} parent=55 // pred_fallthru
        _
    $region56: #{stmamba_forward.5} parent=5 // pred_fallthru
      _
  $region6: #{stmamba_forward.5} parent=0 // loop_footer
    %s17 = sadd.s32 1, %s13
  $region7: #{stmamba_forward.5} parent=0 // loop_footer_branch
    %12 = sbr.rel target = $region3
  $region8: #{stmamba_forward.5} parent=0 // loop_exit
    _

</llo_original>
